<compile_context>
chip_gen: v6e
topology: v6e:2x2x1
jax: 0.10.0
libtpu: 0.0.40
codegen_flags: <defaults>
</compile_context>

<pallas_src>
import jax
import jax.numpy as jnp
from jax.experimental import pallas as pl
from jax.experimental.pallas import tpu as pltpu


def _leaky_relu(v, slope=0.2):
    return jnp.where(v > 0, v, slope * v)


def rb_forward(x_nchw, params, *, images_per_step=1):
    """x_nchw: (B, C, H, W); params = (w1, b1, w2, b2, w3, b3, w4, b4) in
    PyTorch layout (w: (Cout, Cin, 3, 3), b: (Cout,)). Returns (B, C, H, W)."""
    B, C, H, W = x_nchw.shape
    bt = images_per_step
    assert B % bt == 0, "batch must be divisible by images_per_step"
    M = bt * H * W            # matmul M dimension (pixels handled per grid step)

    # ---- wrapper-side layout plumbing (free XLA reshapes/transposes) --------
    x = jnp.transpose(x_nchw, (0, 2, 3, 1)).reshape(B, H * W, C)   # (B, HW, C)

    def prep_w(w):
        # (Cout, Cin, 3, 3) -> (9*Cin, Cout) with rows ordered (ky, kx, ci),
        # zero-padded to (10*Cin, Cout) so the folded K is a multiple of 128.
        assert w.shape == (C, C, 3, 3)
        wt = jnp.transpose(w, (2, 3, 1, 0)).reshape(9 * C, C)
        wt = jnp.concatenate([wt, jnp.zeros((C, C), wt.dtype)], axis=0)
        return wt.astype(jnp.bfloat16)                 # bf16-resident in VMEM

    def prep_b(b):
        return b.reshape(1, C).astype(jnp.float32)

    # Per-tap validity masks for "same" padding, built once here (not per grid
    # step).  Tap order is ky-major/kx-minor, matching prep_w's row order.
    ii = jnp.arange(H)[:, None, None]
    jj = jnp.arange(W)[None, :, None]
    tap_masks = []
    for ky in range(3):
        dy = ky - 1
        for kx in range(3):
            dx = kx - 1
            ok = ((ii + dy >= 0) & (ii + dy < H) &
                  (jj + dx >= 0) & (jj + dx < W))                  # (H, W, 1)
            tap_masks.append(jnp.broadcast_to(ok, (H, W, C)).reshape(H * W, C))
    masks = jnp.stack(tap_masks).astype(jnp.bfloat16)              # (9, HW, C)
    if bt > 1:
        masks = jnp.tile(masks, (1, bt, 1))                        # (9, M, C)

    w1, b1, w2, b2, w3, b3, w4, b4 = params
    consts = [masks,
              prep_w(w1), prep_b(b1), prep_w(w2), prep_b(b2),
              prep_w(w3), prep_b(b3), prep_w(w4), prep_b(b4)]

    # ---- fused kernel: 4x {roll/mask im2col -> one K=10*C matmul} -----------
    def kernel(x_ref, m_ref, w1r, b1r, w2r, b2r, w3r, b3r, w4r, b4r, o_ref):
        x_f32 = x_ref[...].reshape(M, C).astype(jnp.float32)

        def conv3x3(act, w_ref, b_ref):
            # act: (M, C) f32.  One 3x3 "same" conv as a single MXU matmul.
            # Column (+-1) shifts first - the only sublane-by-1 rotates; the
            # row shifts below are multiples of W (tile-aligned for W % 8 == 0).
            col = {0: act,
                   1: pltpu.roll(act, M - 1, axis=0),        # v[p] = act[p + 1]
                   -1: pltpu.roll(act, 1, axis=0)}           # v[p] = act[p - 1]
            pieces = []
            for ky in range(3):
                dy = ky - 1
                for kx in range(3):
                    dx = kx - 1
                    v = col[dx]
                    if dy != 0:
                        v = pltpu.roll(v, (-dy * W) % M, axis=0)  # v[p]=act[p+dy*W+dx]
                    v = v.astype(jnp.bfloat16)
                    if not (dy == 0 and dx == 0):
                        v = v * m_ref[ky * 3 + kx]           # zero out-of-image taps
                    pieces.append(v)
            # Tap 10: its weight rows are all-zero, so any finite values do;
            # reuse the centre tap instead of materialising a zeros block.
            pieces.append(pieces[4])
            # Lane-aligned two-level concat: (64|64) -> 128, then 5 x 128 -> 640.
            pairs = [jnp.concatenate(pieces[2 * t:2 * t + 2], axis=-1)
                     for t in range(5)]
            patches = jnp.concatenate(pairs, axis=-1)        # (M, 10*C) bf16
            y = jnp.dot(patches, w_ref[...],                 # bf16 MXU, f32 acc
                        preferred_element_type=jnp.float32)
            return y + b_ref[...]                            # (M, C) f32

        y = _leaky_relu(conv3x3(x_f32, w1r, b1r))            # conv3_1[0] + LReLU
        y = conv3x3(y, w2r, b2r)                             # conv3_1[2]
        y = _leaky_relu(conv3x3(y, w3r, b3r))                # conv3_2[0] + LReLU
        y = conv3x3(y, w4r, b4r)                             # conv3_2[2]

        o_ref[...] = (x_f32 + y).reshape(bt, H * W, C).astype(o_ref.dtype)

    img_spec = pl.BlockSpec((bt, H * W, C), lambda b: (b, 0, 0))

    def resident_spec(shape):       # constant index_map -> stays in VMEM
        return pl.BlockSpec(shape, lambda b: (0,) * len(shape))

    out = pl.pallas_call(
        kernel,
        out_shape=jax.ShapeDtypeStruct((B, H * W, C), x.dtype),
        grid_spec=pltpu.PrefetchScalarGridSpec(
            num_scalar_prefetch=0,
            grid=(B // bt,),
            in_specs=[img_spec] + [resident_spec(c.shape) for c in consts],
            out_specs=img_spec,
        ),
        compiler_params=pltpu.CompilerParams(
            dimension_semantics=("parallel",),
        ),
    )(x, *consts)

    return jnp.transpose(out.reshape(B, H, W, C), (0, 3, 1, 2))   # back to NCHW


# ----------------------------- pure-JAX reference -----------------------------

def _conv3x3_ref(x, w, b):
    y = jax.lax.conv_general_dilated(
        x, w, window_strides=(1, 1), padding=((1, 1), (1, 1)),
        dimension_numbers=("NCHW", "OIHW", "NCHW"),
        precision=jax.lax.Precision.HIGHEST)
    return y + b[None, :, None, None]


def rb_reference(x, params):
    w1, b1, w2, b2, w3, b3, w4, b4 = params
    y = _leaky_relu(_conv3x3_ref(x, w1, b1))
    y = _conv3x3_ref(y, w2, b2)
    y = _leaky_relu(_conv3x3_ref(y, w3, b3))
    y = _conv3x3_ref(y, w4, b4)
    return x + y


if __name__ == "__main__":
    B, C, H, W = 2, 64, 16, 16          # bc=64 matches the module default
    key = jax.random.PRNGKey(0)
    keys = jax.random.split(key, 9)

    x = jax.random.normal(keys[0], (B, C, H, W), dtype=jnp.float32)

    def conv_params(kw, kb):
        w = jax.random.normal(kw, (C, C, 3, 3), dtype=jnp.float32) / (3.0 * (C ** 0.5))
        b = jax.random.normal(kb, (C,), dtype=jnp.float32) * 0.1
        return w, b

    w1, b1 = conv_params(keys[1], keys[2])
    w2, b2 = conv_params(keys[3], keys[4])
    w3, b3 = conv_params(keys[5], keys[6])
    w4, b4 = conv_params(keys[7], keys[8])
    params = (w1, b1, w2, b2, w3, b3, w4, b4)

    out = jax.block_until_ready(rb_forward(x, params))
    ref = rb_reference(x, params)

    assert out.shape == (B, C, H, W), out.shape
    # bf16 MXU operands (f32 accumulation) => ~1e-2 abs error over 4 chained
    # convs; the f32/HIGHEST lax.conv reference remains the ground truth.
    max_err = float(jnp.max(jnp.abs(out - ref)))
    assert jnp.allclose(out, ref, atol=5e-2, rtol=5e-2), max_err
    print("KERNEL_OK")
</pallas_src>

<mosaic_0001>
module attributes {stable_mosaic.version = 11 : i64} {
  func.func @kernel(%arg0: i32, %arg1: memref<1x256x64xf32, #tpu.memory_space<vmem>>, %arg2: memref<9x256x64xbf16, #tpu.memory_space<vmem>>, %arg3: memref<640x64xbf16, #tpu.memory_space<vmem>>, %arg4: memref<1x64xf32, #tpu.memory_space<vmem>>, %arg5: memref<640x64xbf16, #tpu.memory_space<vmem>>, %arg6: memref<1x64xf32, #tpu.memory_space<vmem>>, %arg7: memref<640x64xbf16, #tpu.memory_space<vmem>>, %arg8: memref<1x64xf32, #tpu.memory_space<vmem>>, %arg9: memref<640x64xbf16, #tpu.memory_space<vmem>>, %arg10: memref<1x64xf32, #tpu.memory_space<vmem>>, %arg11: memref<1x256x64xf32, #tpu.memory_space<vmem>>) attributes {dimension_semantics = [#tpu.dimension_semantics<parallel>], iteration_bounds = array<i64: 2>, scalar_prefetch = 0 : i64, scratch_operands = 0 : i64, tpu.core_type = #tpu.core_type<tc>, window_params = [{transform_indices = @transform_0, window_bounds = array<i64: 1, 256, 64>}, {pipeline_mode = #tpu.pipeline_mode<synchronous>, transform_indices = @transform_1, window_bounds = array<i64: 9, 256, 64>}, {pipeline_mode = #tpu.pipeline_mode<synchronous>, transform_indices = @transform_2, window_bounds = array<i64: 640, 64>}, {pipeline_mode = #tpu.pipeline_mode<synchronous>, transform_indices = @transform_3, window_bounds = array<i64: 1, 64>}, {pipeline_mode = #tpu.pipeline_mode<synchronous>, transform_indices = @transform_4, window_bounds = array<i64: 640, 64>}, {pipeline_mode = #tpu.pipeline_mode<synchronous>, transform_indices = @transform_5, window_bounds = array<i64: 1, 64>}, {pipeline_mode = #tpu.pipeline_mode<synchronous>, transform_indices = @transform_6, window_bounds = array<i64: 640, 64>}, {pipeline_mode = #tpu.pipeline_mode<synchronous>, transform_indices = @transform_7, window_bounds = array<i64: 1, 64>}, {pipeline_mode = #tpu.pipeline_mode<synchronous>, transform_indices = @transform_8, window_bounds = array<i64: 640, 64>}, {pipeline_mode = #tpu.pipeline_mode<synchronous>, transform_indices = @transform_9, window_bounds = array<i64: 1, 64>}, {transform_indices = @transform_10, window_bounds = array<i64: 1, 256, 64>}]} {
    %c0 = arith.constant 0 : index
    %c0_0 = arith.constant 0 : index
    %c0_1 = arith.constant 0 : index
    %0 = vector.load %arg1[%c0, %c0_0, %c0_1] : memref<1x256x64xf32, #tpu.memory_space<vmem>>, vector<1x256x64xf32>
    %1 = vector.shape_cast %0 : vector<1x256x64xf32> to vector<256x64xf32>
    %c255_i32 = arith.constant 255 : i32
    %2 = tpu.dynamic_rotate %1 by %c255_i32 dim 0 : vector<256x64xf32>, i32 -> vector<256x64xf32>
    %c1_i32 = arith.constant 1 : i32
    %3 = tpu.dynamic_rotate %1 by %c1_i32 dim 0 : vector<256x64xf32>, i32 -> vector<256x64xf32>
    %c16_i32 = arith.constant 16 : i32
    %4 = tpu.dynamic_rotate %3 by %c16_i32 dim 0 : vector<256x64xf32>, i32 -> vector<256x64xf32>
    %5 = arith.truncf %4 : vector<256x64xf32> to vector<256x64xbf16>
    %c0_2 = arith.constant 0 : index
    %c0_3 = arith.constant 0 : index
    %c0_4 = arith.constant 0 : index
    %6 = vector.load %arg2[%c0_2, %c0_3, %c0_4] : memref<9x256x64xbf16, #tpu.memory_space<vmem>>, vector<1x256x64xbf16>
    %7 = vector.shape_cast %6 : vector<1x256x64xbf16> to vector<256x64xbf16>
    %8 = arith.mulf %5, %7 : vector<256x64xbf16>
    %c16_i32_5 = arith.constant 16 : i32
    %9 = tpu.dynamic_rotate %1 by %c16_i32_5 dim 0 : vector<256x64xf32>, i32 -> vector<256x64xf32>
    %10 = arith.truncf %9 : vector<256x64xf32> to vector<256x64xbf16>
    %c1 = arith.constant 1 : index
    %c0_6 = arith.constant 0 : index
    %c0_7 = arith.constant 0 : index
    %11 = vector.load %arg2[%c1, %c0_6, %c0_7] : memref<9x256x64xbf16, #tpu.memory_space<vmem>>, vector<1x256x64xbf16>
    %12 = vector.shape_cast %11 : vector<1x256x64xbf16> to vector<256x64xbf16>
    %13 = arith.mulf %10, %12 : vector<256x64xbf16>
    %c16_i32_8 = arith.constant 16 : i32
    %14 = tpu.dynamic_rotate %2 by %c16_i32_8 dim 0 : vector<256x64xf32>, i32 -> vector<256x64xf32>
    %15 = arith.truncf %14 : vector<256x64xf32> to vector<256x64xbf16>
    %c2 = arith.constant 2 : index
    %c0_9 = arith.constant 0 : index
    %c0_10 = arith.constant 0 : index
    %16 = vector.load %arg2[%c2, %c0_9, %c0_10] : memref<9x256x64xbf16, #tpu.memory_space<vmem>>, vector<1x256x64xbf16>
    %17 = vector.shape_cast %16 : vector<1x256x64xbf16> to vector<256x64xbf16>
    %18 = arith.mulf %15, %17 : vector<256x64xbf16>
    %19 = arith.truncf %3 : vector<256x64xf32> to vector<256x64xbf16>
    %c3 = arith.constant 3 : index
    %c0_11 = arith.constant 0 : index
    %c0_12 = arith.constant 0 : index
    %20 = vector.load %arg2[%c3, %c0_11, %c0_12] : memref<9x256x64xbf16, #tpu.memory_space<vmem>>, vector<1x256x64xbf16>
    %21 = vector.shape_cast %20 : vector<1x256x64xbf16> to vector<256x64xbf16>
    %22 = arith.mulf %19, %21 : vector<256x64xbf16>
    %23 = arith.truncf %1 : vector<256x64xf32> to vector<256x64xbf16>
    %24 = arith.truncf %2 : vector<256x64xf32> to vector<256x64xbf16>
    %c5 = arith.constant 5 : index
    %c0_13 = arith.constant 0 : index
    %c0_14 = arith.constant 0 : index
    %25 = vector.load %arg2[%c5, %c0_13, %c0_14] : memref<9x256x64xbf16, #tpu.memory_space<vmem>>, vector<1x256x64xbf16>
    %26 = vector.shape_cast %25 : vector<1x256x64xbf16> to vector<256x64xbf16>
    %27 = arith.mulf %24, %26 : vector<256x64xbf16>
    %c240_i32 = arith.constant 240 : i32
    %28 = tpu.dynamic_rotate %3 by %c240_i32 dim 0 : vector<256x64xf32>, i32 -> vector<256x64xf32>
    %29 = arith.truncf %28 : vector<256x64xf32> to vector<256x64xbf16>
    %c6 = arith.constant 6 : index
    %c0_15 = arith.constant 0 : index
    %c0_16 = arith.constant 0 : index
    %30 = vector.load %arg2[%c6, %c0_15, %c0_16] : memref<9x256x64xbf16, #tpu.memory_space<vmem>>, vector<1x256x64xbf16>
    %31 = vector.shape_cast %30 : vector<1x256x64xbf16> to vector<256x64xbf16>
    %32 = arith.mulf %29, %31 : vector<256x64xbf16>
    %c240_i32_17 = arith.constant 240 : i32
    %33 = tpu.dynamic_rotate %1 by %c240_i32_17 dim 0 : vector<256x64xf32>, i32 -> vector<256x64xf32>
    %34 = arith.truncf %33 : vector<256x64xf32> to vector<256x64xbf16>
    %c7 = arith.constant 7 : index
    %c0_18 = arith.constant 0 : index
    %c0_19 = arith.constant 0 : index
    %35 = vector.load %arg2[%c7, %c0_18, %c0_19] : memref<9x256x64xbf16, #tpu.memory_space<vmem>>, vector<1x256x64xbf16>
    %36 = vector.shape_cast %35 : vector<1x256x64xbf16> to vector<256x64xbf16>
    %37 = arith.mulf %34, %36 : vector<256x64xbf16>
    %c240_i32_20 = arith.constant 240 : i32
    %38 = tpu.dynamic_rotate %2 by %c240_i32_20 dim 0 : vector<256x64xf32>, i32 -> vector<256x64xf32>
    %39 = arith.truncf %38 : vector<256x64xf32> to vector<256x64xbf16>
    %c8 = arith.constant 8 : index
    %c0_21 = arith.constant 0 : index
    %c0_22 = arith.constant 0 : index
    %40 = vector.load %arg2[%c8, %c0_21, %c0_22] : memref<9x256x64xbf16, #tpu.memory_space<vmem>>, vector<1x256x64xbf16>
    %41 = vector.shape_cast %40 : vector<1x256x64xbf16> to vector<256x64xbf16>
    %42 = arith.mulf %39, %41 : vector<256x64xbf16>
    %43 = tpu.concatenate %8, %13 in 1 : vector<256x64xbf16>, vector<256x64xbf16> -> vector<256x128xbf16>
    %44 = tpu.concatenate %18, %22 in 1 : vector<256x64xbf16>, vector<256x64xbf16> -> vector<256x128xbf16>
    %45 = tpu.concatenate %23, %27 in 1 : vector<256x64xbf16>, vector<256x64xbf16> -> vector<256x128xbf16>
    %46 = tpu.concatenate %32, %37 in 1 : vector<256x64xbf16>, vector<256x64xbf16> -> vector<256x128xbf16>
    %47 = tpu.concatenate %42, %23 in 1 : vector<256x64xbf16>, vector<256x64xbf16> -> vector<256x128xbf16>
    %48 = tpu.concatenate %43, %44, %45, %46, %47 in 1 : vector<256x128xbf16>, vector<256x128xbf16>, vector<256x128xbf16>, vector<256x128xbf16>, vector<256x128xbf16> -> vector<256x640xbf16>
    %c0_23 = arith.constant 0 : index
    %c0_24 = arith.constant 0 : index
    %49 = vector.load %arg3[%c0_23, %c0_24] : memref<640x64xbf16, #tpu.memory_space<vmem>>, vector<640x64xbf16>
    %cst = arith.constant dense<0.000000e+00> : vector<256x64xf32>
    %50 = tpu.matmul %48, %49, %cst {dimension_numbers = #tpu.dot_dimension_numbers<[1], [0], [0], [1], [0, 0, 1, 1], [], []>} : vector<256x640xbf16>, vector<640x64xbf16>, vector<256x64xf32> -> vector<256x64xf32>
    %c0_25 = arith.constant 0 : index
    %c0_26 = arith.constant 0 : index
    %51 = vector.load %arg4[%c0_25, %c0_26] : memref<1x64xf32, #tpu.memory_space<vmem>>, vector<1x64xf32>
    %52 = vector.broadcast %51 : vector<1x64xf32> to vector<256x64xf32>
    %53 = arith.addf %50, %52 : vector<256x64xf32>
    %cst_27 = arith.constant 0.000000e+00 : f32
    %54 = vector.broadcast %cst_27 : f32 to vector<256x64xf32>
    %55 = arith.cmpf ogt, %53, %54 : vector<256x64xf32>
    %cst_28 = arith.constant 2.000000e-01 : f32
    %56 = vector.broadcast %cst_28 : f32 to vector<256x64xf32>
    %57 = arith.mulf %56, %53 : vector<256x64xf32>
    %58 = arith.select %55, %53, %57 : vector<256x64xi1>, vector<256x64xf32>
    %c255_i32_29 = arith.constant 255 : i32
    %59 = tpu.dynamic_rotate %58 by %c255_i32_29 dim 0 : vector<256x64xf32>, i32 -> vector<256x64xf32>
    %c1_i32_30 = arith.constant 1 : i32
    %60 = tpu.dynamic_rotate %58 by %c1_i32_30 dim 0 : vector<256x64xf32>, i32 -> vector<256x64xf32>
    %c16_i32_31 = arith.constant 16 : i32
    %61 = tpu.dynamic_rotate %60 by %c16_i32_31 dim 0 : vector<256x64xf32>, i32 -> vector<256x64xf32>
    %62 = arith.truncf %61 : vector<256x64xf32> to vector<256x64xbf16>
    %c0_32 = arith.constant 0 : index
    %c0_33 = arith.constant 0 : index
    %c0_34 = arith.constant 0 : index
    %63 = vector.load %arg2[%c0_32, %c0_33, %c0_34] : memref<9x256x64xbf16, #tpu.memory_space<vmem>>, vector<1x256x64xbf16>
    %64 = vector.shape_cast %63 : vector<1x256x64xbf16> to vector<256x64xbf16>
    %65 = arith.mulf %62, %64 : vector<256x64xbf16>
    %c16_i32_35 = arith.constant 16 : i32
    %66 = tpu.dynamic_rotate %58 by %c16_i32_35 dim 0 : vector<256x64xf32>, i32 -> vector<256x64xf32>
    %67 = arith.truncf %66 : vector<256x64xf32> to vector<256x64xbf16>
    %c1_36 = arith.constant 1 : index
    %c0_37 = arith.constant 0 : index
    %c0_38 = arith.constant 0 : index
    %68 = vector.load %arg2[%c1_36, %c0_37, %c0_38] : memref<9x256x64xbf16, #tpu.memory_space<vmem>>, vector<1x256x64xbf16>
    %69 = vector.shape_cast %68 : vector<1x256x64xbf16> to vector<256x64xbf16>
    %70 = arith.mulf %67, %69 : vector<256x64xbf16>
    %c16_i32_39 = arith.constant 16 : i32
    %71 = tpu.dynamic_rotate %59 by %c16_i32_39 dim 0 : vector<256x64xf32>, i32 -> vector<256x64xf32>
    %72 = arith.truncf %71 : vector<256x64xf32> to vector<256x64xbf16>
    %c2_40 = arith.constant 2 : index
    %c0_41 = arith.constant 0 : index
    %c0_42 = arith.constant 0 : index
    %73 = vector.load %arg2[%c2_40, %c0_41, %c0_42] : memref<9x256x64xbf16, #tpu.memory_space<vmem>>, vector<1x256x64xbf16>
    %74 = vector.shape_cast %73 : vector<1x256x64xbf16> to vector<256x64xbf16>
    %75 = arith.mulf %72, %74 : vector<256x64xbf16>
    %76 = arith.truncf %60 : vector<256x64xf32> to vector<256x64xbf16>
    %c3_43 = arith.constant 3 : index
    %c0_44 = arith.constant 0 : index
    %c0_45 = arith.constant 0 : index
    %77 = vector.load %arg2[%c3_43, %c0_44, %c0_45] : memref<9x256x64xbf16, #tpu.memory_space<vmem>>, vector<1x256x64xbf16>
    %78 = vector.shape_cast %77 : vector<1x256x64xbf16> to vector<256x64xbf16>
    %79 = arith.mulf %76, %78 : vector<256x64xbf16>
    %80 = arith.truncf %58 : vector<256x64xf32> to vector<256x64xbf16>
    %81 = arith.truncf %59 : vector<256x64xf32> to vector<256x64xbf16>
    %c5_46 = arith.constant 5 : index
    %c0_47 = arith.constant 0 : index
    %c0_48 = arith.constant 0 : index
    %82 = vector.load %arg2[%c5_46, %c0_47, %c0_48] : memref<9x256x64xbf16, #tpu.memory_space<vmem>>, vector<1x256x64xbf16>
    %83 = vector.shape_cast %82 : vector<1x256x64xbf16> to vector<256x64xbf16>
    %84 = arith.mulf %81, %83 : vector<256x64xbf16>
    %c240_i32_49 = arith.constant 240 : i32
    %85 = tpu.dynamic_rotate %60 by %c240_i32_49 dim 0 : vector<256x64xf32>, i32 -> vector<256x64xf32>
    %86 = arith.truncf %85 : vector<256x64xf32> to vector<256x64xbf16>
    %c6_50 = arith.constant 6 : index
    %c0_51 = arith.constant 0 : index
    %c0_52 = arith.constant 0 : index
    %87 = vector.load %arg2[%c6_50, %c0_51, %c0_52] : memref<9x256x64xbf16, #tpu.memory_space<vmem>>, vector<1x256x64xbf16>
    %88 = vector.shape_cast %87 : vector<1x256x64xbf16> to vector<256x64xbf16>
    %89 = arith.mulf %86, %88 : vector<256x64xbf16>
    %c240_i32_53 = arith.constant 240 : i32
    %90 = tpu.dynamic_rotate %58 by %c240_i32_53 dim 0 : vector<256x64xf32>, i32 -> vector<256x64xf32>
    %91 = arith.truncf %90 : vector<256x64xf32> to vector<256x64xbf16>
    %c7_54 = arith.constant 7 : index
    %c0_55 = arith.constant 0 : index
    %c0_56 = arith.constant 0 : index
    %92 = vector.load %arg2[%c7_54, %c0_55, %c0_56] : memref<9x256x64xbf16, #tpu.memory_space<vmem>>, vector<1x256x64xbf16>
    %93 = vector.shape_cast %92 : vector<1x256x64xbf16> to vector<256x64xbf16>
    %94 = arith.mulf %91, %93 : vector<256x64xbf16>
    %c240_i32_57 = arith.constant 240 : i32
    %95 = tpu.dynamic_rotate %59 by %c240_i32_57 dim 0 : vector<256x64xf32>, i32 -> vector<256x64xf32>
    %96 = arith.truncf %95 : vector<256x64xf32> to vector<256x64xbf16>
    %c8_58 = arith.constant 8 : index
    %c0_59 = arith.constant 0 : index
    %c0_60 = arith.constant 0 : index
    %97 = vector.load %arg2[%c8_58, %c0_59, %c0_60] : memref<9x256x64xbf16, #tpu.memory_space<vmem>>, vector<1x256x64xbf16>
    %98 = vector.shape_cast %97 : vector<1x256x64xbf16> to vector<256x64xbf16>
    %99 = arith.mulf %96, %98 : vector<256x64xbf16>
    %100 = tpu.concatenate %65, %70 in 1 : vector<256x64xbf16>, vector<256x64xbf16> -> vector<256x128xbf16>
    %101 = tpu.concatenate %75, %79 in 1 : vector<256x64xbf16>, vector<256x64xbf16> -> vector<256x128xbf16>
    %102 = tpu.concatenate %80, %84 in 1 : vector<256x64xbf16>, vector<256x64xbf16> -> vector<256x128xbf16>
    %103 = tpu.concatenate %89, %94 in 1 : vector<256x64xbf16>, vector<256x64xbf16> -> vector<256x128xbf16>
    %104 = tpu.concatenate %99, %80 in 1 : vector<256x64xbf16>, vector<256x64xbf16> -> vector<256x128xbf16>
    %105 = tpu.concatenate %100, %101, %102, %103, %104 in 1 : vector<256x128xbf16>, vector<256x128xbf16>, vector<256x128xbf16>, vector<256x128xbf16>, vector<256x128xbf16> -> vector<256x640xbf16>
    %c0_61 = arith.constant 0 : index
    %c0_62 = arith.constant 0 : index
    %106 = vector.load %arg5[%c0_61, %c0_62] : memref<640x64xbf16, #tpu.memory_space<vmem>>, vector<640x64xbf16>
    %cst_63 = arith.constant dense<0.000000e+00> : vector<256x64xf32>
    %107 = tpu.matmul %105, %106, %cst_63 {dimension_numbers = #tpu.dot_dimension_numbers<[1], [0], [0], [1], [0, 0, 1, 1], [], []>} : vector<256x640xbf16>, vector<640x64xbf16>, vector<256x64xf32> -> vector<256x64xf32>
    %c0_64 = arith.constant 0 : index
    %c0_65 = arith.constant 0 : index
    %108 = vector.load %arg6[%c0_64, %c0_65] : memref<1x64xf32, #tpu.memory_space<vmem>>, vector<1x64xf32>
    %109 = vector.broadcast %108 : vector<1x64xf32> to vector<256x64xf32>
    %110 = arith.addf %107, %109 : vector<256x64xf32>
    %c255_i32_66 = arith.constant 255 : i32
    %111 = tpu.dynamic_rotate %110 by %c255_i32_66 dim 0 : vector<256x64xf32>, i32 -> vector<256x64xf32>
    %c1_i32_67 = arith.constant 1 : i32
    %112 = tpu.dynamic_rotate %110 by %c1_i32_67 dim 0 : vector<256x64xf32>, i32 -> vector<256x64xf32>
    %c16_i32_68 = arith.constant 16 : i32
    %113 = tpu.dynamic_rotate %112 by %c16_i32_68 dim 0 : vector<256x64xf32>, i32 -> vector<256x64xf32>
    %114 = arith.truncf %113 : vector<256x64xf32> to vector<256x64xbf16>
    %c0_69 = arith.constant 0 : index
    %c0_70 = arith.constant 0 : index
    %c0_71 = arith.constant 0 : index
    %115 = vector.load %arg2[%c0_69, %c0_70, %c0_71] : memref<9x256x64xbf16, #tpu.memory_space<vmem>>, vector<1x256x64xbf16>
    %116 = vector.shape_cast %115 : vector<1x256x64xbf16> to vector<256x64xbf16>
    %117 = arith.mulf %114, %116 : vector<256x64xbf16>
    %c16_i32_72 = arith.constant 16 : i32
    %118 = tpu.dynamic_rotate %110 by %c16_i32_72 dim 0 : vector<256x64xf32>, i32 -> vector<256x64xf32>
    %119 = arith.truncf %118 : vector<256x64xf32> to vector<256x64xbf16>
    %c1_73 = arith.constant 1 : index
    %c0_74 = arith.constant 0 : index
    %c0_75 = arith.constant 0 : index
    %120 = vector.load %arg2[%c1_73, %c0_74, %c0_75] : memref<9x256x64xbf16, #tpu.memory_space<vmem>>, vector<1x256x64xbf16>
    %121 = vector.shape_cast %120 : vector<1x256x64xbf16> to vector<256x64xbf16>
    %122 = arith.mulf %119, %121 : vector<256x64xbf16>
    %c16_i32_76 = arith.constant 16 : i32
    %123 = tpu.dynamic_rotate %111 by %c16_i32_76 dim 0 : vector<256x64xf32>, i32 -> vector<256x64xf32>
    %124 = arith.truncf %123 : vector<256x64xf32> to vector<256x64xbf16>
    %c2_77 = arith.constant 2 : index
    %c0_78 = arith.constant 0 : index
    %c0_79 = arith.constant 0 : index
    %125 = vector.load %arg2[%c2_77, %c0_78, %c0_79] : memref<9x256x64xbf16, #tpu.memory_space<vmem>>, vector<1x256x64xbf16>
    %126 = vector.shape_cast %125 : vector<1x256x64xbf16> to vector<256x64xbf16>
    %127 = arith.mulf %124, %126 : vector<256x64xbf16>
    %128 = arith.truncf %112 : vector<256x64xf32> to vector<256x64xbf16>
    %c3_80 = arith.constant 3 : index
    %c0_81 = arith.constant 0 : index
    %c0_82 = arith.constant 0 : index
    %129 = vector.load %arg2[%c3_80, %c0_81, %c0_82] : memref<9x256x64xbf16, #tpu.memory_space<vmem>>, vector<1x256x64xbf16>
    %130 = vector.shape_cast %129 : vector<1x256x64xbf16> to vector<256x64xbf16>
    %131 = arith.mulf %128, %130 : vector<256x64xbf16>
    %132 = arith.truncf %110 : vector<256x64xf32> to vector<256x64xbf16>
    %133 = arith.truncf %111 : vector<256x64xf32> to vector<256x64xbf16>
    %c5_83 = arith.constant 5 : index
    %c0_84 = arith.constant 0 : index
    %c0_85 = arith.constant 0 : index
    %134 = vector.load %arg2[%c5_83, %c0_84, %c0_85] : memref<9x256x64xbf16, #tpu.memory_space<vmem>>, vector<1x256x64xbf16>
    %135 = vector.shape_cast %134 : vector<1x256x64xbf16> to vector<256x64xbf16>
    %136 = arith.mulf %133, %135 : vector<256x64xbf16>
    %c240_i32_86 = arith.constant 240 : i32
    %137 = tpu.dynamic_rotate %112 by %c240_i32_86 dim 0 : vector<256x64xf32>, i32 -> vector<256x64xf32>
    %138 = arith.truncf %137 : vector<256x64xf32> to vector<256x64xbf16>
    %c6_87 = arith.constant 6 : index
    %c0_88 = arith.constant 0 : index
    %c0_89 = arith.constant 0 : index
    %139 = vector.load %arg2[%c6_87, %c0_88, %c0_89] : memref<9x256x64xbf16, #tpu.memory_space<vmem>>, vector<1x256x64xbf16>
    %140 = vector.shape_cast %139 : vector<1x256x64xbf16> to vector<256x64xbf16>
    %141 = arith.mulf %138, %140 : vector<256x64xbf16>
    %c240_i32_90 = arith.constant 240 : i32
    %142 = tpu.dynamic_rotate %110 by %c240_i32_90 dim 0 : vector<256x64xf32>, i32 -> vector<256x64xf32>
    %143 = arith.truncf %142 : vector<256x64xf32> to vector<256x64xbf16>
    %c7_91 = arith.constant 7 : index
    %c0_92 = arith.constant 0 : index
    %c0_93 = arith.constant 0 : index
    %144 = vector.load %arg2[%c7_91, %c0_92, %c0_93] : memref<9x256x64xbf16, #tpu.memory_space<vmem>>, vector<1x256x64xbf16>
    %145 = vector.shape_cast %144 : vector<1x256x64xbf16> to vector<256x64xbf16>
    %146 = arith.mulf %143, %145 : vector<256x64xbf16>
    %c240_i32_94 = arith.constant 240 : i32
    %147 = tpu.dynamic_rotate %111 by %c240_i32_94 dim 0 : vector<256x64xf32>, i32 -> vector<256x64xf32>
    %148 = arith.truncf %147 : vector<256x64xf32> to vector<256x64xbf16>
    %c8_95 = arith.constant 8 : index
    %c0_96 = arith.constant 0 : index
    %c0_97 = arith.constant 0 : index
    %149 = vector.load %arg2[%c8_95, %c0_96, %c0_97] : memref<9x256x64xbf16, #tpu.memory_space<vmem>>, vector<1x256x64xbf16>
    %150 = vector.shape_cast %149 : vector<1x256x64xbf16> to vector<256x64xbf16>
    %151 = arith.mulf %148, %150 : vector<256x64xbf16>
    %152 = tpu.concatenate %117, %122 in 1 : vector<256x64xbf16>, vector<256x64xbf16> -> vector<256x128xbf16>
    %153 = tpu.concatenate %127, %131 in 1 : vector<256x64xbf16>, vector<256x64xbf16> -> vector<256x128xbf16>
    %154 = tpu.concatenate %132, %136 in 1 : vector<256x64xbf16>, vector<256x64xbf16> -> vector<256x128xbf16>
    %155 = tpu.concatenate %141, %146 in 1 : vector<256x64xbf16>, vector<256x64xbf16> -> vector<256x128xbf16>
    %156 = tpu.concatenate %151, %132 in 1 : vector<256x64xbf16>, vector<256x64xbf16> -> vector<256x128xbf16>
    %157 = tpu.concatenate %152, %153, %154, %155, %156 in 1 : vector<256x128xbf16>, vector<256x128xbf16>, vector<256x128xbf16>, vector<256x128xbf16>, vector<256x128xbf16> -> vector<256x640xbf16>
    %c0_98 = arith.constant 0 : index
    %c0_99 = arith.constant 0 : index
    %158 = vector.load %arg7[%c0_98, %c0_99] : memref<640x64xbf16, #tpu.memory_space<vmem>>, vector<640x64xbf16>
    %cst_100 = arith.constant dense<0.000000e+00> : vector<256x64xf32>
    %159 = tpu.matmul %157, %158, %cst_100 {dimension_numbers = #tpu.dot_dimension_numbers<[1], [0], [0], [1], [0, 0, 1, 1], [], []>} : vector<256x640xbf16>, vector<640x64xbf16>, vector<256x64xf32> -> vector<256x64xf32>
    %c0_101 = arith.constant 0 : index
    %c0_102 = arith.constant 0 : index
    %160 = vector.load %arg8[%c0_101, %c0_102] : memref<1x64xf32, #tpu.memory_space<vmem>>, vector<1x64xf32>
    %161 = vector.broadcast %160 : vector<1x64xf32> to vector<256x64xf32>
    %162 = arith.addf %159, %161 : vector<256x64xf32>
    %cst_103 = arith.constant 0.000000e+00 : f32
    %163 = vector.broadcast %cst_103 : f32 to vector<256x64xf32>
    %164 = arith.cmpf ogt, %162, %163 : vector<256x64xf32>
    %cst_104 = arith.constant 2.000000e-01 : f32
    %165 = vector.broadcast %cst_104 : f32 to vector<256x64xf32>
    %166 = arith.mulf %165, %162 : vector<256x64xf32>
    %167 = arith.select %164, %162, %166 : vector<256x64xi1>, vector<256x64xf32>
    %c255_i32_105 = arith.constant 255 : i32
    %168 = tpu.dynamic_rotate %167 by %c255_i32_105 dim 0 : vector<256x64xf32>, i32 -> vector<256x64xf32>
    %c1_i32_106 = arith.constant 1 : i32
    %169 = tpu.dynamic_rotate %167 by %c1_i32_106 dim 0 : vector<256x64xf32>, i32 -> vector<256x64xf32>
    %c16_i32_107 = arith.constant 16 : i32
    %170 = tpu.dynamic_rotate %169 by %c16_i32_107 dim 0 : vector<256x64xf32>, i32 -> vector<256x64xf32>
    %171 = arith.truncf %170 : vector<256x64xf32> to vector<256x64xbf16>
    %c0_108 = arith.constant 0 : index
    %c0_109 = arith.constant 0 : index
    %c0_110 = arith.constant 0 : index
    %172 = vector.load %arg2[%c0_108, %c0_109, %c0_110] : memref<9x256x64xbf16, #tpu.memory_space<vmem>>, vector<1x256x64xbf16>
    %173 = vector.shape_cast %172 : vector<1x256x64xbf16> to vector<256x64xbf16>
    %174 = arith.mulf %171, %173 : vector<256x64xbf16>
    %c16_i32_111 = arith.constant 16 : i32
    %175 = tpu.dynamic_rotate %167 by %c16_i32_111 dim 0 : vector<256x64xf32>, i32 -> vector<256x64xf32>
    %176 = arith.truncf %175 : vector<256x64xf32> to vector<256x64xbf16>
    %c1_112 = arith.constant 1 : index
    %c0_113 = arith.constant 0 : index
    %c0_114 = arith.constant 0 : index
    %177 = vector.load %arg2[%c1_112, %c0_113, %c0_114] : memref<9x256x64xbf16, #tpu.memory_space<vmem>>, vector<1x256x64xbf16>
    %178 = vector.shape_cast %177 : vector<1x256x64xbf16> to vector<256x64xbf16>
    %179 = arith.mulf %176, %178 : vector<256x64xbf16>
    %c16_i32_115 = arith.constant 16 : i32
    %180 = tpu.dynamic_rotate %168 by %c16_i32_115 dim 0 : vector<256x64xf32>, i32 -> vector<256x64xf32>
    %181 = arith.truncf %180 : vector<256x64xf32> to vector<256x64xbf16>
    %c2_116 = arith.constant 2 : index
    %c0_117 = arith.constant 0 : index
    %c0_118 = arith.constant 0 : index
    %182 = vector.load %arg2[%c2_116, %c0_117, %c0_118] : memref<9x256x64xbf16, #tpu.memory_space<vmem>>, vector<1x256x64xbf16>
    %183 = vector.shape_cast %182 : vector<1x256x64xbf16> to vector<256x64xbf16>
    %184 = arith.mulf %181, %183 : vector<256x64xbf16>
    %185 = arith.truncf %169 : vector<256x64xf32> to vector<256x64xbf16>
    %c3_119 = arith.constant 3 : index
    %c0_120 = arith.constant 0 : index
    %c0_121 = arith.constant 0 : index
    %186 = vector.load %arg2[%c3_119, %c0_120, %c0_121] : memref<9x256x64xbf16, #tpu.memory_space<vmem>>, vector<1x256x64xbf16>
    %187 = vector.shape_cast %186 : vector<1x256x64xbf16> to vector<256x64xbf16>
    %188 = arith.mulf %185, %187 : vector<256x64xbf16>
    %189 = arith.truncf %167 : vector<256x64xf32> to vector<256x64xbf16>
    %190 = arith.truncf %168 : vector<256x64xf32> to vector<256x64xbf16>
    %c5_122 = arith.constant 5 : index
    %c0_123 = arith.constant 0 : index
    %c0_124 = arith.constant 0 : index
    %191 = vector.load %arg2[%c5_122, %c0_123, %c0_124] : memref<9x256x64xbf16, #tpu.memory_space<vmem>>, vector<1x256x64xbf16>
    %192 = vector.shape_cast %191 : vector<1x256x64xbf16> to vector<256x64xbf16>
    %193 = arith.mulf %190, %192 : vector<256x64xbf16>
    %c240_i32_125 = arith.constant 240 : i32
    %194 = tpu.dynamic_rotate %169 by %c240_i32_125 dim 0 : vector<256x64xf32>, i32 -> vector<256x64xf32>
    %195 = arith.truncf %194 : vector<256x64xf32> to vector<256x64xbf16>
    %c6_126 = arith.constant 6 : index
    %c0_127 = arith.constant 0 : index
    %c0_128 = arith.constant 0 : index
    %196 = vector.load %arg2[%c6_126, %c0_127, %c0_128] : memref<9x256x64xbf16, #tpu.memory_space<vmem>>, vector<1x256x64xbf16>
    %197 = vector.shape_cast %196 : vector<1x256x64xbf16> to vector<256x64xbf16>
    %198 = arith.mulf %195, %197 : vector<256x64xbf16>
    %c240_i32_129 = arith.constant 240 : i32
    %199 = tpu.dynamic_rotate %167 by %c240_i32_129 dim 0 : vector<256x64xf32>, i32 -> vector<256x64xf32>
    %200 = arith.truncf %199 : vector<256x64xf32> to vector<256x64xbf16>
    %c7_130 = arith.constant 7 : index
    %c0_131 = arith.constant 0 : index
    %c0_132 = arith.constant 0 : index
    %201 = vector.load %arg2[%c7_130, %c0_131, %c0_132] : memref<9x256x64xbf16, #tpu.memory_space<vmem>>, vector<1x256x64xbf16>
    %202 = vector.shape_cast %201 : vector<1x256x64xbf16> to vector<256x64xbf16>
    %203 = arith.mulf %200, %202 : vector<256x64xbf16>
    %c240_i32_133 = arith.constant 240 : i32
    %204 = tpu.dynamic_rotate %168 by %c240_i32_133 dim 0 : vector<256x64xf32>, i32 -> vector<256x64xf32>
    %205 = arith.truncf %204 : vector<256x64xf32> to vector<256x64xbf16>
    %c8_134 = arith.constant 8 : index
    %c0_135 = arith.constant 0 : index
    %c0_136 = arith.constant 0 : index
    %206 = vector.load %arg2[%c8_134, %c0_135, %c0_136] : memref<9x256x64xbf16, #tpu.memory_space<vmem>>, vector<1x256x64xbf16>
    %207 = vector.shape_cast %206 : vector<1x256x64xbf16> to vector<256x64xbf16>
    %208 = arith.mulf %205, %207 : vector<256x64xbf16>
    %209 = tpu.concatenate %174, %179 in 1 : vector<256x64xbf16>, vector<256x64xbf16> -> vector<256x128xbf16>
    %210 = tpu.concatenate %184, %188 in 1 : vector<256x64xbf16>, vector<256x64xbf16> -> vector<256x128xbf16>
    %211 = tpu.concatenate %189, %193 in 1 : vector<256x64xbf16>, vector<256x64xbf16> -> vector<256x128xbf16>
    %212 = tpu.concatenate %198, %203 in 1 : vector<256x64xbf16>, vector<256x64xbf16> -> vector<256x128xbf16>
    %213 = tpu.concatenate %208, %189 in 1 : vector<256x64xbf16>, vector<256x64xbf16> -> vector<256x128xbf16>
    %214 = tpu.concatenate %209, %210, %211, %212, %213 in 1 : vector<256x128xbf16>, vector<256x128xbf16>, vector<256x128xbf16>, vector<256x128xbf16>, vector<256x128xbf16> -> vector<256x640xbf16>
    %c0_137 = arith.constant 0 : index
    %c0_138 = arith.constant 0 : index
    %215 = vector.load %arg9[%c0_137, %c0_138] : memref<640x64xbf16, #tpu.memory_space<vmem>>, vector<640x64xbf16>
    %cst_139 = arith.constant dense<0.000000e+00> : vector<256x64xf32>
    %216 = tpu.matmul %214, %215, %cst_139 {dimension_numbers = #tpu.dot_dimension_numbers<[1], [0], [0], [1], [0, 0, 1, 1], [], []>} : vector<256x640xbf16>, vector<640x64xbf16>, vector<256x64xf32> -> vector<256x64xf32>
    %c0_140 = arith.constant 0 : index
    %c0_141 = arith.constant 0 : index
    %217 = vector.load %arg10[%c0_140, %c0_141] : memref<1x64xf32, #tpu.memory_space<vmem>>, vector<1x64xf32>
    %218 = vector.broadcast %217 : vector<1x64xf32> to vector<256x64xf32>
    %219 = arith.addf %216, %218 : vector<256x64xf32>
    %220 = arith.addf %1, %219 : vector<256x64xf32>
    %221 = vector.shape_cast %220 : vector<256x64xf32> to vector<1x256x64xf32>
    %c0_142 = arith.constant 0 : index
    %c0_143 = arith.constant 0 : index
    %c0_144 = arith.constant 0 : index
    %222 = vector.load %arg11[%c0_142, %c0_143, %c0_144] : memref<1x256x64xf32, #tpu.memory_space<vmem>>, vector<1x256x64xf32>
    tpu.vector_store %arg11[%c0_142, %c0_143, %c0_144], %221 {strides = array<i32>} : memref<1x256x64xf32, #tpu.memory_space<vmem>>, vector<1x256x64xf32>,
    return
  }
  func.func @transform_0(%arg0: i32) -> (i32, i32, i32) {
    %c0_i32 = arith.constant 0 : i32
    %c0_i32_0 = arith.constant 0 : i32
    %c0_i32_1 = arith.constant 0 : i32
    return %arg0, %c0_i32, %c0_i32_0 : i32, i32, i32
  }
  func.func @transform_1(%arg0: i32) -> (i32, i32, i32) {
    %c0_i32 = arith.constant 0 : i32
    %c0_i32_0 = arith.constant 0 : i32
    %c0_i32_1 = arith.constant 0 : i32
    %c0_i32_2 = arith.constant 0 : i32
    return %c0_i32, %c0_i32_0, %c0_i32_1 : i32, i32, i32
  }
  func.func @transform_2(%arg0: i32) -> (i32, i32) {
    %c0_i32 = arith.constant 0 : i32
    %c0_i32_0 = arith.constant 0 : i32
    %c0_i32_1 = arith.constant 0 : i32
    return %c0_i32, %c0_i32_0 : i32, i32
  }
  func.func @transform_3(%arg0: i32) -> (i32, i32) {
    %c0_i32 = arith.constant 0 : i32
    %c0_i32_0 = arith.constant 0 : i32
    %c0_i32_1 = arith.constant 0 : i32
    return %c0_i32, %c0_i32_0 : i32, i32
  }
  func.func @transform_4(%arg0: i32) -> (i32, i32) {
    %c0_i32 = arith.constant 0 : i32
    %c0_i32_0 = arith.constant 0 : i32
    %c0_i32_1 = arith.constant 0 : i32
    return %c0_i32, %c0_i32_0 : i32, i32
  }
  func.func @transform_5(%arg0: i32) -> (i32, i32) {
    %c0_i32 = arith.constant 0 : i32
    %c0_i32_0 = arith.constant 0 : i32
    %c0_i32_1 = arith.constant 0 : i32
    return %c0_i32, %c0_i32_0 : i32, i32
  }
  func.func @transform_6(%arg0: i32) -> (i32, i32) {
    %c0_i32 = arith.constant 0 : i32
    %c0_i32_0 = arith.constant 0 : i32
    %c0_i32_1 = arith.constant 0 : i32
    return %c0_i32, %c0_i32_0 : i32, i32
  }
  func.func @transform_7(%arg0: i32) -> (i32, i32) {
    %c0_i32 = arith.constant 0 : i32
    %c0_i32_0 = arith.constant 0 : i32
    %c0_i32_1 = arith.constant 0 : i32
    return %c0_i32, %c0_i32_0 : i32, i32
  }
  func.func @transform_8(%arg0: i32) -> (i32, i32) {
    %c0_i32 = arith.constant 0 : i32
    %c0_i32_0 = arith.constant 0 : i32
    %c0_i32_1 = arith.constant 0 : i32
    return %c0_i32, %c0_i32_0 : i32, i32
  }
  func.func @transform_9(%arg0: i32) -> (i32, i32) {
    %c0_i32 = arith.constant 0 : i32
    %c0_i32_0 = arith.constant 0 : i32
    %c0_i32_1 = arith.constant 0 : i32
    return %c0_i32, %c0_i32_0 : i32, i32
  }
  func.func @transform_10(%arg0: i32) -> (i32, i32, i32) {
    %c0_i32 = arith.constant 0 : i32
    %c0_i32_0 = arith.constant 0 : i32
    %c0_i32_1 = arith.constant 0 : i32
    return %arg0, %c0_i32, %c0_i32_0 : i32, i32, i32
  }
}

</mosaic_0001>

<llo_original>
// kernel: tpu_custom_call.1
$region0: #{tpu_custom_call.1}
  #allocation0 [shape = 'u32[]', space=smem, size = 0x4, offset = 0x4, fixed_abs, tag = 'smem constant byte address 0x4 - core index']
  #allocation1 [shape = 'u32[144,128]{1,0:T(1,128)}', space=vmem, size = 0x12000, scoped, tag = 'internal scratch']
  %s0 = inlined_call_operand.vmem [shape: f32[2,256,64], index: 0, kind: input, shape index: {}]
  %s1 = inlined_call_operand.vmem [shape: bf16[9,256,64], index: 1, kind: input, shape index: {}]
  %s2 = inlined_call_operand.vmem [shape: bf16[640,64], index: 2, kind: input, shape index: {}]
  %s3 = inlined_call_operand.vmem [shape: f32[1,64], index: 3, kind: input, shape index: {}]
  %s4 = inlined_call_operand.vmem [shape: bf16[640,64], index: 4, kind: input, shape index: {}]
  %s5 = inlined_call_operand.vmem [shape: f32[1,64], index: 5, kind: input, shape index: {}]
  %s6 = inlined_call_operand.vmem [shape: bf16[640,64], index: 6, kind: input, shape index: {}]
  %s7 = inlined_call_operand.vmem [shape: f32[1,64], index: 7, kind: input, shape index: {}]
  %s8 = inlined_call_operand.vmem [shape: bf16[640,64], index: 8, kind: input, shape index: {}]
  %s9 = inlined_call_operand.vmem [shape: f32[1,64], index: 9, kind: input, shape index: {}]
  %s10 = inlined_call_operand.vmem [shape: f32[2,256,64], index: 10, kind: output, shape index: {}]
  %s11 = sld [smem:[#allocation0]]
  $region73: #{tpu_custom_call.1} parent=0
    _
  %s13 = ssub.s32 1, %s11
  %s14 = scalar_select 0, %s13, %s11
  loop: start=0, step=1, limit=4
  $region2: #{tpu_custom_call.1} parent=0 // loop_pre_header
    _
  $region3: #{tpu_custom_call.1} parent=0 // loop_header
    %s16 = sphi 0, %s20
    %p17 = scmp.ge.s32.totalorder %s16, 4
    %s26 = sphi 0, %s28
    %s29 = sphi 0, %s26
    %s30 = sphi 0, %s29
    %s46 = sphi 0, %s30
    %s50 = sphi 0, %s50
    %s52 = sphi 0, %s50
    %s53 = sphi 0, %s52
    %s67 = sphi 0, %s53
    %s71 = sphi 0, %s71
    %s73 = sphi 0, %s71
    %s74 = sphi 0, %s73
    %s88 = sphi 0, %s74
    %s92 = sphi 0, %s92
    %s94 = sphi 0, %s92
    %s95 = sphi 0, %s94
    %s109 = sphi 0, %s95
    %s113 = sphi 0, %s113
    %s115 = sphi 0, %s113
    %s116 = sphi 0, %s115
    %s130 = sphi 0, %s116
    %s134 = sphi 0, %s134
    %s136 = sphi 0, %s134
    %s137 = sphi 0, %s136
    %s151 = sphi 0, %s137
    %s155 = sphi 0, %s155
    %s157 = sphi 0, %s155
    %s158 = sphi 0, %s157
    %s172 = sphi 0, %s158
    %s176 = sphi 0, %s176
    %s178 = sphi 0, %s176
    %s179 = sphi 0, %s178
    %s193 = sphi 0, %s179
    %s197 = sphi 0, %s197
    %s199 = sphi 0, %s197
    %s200 = sphi 0, %s199
    %s214 = sphi 0, %s200
    %s218 = sphi 0, %s218
    %s220 = sphi 0, %s218
    %s221 = sphi 0, %s220
    %s235 = sphi 0, %s221
    %s241 = sphi 0, %s243
    %s244 = sphi 0, %s241
    %s245 = sphi 0, %s244
    %s261 = sphi 0, %s245
  $region4: #{tpu_custom_call.1} parent=0 // loop_header_branch
    %19 = sbr.rel (%p17) target = $region8
  $region5: #{tpu_custom_call.1} parent=0 // loop_body
    %s21 = ssub.s32 %s16, 1
    %s22 = ssub.s32 %s16, 2
    %s23 = sadd.s32 %s16, 1
    %s24 = ssub.s32 %s16, %s23
    %p25 = scmp.eq.s32.totalorder %s24, 0
    %s27 = sadd.s32 %s26, 1
    %s28 = scalar_select %p25, %s26, %s27
    %p31 = pneg %p25
    %p32 = scmp.eq.s32.totalorder %s16, 1
    %p33 = por %p31, %p32
    %p34 = scmp.ne.s32.totalorder %s26, %s29
    %p35 = scmp.eq.s32.totalorder %s16, 0
    %p36 = por %p34, %p35
    %p37 = scmp.ne.s32.totalorder %s26, %s29
    %p38 = scmp.eq.s32.totalorder %s21, 1
    %p39 = por %p37, %p38
    %p40 = scmp.ne.s32.totalorder %s29, %s30
    %p41 = scmp.eq.s32.totalorder %s21, 0
    %p42 = por %p40, %p41
    %p43 = scmp.ne.s32.totalorder %s29, %s30
    %p44 = scmp.eq.s32.totalorder %s22, 1
    %p45 = por %p43, %p44
    %p47 = scmp.ne.s32.totalorder %s30, %s46
    %p48 = scmp.eq.s32.totalorder %s22, 0
    %p49 = por %p47, %p48
    %s51 = sadd.s32 %s50, 1
    %p54 = scmp.eq.s32.totalorder %s16, 1
    %p55 = scmp.ne.s32.totalorder %s50, %s52
    %p56 = scmp.eq.s32.totalorder %s16, 0
    %p57 = por %p55, %p56
    %p58 = scmp.ne.s32.totalorder %s50, %s52
    %p59 = scmp.eq.s32.totalorder %s21, 1
    %p60 = por %p58, %p59
    %p61 = scmp.ne.s32.totalorder %s52, %s53
    %p62 = scmp.eq.s32.totalorder %s21, 0
    %p63 = por %p61, %p62
    %p64 = scmp.ne.s32.totalorder %s52, %s53
    %p65 = scmp.eq.s32.totalorder %s22, 1
    %p66 = por %p64, %p65
    %p68 = scmp.ne.s32.totalorder %s53, %s67
    %p69 = scmp.eq.s32.totalorder %s22, 0
    %p70 = por %p68, %p69
    %s72 = sadd.s32 %s71, 1
    %p75 = scmp.eq.s32.totalorder %s16, 1
    %p76 = scmp.ne.s32.totalorder %s71, %s73
    %p77 = scmp.eq.s32.totalorder %s16, 0
    %p78 = por %p76, %p77
    %p79 = scmp.ne.s32.totalorder %s71, %s73
    %p80 = scmp.eq.s32.totalorder %s21, 1
    %p81 = por %p79, %p80
    %p82 = scmp.ne.s32.totalorder %s73, %s74
    %p83 = scmp.eq.s32.totalorder %s21, 0
    %p84 = por %p82, %p83
    %p85 = scmp.ne.s32.totalorder %s73, %s74
    %p86 = scmp.eq.s32.totalorder %s22, 1
    %p87 = por %p85, %p86
    %p89 = scmp.ne.s32.totalorder %s74, %s88
    %p90 = scmp.eq.s32.totalorder %s22, 0
    %p91 = por %p89, %p90
    %s93 = sadd.s32 %s92, 1
    %p96 = scmp.eq.s32.totalorder %s16, 1
    %p97 = scmp.ne.s32.totalorder %s92, %s94
    %p98 = scmp.eq.s32.totalorder %s16, 0
    %p99 = por %p97, %p98
    %p100 = scmp.ne.s32.totalorder %s92, %s94
    %p101 = scmp.eq.s32.totalorder %s21, 1
    %p102 = por %p100, %p101
    %p103 = scmp.ne.s32.totalorder %s94, %s95
    %p104 = scmp.eq.s32.totalorder %s21, 0
    %p105 = por %p103, %p104
    %p106 = scmp.ne.s32.totalorder %s94, %s95
    %p107 = scmp.eq.s32.totalorder %s22, 1
    %p108 = por %p106, %p107
    %p110 = scmp.ne.s32.totalorder %s95, %s109
    %p111 = scmp.eq.s32.totalorder %s22, 0
    %p112 = por %p110, %p111
    %s114 = sadd.s32 %s113, 1
    %p117 = scmp.eq.s32.totalorder %s16, 1
    %p118 = scmp.ne.s32.totalorder %s113, %s115
    %p119 = scmp.eq.s32.totalorder %s16, 0
    %p120 = por %p118, %p119
    %p121 = scmp.ne.s32.totalorder %s113, %s115
    %p122 = scmp.eq.s32.totalorder %s21, 1
    %p123 = por %p121, %p122
    %p124 = scmp.ne.s32.totalorder %s115, %s116
    %p125 = scmp.eq.s32.totalorder %s21, 0
    %p126 = por %p124, %p125
    %p127 = scmp.ne.s32.totalorder %s115, %s116
    %p128 = scmp.eq.s32.totalorder %s22, 1
    %p129 = por %p127, %p128
    %p131 = scmp.ne.s32.totalorder %s116, %s130
    %p132 = scmp.eq.s32.totalorder %s22, 0
    %p133 = por %p131, %p132
    %s135 = sadd.s32 %s134, 1
    %p138 = scmp.eq.s32.totalorder %s16, 1
    %p139 = scmp.ne.s32.totalorder %s134, %s136
    %p140 = scmp.eq.s32.totalorder %s16, 0
    %p141 = por %p139, %p140
    %p142 = scmp.ne.s32.totalorder %s134, %s136
    %p143 = scmp.eq.s32.totalorder %s21, 1
    %p144 = por %p142, %p143
    %p145 = scmp.ne.s32.totalorder %s136, %s137
    %p146 = scmp.eq.s32.totalorder %s21, 0
    %p147 = por %p145, %p146
    %p148 = scmp.ne.s32.totalorder %s136, %s137
    %p149 = scmp.eq.s32.totalorder %s22, 1
    %p150 = por %p148, %p149
    %p152 = scmp.ne.s32.totalorder %s137, %s151
    %p153 = scmp.eq.s32.totalorder %s22, 0
    %p154 = por %p152, %p153
    %s156 = sadd.s32 %s155, 1
    %p159 = scmp.eq.s32.totalorder %s16, 1
    %p160 = scmp.ne.s32.totalorder %s155, %s157
    %p161 = scmp.eq.s32.totalorder %s16, 0
    %p162 = por %p160, %p161
    %p163 = scmp.ne.s32.totalorder %s155, %s157
    %p164 = scmp.eq.s32.totalorder %s21, 1
    %p165 = por %p163, %p164
    %p166 = scmp.ne.s32.totalorder %s157, %s158
    %p167 = scmp.eq.s32.totalorder %s21, 0
    %p168 = por %p166, %p167
    %p169 = scmp.ne.s32.totalorder %s157, %s158
    %p170 = scmp.eq.s32.totalorder %s22, 1
    %p171 = por %p169, %p170
    %p173 = scmp.ne.s32.totalorder %s158, %s172
    %p174 = scmp.eq.s32.totalorder %s22, 0
    %p175 = por %p173, %p174
    %s177 = sadd.s32 %s176, 1
    %p180 = scmp.eq.s32.totalorder %s16, 1
    %p181 = scmp.ne.s32.totalorder %s176, %s178
    %p182 = scmp.eq.s32.totalorder %s16, 0
    %p183 = por %p181, %p182
    %p184 = scmp.ne.s32.totalorder %s176, %s178
    %p185 = scmp.eq.s32.totalorder %s21, 1
    %p186 = por %p184, %p185
    %p187 = scmp.ne.s32.totalorder %s178, %s179
    %p188 = scmp.eq.s32.totalorder %s21, 0
    %p189 = por %p187, %p188
    %p190 = scmp.ne.s32.totalorder %s178, %s179
    %p191 = scmp.eq.s32.totalorder %s22, 1
    %p192 = por %p190, %p191
    %p194 = scmp.ne.s32.totalorder %s179, %s193
    %p195 = scmp.eq.s32.totalorder %s22, 0
    %p196 = por %p194, %p195
    %s198 = sadd.s32 %s197, 1
    %p201 = scmp.eq.s32.totalorder %s16, 1
    %p202 = scmp.ne.s32.totalorder %s197, %s199
    %p203 = scmp.eq.s32.totalorder %s16, 0
    %p204 = por %p202, %p203
    %p205 = scmp.ne.s32.totalorder %s197, %s199
    %p206 = scmp.eq.s32.totalorder %s21, 1
    %p207 = por %p205, %p206
    %p208 = scmp.ne.s32.totalorder %s199, %s200
    %p209 = scmp.eq.s32.totalorder %s21, 0
    %p210 = por %p208, %p209
    %p211 = scmp.ne.s32.totalorder %s199, %s200
    %p212 = scmp.eq.s32.totalorder %s22, 1
    %p213 = por %p211, %p212
    %p215 = scmp.ne.s32.totalorder %s200, %s214
    %p216 = scmp.eq.s32.totalorder %s22, 0
    %p217 = por %p215, %p216
    %s219 = sadd.s32 %s218, 1
    %p222 = scmp.eq.s32.totalorder %s16, 1
    %p223 = scmp.ne.s32.totalorder %s218, %s220
    %p224 = scmp.eq.s32.totalorder %s16, 0
    %p225 = por %p223, %p224
    %p226 = scmp.ne.s32.totalorder %s218, %s220
    %p227 = scmp.eq.s32.totalorder %s21, 1
    %p228 = por %p226, %p227
    %p229 = scmp.ne.s32.totalorder %s220, %s221
    %p230 = scmp.eq.s32.totalorder %s21, 0
    %p231 = por %p229, %p230
    %p232 = scmp.ne.s32.totalorder %s220, %s221
    %p233 = scmp.eq.s32.totalorder %s22, 1
    %p234 = por %p232, %p233
    %p236 = scmp.ne.s32.totalorder %s221, %s235
    %p237 = scmp.eq.s32.totalorder %s22, 0
    %p238 = por %p236, %p237
    %s239 = ssub.s32 %s16, %s23
    %p240 = scmp.eq.s32.totalorder %s239, 0
    %s242 = sadd.s32 %s241, 1
    %s243 = scalar_select %p240, %s241, %s242
    %p246 = pneg %p240
    %p247 = scmp.eq.s32.totalorder %s16, 1
    %p248 = por %p246, %p247
    %p249 = scmp.ne.s32.totalorder %s241, %s244
    %p250 = scmp.eq.s32.totalorder %s16, 0
    %p251 = por %p249, %p250
    %p252 = scmp.ne.s32.totalorder %s241, %s244
    %p253 = scmp.eq.s32.totalorder %s21, 1
    %p254 = por %p252, %p253
    %p255 = scmp.ne.s32.totalorder %s244, %s245
    %p256 = scmp.eq.s32.totalorder %s21, 0
    %p257 = por %p255, %p256
    %p258 = scmp.ne.s32.totalorder %s244, %s245
    %p259 = scmp.eq.s32.totalorder %s22, 1
    %p260 = por %p258, %p259
    %p262 = scmp.ne.s32.totalorder %s245, %s261
    %p263 = scmp.eq.s32.totalorder %s22, 0
    %p264 = por %p262, %p263
    %p265 = scmp.le.s32.totalorder 1, %s16
    %p266 = scmp.lt.s32.totalorder %s16, 3
    %p267 = pnand %p265, %p266
    %p268 = pneg %p267
    // Predicated region
    $region9: #{tpu_custom_call.1} parent=5 // pred_check
      _
    $region10: #{tpu_custom_call.1} parent=5 // pred_check_branch
      %270 = sbr.rel (%p267) target = $region12
    $region11: #{tpu_custom_call.1} parent=5 // pred_region
      %s271 = ssub.s32 %s16, 1
      // Predicated region
      $region13: #{tpu_custom_call.1} parent=11 // pred_check
        %p272 = pneg %p63
      $region14: #{tpu_custom_call.1} parent=11 // pred_check_branch
        %274 = sbr.rel (%p272) target = $region16
      $region15: #{tpu_custom_call.1} parent=11 // pred_region
        _
      $region16: #{tpu_custom_call.1} parent=11 // pred_fallthru
        _
      // Predicated region
      $region17: #{tpu_custom_call.1} parent=11 // pred_check
        %p275 = pneg %p84
      $region18: #{tpu_custom_call.1} parent=11 // pred_check_branch
        %277 = sbr.rel (%p275) target = $region20
      $region19: #{tpu_custom_call.1} parent=11 // pred_region
        _
      $region20: #{tpu_custom_call.1} parent=11 // pred_fallthru
        _
      // Predicated region
      $region21: #{tpu_custom_call.1} parent=11 // pred_check
        %p278 = pneg %p105
      $region22: #{tpu_custom_call.1} parent=11 // pred_check_branch
        %280 = sbr.rel (%p278) target = $region24
      $region23: #{tpu_custom_call.1} parent=11 // pred_region
        _
      $region24: #{tpu_custom_call.1} parent=11 // pred_fallthru
        _
      // Predicated region
      $region25: #{tpu_custom_call.1} parent=11 // pred_check
        %p281 = pneg %p126
      $region26: #{tpu_custom_call.1} parent=11 // pred_check_branch
        %283 = sbr.rel (%p281) target = $region28
      $region27: #{tpu_custom_call.1} parent=11 // pred_region
        _
      $region28: #{tpu_custom_call.1} parent=11 // pred_fallthru
        _
      // Predicated region
      $region29: #{tpu_custom_call.1} parent=11 // pred_check
        %p284 = pneg %p147
      $region30: #{tpu_custom_call.1} parent=11 // pred_check_branch
        %286 = sbr.rel (%p284) target = $region32
      $region31: #{tpu_custom_call.1} parent=11 // pred_region
        _
      $region32: #{tpu_custom_call.1} parent=11 // pred_fallthru
        _
      // Predicated region
      $region33: #{tpu_custom_call.1} parent=11 // pred_check
        %p287 = pneg %p168
      $region34: #{tpu_custom_call.1} parent=11 // pred_check_branch
        %289 = sbr.rel (%p287) target = $region36
      $region35: #{tpu_custom_call.1} parent=11 // pred_region
        _
      $region36: #{tpu_custom_call.1} parent=11 // pred_fallthru
        _
      // Predicated region
      $region37: #{tpu_custom_call.1} parent=11 // pred_check
        %p290 = pneg %p189
      $region38: #{tpu_custom_call.1} parent=11 // pred_check_branch
        %292 = sbr.rel (%p290) target = $region40
      $region39: #{tpu_custom_call.1} parent=11 // pred_region
        _
      $region40: #{tpu_custom_call.1} parent=11 // pred_fallthru
        _
      // Predicated region
      $region41: #{tpu_custom_call.1} parent=11 // pred_check
        %p293 = pneg %p210
      $region42: #{tpu_custom_call.1} parent=11 // pred_check_branch
        %295 = sbr.rel (%p293) target = $region44
      $region43: #{tpu_custom_call.1} parent=11 // pred_region
        _
      $region44: #{tpu_custom_call.1} parent=11 // pred_fallthru
        _
      // Predicated region
      $region45: #{tpu_custom_call.1} parent=11 // pred_check
        %p296 = pneg %p231
      $region46: #{tpu_custom_call.1} parent=11 // pred_check_branch
        %298 = sbr.rel (%p296) target = $region48
      $region47: #{tpu_custom_call.1} parent=11 // pred_region
        _
      $region48: #{tpu_custom_call.1} parent=11 // pred_fallthru
        _
    $region12: #{tpu_custom_call.1} parent=5 // pred_fallthru
      _
    %p299 = scmp.lt.s32.totalorder %s16, 2
    // Predicated region
    $region49: #{tpu_custom_call.1} parent=5 // pred_check
      %p300 = pneg %p299
    $region50: #{tpu_custom_call.1} parent=5 // pred_check_branch
      %302 = sbr.rel (%p300) target = $region52
    $region51: #{tpu_custom_call.1} parent=5 // pred_region
      // Predicated region
      $region53: #{tpu_custom_call.1} parent=51 // pred_check
        %p303 = pneg %p36
      $region54: #{tpu_custom_call.1} parent=51 // pred_check_branch
        %305 = sbr.rel (%p303) target = $region56
      $region55: #{tpu_custom_call.1} parent=51 // pred_region
        %p306 = scmp.lt.s32.totalorder %s16, 1
        %s307 = scalar_select %p306, %s16, 1
        %s308 = smul.addr %s307, 32
        %s309 = smul.addr %s308, 8
        %s310 = scalar_lea.vmem %s0, %s309
      $region56: #{tpu_custom_call.1} parent=51 // pred_fallthru
        _
    $region52: #{tpu_custom_call.1} parent=5 // pred_fallthru
      _
    %p311 = scmp.le.s32.totalorder 1, %s16
    %p312 = scmp.lt.s32.totalorder %s16, 3
    %p313 = pnand %p311, %p312
    %p314 = pneg %p313
    // Predicated region
    $region57: #{tpu_custom_call.1} parent=5 // pred_check
      _
    $region58: #{tpu_custom_call.1} parent=5 // pred_check_branch
      %316 = sbr.rel (%p313) target = $region60
    $region59: #{tpu_custom_call.1} parent=5 // pred_region
      %s317 = ssub.s32 %s16, 1
      %p318 = scmp.lt.s32.totalorder %s21, 1
      %s319 = scalar_select %p318, %s21, 1
      %s320 = smul.addr %s319, 32
      %s321 = smul.addr %s320, 8
      %s322 = scalar_lea.vmem %s0, %s321
      %p323 = pneg %p42
      %p324 = pneg %p39
      %p325 = pneg %p63
      %p326 = pneg %p60
      %p327 = pneg %p84
      %p328 = pneg %p81
      %p329 = pneg %p105
      %p330 = pneg %p102
      %p331 = pneg %p126
      %p332 = pneg %p123
      %p333 = pneg %p147
      %p334 = pneg %p144
      %p335 = pneg %p168
      %p336 = pneg %p165
      %p337 = pneg %p189
      %p338 = pneg %p186
      %p339 = pneg %p210
      %p340 = pneg %p207
      %p341 = pneg %p231
      %p342 = pneg %p228
      %p343 = pneg %p257
      %p344 = pneg %p254
      %p345 = scmp.lt.s32.totalorder %s21, 1
      %s346 = scalar_select %p345, %s21, 1
      %s347 = smul.addr %s346, 32
      %s348 = smul.addr %s347, 8
      %s349 = scalar_lea.vmem %s10, %s348
      %p350 = scmp.lt.s32.totalorder %s21, 1
      %s351 = scalar_select %p350, %s21, 1
      %s352 = smul.addr %s351, 32
      %s353 = smul.addr %s352, 8
      %s354 = scalar_lea.vmem %s0, %s353
      %p355 = scmp.lt.s32.totalorder %s21, 1
      %s356 = scalar_select %p355, %s21, 1
      %s357 = smul.addr %s356, 32
      %s358 = smul.addr %s357, 8
      %s359 = scalar_lea.vmem %s10, %s358
      %v361 = vld [vmem:[%s354] sm:$0xff]
      %v362 = vld [vmem:[%s354 + $0x8] sm:$0xff]
      %v363 = vld [vmem:[%s354 + $0x10] sm:$0xff]
      %v364 = vld [vmem:[%s354 + $0x18] sm:$0xff]
      %v365 = vld [vmem:[%s354 + $0x20] sm:$0xff]
      %v366 = vld [vmem:[%s354 + $0x28] sm:$0xff]
      %v367 = vld [vmem:[%s354 + $0x30] sm:$0xff]
      %v368 = vld [vmem:[%s354 + $0x38] sm:$0xff]
      %v369 = vld [vmem:[%s354 + $0x40] sm:$0xff]
      %v370 = vld [vmem:[%s354 + $0x48] sm:$0xff]
      %v371 = vld [vmem:[%s354 + $0x50] sm:$0xff]
      %v372 = vld [vmem:[%s354 + $0x58] sm:$0xff]
      %v373 = vld [vmem:[%s354 + $0x60] sm:$0xff]
      %v374 = vld [vmem:[%s354 + $0x68] sm:$0xff]
      %v375 = vld [vmem:[%s354 + $0x70] sm:$0xff]
      %v376 = vld [vmem:[%s354 + $0x78] sm:$0xff]
      %v377 = vld [vmem:[%s354 + $0x80] sm:$0xff]
      %v378 = vld [vmem:[%s354 + $0x88] sm:$0xff]
      %v379 = vld [vmem:[%s354 + $0x90] sm:$0xff]
      %v380 = vld [vmem:[%s354 + $0x98] sm:$0xff]
      %v381 = vld [vmem:[%s354 + $0xa0] sm:$0xff]
      %v382 = vld [vmem:[%s354 + $0xa8] sm:$0xff]
      %v383 = vld [vmem:[%s354 + $0xb0] sm:$0xff]
      %v384 = vld [vmem:[%s354 + $0xb8] sm:$0xff]
      %v385 = vld [vmem:[%s354 + $0xc0] sm:$0xff]
      %v386 = vld [vmem:[%s354 + $0xc8] sm:$0xff]
      %v387 = vld [vmem:[%s354 + $0xd0] sm:$0xff]
      %v388 = vld [vmem:[%s354 + $0xd8] sm:$0xff]
      %v389 = vld [vmem:[%s354 + $0xe0] sm:$0xff]
      %v390 = vld [vmem:[%s354 + $0xe8] sm:$0xff]
      %v391 = vld [vmem:[%s354 + $0xf0] sm:$0xff]
      %v392 = vld [vmem:[%s354 + $0xf8] sm:$0xff]
      %v393 = vrot.slane %v361, 1
      %v394 = vrot.slane %v362, 1
      %v395 = vrot.slane %v363, 1
      %v396 = vrot.slane %v364, 1
      %v397 = vrot.slane %v365, 1
      %v398 = vrot.slane %v366, 1
      %v399 = vrot.slane %v367, 1
      %v400 = vrot.slane %v368, 1
      %v401 = vrot.slane %v369, 1
      %v402 = vrot.slane %v370, 1
      %v403 = vrot.slane %v371, 1
      %v404 = vrot.slane %v372, 1
      %v405 = vrot.slane %v373, 1
      %v406 = vrot.slane %v374, 1
      %v407 = vrot.slane %v375, 1
      %v408 = vrot.slane %v376, 1
      %v409 = vrot.slane %v377, 1
      %v410 = vrot.slane %v378, 1
      %v411 = vrot.slane %v379, 1
      %v412 = vrot.slane %v380, 1
      %v413 = vrot.slane %v381, 1
      %v414 = vrot.slane %v382, 1
      %v415 = vrot.slane %v383, 1
      %v416 = vrot.slane %v384, 1
      %v417 = vrot.slane %v385, 1
      %v418 = vrot.slane %v386, 1
      %v419 = vrot.slane %v387, 1
      %v420 = vrot.slane %v388, 1
      %v421 = vrot.slane %v389, 1
      %v422 = vrot.slane %v390, 1
      %v423 = vrot.slane %v391, 1
      %v424 = vrot.slane %v392, 1
      %v425 = vlaneseq
      %v426 = vshrl.u32 %v425, 7
      %vm427 = vcmp.lt.s32.totalorder %v426, 7
      %v428 = vsel %vm427, %v423, %v424
      %v429 = vsel %vm427, %v422, %v423
      %v430 = vsel %vm427, %v421, %v422
      %v431 = vsel %vm427, %v420, %v421
      %v432 = vsel %vm427, %v419, %v420
      %v433 = vsel %vm427, %v418, %v419
      %v434 = vsel %vm427, %v417, %v418
      %v435 = vsel %vm427, %v416, %v417
      %v436 = vsel %vm427, %v415, %v416
      %v437 = vsel %vm427, %v414, %v415
      %v438 = vsel %vm427, %v413, %v414
      %v439 = vsel %vm427, %v412, %v413
      %v440 = vsel %vm427, %v411, %v412
      %v441 = vsel %vm427, %v410, %v411
      %v442 = vsel %vm427, %v409, %v410
      %v443 = vsel %vm427, %v408, %v409
      %v444 = vsel %vm427, %v407, %v408
      %v445 = vsel %vm427, %v406, %v407
      %v446 = vsel %vm427, %v405, %v406
      %v447 = vsel %vm427, %v404, %v405
      %v448 = vsel %vm427, %v403, %v404
      %v449 = vsel %vm427, %v402, %v403
      %v450 = vsel %vm427, %v401, %v402
      %v451 = vsel %vm427, %v400, %v401
      %v452 = vsel %vm427, %v399, %v400
      %v453 = vsel %vm427, %v398, %v399
      %v454 = vsel %vm427, %v397, %v398
      %v455 = vsel %vm427, %v396, %v397
      %v456 = vsel %vm427, %v395, %v396
      %v457 = vsel %vm427, %v394, %v395
      %v458 = vsel %vm427, %v393, %v394
      %v459 = vsel %vm427, %v424, %v393
      %v460 = vrot.slane %v361, 7
      %v461 = vrot.slane %v362, 7
      %v462 = vrot.slane %v363, 7
      %v463 = vrot.slane %v364, 7
      %v464 = vrot.slane %v365, 7
      %v465 = vrot.slane %v366, 7
      %v466 = vrot.slane %v367, 7
      %v467 = vrot.slane %v368, 7
      %v468 = vrot.slane %v369, 7
      %v469 = vrot.slane %v370, 7
      %v470 = vrot.slane %v371, 7
      %v471 = vrot.slane %v372, 7
      %v472 = vrot.slane %v373, 7
      %v473 = vrot.slane %v374, 7
      %v474 = vrot.slane %v375, 7
      %v475 = vrot.slane %v376, 7
      %v476 = vrot.slane %v377, 7
      %v477 = vrot.slane %v378, 7
      %v478 = vrot.slane %v379, 7
      %v479 = vrot.slane %v380, 7
      %v480 = vrot.slane %v381, 7
      %v481 = vrot.slane %v382, 7
      %v482 = vrot.slane %v383, 7
      %v483 = vrot.slane %v384, 7
      %v484 = vrot.slane %v385, 7
      %v485 = vrot.slane %v386, 7
      %v486 = vrot.slane %v387, 7
      %v487 = vrot.slane %v388, 7
      %v488 = vrot.slane %v389, 7
      %v489 = vrot.slane %v390, 7
      %v490 = vrot.slane %v391, 7
      %v491 = vrot.slane %v392, 7
      %vm492 = vcmp.lt.s32.totalorder %v426, 1
      %v493 = vsel %vm492, %v490, %v491
      %v494 = vsel %vm492, %v489, %v490
      %v495 = vsel %vm492, %v488, %v489
      %v496 = vsel %vm492, %v487, %v488
      %v497 = vsel %vm492, %v486, %v487
      %v498 = vsel %vm492, %v485, %v486
      %v499 = vsel %vm492, %v484, %v485
      %v500 = vsel %vm492, %v483, %v484
      %v501 = vsel %vm492, %v482, %v483
      %v502 = vsel %vm492, %v481, %v482
      %v503 = vsel %vm492, %v480, %v481
      %v504 = vsel %vm492, %v479, %v480
      %v505 = vsel %vm492, %v478, %v479
      %v506 = vsel %vm492, %v477, %v478
      %v507 = vsel %vm492, %v476, %v477
      %v508 = vsel %vm492, %v475, %v476
      %v509 = vsel %vm492, %v474, %v475
      %v510 = vsel %vm492, %v473, %v474
      %v511 = vsel %vm492, %v472, %v473
      %v512 = vsel %vm492, %v471, %v472
      %v513 = vsel %vm492, %v470, %v471
      %v514 = vsel %vm492, %v469, %v470
      %v515 = vsel %vm492, %v468, %v469
      %v516 = vsel %vm492, %v467, %v468
      %v517 = vsel %vm492, %v466, %v467
      %v518 = vsel %vm492, %v465, %v466
      %v519 = vsel %vm492, %v464, %v465
      %v520 = vsel %vm492, %v463, %v464
      %v521 = vsel %vm492, %v462, %v463
      %v522 = vsel %vm492, %v461, %v462
      %v523 = vsel %vm492, %v460, %v461
      %v524 = vsel %vm492, %v491, %v460
      %v525 = vpack.c.bf16 %v493, %v494
      %v526 = vpack.c.bf16 %v523, %v524
      %v527 = vpack.c.bf16 %v521, %v522
      %v528 = vpack.c.bf16 %v519, %v520
      %v529 = vpack.c.bf16 %v517, %v518
      %v530 = vpack.c.bf16 %v515, %v516
      %v531 = vpack.c.bf16 %v513, %v514
      %v532 = vpack.c.bf16 %v511, %v512
      %v533 = vpack.c.bf16 %v509, %v510
      %v534 = vpack.c.bf16 %v507, %v508
      %v535 = vpack.c.bf16 %v505, %v506
      %v536 = vpack.c.bf16 %v503, %v504
      %v537 = vpack.c.bf16 %v501, %v502
      %v538 = vpack.c.bf16 %v499, %v500
      %v539 = vpack.c.bf16 %v497, %v498
      %v540 = vpack.c.bf16 %v495, %v496
      %v541 = vld [vmem:[%s1] sm:$0xf]
      %v542 = vld [vmem:[%s1 + $0x4] sm:$0xf]
      %v543 = vld [vmem:[%s1 + $0x8] sm:$0xf]
      %v544 = vld [vmem:[%s1 + $0xc] sm:$0xf]
      %v545 = vld [vmem:[%s1 + $0x10] sm:$0xf]
      %v546 = vld [vmem:[%s1 + $0x14] sm:$0xf]
      %v547 = vld [vmem:[%s1 + $0x18] sm:$0xf]
      %v548 = vld [vmem:[%s1 + $0x1c] sm:$0xf]
      %v549 = vld [vmem:[%s1 + $0x20] sm:$0xf]
      %v550 = vld [vmem:[%s1 + $0x24] sm:$0xf]
      %v551 = vld [vmem:[%s1 + $0x28] sm:$0xf]
      %v552 = vld [vmem:[%s1 + $0x2c] sm:$0xf]
      %v553 = vld [vmem:[%s1 + $0x30] sm:$0xf]
      %v554 = vld [vmem:[%s1 + $0x34] sm:$0xf]
      %v555 = vld [vmem:[%s1 + $0x38] sm:$0xf]
      %v556 = vld [vmem:[%s1 + $0x3c] sm:$0xf]
      %v557 = vld [vmem:[%s1 + $0x40] sm:$0xf]
      %v558 = vld [vmem:[%s1 + $0x44] sm:$0xf]
      %v559 = vld [vmem:[%s1 + $0x48] sm:$0xf]
      %v560 = vld [vmem:[%s1 + $0x4c] sm:$0xf]
      %v561 = vld [vmem:[%s1 + $0x50] sm:$0xf]
      %v562 = vld [vmem:[%s1 + $0x54] sm:$0xf]
      %v563 = vld [vmem:[%s1 + $0x58] sm:$0xf]
      %v564 = vld [vmem:[%s1 + $0x5c] sm:$0xf]
      %v565 = vld [vmem:[%s1 + $0x60] sm:$0xf]
      %v566 = vld [vmem:[%s1 + $0x64] sm:$0xf]
      %v567 = vld [vmem:[%s1 + $0x68] sm:$0xf]
      %v568 = vld [vmem:[%s1 + $0x6c] sm:$0xf]
      %v569 = vld [vmem:[%s1 + $0x70] sm:$0xf]
      %v570 = vld [vmem:[%s1 + $0x74] sm:$0xf]
      %v571 = vld [vmem:[%s1 + $0x78] sm:$0xf]
      %v572 = vld [vmem:[%s1 + $0x7c] sm:$0xf]
      %v605 = vunpack.c.l.b16 %v541
      %v606 = vunpack.c.l.b16 %v542
      %v607 = vunpack.c.l.b16 %v543
      %v608 = vunpack.c.l.b16 %v544
      %v609 = vunpack.c.l.b16 %v545
      %v610 = vunpack.c.l.b16 %v546
      %v611 = vunpack.c.l.b16 %v547
      %v612 = vunpack.c.l.b16 %v548
      %v613 = vunpack.c.l.b16 %v549
      %v614 = vunpack.c.l.b16 %v550
      %v615 = vunpack.c.l.b16 %v551
      %v616 = vunpack.c.l.b16 %v552
      %v617 = vunpack.c.l.b16 %v553
      %v618 = vunpack.c.l.b16 %v554
      %v619 = vunpack.c.l.b16 %v555
      %v620 = vunpack.c.l.b16 %v556
      %v621 = vunpack.c.l.b16 %v557
      %v622 = vunpack.c.l.b16 %v558
      %v623 = vunpack.c.l.b16 %v559
      %v624 = vunpack.c.l.b16 %v560
      %v625 = vunpack.c.l.b16 %v561
      %v626 = vunpack.c.l.b16 %v562
      %v627 = vunpack.c.l.b16 %v563
      %v628 = vunpack.c.l.b16 %v564
      %v629 = vunpack.c.l.b16 %v565
      %v630 = vunpack.c.l.b16 %v566
      %v631 = vunpack.c.l.b16 %v567
      %v632 = vunpack.c.l.b16 %v568
      %v633 = vunpack.c.l.b16 %v569
      %v634 = vunpack.c.l.b16 %v570
      %v635 = vunpack.c.l.b16 %v571
      %v636 = vunpack.c.l.b16 %v572
      %v637 = vpack.c.b16 %v606, %v605
      %v638 = vpack.c.b16 %v608, %v607
      %v639 = vpack.c.b16 %v610, %v609
      %v640 = vpack.c.b16 %v612, %v611
      %v641 = vpack.c.b16 %v614, %v613
      %v642 = vpack.c.b16 %v616, %v615
      %v643 = vpack.c.b16 %v618, %v617
      %v644 = vpack.c.b16 %v620, %v619
      %v645 = vpack.c.b16 %v622, %v621
      %v646 = vpack.c.b16 %v624, %v623
      %v647 = vpack.c.b16 %v626, %v625
      %v648 = vpack.c.b16 %v628, %v627
      %v649 = vpack.c.b16 %v630, %v629
      %v650 = vpack.c.b16 %v632, %v631
      %v651 = vpack.c.b16 %v634, %v633
      %v652 = vpack.c.b16 %v636, %v635
      %v669 = vmul.bf16 %v525, %v637
      %v670 = vmul.bf16 %v526, %v638
      %v671 = vmul.bf16 %v527, %v639
      %v672 = vmul.bf16 %v528, %v640
      %v673 = vmul.bf16 %v529, %v641
      %v674 = vmul.bf16 %v530, %v642
      %v675 = vmul.bf16 %v531, %v643
      %v676 = vmul.bf16 %v532, %v644
      %v677 = vmul.bf16 %v533, %v645
      %v678 = vmul.bf16 %v534, %v646
      %v679 = vmul.bf16 %v535, %v647
      %v680 = vmul.bf16 %v536, %v648
      %v681 = vmul.bf16 %v537, %v649
      %v682 = vmul.bf16 %v538, %v650
      %v683 = vmul.bf16 %v539, %v651
      %v684 = vmul.bf16 %v540, %v652
      %v685 = vpack.c.bf16 %v392, %v391
      %v686 = vpack.c.bf16 %v362, %v361
      %v687 = vpack.c.bf16 %v364, %v363
      %v688 = vpack.c.bf16 %v366, %v365
      %v689 = vpack.c.bf16 %v368, %v367
      %v690 = vpack.c.bf16 %v370, %v369
      %v691 = vpack.c.bf16 %v372, %v371
      %v692 = vpack.c.bf16 %v374, %v373
      %v693 = vpack.c.bf16 %v376, %v375
      %v694 = vpack.c.bf16 %v378, %v377
      %v695 = vpack.c.bf16 %v380, %v379
      %v696 = vpack.c.bf16 %v382, %v381
      %v697 = vpack.c.bf16 %v384, %v383
      %v698 = vpack.c.bf16 %v386, %v385
      %v699 = vpack.c.bf16 %v388, %v387
      %v700 = vpack.c.bf16 %v390, %v389
      %s701 = scalar_lea.vmem %s1, 128
      %v702 = vld [vmem:[%s701] sm:$0xf]
      %v703 = vld [vmem:[%s701 + $0x4] sm:$0xf]
      %v704 = vld [vmem:[%s701 + $0x8] sm:$0xf]
      %v705 = vld [vmem:[%s701 + $0xc] sm:$0xf]
      %v706 = vld [vmem:[%s701 + $0x10] sm:$0xf]
      %v707 = vld [vmem:[%s701 + $0x14] sm:$0xf]
      %v708 = vld [vmem:[%s701 + $0x18] sm:$0xf]
      %v709 = vld [vmem:[%s701 + $0x1c] sm:$0xf]
      %v710 = vld [vmem:[%s701 + $0x20] sm:$0xf]
      %v711 = vld [vmem:[%s701 + $0x24] sm:$0xf]
      %v712 = vld [vmem:[%s701 + $0x28] sm:$0xf]
      %v713 = vld [vmem:[%s701 + $0x2c] sm:$0xf]
      %v714 = vld [vmem:[%s701 + $0x30] sm:$0xf]
      %v715 = vld [vmem:[%s701 + $0x34] sm:$0xf]
      %v716 = vld [vmem:[%s701 + $0x38] sm:$0xf]
      %v717 = vld [vmem:[%s701 + $0x3c] sm:$0xf]
      %v718 = vld [vmem:[%s701 + $0x40] sm:$0xf]
      %v719 = vld [vmem:[%s701 + $0x44] sm:$0xf]
      %v720 = vld [vmem:[%s701 + $0x48] sm:$0xf]
      %v721 = vld [vmem:[%s701 + $0x4c] sm:$0xf]
      %v722 = vld [vmem:[%s701 + $0x50] sm:$0xf]
      %v723 = vld [vmem:[%s701 + $0x54] sm:$0xf]
      %v724 = vld [vmem:[%s701 + $0x58] sm:$0xf]
      %v725 = vld [vmem:[%s701 + $0x5c] sm:$0xf]
      %v726 = vld [vmem:[%s701 + $0x60] sm:$0xf]
      %v727 = vld [vmem:[%s701 + $0x64] sm:$0xf]
      %v728 = vld [vmem:[%s701 + $0x68] sm:$0xf]
      %v729 = vld [vmem:[%s701 + $0x6c] sm:$0xf]
      %v730 = vld [vmem:[%s701 + $0x70] sm:$0xf]
      %v731 = vld [vmem:[%s701 + $0x74] sm:$0xf]
      %v732 = vld [vmem:[%s701 + $0x78] sm:$0xf]
      %v733 = vld [vmem:[%s701 + $0x7c] sm:$0xf]
      %v766 = vunpack.c.l.b16 %v702
      %v767 = vunpack.c.l.b16 %v703
      %v768 = vunpack.c.l.b16 %v704
      %v769 = vunpack.c.l.b16 %v705
      %v770 = vunpack.c.l.b16 %v706
      %v771 = vunpack.c.l.b16 %v707
      %v772 = vunpack.c.l.b16 %v708
      %v773 = vunpack.c.l.b16 %v709
      %v774 = vunpack.c.l.b16 %v710
      %v775 = vunpack.c.l.b16 %v711
      %v776 = vunpack.c.l.b16 %v712
      %v777 = vunpack.c.l.b16 %v713
      %v778 = vunpack.c.l.b16 %v714
      %v779 = vunpack.c.l.b16 %v715
      %v780 = vunpack.c.l.b16 %v716
      %v781 = vunpack.c.l.b16 %v717
      %v782 = vunpack.c.l.b16 %v718
      %v783 = vunpack.c.l.b16 %v719
      %v784 = vunpack.c.l.b16 %v720
      %v785 = vunpack.c.l.b16 %v721
      %v786 = vunpack.c.l.b16 %v722
      %v787 = vunpack.c.l.b16 %v723
      %v788 = vunpack.c.l.b16 %v724
      %v789 = vunpack.c.l.b16 %v725
      %v790 = vunpack.c.l.b16 %v726
      %v791 = vunpack.c.l.b16 %v727
      %v792 = vunpack.c.l.b16 %v728
      %v793 = vunpack.c.l.b16 %v729
      %v794 = vunpack.c.l.b16 %v730
      %v795 = vunpack.c.l.b16 %v731
      %v796 = vunpack.c.l.b16 %v732
      %v797 = vunpack.c.l.b16 %v733
      %v798 = vpack.c.b16 %v767, %v766
      %v799 = vpack.c.b16 %v769, %v768
      %v800 = vpack.c.b16 %v771, %v770
      %v801 = vpack.c.b16 %v773, %v772
      %v802 = vpack.c.b16 %v775, %v774
      %v803 = vpack.c.b16 %v777, %v776
      %v804 = vpack.c.b16 %v779, %v778
      %v805 = vpack.c.b16 %v781, %v780
      %v806 = vpack.c.b16 %v783, %v782
      %v807 = vpack.c.b16 %v785, %v784
      %v808 = vpack.c.b16 %v787, %v786
      %v809 = vpack.c.b16 %v789, %v788
      %v810 = vpack.c.b16 %v791, %v790
      %v811 = vpack.c.b16 %v793, %v792
      %v812 = vpack.c.b16 %v795, %v794
      %v813 = vpack.c.b16 %v797, %v796
      %v830 = vmul.bf16 %v685, %v798
      %v831 = vmul.bf16 %v686, %v799
      %v832 = vmul.bf16 %v687, %v800
      %v833 = vmul.bf16 %v688, %v801
      %v834 = vmul.bf16 %v689, %v802
      %v835 = vmul.bf16 %v690, %v803
      %v836 = vmul.bf16 %v691, %v804
      %v837 = vmul.bf16 %v692, %v805
      %v838 = vmul.bf16 %v693, %v806
      %v839 = vmul.bf16 %v694, %v807
      %v840 = vmul.bf16 %v695, %v808
      %v841 = vmul.bf16 %v696, %v809
      %v842 = vmul.bf16 %v697, %v810
      %v843 = vmul.bf16 %v698, %v811
      %v844 = vmul.bf16 %v699, %v812
      %v845 = vmul.bf16 %v700, %v813
      %v846 = vpack.c.bf16 %v459, %v428
      %v847 = vpack.c.bf16 %v457, %v458
      %v848 = vpack.c.bf16 %v455, %v456
      %v849 = vpack.c.bf16 %v453, %v454
      %v850 = vpack.c.bf16 %v451, %v452
      %v851 = vpack.c.bf16 %v449, %v450
      %v852 = vpack.c.bf16 %v447, %v448
      %v853 = vpack.c.bf16 %v445, %v446
      %v854 = vpack.c.bf16 %v443, %v444
      %v855 = vpack.c.bf16 %v441, %v442
      %v856 = vpack.c.bf16 %v439, %v440
      %v857 = vpack.c.bf16 %v437, %v438
      %v858 = vpack.c.bf16 %v435, %v436
      %v859 = vpack.c.bf16 %v433, %v434
      %v860 = vpack.c.bf16 %v431, %v432
      %v861 = vpack.c.bf16 %v429, %v430
      %s862 = scalar_lea.vmem %s1, 256
      %v863 = vld [vmem:[%s862] sm:$0xf]
      %v864 = vld [vmem:[%s862 + $0x4] sm:$0xf]
      %v865 = vld [vmem:[%s862 + $0x8] sm:$0xf]
      %v866 = vld [vmem:[%s862 + $0xc] sm:$0xf]
      %v867 = vld [vmem:[%s862 + $0x10] sm:$0xf]
      %v868 = vld [vmem:[%s862 + $0x14] sm:$0xf]
      %v869 = vld [vmem:[%s862 + $0x18] sm:$0xf]
      %v870 = vld [vmem:[%s862 + $0x1c] sm:$0xf]
      %v871 = vld [vmem:[%s862 + $0x20] sm:$0xf]
      %v872 = vld [vmem:[%s862 + $0x24] sm:$0xf]
      %v873 = vld [vmem:[%s862 + $0x28] sm:$0xf]
      %v874 = vld [vmem:[%s862 + $0x2c] sm:$0xf]
      %v875 = vld [vmem:[%s862 + $0x30] sm:$0xf]
      %v876 = vld [vmem:[%s862 + $0x34] sm:$0xf]
      %v877 = vld [vmem:[%s862 + $0x38] sm:$0xf]
      %v878 = vld [vmem:[%s862 + $0x3c] sm:$0xf]
      %v879 = vld [vmem:[%s862 + $0x40] sm:$0xf]
      %v880 = vld [vmem:[%s862 + $0x44] sm:$0xf]
      %v881 = vld [vmem:[%s862 + $0x48] sm:$0xf]
      %v882 = vld [vmem:[%s862 + $0x4c] sm:$0xf]
      %v883 = vld [vmem:[%s862 + $0x50] sm:$0xf]
      %v884 = vld [vmem:[%s862 + $0x54] sm:$0xf]
      %v885 = vld [vmem:[%s862 + $0x58] sm:$0xf]
      %v886 = vld [vmem:[%s862 + $0x5c] sm:$0xf]
      %v887 = vld [vmem:[%s862 + $0x60] sm:$0xf]
      %v888 = vld [vmem:[%s862 + $0x64] sm:$0xf]
      %v889 = vld [vmem:[%s862 + $0x68] sm:$0xf]
      %v890 = vld [vmem:[%s862 + $0x6c] sm:$0xf]
      %v891 = vld [vmem:[%s862 + $0x70] sm:$0xf]
      %v892 = vld [vmem:[%s862 + $0x74] sm:$0xf]
      %v893 = vld [vmem:[%s862 + $0x78] sm:$0xf]
      %v894 = vld [vmem:[%s862 + $0x7c] sm:$0xf]
      %v927 = vunpack.c.l.b16 %v863
      %v928 = vunpack.c.l.b16 %v864
      %v929 = vunpack.c.l.b16 %v865
      %v930 = vunpack.c.l.b16 %v866
      %v931 = vunpack.c.l.b16 %v867
      %v932 = vunpack.c.l.b16 %v868
      %v933 = vunpack.c.l.b16 %v869
      %v934 = vunpack.c.l.b16 %v870
      %v935 = vunpack.c.l.b16 %v871
      %v936 = vunpack.c.l.b16 %v872
      %v937 = vunpack.c.l.b16 %v873
      %v938 = vunpack.c.l.b16 %v874
      %v939 = vunpack.c.l.b16 %v875
      %v940 = vunpack.c.l.b16 %v876
      %v941 = vunpack.c.l.b16 %v877
      %v942 = vunpack.c.l.b16 %v878
      %v943 = vunpack.c.l.b16 %v879
      %v944 = vunpack.c.l.b16 %v880
      %v945 = vunpack.c.l.b16 %v881
      %v946 = vunpack.c.l.b16 %v882
      %v947 = vunpack.c.l.b16 %v883
      %v948 = vunpack.c.l.b16 %v884
      %v949 = vunpack.c.l.b16 %v885
      %v950 = vunpack.c.l.b16 %v886
      %v951 = vunpack.c.l.b16 %v887
      %v952 = vunpack.c.l.b16 %v888
      %v953 = vunpack.c.l.b16 %v889
      %v954 = vunpack.c.l.b16 %v890
      %v955 = vunpack.c.l.b16 %v891
      %v956 = vunpack.c.l.b16 %v892
      %v957 = vunpack.c.l.b16 %v893
      %v958 = vunpack.c.l.b16 %v894
      %v959 = vpack.c.b16 %v928, %v927
      %v960 = vpack.c.b16 %v930, %v929
      %v961 = vpack.c.b16 %v932, %v931
      %v962 = vpack.c.b16 %v934, %v933
      %v963 = vpack.c.b16 %v936, %v935
      %v964 = vpack.c.b16 %v938, %v937
      %v965 = vpack.c.b16 %v940, %v939
      %v966 = vpack.c.b16 %v942, %v941
      %v967 = vpack.c.b16 %v944, %v943
      %v968 = vpack.c.b16 %v946, %v945
      %v969 = vpack.c.b16 %v948, %v947
      %v970 = vpack.c.b16 %v950, %v949
      %v971 = vpack.c.b16 %v952, %v951
      %v972 = vpack.c.b16 %v954, %v953
      %v973 = vpack.c.b16 %v956, %v955
      %v974 = vpack.c.b16 %v958, %v957
      %v991 = vmul.bf16 %v846, %v959
      %v992 = vmul.bf16 %v847, %v960
      %v993 = vmul.bf16 %v848, %v961
      %v994 = vmul.bf16 %v849, %v962
      %v995 = vmul.bf16 %v850, %v963
      %v996 = vmul.bf16 %v851, %v964
      %v997 = vmul.bf16 %v852, %v965
      %v998 = vmul.bf16 %v853, %v966
      %v999 = vmul.bf16 %v854, %v967
      %v1000 = vmul.bf16 %v855, %v968
      %v1001 = vmul.bf16 %v856, %v969
      %v1002 = vmul.bf16 %v857, %v970
      %v1003 = vmul.bf16 %v858, %v971
      %v1004 = vmul.bf16 %v859, %v972
      %v1005 = vmul.bf16 %v860, %v973
      %v1006 = vmul.bf16 %v861, %v974
      %s1007 = scalar_lea.vmem %s1, 384
      %v1008 = vld [vmem:[%s1007] sm:$0xf]
      %v1009 = vld [vmem:[%s1007 + $0x4] sm:$0xf]
      %v1010 = vld [vmem:[%s1007 + $0x8] sm:$0xf]
      %v1011 = vld [vmem:[%s1007 + $0xc] sm:$0xf]
      %v1012 = vld [vmem:[%s1007 + $0x10] sm:$0xf]
      %v1013 = vld [vmem:[%s1007 + $0x14] sm:$0xf]
      %v1014 = vld [vmem:[%s1007 + $0x18] sm:$0xf]
      %v1015 = vld [vmem:[%s1007 + $0x1c] sm:$0xf]
      %v1016 = vld [vmem:[%s1007 + $0x20] sm:$0xf]
      %v1017 = vld [vmem:[%s1007 + $0x24] sm:$0xf]
      %v1018 = vld [vmem:[%s1007 + $0x28] sm:$0xf]
      %v1019 = vld [vmem:[%s1007 + $0x2c] sm:$0xf]
      %v1020 = vld [vmem:[%s1007 + $0x30] sm:$0xf]
      %v1021 = vld [vmem:[%s1007 + $0x34] sm:$0xf]
      %v1022 = vld [vmem:[%s1007 + $0x38] sm:$0xf]
      %v1023 = vld [vmem:[%s1007 + $0x3c] sm:$0xf]
      %v1024 = vld [vmem:[%s1007 + $0x40] sm:$0xf]
      %v1025 = vld [vmem:[%s1007 + $0x44] sm:$0xf]
      %v1026 = vld [vmem:[%s1007 + $0x48] sm:$0xf]
      %v1027 = vld [vmem:[%s1007 + $0x4c] sm:$0xf]
      %v1028 = vld [vmem:[%s1007 + $0x50] sm:$0xf]
      %v1029 = vld [vmem:[%s1007 + $0x54] sm:$0xf]
      %v1030 = vld [vmem:[%s1007 + $0x58] sm:$0xf]
      %v1031 = vld [vmem:[%s1007 + $0x5c] sm:$0xf]
      %v1032 = vld [vmem:[%s1007 + $0x60] sm:$0xf]
      %v1033 = vld [vmem:[%s1007 + $0x64] sm:$0xf]
      %v1034 = vld [vmem:[%s1007 + $0x68] sm:$0xf]
      %v1035 = vld [vmem:[%s1007 + $0x6c] sm:$0xf]
      %v1036 = vld [vmem:[%s1007 + $0x70] sm:$0xf]
      %v1037 = vld [vmem:[%s1007 + $0x74] sm:$0xf]
      %v1038 = vld [vmem:[%s1007 + $0x78] sm:$0xf]
      %v1039 = vld [vmem:[%s1007 + $0x7c] sm:$0xf]
      %v1072 = vunpack.c.l.b16 %v1008
      %v1073 = vunpack.c.l.b16 %v1009
      %v1074 = vunpack.c.l.b16 %v1010
      %v1075 = vunpack.c.l.b16 %v1011
      %v1076 = vunpack.c.l.b16 %v1012
      %v1077 = vunpack.c.l.b16 %v1013
      %v1078 = vunpack.c.l.b16 %v1014
      %v1079 = vunpack.c.l.b16 %v1015
      %v1080 = vunpack.c.l.b16 %v1016
      %v1081 = vunpack.c.l.b16 %v1017
      %v1082 = vunpack.c.l.b16 %v1018
      %v1083 = vunpack.c.l.b16 %v1019
      %v1084 = vunpack.c.l.b16 %v1020
      %v1085 = vunpack.c.l.b16 %v1021
      %v1086 = vunpack.c.l.b16 %v1022
      %v1087 = vunpack.c.l.b16 %v1023
      %v1088 = vunpack.c.l.b16 %v1024
      %v1089 = vunpack.c.l.b16 %v1025
      %v1090 = vunpack.c.l.b16 %v1026
      %v1091 = vunpack.c.l.b16 %v1027
      %v1092 = vunpack.c.l.b16 %v1028
      %v1093 = vunpack.c.l.b16 %v1029
      %v1094 = vunpack.c.l.b16 %v1030
      %v1095 = vunpack.c.l.b16 %v1031
      %v1096 = vunpack.c.l.b16 %v1032
      %v1097 = vunpack.c.l.b16 %v1033
      %v1098 = vunpack.c.l.b16 %v1034
      %v1099 = vunpack.c.l.b16 %v1035
      %v1100 = vunpack.c.l.b16 %v1036
      %v1101 = vunpack.c.l.b16 %v1037
      %v1102 = vunpack.c.l.b16 %v1038
      %v1103 = vunpack.c.l.b16 %v1039
      %v1104 = vpack.c.b16 %v1073, %v1072
      %v1105 = vpack.c.b16 %v1075, %v1074
      %v1106 = vpack.c.b16 %v1077, %v1076
      %v1107 = vpack.c.b16 %v1079, %v1078
      %v1108 = vpack.c.b16 %v1081, %v1080
      %v1109 = vpack.c.b16 %v1083, %v1082
      %v1110 = vpack.c.b16 %v1085, %v1084
      %v1111 = vpack.c.b16 %v1087, %v1086
      %v1112 = vpack.c.b16 %v1089, %v1088
      %v1113 = vpack.c.b16 %v1091, %v1090
      %v1114 = vpack.c.b16 %v1093, %v1092
      %v1115 = vpack.c.b16 %v1095, %v1094
      %v1116 = vpack.c.b16 %v1097, %v1096
      %v1117 = vpack.c.b16 %v1099, %v1098
      %v1118 = vpack.c.b16 %v1101, %v1100
      %v1119 = vpack.c.b16 %v1103, %v1102
      %v1136 = vmul.bf16 %v526, %v1104
      %v1137 = vmul.bf16 %v527, %v1105
      %v1138 = vmul.bf16 %v528, %v1106
      %v1139 = vmul.bf16 %v529, %v1107
      %v1140 = vmul.bf16 %v530, %v1108
      %v1141 = vmul.bf16 %v531, %v1109
      %v1142 = vmul.bf16 %v532, %v1110
      %v1143 = vmul.bf16 %v533, %v1111
      %v1144 = vmul.bf16 %v534, %v1112
      %v1145 = vmul.bf16 %v535, %v1113
      %v1146 = vmul.bf16 %v536, %v1114
      %v1147 = vmul.bf16 %v537, %v1115
      %v1148 = vmul.bf16 %v538, %v1116
      %v1149 = vmul.bf16 %v539, %v1117
      %v1150 = vmul.bf16 %v540, %v1118
      %v1151 = vmul.bf16 %v525, %v1119
      %s1152 = scalar_lea.vmem %s1, 640
      %v1153 = vld [vmem:[%s1152] sm:$0xf]
      %v1154 = vld [vmem:[%s1152 + $0x4] sm:$0xf]
      %v1155 = vld [vmem:[%s1152 + $0x8] sm:$0xf]
      %v1156 = vld [vmem:[%s1152 + $0xc] sm:$0xf]
      %v1157 = vld [vmem:[%s1152 + $0x10] sm:$0xf]
      %v1158 = vld [vmem:[%s1152 + $0x14] sm:$0xf]
      %v1159 = vld [vmem:[%s1152 + $0x18] sm:$0xf]
      %v1160 = vld [vmem:[%s1152 + $0x1c] sm:$0xf]
      %v1161 = vld [vmem:[%s1152 + $0x20] sm:$0xf]
      %v1162 = vld [vmem:[%s1152 + $0x24] sm:$0xf]
      %v1163 = vld [vmem:[%s1152 + $0x28] sm:$0xf]
      %v1164 = vld [vmem:[%s1152 + $0x2c] sm:$0xf]
      %v1165 = vld [vmem:[%s1152 + $0x30] sm:$0xf]
      %v1166 = vld [vmem:[%s1152 + $0x34] sm:$0xf]
      %v1167 = vld [vmem:[%s1152 + $0x38] sm:$0xf]
      %v1168 = vld [vmem:[%s1152 + $0x3c] sm:$0xf]
      %v1169 = vld [vmem:[%s1152 + $0x40] sm:$0xf]
      %v1170 = vld [vmem:[%s1152 + $0x44] sm:$0xf]
      %v1171 = vld [vmem:[%s1152 + $0x48] sm:$0xf]
      %v1172 = vld [vmem:[%s1152 + $0x4c] sm:$0xf]
      %v1173 = vld [vmem:[%s1152 + $0x50] sm:$0xf]
      %v1174 = vld [vmem:[%s1152 + $0x54] sm:$0xf]
      %v1175 = vld [vmem:[%s1152 + $0x58] sm:$0xf]
      %v1176 = vld [vmem:[%s1152 + $0x5c] sm:$0xf]
      %v1177 = vld [vmem:[%s1152 + $0x60] sm:$0xf]
      %v1178 = vld [vmem:[%s1152 + $0x64] sm:$0xf]
      %v1179 = vld [vmem:[%s1152 + $0x68] sm:$0xf]
      %v1180 = vld [vmem:[%s1152 + $0x6c] sm:$0xf]
      %v1181 = vld [vmem:[%s1152 + $0x70] sm:$0xf]
      %v1182 = vld [vmem:[%s1152 + $0x74] sm:$0xf]
      %v1183 = vld [vmem:[%s1152 + $0x78] sm:$0xf]
      %v1184 = vld [vmem:[%s1152 + $0x7c] sm:$0xf]
      %v1217 = vunpack.c.l.b16 %v1153
      %v1218 = vunpack.c.l.b16 %v1154
      %v1219 = vunpack.c.l.b16 %v1155
      %v1220 = vunpack.c.l.b16 %v1156
      %v1221 = vunpack.c.l.b16 %v1157
      %v1222 = vunpack.c.l.b16 %v1158
      %v1223 = vunpack.c.l.b16 %v1159
      %v1224 = vunpack.c.l.b16 %v1160
      %v1225 = vunpack.c.l.b16 %v1161
      %v1226 = vunpack.c.l.b16 %v1162
      %v1227 = vunpack.c.l.b16 %v1163
      %v1228 = vunpack.c.l.b16 %v1164
      %v1229 = vunpack.c.l.b16 %v1165
      %v1230 = vunpack.c.l.b16 %v1166
      %v1231 = vunpack.c.l.b16 %v1167
      %v1232 = vunpack.c.l.b16 %v1168
      %v1233 = vunpack.c.l.b16 %v1169
      %v1234 = vunpack.c.l.b16 %v1170
      %v1235 = vunpack.c.l.b16 %v1171
      %v1236 = vunpack.c.l.b16 %v1172
      %v1237 = vunpack.c.l.b16 %v1173
      %v1238 = vunpack.c.l.b16 %v1174
      %v1239 = vunpack.c.l.b16 %v1175
      %v1240 = vunpack.c.l.b16 %v1176
      %v1241 = vunpack.c.l.b16 %v1177
      %v1242 = vunpack.c.l.b16 %v1178
      %v1243 = vunpack.c.l.b16 %v1179
      %v1244 = vunpack.c.l.b16 %v1180
      %v1245 = vunpack.c.l.b16 %v1181
      %v1246 = vunpack.c.l.b16 %v1182
      %v1247 = vunpack.c.l.b16 %v1183
      %v1248 = vunpack.c.l.b16 %v1184
      %v1249 = vpack.c.b16 %v1218, %v1217
      %v1250 = vpack.c.b16 %v1220, %v1219
      %v1251 = vpack.c.b16 %v1222, %v1221
      %v1252 = vpack.c.b16 %v1224, %v1223
      %v1253 = vpack.c.b16 %v1226, %v1225
      %v1254 = vpack.c.b16 %v1228, %v1227
      %v1255 = vpack.c.b16 %v1230, %v1229
      %v1256 = vpack.c.b16 %v1232, %v1231
      %v1257 = vpack.c.b16 %v1234, %v1233
      %v1258 = vpack.c.b16 %v1236, %v1235
      %v1259 = vpack.c.b16 %v1238, %v1237
      %v1260 = vpack.c.b16 %v1240, %v1239
      %v1261 = vpack.c.b16 %v1242, %v1241
      %v1262 = vpack.c.b16 %v1244, %v1243
      %v1263 = vpack.c.b16 %v1246, %v1245
      %v1264 = vpack.c.b16 %v1248, %v1247
      %v1281 = vmul.bf16 %v847, %v1249
      %v1282 = vmul.bf16 %v848, %v1250
      %v1283 = vmul.bf16 %v849, %v1251
      %v1284 = vmul.bf16 %v850, %v1252
      %v1285 = vmul.bf16 %v851, %v1253
      %v1286 = vmul.bf16 %v852, %v1254
      %v1287 = vmul.bf16 %v853, %v1255
      %v1288 = vmul.bf16 %v854, %v1256
      %v1289 = vmul.bf16 %v855, %v1257
      %v1290 = vmul.bf16 %v856, %v1258
      %v1291 = vmul.bf16 %v857, %v1259
      %v1292 = vmul.bf16 %v858, %v1260
      %v1293 = vmul.bf16 %v859, %v1261
      %v1294 = vmul.bf16 %v860, %v1262
      %v1295 = vmul.bf16 %v861, %v1263
      %v1296 = vmul.bf16 %v846, %v1264
      %s1297 = scalar_lea.vmem %s1, 768
      %v1298 = vld [vmem:[%s1297] sm:$0xf]
      %v1299 = vld [vmem:[%s1297 + $0x4] sm:$0xf]
      %v1300 = vld [vmem:[%s1297 + $0x8] sm:$0xf]
      %v1301 = vld [vmem:[%s1297 + $0xc] sm:$0xf]
      %v1302 = vld [vmem:[%s1297 + $0x10] sm:$0xf]
      %v1303 = vld [vmem:[%s1297 + $0x14] sm:$0xf]
      %v1304 = vld [vmem:[%s1297 + $0x18] sm:$0xf]
      %v1305 = vld [vmem:[%s1297 + $0x1c] sm:$0xf]
      %v1306 = vld [vmem:[%s1297 + $0x20] sm:$0xf]
      %v1307 = vld [vmem:[%s1297 + $0x24] sm:$0xf]
      %v1308 = vld [vmem:[%s1297 + $0x28] sm:$0xf]
      %v1309 = vld [vmem:[%s1297 + $0x2c] sm:$0xf]
      %v1310 = vld [vmem:[%s1297 + $0x30] sm:$0xf]
      %v1311 = vld [vmem:[%s1297 + $0x34] sm:$0xf]
      %v1312 = vld [vmem:[%s1297 + $0x38] sm:$0xf]
      %v1313 = vld [vmem:[%s1297 + $0x3c] sm:$0xf]
      %v1314 = vld [vmem:[%s1297 + $0x40] sm:$0xf]
      %v1315 = vld [vmem:[%s1297 + $0x44] sm:$0xf]
      %v1316 = vld [vmem:[%s1297 + $0x48] sm:$0xf]
      %v1317 = vld [vmem:[%s1297 + $0x4c] sm:$0xf]
      %v1318 = vld [vmem:[%s1297 + $0x50] sm:$0xf]
      %v1319 = vld [vmem:[%s1297 + $0x54] sm:$0xf]
      %v1320 = vld [vmem:[%s1297 + $0x58] sm:$0xf]
      %v1321 = vld [vmem:[%s1297 + $0x5c] sm:$0xf]
      %v1322 = vld [vmem:[%s1297 + $0x60] sm:$0xf]
      %v1323 = vld [vmem:[%s1297 + $0x64] sm:$0xf]
      %v1324 = vld [vmem:[%s1297 + $0x68] sm:$0xf]
      %v1325 = vld [vmem:[%s1297 + $0x6c] sm:$0xf]
      %v1326 = vld [vmem:[%s1297 + $0x70] sm:$0xf]
      %v1327 = vld [vmem:[%s1297 + $0x74] sm:$0xf]
      %v1328 = vld [vmem:[%s1297 + $0x78] sm:$0xf]
      %v1329 = vld [vmem:[%s1297 + $0x7c] sm:$0xf]
      %v1362 = vunpack.c.l.b16 %v1298
      %v1363 = vunpack.c.l.b16 %v1299
      %v1364 = vunpack.c.l.b16 %v1300
      %v1365 = vunpack.c.l.b16 %v1301
      %v1366 = vunpack.c.l.b16 %v1302
      %v1367 = vunpack.c.l.b16 %v1303
      %v1368 = vunpack.c.l.b16 %v1304
      %v1369 = vunpack.c.l.b16 %v1305
      %v1370 = vunpack.c.l.b16 %v1306
      %v1371 = vunpack.c.l.b16 %v1307
      %v1372 = vunpack.c.l.b16 %v1308
      %v1373 = vunpack.c.l.b16 %v1309
      %v1374 = vunpack.c.l.b16 %v1310
      %v1375 = vunpack.c.l.b16 %v1311
      %v1376 = vunpack.c.l.b16 %v1312
      %v1377 = vunpack.c.l.b16 %v1313
      %v1378 = vunpack.c.l.b16 %v1314
      %v1379 = vunpack.c.l.b16 %v1315
      %v1380 = vunpack.c.l.b16 %v1316
      %v1381 = vunpack.c.l.b16 %v1317
      %v1382 = vunpack.c.l.b16 %v1318
      %v1383 = vunpack.c.l.b16 %v1319
      %v1384 = vunpack.c.l.b16 %v1320
      %v1385 = vunpack.c.l.b16 %v1321
      %v1386 = vunpack.c.l.b16 %v1322
      %v1387 = vunpack.c.l.b16 %v1323
      %v1388 = vunpack.c.l.b16 %v1324
      %v1389 = vunpack.c.l.b16 %v1325
      %v1390 = vunpack.c.l.b16 %v1326
      %v1391 = vunpack.c.l.b16 %v1327
      %v1392 = vunpack.c.l.b16 %v1328
      %v1393 = vunpack.c.l.b16 %v1329
      %v1394 = vpack.c.b16 %v1363, %v1362
      %v1395 = vpack.c.b16 %v1365, %v1364
      %v1396 = vpack.c.b16 %v1367, %v1366
      %v1397 = vpack.c.b16 %v1369, %v1368
      %v1398 = vpack.c.b16 %v1371, %v1370
      %v1399 = vpack.c.b16 %v1373, %v1372
      %v1400 = vpack.c.b16 %v1375, %v1374
      %v1401 = vpack.c.b16 %v1377, %v1376
      %v1402 = vpack.c.b16 %v1379, %v1378
      %v1403 = vpack.c.b16 %v1381, %v1380
      %v1404 = vpack.c.b16 %v1383, %v1382
      %v1405 = vpack.c.b16 %v1385, %v1384
      %v1406 = vpack.c.b16 %v1387, %v1386
      %v1407 = vpack.c.b16 %v1389, %v1388
      %v1408 = vpack.c.b16 %v1391, %v1390
      %v1409 = vpack.c.b16 %v1393, %v1392
      %v1426 = vmul.bf16 %v527, %v1394
      %v1427 = vmul.bf16 %v528, %v1395
      %v1428 = vmul.bf16 %v529, %v1396
      %v1429 = vmul.bf16 %v530, %v1397
      %v1430 = vmul.bf16 %v531, %v1398
      %v1431 = vmul.bf16 %v532, %v1399
      %v1432 = vmul.bf16 %v533, %v1400
      %v1433 = vmul.bf16 %v534, %v1401
      %v1434 = vmul.bf16 %v535, %v1402
      %v1435 = vmul.bf16 %v536, %v1403
      %v1436 = vmul.bf16 %v537, %v1404
      %v1437 = vmul.bf16 %v538, %v1405
      %v1438 = vmul.bf16 %v539, %v1406
      %v1439 = vmul.bf16 %v540, %v1407
      %v1440 = vmul.bf16 %v525, %v1408
      %v1441 = vmul.bf16 %v526, %v1409
      %s1442 = scalar_lea.vmem %s1, 896
      %v1443 = vld [vmem:[%s1442] sm:$0xf]
      %v1444 = vld [vmem:[%s1442 + $0x4] sm:$0xf]
      %v1445 = vld [vmem:[%s1442 + $0x8] sm:$0xf]
      %v1446 = vld [vmem:[%s1442 + $0xc] sm:$0xf]
      %v1447 = vld [vmem:[%s1442 + $0x10] sm:$0xf]
      %v1448 = vld [vmem:[%s1442 + $0x14] sm:$0xf]
      %v1449 = vld [vmem:[%s1442 + $0x18] sm:$0xf]
      %v1450 = vld [vmem:[%s1442 + $0x1c] sm:$0xf]
      %v1451 = vld [vmem:[%s1442 + $0x20] sm:$0xf]
      %v1452 = vld [vmem:[%s1442 + $0x24] sm:$0xf]
      %v1453 = vld [vmem:[%s1442 + $0x28] sm:$0xf]
      %v1454 = vld [vmem:[%s1442 + $0x2c] sm:$0xf]
      %v1455 = vld [vmem:[%s1442 + $0x30] sm:$0xf]
      %v1456 = vld [vmem:[%s1442 + $0x34] sm:$0xf]
      %v1457 = vld [vmem:[%s1442 + $0x38] sm:$0xf]
      %v1458 = vld [vmem:[%s1442 + $0x3c] sm:$0xf]
      %v1459 = vld [vmem:[%s1442 + $0x40] sm:$0xf]
      %v1460 = vld [vmem:[%s1442 + $0x44] sm:$0xf]
      %v1461 = vld [vmem:[%s1442 + $0x48] sm:$0xf]
      %v1462 = vld [vmem:[%s1442 + $0x4c] sm:$0xf]
      %v1463 = vld [vmem:[%s1442 + $0x50] sm:$0xf]
      %v1464 = vld [vmem:[%s1442 + $0x54] sm:$0xf]
      %v1465 = vld [vmem:[%s1442 + $0x58] sm:$0xf]
      %v1466 = vld [vmem:[%s1442 + $0x5c] sm:$0xf]
      %v1467 = vld [vmem:[%s1442 + $0x60] sm:$0xf]
      %v1468 = vld [vmem:[%s1442 + $0x64] sm:$0xf]
      %v1469 = vld [vmem:[%s1442 + $0x68] sm:$0xf]
      %v1470 = vld [vmem:[%s1442 + $0x6c] sm:$0xf]
      %v1471 = vld [vmem:[%s1442 + $0x70] sm:$0xf]
      %v1472 = vld [vmem:[%s1442 + $0x74] sm:$0xf]
      %v1473 = vld [vmem:[%s1442 + $0x78] sm:$0xf]
      %v1474 = vld [vmem:[%s1442 + $0x7c] sm:$0xf]
      %v1507 = vunpack.c.l.b16 %v1443
      %v1508 = vunpack.c.l.b16 %v1444
      %v1509 = vunpack.c.l.b16 %v1445
      %v1510 = vunpack.c.l.b16 %v1446
      %v1511 = vunpack.c.l.b16 %v1447
      %v1512 = vunpack.c.l.b16 %v1448
      %v1513 = vunpack.c.l.b16 %v1449
      %v1514 = vunpack.c.l.b16 %v1450
      %v1515 = vunpack.c.l.b16 %v1451
      %v1516 = vunpack.c.l.b16 %v1452
      %v1517 = vunpack.c.l.b16 %v1453
      %v1518 = vunpack.c.l.b16 %v1454
      %v1519 = vunpack.c.l.b16 %v1455
      %v1520 = vunpack.c.l.b16 %v1456
      %v1521 = vunpack.c.l.b16 %v1457
      %v1522 = vunpack.c.l.b16 %v1458
      %v1523 = vunpack.c.l.b16 %v1459
      %v1524 = vunpack.c.l.b16 %v1460
      %v1525 = vunpack.c.l.b16 %v1461
      %v1526 = vunpack.c.l.b16 %v1462
      %v1527 = vunpack.c.l.b16 %v1463
      %v1528 = vunpack.c.l.b16 %v1464
      %v1529 = vunpack.c.l.b16 %v1465
      %v1530 = vunpack.c.l.b16 %v1466
      %v1531 = vunpack.c.l.b16 %v1467
      %v1532 = vunpack.c.l.b16 %v1468
      %v1533 = vunpack.c.l.b16 %v1469
      %v1534 = vunpack.c.l.b16 %v1470
      %v1535 = vunpack.c.l.b16 %v1471
      %v1536 = vunpack.c.l.b16 %v1472
      %v1537 = vunpack.c.l.b16 %v1473
      %v1538 = vunpack.c.l.b16 %v1474
      %v1539 = vpack.c.b16 %v1508, %v1507
      %v1540 = vpack.c.b16 %v1510, %v1509
      %v1541 = vpack.c.b16 %v1512, %v1511
      %v1542 = vpack.c.b16 %v1514, %v1513
      %v1543 = vpack.c.b16 %v1516, %v1515
      %v1544 = vpack.c.b16 %v1518, %v1517
      %v1545 = vpack.c.b16 %v1520, %v1519
      %v1546 = vpack.c.b16 %v1522, %v1521
      %v1547 = vpack.c.b16 %v1524, %v1523
      %v1548 = vpack.c.b16 %v1526, %v1525
      %v1549 = vpack.c.b16 %v1528, %v1527
      %v1550 = vpack.c.b16 %v1530, %v1529
      %v1551 = vpack.c.b16 %v1532, %v1531
      %v1552 = vpack.c.b16 %v1534, %v1533
      %v1553 = vpack.c.b16 %v1536, %v1535
      %v1554 = vpack.c.b16 %v1538, %v1537
      %v1571 = vmul.bf16 %v687, %v1539
      %v1572 = vmul.bf16 %v688, %v1540
      %v1573 = vmul.bf16 %v689, %v1541
      %v1574 = vmul.bf16 %v690, %v1542
      %v1575 = vmul.bf16 %v691, %v1543
      %v1576 = vmul.bf16 %v692, %v1544
      %v1577 = vmul.bf16 %v693, %v1545
      %v1578 = vmul.bf16 %v694, %v1546
      %v1579 = vmul.bf16 %v695, %v1547
      %v1580 = vmul.bf16 %v696, %v1548
      %v1581 = vmul.bf16 %v697, %v1549
      %v1582 = vmul.bf16 %v698, %v1550
      %v1583 = vmul.bf16 %v699, %v1551
      %v1584 = vmul.bf16 %v700, %v1552
      %v1585 = vmul.bf16 %v685, %v1553
      %v1586 = vmul.bf16 %v686, %v1554
      %s1587 = scalar_lea.vmem %s1, 1024
      %v1588 = vld [vmem:[%s1587] sm:$0xf]
      %v1589 = vld [vmem:[%s1587 + $0x4] sm:$0xf]
      %v1590 = vld [vmem:[%s1587 + $0x8] sm:$0xf]
      %v1591 = vld [vmem:[%s1587 + $0xc] sm:$0xf]
      %v1592 = vld [vmem:[%s1587 + $0x10] sm:$0xf]
      %v1593 = vld [vmem:[%s1587 + $0x14] sm:$0xf]
      %v1594 = vld [vmem:[%s1587 + $0x18] sm:$0xf]
      %v1595 = vld [vmem:[%s1587 + $0x1c] sm:$0xf]
      %v1596 = vld [vmem:[%s1587 + $0x20] sm:$0xf]
      %v1597 = vld [vmem:[%s1587 + $0x24] sm:$0xf]
      %v1598 = vld [vmem:[%s1587 + $0x28] sm:$0xf]
      %v1599 = vld [vmem:[%s1587 + $0x2c] sm:$0xf]
      %v1600 = vld [vmem:[%s1587 + $0x30] sm:$0xf]
      %v1601 = vld [vmem:[%s1587 + $0x34] sm:$0xf]
      %v1602 = vld [vmem:[%s1587 + $0x38] sm:$0xf]
      %v1603 = vld [vmem:[%s1587 + $0x3c] sm:$0xf]
      %v1604 = vld [vmem:[%s1587 + $0x40] sm:$0xf]
      %v1605 = vld [vmem:[%s1587 + $0x44] sm:$0xf]
      %v1606 = vld [vmem:[%s1587 + $0x48] sm:$0xf]
      %v1607 = vld [vmem:[%s1587 + $0x4c] sm:$0xf]
      %v1608 = vld [vmem:[%s1587 + $0x50] sm:$0xf]
      %v1609 = vld [vmem:[%s1587 + $0x54] sm:$0xf]
      %v1610 = vld [vmem:[%s1587 + $0x58] sm:$0xf]
      %v1611 = vld [vmem:[%s1587 + $0x5c] sm:$0xf]
      %v1612 = vld [vmem:[%s1587 + $0x60] sm:$0xf]
      %v1613 = vld [vmem:[%s1587 + $0x64] sm:$0xf]
      %v1614 = vld [vmem:[%s1587 + $0x68] sm:$0xf]
      %v1615 = vld [vmem:[%s1587 + $0x6c] sm:$0xf]
      %v1616 = vld [vmem:[%s1587 + $0x70] sm:$0xf]
      %v1617 = vld [vmem:[%s1587 + $0x74] sm:$0xf]
      %v1618 = vld [vmem:[%s1587 + $0x78] sm:$0xf]
      %v1619 = vld [vmem:[%s1587 + $0x7c] sm:$0xf]
      %v1652 = vunpack.c.l.b16 %v1588
      %v1653 = vunpack.c.l.b16 %v1589
      %v1654 = vunpack.c.l.b16 %v1590
      %v1655 = vunpack.c.l.b16 %v1591
      %v1656 = vunpack.c.l.b16 %v1592
      %v1657 = vunpack.c.l.b16 %v1593
      %v1658 = vunpack.c.l.b16 %v1594
      %v1659 = vunpack.c.l.b16 %v1595
      %v1660 = vunpack.c.l.b16 %v1596
      %v1661 = vunpack.c.l.b16 %v1597
      %v1662 = vunpack.c.l.b16 %v1598
      %v1663 = vunpack.c.l.b16 %v1599
      %v1664 = vunpack.c.l.b16 %v1600
      %v1665 = vunpack.c.l.b16 %v1601
      %v1666 = vunpack.c.l.b16 %v1602
      %v1667 = vunpack.c.l.b16 %v1603
      %v1668 = vunpack.c.l.b16 %v1604
      %v1669 = vunpack.c.l.b16 %v1605
      %v1670 = vunpack.c.l.b16 %v1606
      %v1671 = vunpack.c.l.b16 %v1607
      %v1672 = vunpack.c.l.b16 %v1608
      %v1673 = vunpack.c.l.b16 %v1609
      %v1674 = vunpack.c.l.b16 %v1610
      %v1675 = vunpack.c.l.b16 %v1611
      %v1676 = vunpack.c.l.b16 %v1612
      %v1677 = vunpack.c.l.b16 %v1613
      %v1678 = vunpack.c.l.b16 %v1614
      %v1679 = vunpack.c.l.b16 %v1615
      %v1680 = vunpack.c.l.b16 %v1616
      %v1681 = vunpack.c.l.b16 %v1617
      %v1682 = vunpack.c.l.b16 %v1618
      %v1683 = vunpack.c.l.b16 %v1619
      %v1684 = vpack.c.b16 %v1653, %v1652
      %v1685 = vpack.c.b16 %v1655, %v1654
      %v1686 = vpack.c.b16 %v1657, %v1656
      %v1687 = vpack.c.b16 %v1659, %v1658
      %v1688 = vpack.c.b16 %v1661, %v1660
      %v1689 = vpack.c.b16 %v1663, %v1662
      %v1690 = vpack.c.b16 %v1665, %v1664
      %v1691 = vpack.c.b16 %v1667, %v1666
      %v1692 = vpack.c.b16 %v1669, %v1668
      %v1693 = vpack.c.b16 %v1671, %v1670
      %v1694 = vpack.c.b16 %v1673, %v1672
      %v1695 = vpack.c.b16 %v1675, %v1674
      %v1696 = vpack.c.b16 %v1677, %v1676
      %v1697 = vpack.c.b16 %v1679, %v1678
      %v1698 = vpack.c.b16 %v1681, %v1680
      %v1699 = vpack.c.b16 %v1683, %v1682
      %v1716 = vmul.bf16 %v848, %v1684
      %v1717 = vmul.bf16 %v849, %v1685
      %v1718 = vmul.bf16 %v850, %v1686
      %v1719 = vmul.bf16 %v851, %v1687
      %v1720 = vmul.bf16 %v852, %v1688
      %v1721 = vmul.bf16 %v853, %v1689
      %v1722 = vmul.bf16 %v854, %v1690
      %v1723 = vmul.bf16 %v855, %v1691
      %v1724 = vmul.bf16 %v856, %v1692
      %v1725 = vmul.bf16 %v857, %v1693
      %v1726 = vmul.bf16 %v858, %v1694
      %v1727 = vmul.bf16 %v859, %v1695
      %v1728 = vmul.bf16 %v860, %v1696
      %v1729 = vmul.bf16 %v861, %v1697
      %v1730 = vmul.bf16 %v846, %v1698
      %v1731 = vmul.bf16 %v847, %v1699
      %1748 = vrot.lane.b32.xlu0 %v830, 64
      %v1749 = vpop.permute.xlu0 %1748
      %1750 = vrot.lane.b32.xlu0 %v831, 64
      %v1751 = vpop.permute.xlu0 %1750
      %1752 = vrot.lane.b32.xlu0 %v832, 64
      %v1753 = vpop.permute.xlu0 %1752
      %1754 = vrot.lane.b32.xlu0 %v833, 64
      %v1755 = vpop.permute.xlu0 %1754
      %1756 = vrot.lane.b32.xlu0 %v834, 64
      %v1757 = vpop.permute.xlu0 %1756
      %1758 = vrot.lane.b32.xlu0 %v835, 64
      %v1759 = vpop.permute.xlu0 %1758
      %1760 = vrot.lane.b32.xlu0 %v836, 64
      %v1761 = vpop.permute.xlu0 %1760
      %1762 = vrot.lane.b32.xlu0 %v837, 64
      %v1763 = vpop.permute.xlu0 %1762
      %1764 = vrot.lane.b32.xlu0 %v838, 64
      %v1765 = vpop.permute.xlu0 %1764
      %1766 = vrot.lane.b32.xlu0 %v839, 64
      %v1767 = vpop.permute.xlu0 %1766
      %1768 = vrot.lane.b32.xlu0 %v840, 64
      %v1769 = vpop.permute.xlu0 %1768
      %1770 = vrot.lane.b32.xlu0 %v841, 64
      %v1771 = vpop.permute.xlu0 %1770
      %1772 = vrot.lane.b32.xlu0 %v842, 64
      %v1773 = vpop.permute.xlu0 %1772
      %1774 = vrot.lane.b32.xlu0 %v843, 64
      %v1775 = vpop.permute.xlu0 %1774
      %1776 = vrot.lane.b32.xlu0 %v844, 64
      %v1777 = vpop.permute.xlu0 %1776
      %1778 = vrot.lane.b32.xlu0 %v845, 64
      %v1779 = vpop.permute.xlu0 %1778
      %vm1780 = vcmask 523264
      %v1783 = vsel %vm1780, %v669, %v1749
      %v1787 = vsel %vm1780, %v670, %v1751
      %v1791 = vsel %vm1780, %v671, %v1753
      %v1795 = vsel %vm1780, %v672, %v1755
      %v1799 = vsel %vm1780, %v673, %v1757
      %v1803 = vsel %vm1780, %v674, %v1759
      %v1807 = vsel %vm1780, %v675, %v1761
      %v1811 = vsel %vm1780, %v676, %v1763
      %v1815 = vsel %vm1780, %v677, %v1765
      %v1819 = vsel %vm1780, %v678, %v1767
      %v1823 = vsel %vm1780, %v679, %v1769
      %v1827 = vsel %vm1780, %v680, %v1771
      %v1831 = vsel %vm1780, %v681, %v1773
      %v1835 = vsel %vm1780, %v682, %v1775
      %v1839 = vsel %vm1780, %v683, %v1777
      %v1843 = vsel %vm1780, %v684, %v1779
      %1861 = vrot.lane.b32.xlu0 %v1136, 64
      %v1862 = vpop.permute.xlu0 %1861
      %1863 = vrot.lane.b32.xlu0 %v1137, 64
      %v1864 = vpop.permute.xlu0 %1863
      %1865 = vrot.lane.b32.xlu0 %v1138, 64
      %v1866 = vpop.permute.xlu0 %1865
      %1867 = vrot.lane.b32.xlu0 %v1139, 64
      %v1868 = vpop.permute.xlu0 %1867
      %1869 = vrot.lane.b32.xlu0 %v1140, 64
      %v1870 = vpop.permute.xlu0 %1869
      %1871 = vrot.lane.b32.xlu0 %v1141, 64
      %v1872 = vpop.permute.xlu0 %1871
      %1873 = vrot.lane.b32.xlu0 %v1142, 64
      %v1874 = vpop.permute.xlu0 %1873
      %1875 = vrot.lane.b32.xlu0 %v1143, 64
      %v1876 = vpop.permute.xlu0 %1875
      %1877 = vrot.lane.b32.xlu0 %v1144, 64
      %v1878 = vpop.permute.xlu0 %1877
      %1879 = vrot.lane.b32.xlu0 %v1145, 64
      %v1880 = vpop.permute.xlu0 %1879
      %1881 = vrot.lane.b32.xlu0 %v1146, 64
      %v1882 = vpop.permute.xlu0 %1881
      %1883 = vrot.lane.b32.xlu0 %v1147, 64
      %v1884 = vpop.permute.xlu0 %1883
      %1885 = vrot.lane.b32.xlu0 %v1148, 64
      %v1886 = vpop.permute.xlu0 %1885
      %1887 = vrot.lane.b32.xlu0 %v1149, 64
      %v1888 = vpop.permute.xlu0 %1887
      %1889 = vrot.lane.b32.xlu0 %v1150, 64
      %v1890 = vpop.permute.xlu0 %1889
      %1891 = vrot.lane.b32.xlu0 %v1151, 64
      %v1892 = vpop.permute.xlu0 %1891
      %v1895 = vsel %vm1780, %v991, %v1862
      %v1899 = vsel %vm1780, %v992, %v1864
      %v1903 = vsel %vm1780, %v993, %v1866
      %v1907 = vsel %vm1780, %v994, %v1868
      %v1911 = vsel %vm1780, %v995, %v1870
      %v1915 = vsel %vm1780, %v996, %v1872
      %v1919 = vsel %vm1780, %v997, %v1874
      %v1923 = vsel %vm1780, %v998, %v1876
      %v1927 = vsel %vm1780, %v999, %v1878
      %v1931 = vsel %vm1780, %v1000, %v1880
      %v1935 = vsel %vm1780, %v1001, %v1882
      %v1939 = vsel %vm1780, %v1002, %v1884
      %v1943 = vsel %vm1780, %v1003, %v1886
      %v1947 = vsel %vm1780, %v1004, %v1888
      %v1951 = vsel %vm1780, %v1005, %v1890
      %v1955 = vsel %vm1780, %v1006, %v1892
      %1973 = vrot.lane.b32.xlu0 %v1281, 64
      %v1974 = vpop.permute.xlu0 %1973
      %1975 = vrot.lane.b32.xlu0 %v1282, 64
      %v1976 = vpop.permute.xlu0 %1975
      %1977 = vrot.lane.b32.xlu0 %v1283, 64
      %v1978 = vpop.permute.xlu0 %1977
      %1979 = vrot.lane.b32.xlu0 %v1284, 64
      %v1980 = vpop.permute.xlu0 %1979
      %1981 = vrot.lane.b32.xlu0 %v1285, 64
      %v1982 = vpop.permute.xlu0 %1981
      %1983 = vrot.lane.b32.xlu0 %v1286, 64
      %v1984 = vpop.permute.xlu0 %1983
      %1985 = vrot.lane.b32.xlu0 %v1287, 64
      %v1986 = vpop.permute.xlu0 %1985
      %1987 = vrot.lane.b32.xlu0 %v1288, 64
      %v1988 = vpop.permute.xlu0 %1987
      %1989 = vrot.lane.b32.xlu0 %v1289, 64
      %v1990 = vpop.permute.xlu0 %1989
      %1991 = vrot.lane.b32.xlu0 %v1290, 64
      %v1992 = vpop.permute.xlu0 %1991
      %1993 = vrot.lane.b32.xlu0 %v1291, 64
      %v1994 = vpop.permute.xlu0 %1993
      %1995 = vrot.lane.b32.xlu0 %v1292, 64
      %v1996 = vpop.permute.xlu0 %1995
      %1997 = vrot.lane.b32.xlu0 %v1293, 64
      %v1998 = vpop.permute.xlu0 %1997
      %1999 = vrot.lane.b32.xlu0 %v1294, 64
      %v2000 = vpop.permute.xlu0 %1999
      %2001 = vrot.lane.b32.xlu0 %v1295, 64
      %v2002 = vpop.permute.xlu0 %2001
      %2003 = vrot.lane.b32.xlu0 %v1296, 64
      %v2004 = vpop.permute.xlu0 %2003
      %v2007 = vsel %vm1780, %v686, %v1974
      %v2011 = vsel %vm1780, %v687, %v1976
      %v2015 = vsel %vm1780, %v688, %v1978
      %v2019 = vsel %vm1780, %v689, %v1980
      %v2023 = vsel %vm1780, %v690, %v1982
      %v2027 = vsel %vm1780, %v691, %v1984
      %v2031 = vsel %vm1780, %v692, %v1986
      %v2035 = vsel %vm1780, %v693, %v1988
      %v2039 = vsel %vm1780, %v694, %v1990
      %v2043 = vsel %vm1780, %v695, %v1992
      %v2047 = vsel %vm1780, %v696, %v1994
      %v2051 = vsel %vm1780, %v697, %v1996
      %v2055 = vsel %vm1780, %v698, %v1998
      %v2059 = vsel %vm1780, %v699, %v2000
      %v2063 = vsel %vm1780, %v700, %v2002
      %v2067 = vsel %vm1780, %v685, %v2004
      %2085 = vrot.lane.b32.xlu0 %v1571, 64
      %v2086 = vpop.permute.xlu0 %2085
      %2087 = vrot.lane.b32.xlu0 %v1572, 64
      %v2088 = vpop.permute.xlu0 %2087
      %2089 = vrot.lane.b32.xlu0 %v1573, 64
      %v2090 = vpop.permute.xlu0 %2089
      %2091 = vrot.lane.b32.xlu0 %v1574, 64
      %v2092 = vpop.permute.xlu0 %2091
      %2093 = vrot.lane.b32.xlu0 %v1575, 64
      %v2094 = vpop.permute.xlu0 %2093
      %2095 = vrot.lane.b32.xlu0 %v1576, 64
      %v2096 = vpop.permute.xlu0 %2095
      %2097 = vrot.lane.b32.xlu0 %v1577, 64
      %v2098 = vpop.permute.xlu0 %2097
      %2099 = vrot.lane.b32.xlu0 %v1578, 64
      %v2100 = vpop.permute.xlu0 %2099
      %2101 = vrot.lane.b32.xlu0 %v1579, 64
      %v2102 = vpop.permute.xlu0 %2101
      %2103 = vrot.lane.b32.xlu0 %v1580, 64
      %v2104 = vpop.permute.xlu0 %2103
      %2105 = vrot.lane.b32.xlu0 %v1581, 64
      %v2106 = vpop.permute.xlu0 %2105
      %2107 = vrot.lane.b32.xlu0 %v1582, 64
      %v2108 = vpop.permute.xlu0 %2107
      %2109 = vrot.lane.b32.xlu0 %v1583, 64
      %v2110 = vpop.permute.xlu0 %2109
      %2111 = vrot.lane.b32.xlu0 %v1584, 64
      %v2112 = vpop.permute.xlu0 %2111
      %2113 = vrot.lane.b32.xlu0 %v1585, 64
      %v2114 = vpop.permute.xlu0 %2113
      %2115 = vrot.lane.b32.xlu0 %v1586, 64
      %v2116 = vpop.permute.xlu0 %2115
      %v2119 = vsel %vm1780, %v1426, %v2086
      %v2123 = vsel %vm1780, %v1427, %v2088
      %v2127 = vsel %vm1780, %v1428, %v2090
      %v2131 = vsel %vm1780, %v1429, %v2092
      %v2135 = vsel %vm1780, %v1430, %v2094
      %v2139 = vsel %vm1780, %v1431, %v2096
      %v2143 = vsel %vm1780, %v1432, %v2098
      %v2147 = vsel %vm1780, %v1433, %v2100
      %v2151 = vsel %vm1780, %v1434, %v2102
      %v2155 = vsel %vm1780, %v1435, %v2104
      %v2159 = vsel %vm1780, %v1436, %v2106
      %v2163 = vsel %vm1780, %v1437, %v2108
      %v2167 = vsel %vm1780, %v1438, %v2110
      %v2171 = vsel %vm1780, %v1439, %v2112
      %v2175 = vsel %vm1780, %v1440, %v2114
      %v2179 = vsel %vm1780, %v1441, %v2116
      %2197 = vrot.lane.b32.xlu0 %v686, 64
      %v2198 = vpop.permute.xlu0 %2197
      %2199 = vrot.lane.b32.xlu0 %v687, 64
      %v2200 = vpop.permute.xlu0 %2199
      %2201 = vrot.lane.b32.xlu0 %v688, 64
      %v2202 = vpop.permute.xlu0 %2201
      %2203 = vrot.lane.b32.xlu0 %v689, 64
      %v2204 = vpop.permute.xlu0 %2203
      %2205 = vrot.lane.b32.xlu0 %v690, 64
      %v2206 = vpop.permute.xlu0 %2205
      %2207 = vrot.lane.b32.xlu0 %v691, 64
      %v2208 = vpop.permute.xlu0 %2207
      %2209 = vrot.lane.b32.xlu0 %v692, 64
      %v2210 = vpop.permute.xlu0 %2209
      %2211 = vrot.lane.b32.xlu0 %v693, 64
      %v2212 = vpop.permute.xlu0 %2211
      %2213 = vrot.lane.b32.xlu0 %v694, 64
      %v2214 = vpop.permute.xlu0 %2213
      %2215 = vrot.lane.b32.xlu0 %v695, 64
      %v2216 = vpop.permute.xlu0 %2215
      %2217 = vrot.lane.b32.xlu0 %v696, 64
      %v2218 = vpop.permute.xlu0 %2217
      %2219 = vrot.lane.b32.xlu0 %v697, 64
      %v2220 = vpop.permute.xlu0 %2219
      %2221 = vrot.lane.b32.xlu0 %v698, 64
      %v2222 = vpop.permute.xlu0 %2221
      %2223 = vrot.lane.b32.xlu0 %v699, 64
      %v2224 = vpop.permute.xlu0 %2223
      %2225 = vrot.lane.b32.xlu0 %v700, 64
      %v2226 = vpop.permute.xlu0 %2225
      %2227 = vrot.lane.b32.xlu0 %v685, 64
      %v2228 = vpop.permute.xlu0 %2227
      %v2231 = vsel %vm1780, %v1716, %v2198
      %v2235 = vsel %vm1780, %v1717, %v2200
      %v2239 = vsel %vm1780, %v1718, %v2202
      %v2243 = vsel %vm1780, %v1719, %v2204
      %v2247 = vsel %vm1780, %v1720, %v2206
      %v2251 = vsel %vm1780, %v1721, %v2208
      %v2255 = vsel %vm1780, %v1722, %v2210
      %v2259 = vsel %vm1780, %v1723, %v2212
      %v2263 = vsel %vm1780, %v1724, %v2214
      %v2267 = vsel %vm1780, %v1725, %v2216
      %v2271 = vsel %vm1780, %v1726, %v2218
      %v2275 = vsel %vm1780, %v1727, %v2220
      %v2279 = vsel %vm1780, %v1728, %v2222
      %v2283 = vsel %vm1780, %v1729, %v2224
      %v2287 = vsel %vm1780, %v1730, %v2226
      %v2291 = vsel %vm1780, %v1731, %v2228
      %v2293 = vld [vmem:[%s2] sm:$0xf]
      %v2294 = vld [vmem:[%s2 + $0x4] sm:$0xf]
      %v2295 = vld [vmem:[%s2 + $0x8] sm:$0xf]
      %v2296 = vld [vmem:[%s2 + $0xc] sm:$0xf]
      %v2297 = vld [vmem:[%s2 + $0x10] sm:$0xf]
      %v2298 = vld [vmem:[%s2 + $0x14] sm:$0xf]
      %v2299 = vld [vmem:[%s2 + $0x18] sm:$0xf]
      %v2300 = vld [vmem:[%s2 + $0x1c] sm:$0xf]
      %v2301 = vld [vmem:[%s2 + $0x20] sm:$0xf]
      %v2302 = vld [vmem:[%s2 + $0x24] sm:$0xf]
      %v2303 = vld [vmem:[%s2 + $0x28] sm:$0xf]
      %v2304 = vld [vmem:[%s2 + $0x2c] sm:$0xf]
      %v2305 = vld [vmem:[%s2 + $0x30] sm:$0xf]
      %v2306 = vld [vmem:[%s2 + $0x34] sm:$0xf]
      %v2307 = vld [vmem:[%s2 + $0x38] sm:$0xf]
      %v2308 = vld [vmem:[%s2 + $0x3c] sm:$0xf]
      %v2309 = vld [vmem:[%s2 + $0x40] sm:$0xf]
      %v2310 = vld [vmem:[%s2 + $0x44] sm:$0xf]
      %v2311 = vld [vmem:[%s2 + $0x48] sm:$0xf]
      %v2312 = vld [vmem:[%s2 + $0x4c] sm:$0xf]
      %v2313 = vld [vmem:[%s2 + $0x50] sm:$0xf]
      %v2314 = vld [vmem:[%s2 + $0x54] sm:$0xf]
      %v2315 = vld [vmem:[%s2 + $0x58] sm:$0xf]
      %v2316 = vld [vmem:[%s2 + $0x5c] sm:$0xf]
      %v2317 = vld [vmem:[%s2 + $0x60] sm:$0xf]
      %v2318 = vld [vmem:[%s2 + $0x64] sm:$0xf]
      %v2319 = vld [vmem:[%s2 + $0x68] sm:$0xf]
      %v2320 = vld [vmem:[%s2 + $0x6c] sm:$0xf]
      %v2321 = vld [vmem:[%s2 + $0x70] sm:$0xf]
      %v2322 = vld [vmem:[%s2 + $0x74] sm:$0xf]
      %v2323 = vld [vmem:[%s2 + $0x78] sm:$0xf]
      %v2324 = vld [vmem:[%s2 + $0x7c] sm:$0xf]
      %v2325 = vld [vmem:[%s2 + $0x80] sm:$0xf]
      %v2326 = vld [vmem:[%s2 + $0x84] sm:$0xf]
      %v2327 = vld [vmem:[%s2 + $0x88] sm:$0xf]
      %v2328 = vld [vmem:[%s2 + $0x8c] sm:$0xf]
      %v2329 = vld [vmem:[%s2 + $0x90] sm:$0xf]
      %v2330 = vld [vmem:[%s2 + $0x94] sm:$0xf]
      %v2331 = vld [vmem:[%s2 + $0x98] sm:$0xf]
      %v2332 = vld [vmem:[%s2 + $0x9c] sm:$0xf]
      %v2333 = vld [vmem:[%s2 + $0xa0] sm:$0xf]
      %v2334 = vld [vmem:[%s2 + $0xa4] sm:$0xf]
      %v2335 = vld [vmem:[%s2 + $0xa8] sm:$0xf]
      %v2336 = vld [vmem:[%s2 + $0xac] sm:$0xf]
      %v2337 = vld [vmem:[%s2 + $0xb0] sm:$0xf]
      %v2338 = vld [vmem:[%s2 + $0xb4] sm:$0xf]
      %v2339 = vld [vmem:[%s2 + $0xb8] sm:$0xf]
      %v2340 = vld [vmem:[%s2 + $0xbc] sm:$0xf]
      %v2341 = vld [vmem:[%s2 + $0xc0] sm:$0xf]
      %v2342 = vld [vmem:[%s2 + $0xc4] sm:$0xf]
      %v2343 = vld [vmem:[%s2 + $0xc8] sm:$0xf]
      %v2344 = vld [vmem:[%s2 + $0xcc] sm:$0xf]
      %v2345 = vld [vmem:[%s2 + $0xd0] sm:$0xf]
      %v2346 = vld [vmem:[%s2 + $0xd4] sm:$0xf]
      %v2347 = vld [vmem:[%s2 + $0xd8] sm:$0xf]
      %v2348 = vld [vmem:[%s2 + $0xdc] sm:$0xf]
      %v2349 = vld [vmem:[%s2 + $0xe0] sm:$0xf]
      %v2350 = vld [vmem:[%s2 + $0xe4] sm:$0xf]
      %v2351 = vld [vmem:[%s2 + $0xe8] sm:$0xf]
      %v2352 = vld [vmem:[%s2 + $0xec] sm:$0xf]
      %v2353 = vld [vmem:[%s2 + $0xf0] sm:$0xf]
      %v2354 = vld [vmem:[%s2 + $0xf4] sm:$0xf]
      %v2355 = vld [vmem:[%s2 + $0xf8] sm:$0xf]
      %v2356 = vld [vmem:[%s2 + $0xfc] sm:$0xf]
      %v2357 = vld [vmem:[%s2 + $0x100] sm:$0xf]
      %v2358 = vld [vmem:[%s2 + $0x104] sm:$0xf]
      %v2359 = vld [vmem:[%s2 + $0x108] sm:$0xf]
      %v2360 = vld [vmem:[%s2 + $0x10c] sm:$0xf]
      %v2361 = vld [vmem:[%s2 + $0x110] sm:$0xf]
      %v2362 = vld [vmem:[%s2 + $0x114] sm:$0xf]
      %v2363 = vld [vmem:[%s2 + $0x118] sm:$0xf]
      %v2364 = vld [vmem:[%s2 + $0x11c] sm:$0xf]
      %v2365 = vld [vmem:[%s2 + $0x120] sm:$0xf]
      %v2366 = vld [vmem:[%s2 + $0x124] sm:$0xf]
      %v2367 = vld [vmem:[%s2 + $0x128] sm:$0xf]
      %v2368 = vld [vmem:[%s2 + $0x12c] sm:$0xf]
      %v2369 = vld [vmem:[%s2 + $0x130] sm:$0xf]
      %v2370 = vld [vmem:[%s2 + $0x134] sm:$0xf]
      %v2371 = vld [vmem:[%s2 + $0x138] sm:$0xf]
      %v2372 = vld [vmem:[%s2 + $0x13c] sm:$0xf]
      %v2373 = vld [vmem:[%s3] sm:$0x1]
      %v2375 = vlaneseq
      %v2376 = vshrl.u32 %v2375, 7
      %v2377 = vsub.s32 0, %v2376
      %v2378 = vrot.slane %v2373, %v2377
      %v2460 = vunpack.c.l.b16 %v2293
      %v2461 = vunpack.c.l.b16 %v2294
      %v2462 = vunpack.c.l.b16 %v2295
      %v2463 = vunpack.c.l.b16 %v2296
      %v2464 = vunpack.c.l.b16 %v2297
      %v2465 = vunpack.c.l.b16 %v2298
      %v2466 = vunpack.c.l.b16 %v2299
      %v2467 = vunpack.c.l.b16 %v2300
      %v2468 = vunpack.c.l.b16 %v2301
      %v2469 = vunpack.c.l.b16 %v2302
      %v2470 = vunpack.c.l.b16 %v2303
      %v2471 = vunpack.c.l.b16 %v2304
      %v2472 = vunpack.c.l.b16 %v2305
      %v2473 = vunpack.c.l.b16 %v2306
      %v2474 = vunpack.c.l.b16 %v2307
      %v2475 = vunpack.c.l.b16 %v2308
      %v2476 = vunpack.c.l.b16 %v2309
      %v2477 = vunpack.c.l.b16 %v2310
      %v2478 = vunpack.c.l.b16 %v2311
      %v2479 = vunpack.c.l.b16 %v2312
      %v2480 = vunpack.c.l.b16 %v2313
      %v2481 = vunpack.c.l.b16 %v2314
      %v2482 = vunpack.c.l.b16 %v2315
      %v2483 = vunpack.c.l.b16 %v2316
      %v2484 = vunpack.c.l.b16 %v2317
      %v2485 = vunpack.c.l.b16 %v2318
      %v2486 = vunpack.c.l.b16 %v2319
      %v2487 = vunpack.c.l.b16 %v2320
      %v2488 = vunpack.c.l.b16 %v2321
      %v2489 = vunpack.c.l.b16 %v2322
      %v2490 = vunpack.c.l.b16 %v2323
      %v2491 = vunpack.c.l.b16 %v2324
      %v2492 = vunpack.c.l.b16 %v2325
      %v2493 = vunpack.c.l.b16 %v2326
      %v2494 = vunpack.c.l.b16 %v2327
      %v2495 = vunpack.c.l.b16 %v2328
      %v2496 = vunpack.c.l.b16 %v2329
      %v2497 = vunpack.c.l.b16 %v2330
      %v2498 = vunpack.c.l.b16 %v2331
      %v2499 = vunpack.c.l.b16 %v2332
      %v2500 = vunpack.c.l.b16 %v2333
      %v2501 = vunpack.c.l.b16 %v2334
      %v2502 = vunpack.c.l.b16 %v2335
      %v2503 = vunpack.c.l.b16 %v2336
      %v2504 = vunpack.c.l.b16 %v2337
      %v2505 = vunpack.c.l.b16 %v2338
      %v2506 = vunpack.c.l.b16 %v2339
      %v2507 = vunpack.c.l.b16 %v2340
      %v2508 = vunpack.c.l.b16 %v2341
      %v2509 = vunpack.c.l.b16 %v2342
      %v2510 = vunpack.c.l.b16 %v2343
      %v2511 = vunpack.c.l.b16 %v2344
      %v2512 = vunpack.c.l.b16 %v2345
      %v2513 = vunpack.c.l.b16 %v2346
      %v2514 = vunpack.c.l.b16 %v2347
      %v2515 = vunpack.c.l.b16 %v2348
      %v2516 = vunpack.c.l.b16 %v2349
      %v2517 = vunpack.c.l.b16 %v2350
      %v2518 = vunpack.c.l.b16 %v2351
      %v2519 = vunpack.c.l.b16 %v2352
      %v2520 = vunpack.c.l.b16 %v2353
      %v2521 = vunpack.c.l.b16 %v2354
      %v2522 = vunpack.c.l.b16 %v2355
      %v2523 = vunpack.c.l.b16 %v2356
      %v2524 = vunpack.c.l.b16 %v2357
      %v2525 = vunpack.c.l.b16 %v2358
      %v2526 = vunpack.c.l.b16 %v2359
      %v2527 = vunpack.c.l.b16 %v2360
      %v2528 = vunpack.c.l.b16 %v2361
      %v2529 = vunpack.c.l.b16 %v2362
      %v2530 = vunpack.c.l.b16 %v2363
      %v2531 = vunpack.c.l.b16 %v2364
      %v2532 = vunpack.c.l.b16 %v2365
      %v2533 = vunpack.c.l.b16 %v2366
      %v2534 = vunpack.c.l.b16 %v2367
      %v2535 = vunpack.c.l.b16 %v2368
      %v2536 = vunpack.c.l.b16 %v2369
      %v2537 = vunpack.c.l.b16 %v2370
      %v2538 = vunpack.c.l.b16 %v2371
      %v2539 = vunpack.c.l.b16 %v2372
      %v2540 = vpack.c.b16 %v2461, %v2460
      %v2541 = vpack.c.b16 %v2463, %v2462
      %v2542 = vpack.c.b16 %v2465, %v2464
      %v2543 = vpack.c.b16 %v2467, %v2466
      %v2544 = vpack.c.b16 %v2469, %v2468
      %v2545 = vpack.c.b16 %v2471, %v2470
      %v2546 = vpack.c.b16 %v2473, %v2472
      %v2547 = vpack.c.b16 %v2475, %v2474
      %v2548 = vpack.c.b16 %v2477, %v2476
      %v2549 = vpack.c.b16 %v2479, %v2478
      %v2550 = vpack.c.b16 %v2481, %v2480
      %v2551 = vpack.c.b16 %v2483, %v2482
      %v2552 = vpack.c.b16 %v2485, %v2484
      %v2553 = vpack.c.b16 %v2487, %v2486
      %v2554 = vpack.c.b16 %v2489, %v2488
      %v2555 = vpack.c.b16 %v2491, %v2490
      %v2556 = vpack.c.b16 %v2493, %v2492
      %v2557 = vpack.c.b16 %v2495, %v2494
      %v2558 = vpack.c.b16 %v2497, %v2496
      %v2559 = vpack.c.b16 %v2499, %v2498
      %v2560 = vpack.c.b16 %v2501, %v2500
      %v2561 = vpack.c.b16 %v2503, %v2502
      %v2562 = vpack.c.b16 %v2505, %v2504
      %v2563 = vpack.c.b16 %v2507, %v2506
      %v2564 = vpack.c.b16 %v2509, %v2508
      %v2565 = vpack.c.b16 %v2511, %v2510
      %v2566 = vpack.c.b16 %v2513, %v2512
      %v2567 = vpack.c.b16 %v2515, %v2514
      %v2568 = vpack.c.b16 %v2517, %v2516
      %v2569 = vpack.c.b16 %v2519, %v2518
      %v2570 = vpack.c.b16 %v2521, %v2520
      %v2571 = vpack.c.b16 %v2523, %v2522
      %v2572 = vpack.c.b16 %v2525, %v2524
      %v2573 = vpack.c.b16 %v2527, %v2526
      %v2574 = vpack.c.b16 %v2529, %v2528
      %v2575 = vpack.c.b16 %v2531, %v2530
      %v2576 = vpack.c.b16 %v2533, %v2532
      %v2577 = vpack.c.b16 %v2535, %v2534
      %v2578 = vpack.c.b16 %v2537, %v2536
      %v2579 = vpack.c.b16 %v2539, %v2538
      %2620 = vmatprep.subr.bf16.mxu0 0
      %2621 = vmatpush1.bf16.msra.mxu0 %v2547
      %2622 = vmatprep.subr.bf16.mxu0 0
      %2623 = vmatpush1.bf16.msra.mxu0 %v2546
      %2624 = vmatprep.subr.bf16.mxu0 0
      %2625 = vmatpush1.bf16.msra.mxu0 %v2545
      %2626 = vmatprep.subr.bf16.mxu0 0
      %2627 = vmatpush1.bf16.msra.mxu0 %v2544
      %2628 = vmatprep.subr.bf16.mxu0 0
      %2629 = vmatpush1.bf16.msra.mxu0 %v2543
      %2630 = vmatprep.subr.bf16.mxu0 0
      %2631 = vmatpush1.bf16.msra.mxu0 %v2542
      %2632 = vmatprep.subr.bf16.mxu0 0
      %2633 = vmatpush1.bf16.msra.mxu0 %v2541
      %2634 = vmatprep.subr.bf16.mxu0 0
      %2635 = vmatpush1.bf16.msra.mxu0 %v2540
      %2636 = vmatprep.subr.bf16.mxu0 0
      %2637 = vmatpush2.bf16.msra.mxu0 %v2555
      %2638 = vmatprep.subr.bf16.mxu0 0
      %2639 = vmatpush2.bf16.msra.mxu0 %v2554
      %2640 = vmatprep.subr.bf16.mxu0 0
      %2641 = vmatpush2.bf16.msra.mxu0 %v2553
      %2642 = vmatprep.subr.bf16.mxu0 0
      %2643 = vmatpush2.bf16.msra.mxu0 %v2552
      %2644 = vmatprep.subr.bf16.mxu0 0
      %2645 = vmatpush2.bf16.msra.mxu0 %v2551
      %2646 = vmatprep.subr.bf16.mxu0 0
      %2647 = vmatpush2.bf16.msra.mxu0 %v2550
      %2648 = vmatprep.subr.bf16.mxu0 0
      %2649 = vmatpush2.bf16.msra.mxu0 %v2549
      %2650 = vmatprep.subr.bf16.mxu0 0
      %2651 = vmatpush2.bf16.msra.mxu0 %v2548
      %2652 = vmatprep.mubr.bf16.mxu0 %v1895
      %2653 = vmatmul.mubr.bf16.gmra.mxu0 %v1783
      %v2654 = vpop.f32.mrf.mxu0
      %v2655 = vadd.f32 %v2378, %v2654
      %v2656 = vpop.f32.mrf.mxu0
      %v2657 = vpop.f32.mrf.mxu0
      %v2658 = vadd.f32 %v2378, %v2657
      %v2659 = vpop.f32.mrf.mxu0
      %2660 = vmatprep.mubr.bf16.mxu0 %v1899
      %2661 = vmatmul.mubr.bf16.gmra.mxu0 %v1787
      %v2662 = vpop.f32.mrf.mxu0
      %v2663 = vadd.f32 %v2378, %v2662
      %v2664 = vpop.f32.mrf.mxu0
      %v2665 = vpop.f32.mrf.mxu0
      %v2666 = vadd.f32 %v2378, %v2665
      %v2667 = vpop.f32.mrf.mxu0
      %2668 = vmatprep.mubr.bf16.mxu0 %v1903
      %2669 = vmatmul.mubr.bf16.gmra.mxu0 %v1791
      %v2670 = vpop.f32.mrf.mxu0
      %v2671 = vadd.f32 %v2378, %v2670
      %v2672 = vpop.f32.mrf.mxu0
      %v2673 = vpop.f32.mrf.mxu0
      %v2674 = vadd.f32 %v2378, %v2673
      %v2675 = vpop.f32.mrf.mxu0
      %2676 = vmatprep.mubr.bf16.mxu0 %v1907
      %2677 = vmatmul.mubr.bf16.gmra.mxu0 %v1795
      %v2678 = vpop.f32.mrf.mxu0
      %v2679 = vadd.f32 %v2378, %v2678
      %v2680 = vpop.f32.mrf.mxu0
      %v2681 = vpop.f32.mrf.mxu0
      %v2682 = vadd.f32 %v2378, %v2681
      %v2683 = vpop.f32.mrf.mxu0
      %2684 = vmatprep.mubr.bf16.mxu0 %v1911
      %2685 = vmatmul.mubr.bf16.gmra.mxu0 %v1799
      %v2686 = vpop.f32.mrf.mxu0
      %v2687 = vadd.f32 %v2378, %v2686
      %v2688 = vpop.f32.mrf.mxu0
      %v2689 = vpop.f32.mrf.mxu0
      %v2690 = vadd.f32 %v2378, %v2689
      %v2691 = vpop.f32.mrf.mxu0
      %2692 = vmatprep.mubr.bf16.mxu0 %v1915
      %2693 = vmatmul.mubr.bf16.gmra.mxu0 %v1803
      %v2694 = vpop.f32.mrf.mxu0
      %v2695 = vadd.f32 %v2378, %v2694
      %v2696 = vpop.f32.mrf.mxu0
      %v2697 = vpop.f32.mrf.mxu0
      %v2698 = vadd.f32 %v2378, %v2697
      %v2699 = vpop.f32.mrf.mxu0
      %2700 = vmatprep.mubr.bf16.mxu0 %v1919
      %2701 = vmatmul.mubr.bf16.gmra.mxu0 %v1807
      %v2702 = vpop.f32.mrf.mxu0
      %v2703 = vadd.f32 %v2378, %v2702
      %v2704 = vpop.f32.mrf.mxu0
      %v2705 = vpop.f32.mrf.mxu0
      %v2706 = vadd.f32 %v2378, %v2705
      %v2707 = vpop.f32.mrf.mxu0
      %2708 = vmatprep.mubr.bf16.mxu0 %v1923
      %2709 = vmatmul.mubr.bf16.gmra.mxu0 %v1811
      %v2710 = vpop.f32.mrf.mxu0
      %v2711 = vadd.f32 %v2378, %v2710
      %v2712 = vpop.f32.mrf.mxu0
      %v2713 = vpop.f32.mrf.mxu0
      %v2714 = vadd.f32 %v2378, %v2713
      %v2715 = vpop.f32.mrf.mxu0
      %2716 = vmatprep.mubr.bf16.mxu0 %v1927
      %2717 = vmatmul.mubr.bf16.gmra.mxu0 %v1815
      %v2718 = vpop.f32.mrf.mxu0
      %v2719 = vadd.f32 %v2378, %v2718
      %v2720 = vpop.f32.mrf.mxu0
      %v2721 = vpop.f32.mrf.mxu0
      %v2722 = vadd.f32 %v2378, %v2721
      %v2723 = vpop.f32.mrf.mxu0
      %2724 = vmatprep.mubr.bf16.mxu0 %v1931
      %2725 = vmatmul.mubr.bf16.gmra.mxu0 %v1819
      %v2726 = vpop.f32.mrf.mxu0
      %v2727 = vadd.f32 %v2378, %v2726
      %v2728 = vpop.f32.mrf.mxu0
      %v2729 = vpop.f32.mrf.mxu0
      %v2730 = vadd.f32 %v2378, %v2729
      %v2731 = vpop.f32.mrf.mxu0
      %2732 = vmatprep.mubr.bf16.mxu0 %v1935
      %2733 = vmatmul.mubr.bf16.gmra.mxu0 %v1823
      %v2734 = vpop.f32.mrf.mxu0
      %v2735 = vadd.f32 %v2378, %v2734
      %v2736 = vpop.f32.mrf.mxu0
      %v2737 = vpop.f32.mrf.mxu0
      %v2738 = vadd.f32 %v2378, %v2737
      %v2739 = vpop.f32.mrf.mxu0
      %2740 = vmatprep.mubr.bf16.mxu0 %v1939
      %2741 = vmatmul.mubr.bf16.gmra.mxu0 %v1827
      %v2742 = vpop.f32.mrf.mxu0
      %v2743 = vadd.f32 %v2378, %v2742
      %v2744 = vpop.f32.mrf.mxu0
      %v2745 = vpop.f32.mrf.mxu0
      %v2746 = vadd.f32 %v2378, %v2745
      %v2747 = vpop.f32.mrf.mxu0
      %2748 = vmatprep.mubr.bf16.mxu0 %v1943
      %2749 = vmatmul.mubr.bf16.gmra.mxu0 %v1831
      %v2750 = vpop.f32.mrf.mxu0
      %v2751 = vadd.f32 %v2378, %v2750
      %v2752 = vpop.f32.mrf.mxu0
      %v2753 = vpop.f32.mrf.mxu0
      %v2754 = vadd.f32 %v2378, %v2753
      %v2755 = vpop.f32.mrf.mxu0
      %2756 = vmatprep.mubr.bf16.mxu0 %v1947
      %2757 = vmatmul.mubr.bf16.gmra.mxu0 %v1835
      %v2758 = vpop.f32.mrf.mxu0
      %v2759 = vadd.f32 %v2378, %v2758
      %v2760 = vpop.f32.mrf.mxu0
      %v2761 = vpop.f32.mrf.mxu0
      %v2762 = vadd.f32 %v2378, %v2761
      %v2763 = vpop.f32.mrf.mxu0
      %2764 = vmatprep.mubr.bf16.mxu0 %v1951
      %2765 = vmatmul.mubr.bf16.gmra.mxu0 %v1839
      %v2766 = vpop.f32.mrf.mxu0
      %v2767 = vadd.f32 %v2378, %v2766
      %v2768 = vpop.f32.mrf.mxu0
      %v2769 = vpop.f32.mrf.mxu0
      %v2770 = vadd.f32 %v2378, %v2769
      %v2771 = vpop.f32.mrf.mxu0
      %2772 = vmatprep.mubr.bf16.mxu0 %v1955
      %2773 = vmatmul.mubr.bf16.gmra.mxu0 %v1843
      %v2774 = vpop.f32.mrf.mxu0
      %v2775 = vadd.f32 %v2378, %v2774
      %v2776 = vpop.f32.mrf.mxu0
      %v2777 = vpop.f32.mrf.mxu0
      %v2778 = vadd.f32 %v2378, %v2777
      %v2779 = vpop.f32.mrf.mxu0
      %2780 = vdwg.mxu0
      %2781 = vmatprep.subr.bf16.mxu0 0
      %2782 = vmatpush1.bf16.msra.mxu0 %v2563
      %2783 = vmatprep.subr.bf16.mxu0 0
      %2784 = vmatpush1.bf16.msra.mxu0 %v2562
      %2785 = vmatprep.subr.bf16.mxu0 0
      %2786 = vmatpush1.bf16.msra.mxu0 %v2561
      %2787 = vmatprep.subr.bf16.mxu0 0
      %2788 = vmatpush1.bf16.msra.mxu0 %v2560
      %2789 = vmatprep.subr.bf16.mxu0 0
      %2790 = vmatpush1.bf16.msra.mxu0 %v2559
      %2791 = vmatprep.subr.bf16.mxu0 0
      %2792 = vmatpush1.bf16.msra.mxu0 %v2558
      %2793 = vmatprep.subr.bf16.mxu0 0
      %2794 = vmatpush1.bf16.msra.mxu0 %v2557
      %2795 = vmatprep.subr.bf16.mxu0 0
      %2796 = vmatpush1.bf16.msra.mxu0 %v2556
      %2797 = vmatprep.subr.bf16.mxu0 0
      %2798 = vmatpush2.bf16.msra.mxu0 %v2571
      %2799 = vmatprep.subr.bf16.mxu0 0
      %2800 = vmatpush2.bf16.msra.mxu0 %v2570
      %2801 = vmatprep.subr.bf16.mxu0 0
      %2802 = vmatpush2.bf16.msra.mxu0 %v2569
      %2803 = vmatprep.subr.bf16.mxu0 0
      %2804 = vmatpush2.bf16.msra.mxu0 %v2568
      %2805 = vmatprep.subr.bf16.mxu0 0
      %2806 = vmatpush2.bf16.msra.mxu0 %v2567
      %2807 = vmatprep.subr.bf16.mxu0 0
      %2808 = vmatpush2.bf16.msra.mxu0 %v2566
      %2809 = vmatprep.subr.bf16.mxu0 0
      %2810 = vmatpush2.bf16.msra.mxu0 %v2565
      %2811 = vmatprep.subr.bf16.mxu0 0
      %2812 = vmatpush2.bf16.msra.mxu0 %v2564
      %2813 = vmatprep.mubr.bf16.mxu0 %v2119
      %2814 = vmatmul.mubr.bf16.gmra.mxu0 %v2007
      %v2815 = vpop.f32.mrf.mxu0
      %v2816 = vadd.f32 %v2655, %v2815
      %v2817 = vpop.f32.mrf.mxu0
      %v2818 = vpop.f32.mrf.mxu0
      %v2819 = vadd.f32 %v2658, %v2818
      %v2820 = vpop.f32.mrf.mxu0
      %2821 = vmatprep.mubr.bf16.mxu0 %v2123
      %2822 = vmatmul.mubr.bf16.gmra.mxu0 %v2011
      %v2823 = vpop.f32.mrf.mxu0
      %v2824 = vadd.f32 %v2663, %v2823
      %v2825 = vpop.f32.mrf.mxu0
      %v2826 = vpop.f32.mrf.mxu0
      %v2827 = vadd.f32 %v2666, %v2826
      %v2828 = vpop.f32.mrf.mxu0
      %2829 = vmatprep.mubr.bf16.mxu0 %v2127
      %2830 = vmatmul.mubr.bf16.gmra.mxu0 %v2015
      %v2831 = vpop.f32.mrf.mxu0
      %v2832 = vadd.f32 %v2671, %v2831
      %v2833 = vpop.f32.mrf.mxu0
      %v2834 = vpop.f32.mrf.mxu0
      %v2835 = vadd.f32 %v2674, %v2834
      %v2836 = vpop.f32.mrf.mxu0
      %2837 = vmatprep.mubr.bf16.mxu0 %v2131
      %2838 = vmatmul.mubr.bf16.gmra.mxu0 %v2019
      %v2839 = vpop.f32.mrf.mxu0
      %v2840 = vadd.f32 %v2679, %v2839
      %v2841 = vpop.f32.mrf.mxu0
      %v2842 = vpop.f32.mrf.mxu0
      %v2843 = vadd.f32 %v2682, %v2842
      %v2844 = vpop.f32.mrf.mxu0
      %2845 = vmatprep.mubr.bf16.mxu0 %v2135
      %2846 = vmatmul.mubr.bf16.gmra.mxu0 %v2023
      %v2847 = vpop.f32.mrf.mxu0
      %v2848 = vadd.f32 %v2687, %v2847
      %v2849 = vpop.f32.mrf.mxu0
      %v2850 = vpop.f32.mrf.mxu0
      %v2851 = vadd.f32 %v2690, %v2850
      %v2852 = vpop.f32.mrf.mxu0
      %2853 = vmatprep.mubr.bf16.mxu0 %v2139
      %2854 = vmatmul.mubr.bf16.gmra.mxu0 %v2027
      %v2855 = vpop.f32.mrf.mxu0
      %v2856 = vadd.f32 %v2695, %v2855
      %v2857 = vpop.f32.mrf.mxu0
      %v2858 = vpop.f32.mrf.mxu0
      %v2859 = vadd.f32 %v2698, %v2858
      %v2860 = vpop.f32.mrf.mxu0
      %2861 = vmatprep.mubr.bf16.mxu0 %v2143
      %2862 = vmatmul.mubr.bf16.gmra.mxu0 %v2031
      %v2863 = vpop.f32.mrf.mxu0
      %v2864 = vadd.f32 %v2703, %v2863
      %v2865 = vpop.f32.mrf.mxu0
      %v2866 = vpop.f32.mrf.mxu0
      %v2867 = vadd.f32 %v2706, %v2866
      %v2868 = vpop.f32.mrf.mxu0
      %2869 = vmatprep.mubr.bf16.mxu0 %v2147
      %2870 = vmatmul.mubr.bf16.gmra.mxu0 %v2035
      %v2871 = vpop.f32.mrf.mxu0
      %v2872 = vadd.f32 %v2711, %v2871
      %v2873 = vpop.f32.mrf.mxu0
      %v2874 = vpop.f32.mrf.mxu0
      %v2875 = vadd.f32 %v2714, %v2874
      %v2876 = vpop.f32.mrf.mxu0
      %2877 = vmatprep.mubr.bf16.mxu0 %v2151
      %2878 = vmatmul.mubr.bf16.gmra.mxu0 %v2039
      %v2879 = vpop.f32.mrf.mxu0
      %v2880 = vadd.f32 %v2719, %v2879
      %v2881 = vpop.f32.mrf.mxu0
      %v2882 = vpop.f32.mrf.mxu0
      %v2883 = vadd.f32 %v2722, %v2882
      %v2884 = vpop.f32.mrf.mxu0
      %2885 = vmatprep.mubr.bf16.mxu0 %v2155
      %2886 = vmatmul.mubr.bf16.gmra.mxu0 %v2043
      %v2887 = vpop.f32.mrf.mxu0
      %v2888 = vadd.f32 %v2727, %v2887
      %v2889 = vpop.f32.mrf.mxu0
      %v2890 = vpop.f32.mrf.mxu0
      %v2891 = vadd.f32 %v2730, %v2890
      %v2892 = vpop.f32.mrf.mxu0
      %2893 = vmatprep.mubr.bf16.mxu0 %v2159
      %2894 = vmatmul.mubr.bf16.gmra.mxu0 %v2047
      %v2895 = vpop.f32.mrf.mxu0
      %v2896 = vadd.f32 %v2735, %v2895
      %v2897 = vpop.f32.mrf.mxu0
      %v2898 = vpop.f32.mrf.mxu0
      %v2899 = vadd.f32 %v2738, %v2898
      %v2900 = vpop.f32.mrf.mxu0
      %2901 = vmatprep.mubr.bf16.mxu0 %v2163
      %2902 = vmatmul.mubr.bf16.gmra.mxu0 %v2051
      %v2903 = vpop.f32.mrf.mxu0
      %v2904 = vadd.f32 %v2743, %v2903
      %v2905 = vpop.f32.mrf.mxu0
      %v2906 = vpop.f32.mrf.mxu0
      %v2907 = vadd.f32 %v2746, %v2906
      %v2908 = vpop.f32.mrf.mxu0
      %2909 = vmatprep.mubr.bf16.mxu0 %v2167
      %2910 = vmatmul.mubr.bf16.gmra.mxu0 %v2055
      %v2911 = vpop.f32.mrf.mxu0
      %v2912 = vadd.f32 %v2751, %v2911
      %v2913 = vpop.f32.mrf.mxu0
      %v2914 = vpop.f32.mrf.mxu0
      %v2915 = vadd.f32 %v2754, %v2914
      %v2916 = vpop.f32.mrf.mxu0
      %2917 = vmatprep.mubr.bf16.mxu0 %v2171
      %2918 = vmatmul.mubr.bf16.gmra.mxu0 %v2059
      %v2919 = vpop.f32.mrf.mxu0
      %v2920 = vadd.f32 %v2759, %v2919
      %v2921 = vpop.f32.mrf.mxu0
      %v2922 = vpop.f32.mrf.mxu0
      %v2923 = vadd.f32 %v2762, %v2922
      %v2924 = vpop.f32.mrf.mxu0
      %2925 = vmatprep.mubr.bf16.mxu0 %v2175
      %2926 = vmatmul.mubr.bf16.gmra.mxu0 %v2063
      %v2927 = vpop.f32.mrf.mxu0
      %v2928 = vadd.f32 %v2767, %v2927
      %v2929 = vpop.f32.mrf.mxu0
      %v2930 = vpop.f32.mrf.mxu0
      %v2931 = vadd.f32 %v2770, %v2930
      %v2932 = vpop.f32.mrf.mxu0
      %2933 = vmatprep.mubr.bf16.mxu0 %v2179
      %2934 = vmatmul.mubr.bf16.gmra.mxu0 %v2067
      %v2935 = vpop.f32.mrf.mxu0
      %v2936 = vadd.f32 %v2775, %v2935
      %v2937 = vpop.f32.mrf.mxu0
      %v2938 = vpop.f32.mrf.mxu0
      %v2939 = vadd.f32 %v2778, %v2938
      %v2940 = vpop.f32.mrf.mxu0
      %2941 = vdwg.mxu0
      %2942 = vmatprep.subr.bf16.mxu0 0
      %2943 = vmatpush1.bf16.msra.mxu0 %v2579
      %2944 = vmatprep.subr.bf16.mxu0 0
      %2945 = vmatpush1.bf16.msra.mxu0 %v2578
      %2946 = vmatprep.subr.bf16.mxu0 0
      %2947 = vmatpush1.bf16.msra.mxu0 %v2577
      %2948 = vmatprep.subr.bf16.mxu0 0
      %2949 = vmatpush1.bf16.msra.mxu0 %v2576
      %2950 = vmatprep.subr.bf16.mxu0 0
      %2951 = vmatpush1.bf16.msra.mxu0 %v2575
      %2952 = vmatprep.subr.bf16.mxu0 0
      %2953 = vmatpush1.bf16.msra.mxu0 %v2574
      %2954 = vmatprep.subr.bf16.mxu0 0
      %2955 = vmatpush1.bf16.msra.mxu0 %v2573
      %2956 = vmatprep.subr.bf16.mxu0 0
      %2957 = vmatpush1.bf16.msra.mxu0 %v2572
      %2958 = vmatprep.subr.bf16.mxu0 0
      %2959 = vmatpush2.bf16.msra.mxu0 0
      %2960 = vmatprep.subr.bf16.mxu0 0
      %2961 = vmatpush2.bf16.msra.mxu0 0
      %2962 = vmatprep.subr.bf16.mxu0 0
      %2963 = vmatpush2.bf16.msra.mxu0 0
      %2964 = vmatprep.subr.bf16.mxu0 0
      %2965 = vmatpush2.bf16.msra.mxu0 0
      %2966 = vmatprep.subr.bf16.mxu0 0
      %2967 = vmatpush2.bf16.msra.mxu0 0
      %2968 = vmatprep.subr.bf16.mxu0 0
      %2969 = vmatpush2.bf16.msra.mxu0 0
      %2970 = vmatprep.subr.bf16.mxu0 0
      %2971 = vmatpush2.bf16.msra.mxu0 0
      %2972 = vmatprep.subr.bf16.mxu0 0
      %2973 = vmatpush2.bf16.msra.mxu0 0
      %2974 = vmatprep.mubr.bf16.mxu0 0
      %2975 = vmatmul.mubr.bf16.gmra.mxu0 %v2231
      %v2976 = vpop.f32.mrf.mxu0
      %v2977 = vadd.f32 %v2816, %v2976
      %v2978 = vpop.f32.mrf.mxu0
      %v2979 = vpop.f32.mrf.mxu0
      %v2980 = vadd.f32 %v2819, %v2979
      %v2981 = vpop.f32.mrf.mxu0
      %2982 = vmatprep.mubr.bf16.mxu0 0
      %2983 = vmatmul.mubr.bf16.gmra.mxu0 %v2235
      %v2984 = vpop.f32.mrf.mxu0
      %v2985 = vadd.f32 %v2824, %v2984
      %v2986 = vpop.f32.mrf.mxu0
      %v2987 = vpop.f32.mrf.mxu0
      %v2988 = vadd.f32 %v2827, %v2987
      %v2989 = vpop.f32.mrf.mxu0
      %2990 = vmatprep.mubr.bf16.mxu0 0
      %2991 = vmatmul.mubr.bf16.gmra.mxu0 %v2239
      %v2992 = vpop.f32.mrf.mxu0
      %v2993 = vadd.f32 %v2832, %v2992
      %v2994 = vpop.f32.mrf.mxu0
      %v2995 = vpop.f32.mrf.mxu0
      %v2996 = vadd.f32 %v2835, %v2995
      %v2997 = vpop.f32.mrf.mxu0
      %2998 = vmatprep.mubr.bf16.mxu0 0
      %2999 = vmatmul.mubr.bf16.gmra.mxu0 %v2243
      %v3000 = vpop.f32.mrf.mxu0
      %v3001 = vadd.f32 %v2840, %v3000
      %v3002 = vpop.f32.mrf.mxu0
      %v3003 = vpop.f32.mrf.mxu0
      %v3004 = vadd.f32 %v2843, %v3003
      %v3005 = vpop.f32.mrf.mxu0
      %3006 = vmatprep.mubr.bf16.mxu0 0
      %3007 = vmatmul.mubr.bf16.gmra.mxu0 %v2247
      %v3008 = vpop.f32.mrf.mxu0
      %v3009 = vadd.f32 %v2848, %v3008
      %v3010 = vpop.f32.mrf.mxu0
      %v3011 = vpop.f32.mrf.mxu0
      %v3012 = vadd.f32 %v2851, %v3011
      %v3013 = vpop.f32.mrf.mxu0
      %3014 = vmatprep.mubr.bf16.mxu0 0
      %3015 = vmatmul.mubr.bf16.gmra.mxu0 %v2251
      %v3016 = vpop.f32.mrf.mxu0
      %v3017 = vadd.f32 %v2856, %v3016
      %v3018 = vpop.f32.mrf.mxu0
      %v3019 = vpop.f32.mrf.mxu0
      %v3020 = vadd.f32 %v2859, %v3019
      %v3021 = vpop.f32.mrf.mxu0
      %3022 = vmatprep.mubr.bf16.mxu0 0
      %3023 = vmatmul.mubr.bf16.gmra.mxu0 %v2255
      %v3024 = vpop.f32.mrf.mxu0
      %v3025 = vadd.f32 %v2864, %v3024
      %v3026 = vpop.f32.mrf.mxu0
      %v3027 = vpop.f32.mrf.mxu0
      %v3028 = vadd.f32 %v2867, %v3027
      %v3029 = vpop.f32.mrf.mxu0
      %3030 = vmatprep.mubr.bf16.mxu0 0
      %3031 = vmatmul.mubr.bf16.gmra.mxu0 %v2259
      %v3032 = vpop.f32.mrf.mxu0
      %v3033 = vadd.f32 %v2872, %v3032
      %v3034 = vpop.f32.mrf.mxu0
      %v3035 = vpop.f32.mrf.mxu0
      %v3036 = vadd.f32 %v2875, %v3035
      %v3037 = vpop.f32.mrf.mxu0
      %3038 = vmatprep.mubr.bf16.mxu0 0
      %3039 = vmatmul.mubr.bf16.gmra.mxu0 %v2263
      %v3040 = vpop.f32.mrf.mxu0
      %v3041 = vadd.f32 %v2880, %v3040
      %v3042 = vpop.f32.mrf.mxu0
      %v3043 = vpop.f32.mrf.mxu0
      %v3044 = vadd.f32 %v2883, %v3043
      %v3045 = vpop.f32.mrf.mxu0
      %3046 = vmatprep.mubr.bf16.mxu0 0
      %3047 = vmatmul.mubr.bf16.gmra.mxu0 %v2267
      %v3048 = vpop.f32.mrf.mxu0
      %v3049 = vadd.f32 %v2888, %v3048
      %v3050 = vpop.f32.mrf.mxu0
      %v3051 = vpop.f32.mrf.mxu0
      %v3052 = vadd.f32 %v2891, %v3051
      %v3053 = vpop.f32.mrf.mxu0
      %3054 = vmatprep.mubr.bf16.mxu0 0
      %3055 = vmatmul.mubr.bf16.gmra.mxu0 %v2271
      %v3056 = vpop.f32.mrf.mxu0
      %v3057 = vadd.f32 %v2896, %v3056
      %v3058 = vpop.f32.mrf.mxu0
      %v3059 = vpop.f32.mrf.mxu0
      %v3060 = vadd.f32 %v2899, %v3059
      %v3061 = vpop.f32.mrf.mxu0
      %3062 = vmatprep.mubr.bf16.mxu0 0
      %3063 = vmatmul.mubr.bf16.gmra.mxu0 %v2275
      %v3064 = vpop.f32.mrf.mxu0
      %v3065 = vadd.f32 %v2904, %v3064
      %v3066 = vpop.f32.mrf.mxu0
      %v3067 = vpop.f32.mrf.mxu0
      %v3068 = vadd.f32 %v2907, %v3067
      %v3069 = vpop.f32.mrf.mxu0
      %3070 = vmatprep.mubr.bf16.mxu0 0
      %3071 = vmatmul.mubr.bf16.gmra.mxu0 %v2279
      %v3072 = vpop.f32.mrf.mxu0
      %v3073 = vadd.f32 %v2912, %v3072
      %v3074 = vpop.f32.mrf.mxu0
      %v3075 = vpop.f32.mrf.mxu0
      %v3076 = vadd.f32 %v2915, %v3075
      %v3077 = vpop.f32.mrf.mxu0
      %3078 = vmatprep.mubr.bf16.mxu0 0
      %3079 = vmatmul.mubr.bf16.gmra.mxu0 %v2283
      %v3080 = vpop.f32.mrf.mxu0
      %v3081 = vadd.f32 %v2920, %v3080
      %v3082 = vpop.f32.mrf.mxu0
      %v3083 = vpop.f32.mrf.mxu0
      %v3084 = vadd.f32 %v2923, %v3083
      %v3085 = vpop.f32.mrf.mxu0
      %3086 = vmatprep.mubr.bf16.mxu0 0
      %3087 = vmatmul.mubr.bf16.gmra.mxu0 %v2287
      %v3088 = vpop.f32.mrf.mxu0
      %v3089 = vadd.f32 %v2928, %v3088
      %v3090 = vpop.f32.mrf.mxu0
      %v3091 = vpop.f32.mrf.mxu0
      %v3092 = vadd.f32 %v2931, %v3091
      %v3093 = vpop.f32.mrf.mxu0
      %3094 = vmatprep.mubr.bf16.mxu0 0
      %3095 = vmatmul.mubr.bf16.gmra.mxu0 %v2291
      %v3096 = vpop.f32.mrf.mxu0
      %v3097 = vadd.f32 %v2936, %v3096
      %v3098 = vpop.f32.mrf.mxu0
      %v3099 = vpop.f32.mrf.mxu0
      %v3100 = vadd.f32 %v2939, %v3099
      %v3101 = vpop.f32.mrf.mxu0
      %3102 = vdwg.mxu0
      %vm3103 = vcmp.gt.f32.partialorder %v2977, 0.0
      %vm3104 = vcmp.gt.f32.partialorder %v2980, 0.0
      %vm3105 = vcmp.gt.f32.partialorder %v2985, 0.0
      %vm3106 = vcmp.gt.f32.partialorder %v2988, 0.0
      %vm3107 = vcmp.gt.f32.partialorder %v2993, 0.0
      %vm3108 = vcmp.gt.f32.partialorder %v2996, 0.0
      %vm3109 = vcmp.gt.f32.partialorder %v3001, 0.0
      %vm3110 = vcmp.gt.f32.partialorder %v3004, 0.0
      %vm3111 = vcmp.gt.f32.partialorder %v3009, 0.0
      %vm3112 = vcmp.gt.f32.partialorder %v3012, 0.0
      %vm3113 = vcmp.gt.f32.partialorder %v3017, 0.0
      %vm3114 = vcmp.gt.f32.partialorder %v3020, 0.0
      %vm3115 = vcmp.gt.f32.partialorder %v3025, 0.0
      %vm3116 = vcmp.gt.f32.partialorder %v3028, 0.0
      %vm3117 = vcmp.gt.f32.partialorder %v3033, 0.0
      %vm3118 = vcmp.gt.f32.partialorder %v3036, 0.0
      %vm3119 = vcmp.gt.f32.partialorder %v3041, 0.0
      %vm3120 = vcmp.gt.f32.partialorder %v3044, 0.0
      %vm3121 = vcmp.gt.f32.partialorder %v3049, 0.0
      %vm3122 = vcmp.gt.f32.partialorder %v3052, 0.0
      %vm3123 = vcmp.gt.f32.partialorder %v3057, 0.0
      %vm3124 = vcmp.gt.f32.partialorder %v3060, 0.0
      %vm3125 = vcmp.gt.f32.partialorder %v3065, 0.0
      %vm3126 = vcmp.gt.f32.partialorder %v3068, 0.0
      %vm3127 = vcmp.gt.f32.partialorder %v3073, 0.0
      %vm3128 = vcmp.gt.f32.partialorder %v3076, 0.0
      %vm3129 = vcmp.gt.f32.partialorder %v3081, 0.0
      %vm3130 = vcmp.gt.f32.partialorder %v3084, 0.0
      %vm3131 = vcmp.gt.f32.partialorder %v3089, 0.0
      %vm3132 = vcmp.gt.f32.partialorder %v3092, 0.0
      %vm3133 = vcmp.gt.f32.partialorder %v3097, 0.0
      %vm3134 = vcmp.gt.f32.partialorder %v3100, 0.0
      %v3135 = vmul.f32 %v2977, 0.2
      %v3136 = vmul.f32 %v2980, 0.2
      %v3137 = vmul.f32 %v2985, 0.2
      %v3138 = vmul.f32 %v2988, 0.2
      %v3139 = vmul.f32 %v2993, 0.2
      %v3140 = vmul.f32 %v2996, 0.2
      %v3141 = vmul.f32 %v3001, 0.2
      %v3142 = vmul.f32 %v3004, 0.2
      %v3143 = vmul.f32 %v3009, 0.2
      %v3144 = vmul.f32 %v3012, 0.2
      %v3145 = vmul.f32 %v3017, 0.2
      %v3146 = vmul.f32 %v3020, 0.2
      %v3147 = vmul.f32 %v3025, 0.2
      %v3148 = vmul.f32 %v3028, 0.2
      %v3149 = vmul.f32 %v3033, 0.2
      %v3150 = vmul.f32 %v3036, 0.2
      %v3151 = vmul.f32 %v3041, 0.2
      %v3152 = vmul.f32 %v3044, 0.2
      %v3153 = vmul.f32 %v3049, 0.2
      %v3154 = vmul.f32 %v3052, 0.2
      %v3155 = vmul.f32 %v3057, 0.2
      %v3156 = vmul.f32 %v3060, 0.2
      %v3157 = vmul.f32 %v3065, 0.2
      %v3158 = vmul.f32 %v3068, 0.2
      %v3159 = vmul.f32 %v3073, 0.2
      %v3160 = vmul.f32 %v3076, 0.2
      %v3161 = vmul.f32 %v3081, 0.2
      %v3162 = vmul.f32 %v3084, 0.2
      %v3163 = vmul.f32 %v3089, 0.2
      %v3164 = vmul.f32 %v3092, 0.2
      %v3165 = vmul.f32 %v3097, 0.2
      %v3166 = vmul.f32 %v3100, 0.2
      %v3167 = vsel %vm3103, %v2977, %v3135
      %v3168 = vsel %vm3104, %v2980, %v3136
      %v3169 = vsel %vm3105, %v2985, %v3137
      %v3170 = vsel %vm3106, %v2988, %v3138
      %v3171 = vsel %vm3107, %v2993, %v3139
      %v3172 = vsel %vm3108, %v2996, %v3140
      %v3173 = vsel %vm3109, %v3001, %v3141
      %v3174 = vsel %vm3110, %v3004, %v3142
      %v3175 = vsel %vm3111, %v3009, %v3143
      %v3176 = vsel %vm3112, %v3012, %v3144
      %v3177 = vsel %vm3113, %v3017, %v3145
      %v3178 = vsel %vm3114, %v3020, %v3146
      %v3179 = vsel %vm3115, %v3025, %v3147
      %v3180 = vsel %vm3116, %v3028, %v3148
      %v3181 = vsel %vm3117, %v3033, %v3149
      %v3182 = vsel %vm3118, %v3036, %v3150
      %v3183 = vsel %vm3119, %v3041, %v3151
      %v3184 = vsel %vm3120, %v3044, %v3152
      %v3185 = vsel %vm3121, %v3049, %v3153
      %v3186 = vsel %vm3122, %v3052, %v3154
      %v3187 = vsel %vm3123, %v3057, %v3155
      %v3188 = vsel %vm3124, %v3060, %v3156
      %v3189 = vsel %vm3125, %v3065, %v3157
      %v3190 = vsel %vm3126, %v3068, %v3158
      %v3191 = vsel %vm3127, %v3073, %v3159
      %v3192 = vsel %vm3128, %v3076, %v3160
      %v3193 = vsel %vm3129, %v3081, %v3161
      %v3194 = vsel %vm3130, %v3084, %v3162
      %v3195 = vsel %vm3131, %v3089, %v3163
      %v3196 = vsel %vm3132, %v3092, %v3164
      %v3197 = vsel %vm3133, %v3097, %v3165
      %v3198 = vsel %vm3134, %v3100, %v3166
      %v3199 = vrot.slane %v3167, 1
      %v3200 = vrot.slane %v3168, 1
      %v3201 = vrot.slane %v3169, 1
      %v3202 = vrot.slane %v3170, 1
      %v3203 = vrot.slane %v3171, 1
      %v3204 = vrot.slane %v3172, 1
      %v3205 = vrot.slane %v3173, 1
      %v3206 = vrot.slane %v3174, 1
      %v3207 = vrot.slane %v3175, 1
      %v3208 = vrot.slane %v3176, 1
      %v3209 = vrot.slane %v3177, 1
      %v3210 = vrot.slane %v3178, 1
      %v3211 = vrot.slane %v3179, 1
      %v3212 = vrot.slane %v3180, 1
      %v3213 = vrot.slane %v3181, 1
      %v3214 = vrot.slane %v3182, 1
      %v3215 = vrot.slane %v3183, 1
      %v3216 = vrot.slane %v3184, 1
      %v3217 = vrot.slane %v3185, 1
      %v3218 = vrot.slane %v3186, 1
      %v3219 = vrot.slane %v3187, 1
      %v3220 = vrot.slane %v3188, 1
      %v3221 = vrot.slane %v3189, 1
      %v3222 = vrot.slane %v3190, 1
      %v3223 = vrot.slane %v3191, 1
      %v3224 = vrot.slane %v3192, 1
      %v3225 = vrot.slane %v3193, 1
      %v3226 = vrot.slane %v3194, 1
      %v3227 = vrot.slane %v3195, 1
      %v3228 = vrot.slane %v3196, 1
      %v3229 = vrot.slane %v3197, 1
      %v3230 = vrot.slane %v3198, 1
      %v3231 = vsel %vm427, %v3229, %v3230
      %v3232 = vsel %vm427, %v3228, %v3229
      %v3233 = vsel %vm427, %v3227, %v3228
      %v3234 = vsel %vm427, %v3226, %v3227
      %v3235 = vsel %vm427, %v3225, %v3226
      %v3236 = vsel %vm427, %v3224, %v3225
      %v3237 = vsel %vm427, %v3223, %v3224
      %v3238 = vsel %vm427, %v3222, %v3223
      %v3239 = vsel %vm427, %v3221, %v3222
      %v3240 = vsel %vm427, %v3220, %v3221
      %v3241 = vsel %vm427, %v3219, %v3220
      %v3242 = vsel %vm427, %v3218, %v3219
      %v3243 = vsel %vm427, %v3217, %v3218
      %v3244 = vsel %vm427, %v3216, %v3217
      %v3245 = vsel %vm427, %v3215, %v3216
      %v3246 = vsel %vm427, %v3214, %v3215
      %v3247 = vsel %vm427, %v3213, %v3214
      %v3248 = vsel %vm427, %v3212, %v3213
      %v3249 = vsel %vm427, %v3211, %v3212
      %v3250 = vsel %vm427, %v3210, %v3211
      %v3251 = vsel %vm427, %v3209, %v3210
      %v3252 = vsel %vm427, %v3208, %v3209
      %v3253 = vsel %vm427, %v3207, %v3208
      %v3254 = vsel %vm427, %v3206, %v3207
      %v3255 = vsel %vm427, %v3205, %v3206
      %v3256 = vsel %vm427, %v3204, %v3205
      %v3257 = vsel %vm427, %v3203, %v3204
      %v3258 = vsel %vm427, %v3202, %v3203
      %v3259 = vsel %vm427, %v3201, %v3202
      %v3260 = vsel %vm427, %v3200, %v3201
      %v3261 = vsel %vm427, %v3199, %v3200
      %v3262 = vsel %vm427, %v3230, %v3199
      %v3263 = vrot.slane %v3167, 7
      %v3264 = vrot.slane %v3168, 7
      %v3265 = vrot.slane %v3169, 7
      %v3266 = vrot.slane %v3170, 7
      %v3267 = vrot.slane %v3171, 7
      %v3268 = vrot.slane %v3172, 7
      %v3269 = vrot.slane %v3173, 7
      %v3270 = vrot.slane %v3174, 7
      %v3271 = vrot.slane %v3175, 7
      %v3272 = vrot.slane %v3176, 7
      %v3273 = vrot.slane %v3177, 7
      %v3274 = vrot.slane %v3178, 7
      %v3275 = vrot.slane %v3179, 7
      %v3276 = vrot.slane %v3180, 7
      %v3277 = vrot.slane %v3181, 7
      %v3278 = vrot.slane %v3182, 7
      %v3279 = vrot.slane %v3183, 7
      %v3280 = vrot.slane %v3184, 7
      %v3281 = vrot.slane %v3185, 7
      %v3282 = vrot.slane %v3186, 7
      %v3283 = vrot.slane %v3187, 7
      %v3284 = vrot.slane %v3188, 7
      %v3285 = vrot.slane %v3189, 7
      %v3286 = vrot.slane %v3190, 7
      %v3287 = vrot.slane %v3191, 7
      %v3288 = vrot.slane %v3192, 7
      %v3289 = vrot.slane %v3193, 7
      %v3290 = vrot.slane %v3194, 7
      %v3291 = vrot.slane %v3195, 7
      %v3292 = vrot.slane %v3196, 7
      %v3293 = vrot.slane %v3197, 7
      %v3294 = vrot.slane %v3198, 7
      %v3295 = vsel %vm492, %v3293, %v3294
      %v3296 = vsel %vm492, %v3292, %v3293
      %v3297 = vsel %vm492, %v3291, %v3292
      %v3298 = vsel %vm492, %v3290, %v3291
      %v3299 = vsel %vm492, %v3289, %v3290
      %v3300 = vsel %vm492, %v3288, %v3289
      %v3301 = vsel %vm492, %v3287, %v3288
      %v3302 = vsel %vm492, %v3286, %v3287
      %v3303 = vsel %vm492, %v3285, %v3286
      %v3304 = vsel %vm492, %v3284, %v3285
      %v3305 = vsel %vm492, %v3283, %v3284
      %v3306 = vsel %vm492, %v3282, %v3283
      %v3307 = vsel %vm492, %v3281, %v3282
      %v3308 = vsel %vm492, %v3280, %v3281
      %v3309 = vsel %vm492, %v3279, %v3280
      %v3310 = vsel %vm492, %v3278, %v3279
      %v3311 = vsel %vm492, %v3277, %v3278
      %v3312 = vsel %vm492, %v3276, %v3277
      %v3313 = vsel %vm492, %v3275, %v3276
      %v3314 = vsel %vm492, %v3274, %v3275
      %v3315 = vsel %vm492, %v3273, %v3274
      %v3316 = vsel %vm492, %v3272, %v3273
      %v3317 = vsel %vm492, %v3271, %v3272
      %v3318 = vsel %vm492, %v3270, %v3271
      %v3319 = vsel %vm492, %v3269, %v3270
      %v3320 = vsel %vm492, %v3268, %v3269
      %v3321 = vsel %vm492, %v3267, %v3268
      %v3322 = vsel %vm492, %v3266, %v3267
      %v3323 = vsel %vm492, %v3265, %v3266
      %v3324 = vsel %vm492, %v3264, %v3265
      %v3325 = vsel %vm492, %v3263, %v3264
      %v3326 = vsel %vm492, %v3294, %v3263
      %v3327 = vpack.c.bf16 %v3295, %v3296
      %v3328 = vpack.c.bf16 %v3325, %v3326
      %v3329 = vpack.c.bf16 %v3323, %v3324
      %v3330 = vpack.c.bf16 %v3321, %v3322
      %v3331 = vpack.c.bf16 %v3319, %v3320
      %v3332 = vpack.c.bf16 %v3317, %v3318
      %v3333 = vpack.c.bf16 %v3315, %v3316
      %v3334 = vpack.c.bf16 %v3313, %v3314
      %v3335 = vpack.c.bf16 %v3311, %v3312
      %v3336 = vpack.c.bf16 %v3309, %v3310
      %v3337 = vpack.c.bf16 %v3307, %v3308
      %v3338 = vpack.c.bf16 %v3305, %v3306
      %v3339 = vpack.c.bf16 %v3303, %v3304
      %v3340 = vpack.c.bf16 %v3301, %v3302
      %v3341 = vpack.c.bf16 %v3299, %v3300
      %v3342 = vpack.c.bf16 %v3297, %v3298
      %v3343 = vmul.bf16 %v3327, %v637
      %v3344 = vmul.bf16 %v3328, %v638
      %v3345 = vmul.bf16 %v3329, %v639
      %v3346 = vmul.bf16 %v3330, %v640
      %v3347 = vmul.bf16 %v3331, %v641
      %v3348 = vmul.bf16 %v3332, %v642
      %v3349 = vmul.bf16 %v3333, %v643
      %v3350 = vmul.bf16 %v3334, %v644
      %v3351 = vmul.bf16 %v3335, %v645
      %v3352 = vmul.bf16 %v3336, %v646
      %v3353 = vmul.bf16 %v3337, %v647
      %v3354 = vmul.bf16 %v3338, %v648
      %v3355 = vmul.bf16 %v3339, %v649
      %v3356 = vmul.bf16 %v3340, %v650
      %v3357 = vmul.bf16 %v3341, %v651
      %v3358 = vmul.bf16 %v3342, %v652
      %v3359 = vpack.c.bf16 %v3198, %v3197
      %v3360 = vpack.c.bf16 %v3168, %v3167
      %v3361 = vpack.c.bf16 %v3170, %v3169
      %v3362 = vpack.c.bf16 %v3172, %v3171
      %v3363 = vpack.c.bf16 %v3174, %v3173
      %v3364 = vpack.c.bf16 %v3176, %v3175
      %v3365 = vpack.c.bf16 %v3178, %v3177
      %v3366 = vpack.c.bf16 %v3180, %v3179
      %v3367 = vpack.c.bf16 %v3182, %v3181
      %v3368 = vpack.c.bf16 %v3184, %v3183
      %v3369 = vpack.c.bf16 %v3186, %v3185
      %v3370 = vpack.c.bf16 %v3188, %v3187
      %v3371 = vpack.c.bf16 %v3190, %v3189
      %v3372 = vpack.c.bf16 %v3192, %v3191
      %v3373 = vpack.c.bf16 %v3194, %v3193
      %v3374 = vpack.c.bf16 %v3196, %v3195
      %v3375 = vmul.bf16 %v3359, %v798
      %v3376 = vmul.bf16 %v3360, %v799
      %v3377 = vmul.bf16 %v3361, %v800
      %v3378 = vmul.bf16 %v3362, %v801
      %v3379 = vmul.bf16 %v3363, %v802
      %v3380 = vmul.bf16 %v3364, %v803
      %v3381 = vmul.bf16 %v3365, %v804
      %v3382 = vmul.bf16 %v3366, %v805
      %v3383 = vmul.bf16 %v3367, %v806
      %v3384 = vmul.bf16 %v3368, %v807
      %v3385 = vmul.bf16 %v3369, %v808
      %v3386 = vmul.bf16 %v3370, %v809
      %v3387 = vmul.bf16 %v3371, %v810
      %v3388 = vmul.bf16 %v3372, %v811
      %v3389 = vmul.bf16 %v3373, %v812
      %v3390 = vmul.bf16 %v3374, %v813
      %v3391 = vpack.c.bf16 %v3262, %v3231
      %v3392 = vpack.c.bf16 %v3260, %v3261
      %v3393 = vpack.c.bf16 %v3258, %v3259
      %v3394 = vpack.c.bf16 %v3256, %v3257
      %v3395 = vpack.c.bf16 %v3254, %v3255
      %v3396 = vpack.c.bf16 %v3252, %v3253
      %v3397 = vpack.c.bf16 %v3250, %v3251
      %v3398 = vpack.c.bf16 %v3248, %v3249
      %v3399 = vpack.c.bf16 %v3246, %v3247
      %v3400 = vpack.c.bf16 %v3244, %v3245
      %v3401 = vpack.c.bf16 %v3242, %v3243
      %v3402 = vpack.c.bf16 %v3240, %v3241
      %v3403 = vpack.c.bf16 %v3238, %v3239
      %v3404 = vpack.c.bf16 %v3236, %v3237
      %v3405 = vpack.c.bf16 %v3234, %v3235
      %v3406 = vpack.c.bf16 %v3232, %v3233
      %v3407 = vmul.bf16 %v3391, %v959
      %v3408 = vmul.bf16 %v3392, %v960
      %v3409 = vmul.bf16 %v3393, %v961
      %v3410 = vmul.bf16 %v3394, %v962
      %v3411 = vmul.bf16 %v3395, %v963
      %v3412 = vmul.bf16 %v3396, %v964
      %v3413 = vmul.bf16 %v3397, %v965
      %v3414 = vmul.bf16 %v3398, %v966
      %v3415 = vmul.bf16 %v3399, %v967
      %v3416 = vmul.bf16 %v3400, %v968
      %v3417 = vmul.bf16 %v3401, %v969
      %v3418 = vmul.bf16 %v3402, %v970
      %v3419 = vmul.bf16 %v3403, %v971
      %v3420 = vmul.bf16 %v3404, %v972
      %v3421 = vmul.bf16 %v3405, %v973
      %v3422 = vmul.bf16 %v3406, %v974
      %v3423 = vmul.bf16 %v3328, %v1104
      %v3424 = vmul.bf16 %v3329, %v1105
      %v3425 = vmul.bf16 %v3330, %v1106
      %v3426 = vmul.bf16 %v3331, %v1107
      %v3427 = vmul.bf16 %v3332, %v1108
      %v3428 = vmul.bf16 %v3333, %v1109
      %v3429 = vmul.bf16 %v3334, %v1110
      %v3430 = vmul.bf16 %v3335, %v1111
      %v3431 = vmul.bf16 %v3336, %v1112
      %v3432 = vmul.bf16 %v3337, %v1113
      %v3433 = vmul.bf16 %v3338, %v1114
      %v3434 = vmul.bf16 %v3339, %v1115
      %v3435 = vmul.bf16 %v3340, %v1116
      %v3436 = vmul.bf16 %v3341, %v1117
      %v3437 = vmul.bf16 %v3342, %v1118
      %v3438 = vmul.bf16 %v3327, %v1119
      %v3439 = vmul.bf16 %v3392, %v1249
      %v3440 = vmul.bf16 %v3393, %v1250
      %v3441 = vmul.bf16 %v3394, %v1251
      %v3442 = vmul.bf16 %v3395, %v1252
      %v3443 = vmul.bf16 %v3396, %v1253
      %v3444 = vmul.bf16 %v3397, %v1254
      %v3445 = vmul.bf16 %v3398, %v1255
      %v3446 = vmul.bf16 %v3399, %v1256
      %v3447 = vmul.bf16 %v3400, %v1257
      %v3448 = vmul.bf16 %v3401, %v1258
      %v3449 = vmul.bf16 %v3402, %v1259
      %v3450 = vmul.bf16 %v3403, %v1260
      %v3451 = vmul.bf16 %v3404, %v1261
      %v3452 = vmul.bf16 %v3405, %v1262
      %v3453 = vmul.bf16 %v3406, %v1263
      %v3454 = vmul.bf16 %v3391, %v1264
      %v3455 = vmul.bf16 %v3329, %v1394
      %v3456 = vmul.bf16 %v3330, %v1395
      %v3457 = vmul.bf16 %v3331, %v1396
      %v3458 = vmul.bf16 %v3332, %v1397
      %v3459 = vmul.bf16 %v3333, %v1398
      %v3460 = vmul.bf16 %v3334, %v1399
      %v3461 = vmul.bf16 %v3335, %v1400
      %v3462 = vmul.bf16 %v3336, %v1401
      %v3463 = vmul.bf16 %v3337, %v1402
      %v3464 = vmul.bf16 %v3338, %v1403
      %v3465 = vmul.bf16 %v3339, %v1404
      %v3466 = vmul.bf16 %v3340, %v1405
      %v3467 = vmul.bf16 %v3341, %v1406
      %v3468 = vmul.bf16 %v3342, %v1407
      %v3469 = vmul.bf16 %v3327, %v1408
      %v3470 = vmul.bf16 %v3328, %v1409
      %v3471 = vmul.bf16 %v3361, %v1539
      %v3472 = vmul.bf16 %v3362, %v1540
      %v3473 = vmul.bf16 %v3363, %v1541
      %v3474 = vmul.bf16 %v3364, %v1542
      %v3475 = vmul.bf16 %v3365, %v1543
      %v3476 = vmul.bf16 %v3366, %v1544
      %v3477 = vmul.bf16 %v3367, %v1545
      %v3478 = vmul.bf16 %v3368, %v1546
      %v3479 = vmul.bf16 %v3369, %v1547
      %v3480 = vmul.bf16 %v3370, %v1548
      %v3481 = vmul.bf16 %v3371, %v1549
      %v3482 = vmul.bf16 %v3372, %v1550
      %v3483 = vmul.bf16 %v3373, %v1551
      %v3484 = vmul.bf16 %v3374, %v1552
      %v3485 = vmul.bf16 %v3359, %v1553
      %v3486 = vmul.bf16 %v3360, %v1554
      %v3487 = vmul.bf16 %v3393, %v1684
      %v3488 = vmul.bf16 %v3394, %v1685
      %v3489 = vmul.bf16 %v3395, %v1686
      %v3490 = vmul.bf16 %v3396, %v1687
      %v3491 = vmul.bf16 %v3397, %v1688
      %v3492 = vmul.bf16 %v3398, %v1689
      %v3493 = vmul.bf16 %v3399, %v1690
      %v3494 = vmul.bf16 %v3400, %v1691
      %v3495 = vmul.bf16 %v3401, %v1692
      %v3496 = vmul.bf16 %v3402, %v1693
      %v3497 = vmul.bf16 %v3403, %v1694
      %v3498 = vmul.bf16 %v3404, %v1695
      %v3499 = vmul.bf16 %v3405, %v1696
      %v3500 = vmul.bf16 %v3406, %v1697
      %v3501 = vmul.bf16 %v3391, %v1698
      %v3502 = vmul.bf16 %v3392, %v1699
      %3519 = vrot.lane.b32.xlu0 %v3375, 64
      %v3520 = vpop.permute.xlu0 %3519
      %3521 = vrot.lane.b32.xlu0 %v3376, 64
      %v3522 = vpop.permute.xlu0 %3521
      %3523 = vrot.lane.b32.xlu0 %v3377, 64
      %v3524 = vpop.permute.xlu0 %3523
      %3525 = vrot.lane.b32.xlu0 %v3378, 64
      %v3526 = vpop.permute.xlu0 %3525
      %3527 = vrot.lane.b32.xlu0 %v3379, 64
      %v3528 = vpop.permute.xlu0 %3527
      %3529 = vrot.lane.b32.xlu0 %v3380, 64
      %v3530 = vpop.permute.xlu0 %3529
      %3531 = vrot.lane.b32.xlu0 %v3381, 64
      %v3532 = vpop.permute.xlu0 %3531
      %3533 = vrot.lane.b32.xlu0 %v3382, 64
      %v3534 = vpop.permute.xlu0 %3533
      %3535 = vrot.lane.b32.xlu0 %v3383, 64
      %v3536 = vpop.permute.xlu0 %3535
      %3537 = vrot.lane.b32.xlu0 %v3384, 64
      %v3538 = vpop.permute.xlu0 %3537
      %3539 = vrot.lane.b32.xlu0 %v3385, 64
      %v3540 = vpop.permute.xlu0 %3539
      %3541 = vrot.lane.b32.xlu0 %v3386, 64
      %v3542 = vpop.permute.xlu0 %3541
      %3543 = vrot.lane.b32.xlu0 %v3387, 64
      %v3544 = vpop.permute.xlu0 %3543
      %3545 = vrot.lane.b32.xlu0 %v3388, 64
      %v3546 = vpop.permute.xlu0 %3545
      %3547 = vrot.lane.b32.xlu0 %v3389, 64
      %v3548 = vpop.permute.xlu0 %3547
      %3549 = vrot.lane.b32.xlu0 %v3390, 64
      %v3550 = vpop.permute.xlu0 %3549
      %v3553 = vsel %vm1780, %v3343, %v3520
      %v3557 = vsel %vm1780, %v3344, %v3522
      %v3561 = vsel %vm1780, %v3345, %v3524
      %v3565 = vsel %vm1780, %v3346, %v3526
      %v3569 = vsel %vm1780, %v3347, %v3528
      %v3573 = vsel %vm1780, %v3348, %v3530
      %v3577 = vsel %vm1780, %v3349, %v3532
      %v3581 = vsel %vm1780, %v3350, %v3534
      %v3585 = vsel %vm1780, %v3351, %v3536
      %v3589 = vsel %vm1780, %v3352, %v3538
      %v3593 = vsel %vm1780, %v3353, %v3540
      %v3597 = vsel %vm1780, %v3354, %v3542
      %v3601 = vsel %vm1780, %v3355, %v3544
      %v3605 = vsel %vm1780, %v3356, %v3546
      %v3609 = vsel %vm1780, %v3357, %v3548
      %v3613 = vsel %vm1780, %v3358, %v3550
      %3631 = vrot.lane.b32.xlu0 %v3423, 64
      %v3632 = vpop.permute.xlu0 %3631
      %3633 = vrot.lane.b32.xlu0 %v3424, 64
      %v3634 = vpop.permute.xlu0 %3633
      %3635 = vrot.lane.b32.xlu0 %v3425, 64
      %v3636 = vpop.permute.xlu0 %3635
      %3637 = vrot.lane.b32.xlu0 %v3426, 64
      %v3638 = vpop.permute.xlu0 %3637
      %3639 = vrot.lane.b32.xlu0 %v3427, 64
      %v3640 = vpop.permute.xlu0 %3639
      %3641 = vrot.lane.b32.xlu0 %v3428, 64
      %v3642 = vpop.permute.xlu0 %3641
      %3643 = vrot.lane.b32.xlu0 %v3429, 64
      %v3644 = vpop.permute.xlu0 %3643
      %3645 = vrot.lane.b32.xlu0 %v3430, 64
      %v3646 = vpop.permute.xlu0 %3645
      %3647 = vrot.lane.b32.xlu0 %v3431, 64
      %v3648 = vpop.permute.xlu0 %3647
      %3649 = vrot.lane.b32.xlu0 %v3432, 64
      %v3650 = vpop.permute.xlu0 %3649
      %3651 = vrot.lane.b32.xlu0 %v3433, 64
      %v3652 = vpop.permute.xlu0 %3651
      %3653 = vrot.lane.b32.xlu0 %v3434, 64
      %v3654 = vpop.permute.xlu0 %3653
      %3655 = vrot.lane.b32.xlu0 %v3435, 64
      %v3656 = vpop.permute.xlu0 %3655
      %3657 = vrot.lane.b32.xlu0 %v3436, 64
      %v3658 = vpop.permute.xlu0 %3657
      %3659 = vrot.lane.b32.xlu0 %v3437, 64
      %v3660 = vpop.permute.xlu0 %3659
      %3661 = vrot.lane.b32.xlu0 %v3438, 64
      %v3662 = vpop.permute.xlu0 %3661
      %v3665 = vsel %vm1780, %v3407, %v3632
      %v3669 = vsel %vm1780, %v3408, %v3634
      %v3673 = vsel %vm1780, %v3409, %v3636
      %v3677 = vsel %vm1780, %v3410, %v3638
      %v3681 = vsel %vm1780, %v3411, %v3640
      %v3685 = vsel %vm1780, %v3412, %v3642
      %v3689 = vsel %vm1780, %v3413, %v3644
      %v3693 = vsel %vm1780, %v3414, %v3646
      %v3697 = vsel %vm1780, %v3415, %v3648
      %v3701 = vsel %vm1780, %v3416, %v3650
      %v3705 = vsel %vm1780, %v3417, %v3652
      %v3709 = vsel %vm1780, %v3418, %v3654
      %v3713 = vsel %vm1780, %v3419, %v3656
      %v3717 = vsel %vm1780, %v3420, %v3658
      %v3721 = vsel %vm1780, %v3421, %v3660
      %v3725 = vsel %vm1780, %v3422, %v3662
      %3743 = vrot.lane.b32.xlu0 %v3439, 64
      %v3744 = vpop.permute.xlu0 %3743
      %3745 = vrot.lane.b32.xlu0 %v3440, 64
      %v3746 = vpop.permute.xlu0 %3745
      %3747 = vrot.lane.b32.xlu0 %v3441, 64
      %v3748 = vpop.permute.xlu0 %3747
      %3749 = vrot.lane.b32.xlu0 %v3442, 64
      %v3750 = vpop.permute.xlu0 %3749
      %3751 = vrot.lane.b32.xlu0 %v3443, 64
      %v3752 = vpop.permute.xlu0 %3751
      %3753 = vrot.lane.b32.xlu0 %v3444, 64
      %v3754 = vpop.permute.xlu0 %3753
      %3755 = vrot.lane.b32.xlu0 %v3445, 64
      %v3756 = vpop.permute.xlu0 %3755
      %3757 = vrot.lane.b32.xlu0 %v3446, 64
      %v3758 = vpop.permute.xlu0 %3757
      %3759 = vrot.lane.b32.xlu0 %v3447, 64
      %v3760 = vpop.permute.xlu0 %3759
      %3761 = vrot.lane.b32.xlu0 %v3448, 64
      %v3762 = vpop.permute.xlu0 %3761
      %3763 = vrot.lane.b32.xlu0 %v3449, 64
      %v3764 = vpop.permute.xlu0 %3763
      %3765 = vrot.lane.b32.xlu0 %v3450, 64
      %v3766 = vpop.permute.xlu0 %3765
      %3767 = vrot.lane.b32.xlu0 %v3451, 64
      %v3768 = vpop.permute.xlu0 %3767
      %3769 = vrot.lane.b32.xlu0 %v3452, 64
      %v3770 = vpop.permute.xlu0 %3769
      %3771 = vrot.lane.b32.xlu0 %v3453, 64
      %v3772 = vpop.permute.xlu0 %3771
      %3773 = vrot.lane.b32.xlu0 %v3454, 64
      %v3774 = vpop.permute.xlu0 %3773
      %v3777 = vsel %vm1780, %v3360, %v3744
      %v3781 = vsel %vm1780, %v3361, %v3746
      %v3785 = vsel %vm1780, %v3362, %v3748
      %v3789 = vsel %vm1780, %v3363, %v3750
      %v3793 = vsel %vm1780, %v3364, %v3752
      %v3797 = vsel %vm1780, %v3365, %v3754
      %v3801 = vsel %vm1780, %v3366, %v3756
      %v3805 = vsel %vm1780, %v3367, %v3758
      %v3809 = vsel %vm1780, %v3368, %v3760
      %v3813 = vsel %vm1780, %v3369, %v3762
      %v3817 = vsel %vm1780, %v3370, %v3764
      %v3821 = vsel %vm1780, %v3371, %v3766
      %v3825 = vsel %vm1780, %v3372, %v3768
      %v3829 = vsel %vm1780, %v3373, %v3770
      %v3833 = vsel %vm1780, %v3374, %v3772
      %v3837 = vsel %vm1780, %v3359, %v3774
      %3855 = vrot.lane.b32.xlu0 %v3471, 64
      %v3856 = vpop.permute.xlu0 %3855
      %3857 = vrot.lane.b32.xlu0 %v3472, 64
      %v3858 = vpop.permute.xlu0 %3857
      %3859 = vrot.lane.b32.xlu0 %v3473, 64
      %v3860 = vpop.permute.xlu0 %3859
      %3861 = vrot.lane.b32.xlu0 %v3474, 64
      %v3862 = vpop.permute.xlu0 %3861
      %3863 = vrot.lane.b32.xlu0 %v3475, 64
      %v3864 = vpop.permute.xlu0 %3863
      %3865 = vrot.lane.b32.xlu0 %v3476, 64
      %v3866 = vpop.permute.xlu0 %3865
      %3867 = vrot.lane.b32.xlu0 %v3477, 64
      %v3868 = vpop.permute.xlu0 %3867
      %3869 = vrot.lane.b32.xlu0 %v3478, 64
      %v3870 = vpop.permute.xlu0 %3869
      %3871 = vrot.lane.b32.xlu0 %v3479, 64
      %v3872 = vpop.permute.xlu0 %3871
      %3873 = vrot.lane.b32.xlu0 %v3480, 64
      %v3874 = vpop.permute.xlu0 %3873
      %3875 = vrot.lane.b32.xlu0 %v3481, 64
      %v3876 = vpop.permute.xlu0 %3875
      %3877 = vrot.lane.b32.xlu0 %v3482, 64
      %v3878 = vpop.permute.xlu0 %3877
      %3879 = vrot.lane.b32.xlu0 %v3483, 64
      %v3880 = vpop.permute.xlu0 %3879
      %3881 = vrot.lane.b32.xlu0 %v3484, 64
      %v3882 = vpop.permute.xlu0 %3881
      %3883 = vrot.lane.b32.xlu0 %v3485, 64
      %v3884 = vpop.permute.xlu0 %3883
      %3885 = vrot.lane.b32.xlu0 %v3486, 64
      %v3886 = vpop.permute.xlu0 %3885
      %v3889 = vsel %vm1780, %v3455, %v3856
      %v3893 = vsel %vm1780, %v3456, %v3858
      %v3897 = vsel %vm1780, %v3457, %v3860
      %v3901 = vsel %vm1780, %v3458, %v3862
      %v3905 = vsel %vm1780, %v3459, %v3864
      %v3909 = vsel %vm1780, %v3460, %v3866
      %v3913 = vsel %vm1780, %v3461, %v3868
      %v3917 = vsel %vm1780, %v3462, %v3870
      %v3921 = vsel %vm1780, %v3463, %v3872
      %v3925 = vsel %vm1780, %v3464, %v3874
      %v3929 = vsel %vm1780, %v3465, %v3876
      %v3933 = vsel %vm1780, %v3466, %v3878
      %v3937 = vsel %vm1780, %v3467, %v3880
      %v3941 = vsel %vm1780, %v3468, %v3882
      %v3945 = vsel %vm1780, %v3469, %v3884
      %v3949 = vsel %vm1780, %v3470, %v3886
      %3967 = vrot.lane.b32.xlu0 %v3360, 64
      %v3968 = vpop.permute.xlu0 %3967
      %3969 = vrot.lane.b32.xlu0 %v3361, 64
      %v3970 = vpop.permute.xlu0 %3969
      %3971 = vrot.lane.b32.xlu0 %v3362, 64
      %v3972 = vpop.permute.xlu0 %3971
      %3973 = vrot.lane.b32.xlu0 %v3363, 64
      %v3974 = vpop.permute.xlu0 %3973
      %3975 = vrot.lane.b32.xlu0 %v3364, 64
      %v3976 = vpop.permute.xlu0 %3975
      %3977 = vrot.lane.b32.xlu0 %v3365, 64
      %v3978 = vpop.permute.xlu0 %3977
      %3979 = vrot.lane.b32.xlu0 %v3366, 64
      %v3980 = vpop.permute.xlu0 %3979
      %3981 = vrot.lane.b32.xlu0 %v3367, 64
      %v3982 = vpop.permute.xlu0 %3981
      %3983 = vrot.lane.b32.xlu0 %v3368, 64
      %v3984 = vpop.permute.xlu0 %3983
      %3985 = vrot.lane.b32.xlu0 %v3369, 64
      %v3986 = vpop.permute.xlu0 %3985
      %3987 = vrot.lane.b32.xlu0 %v3370, 64
      %v3988 = vpop.permute.xlu0 %3987
      %3989 = vrot.lane.b32.xlu0 %v3371, 64
      %v3990 = vpop.permute.xlu0 %3989
      %3991 = vrot.lane.b32.xlu0 %v3372, 64
      %v3992 = vpop.permute.xlu0 %3991
      %3993 = vrot.lane.b32.xlu0 %v3373, 64
      %v3994 = vpop.permute.xlu0 %3993
      %3995 = vrot.lane.b32.xlu0 %v3374, 64
      %v3996 = vpop.permute.xlu0 %3995
      %3997 = vrot.lane.b32.xlu0 %v3359, 64
      %v3998 = vpop.permute.xlu0 %3997
      %v4001 = vsel %vm1780, %v3487, %v3968
      %v4005 = vsel %vm1780, %v3488, %v3970
      %v4009 = vsel %vm1780, %v3489, %v3972
      %v4013 = vsel %vm1780, %v3490, %v3974
      %v4017 = vsel %vm1780, %v3491, %v3976
      %v4021 = vsel %vm1780, %v3492, %v3978
      %v4025 = vsel %vm1780, %v3493, %v3980
      %v4029 = vsel %vm1780, %v3494, %v3982
      %v4033 = vsel %vm1780, %v3495, %v3984
      %v4037 = vsel %vm1780, %v3496, %v3986
      %v4041 = vsel %vm1780, %v3497, %v3988
      %v4045 = vsel %vm1780, %v3498, %v3990
      %v4049 = vsel %vm1780, %v3499, %v3992
      %v4053 = vsel %vm1780, %v3500, %v3994
      %v4057 = vsel %vm1780, %v3501, %v3996
      %v4061 = vsel %vm1780, %v3502, %v3998
      %v4063 = vld [vmem:[%s4] sm:$0xf]
      %v4064 = vld [vmem:[%s4 + $0x4] sm:$0xf]
      %v4065 = vld [vmem:[%s4 + $0x8] sm:$0xf]
      %v4066 = vld [vmem:[%s4 + $0xc] sm:$0xf]
      %v4067 = vld [vmem:[%s4 + $0x10] sm:$0xf]
      %v4068 = vld [vmem:[%s4 + $0x14] sm:$0xf]
      %v4069 = vld [vmem:[%s4 + $0x18] sm:$0xf]
      %v4070 = vld [vmem:[%s4 + $0x1c] sm:$0xf]
      %v4071 = vld [vmem:[%s4 + $0x20] sm:$0xf]
      %v4072 = vld [vmem:[%s4 + $0x24] sm:$0xf]
      %v4073 = vld [vmem:[%s4 + $0x28] sm:$0xf]
      %v4074 = vld [vmem:[%s4 + $0x2c] sm:$0xf]
      %v4075 = vld [vmem:[%s4 + $0x30] sm:$0xf]
      %v4076 = vld [vmem:[%s4 + $0x34] sm:$0xf]
      %v4077 = vld [vmem:[%s4 + $0x38] sm:$0xf]
      %v4078 = vld [vmem:[%s4 + $0x3c] sm:$0xf]
      %v4079 = vld [vmem:[%s4 + $0x40] sm:$0xf]
      %v4080 = vld [vmem:[%s4 + $0x44] sm:$0xf]
      %v4081 = vld [vmem:[%s4 + $0x48] sm:$0xf]
      %v4082 = vld [vmem:[%s4 + $0x4c] sm:$0xf]
      %v4083 = vld [vmem:[%s4 + $0x50] sm:$0xf]
      %v4084 = vld [vmem:[%s4 + $0x54] sm:$0xf]
      %v4085 = vld [vmem:[%s4 + $0x58] sm:$0xf]
      %v4086 = vld [vmem:[%s4 + $0x5c] sm:$0xf]
      %v4087 = vld [vmem:[%s4 + $0x60] sm:$0xf]
      %v4088 = vld [vmem:[%s4 + $0x64] sm:$0xf]
      %v4089 = vld [vmem:[%s4 + $0x68] sm:$0xf]
      %v4090 = vld [vmem:[%s4 + $0x6c] sm:$0xf]
      %v4091 = vld [vmem:[%s4 + $0x70] sm:$0xf]
      %v4092 = vld [vmem:[%s4 + $0x74] sm:$0xf]
      %v4093 = vld [vmem:[%s4 + $0x78] sm:$0xf]
      %v4094 = vld [vmem:[%s4 + $0x7c] sm:$0xf]
      %v4095 = vld [vmem:[%s4 + $0x80] sm:$0xf]
      %v4096 = vld [vmem:[%s4 + $0x84] sm:$0xf]
      %v4097 = vld [vmem:[%s4 + $0x88] sm:$0xf]
      %v4098 = vld [vmem:[%s4 + $0x8c] sm:$0xf]
      %v4099 = vld [vmem:[%s4 + $0x90] sm:$0xf]
      %v4100 = vld [vmem:[%s4 + $0x94] sm:$0xf]
      %v4101 = vld [vmem:[%s4 + $0x98] sm:$0xf]
      %v4102 = vld [vmem:[%s4 + $0x9c] sm:$0xf]
      %v4103 = vld [vmem:[%s4 + $0xa0] sm:$0xf]
      %v4104 = vld [vmem:[%s4 + $0xa4] sm:$0xf]
      %v4105 = vld [vmem:[%s4 + $0xa8] sm:$0xf]
      %v4106 = vld [vmem:[%s4 + $0xac] sm:$0xf]
      %v4107 = vld [vmem:[%s4 + $0xb0] sm:$0xf]
      %v4108 = vld [vmem:[%s4 + $0xb4] sm:$0xf]
      %v4109 = vld [vmem:[%s4 + $0xb8] sm:$0xf]
      %v4110 = vld [vmem:[%s4 + $0xbc] sm:$0xf]
      %v4111 = vld [vmem:[%s4 + $0xc0] sm:$0xf]
      %v4112 = vld [vmem:[%s4 + $0xc4] sm:$0xf]
      %v4113 = vld [vmem:[%s4 + $0xc8] sm:$0xf]
      %v4114 = vld [vmem:[%s4 + $0xcc] sm:$0xf]
      %v4115 = vld [vmem:[%s4 + $0xd0] sm:$0xf]
      %v4116 = vld [vmem:[%s4 + $0xd4] sm:$0xf]
      %v4117 = vld [vmem:[%s4 + $0xd8] sm:$0xf]
      %v4118 = vld [vmem:[%s4 + $0xdc] sm:$0xf]
      %v4119 = vld [vmem:[%s4 + $0xe0] sm:$0xf]
      %v4120 = vld [vmem:[%s4 + $0xe4] sm:$0xf]
      %v4121 = vld [vmem:[%s4 + $0xe8] sm:$0xf]
      %v4122 = vld [vmem:[%s4 + $0xec] sm:$0xf]
      %v4123 = vld [vmem:[%s4 + $0xf0] sm:$0xf]
      %v4124 = vld [vmem:[%s4 + $0xf4] sm:$0xf]
      %v4125 = vld [vmem:[%s4 + $0xf8] sm:$0xf]
      %v4126 = vld [vmem:[%s4 + $0xfc] sm:$0xf]
      %v4127 = vld [vmem:[%s4 + $0x100] sm:$0xf]
      %v4128 = vld [vmem:[%s4 + $0x104] sm:$0xf]
      %v4129 = vld [vmem:[%s4 + $0x108] sm:$0xf]
      %v4130 = vld [vmem:[%s4 + $0x10c] sm:$0xf]
      %v4131 = vld [vmem:[%s4 + $0x110] sm:$0xf]
      %v4132 = vld [vmem:[%s4 + $0x114] sm:$0xf]
      %v4133 = vld [vmem:[%s4 + $0x118] sm:$0xf]
      %v4134 = vld [vmem:[%s4 + $0x11c] sm:$0xf]
      %v4135 = vld [vmem:[%s4 + $0x120] sm:$0xf]
      %v4136 = vld [vmem:[%s4 + $0x124] sm:$0xf]
      %v4137 = vld [vmem:[%s4 + $0x128] sm:$0xf]
      %v4138 = vld [vmem:[%s4 + $0x12c] sm:$0xf]
      %v4139 = vld [vmem:[%s4 + $0x130] sm:$0xf]
      %v4140 = vld [vmem:[%s4 + $0x134] sm:$0xf]
      %v4141 = vld [vmem:[%s4 + $0x138] sm:$0xf]
      %v4142 = vld [vmem:[%s4 + $0x13c] sm:$0xf]
      %v4143 = vld [vmem:[%s5] sm:$0x1]
      %v4145 = vlaneseq
      %v4146 = vshrl.u32 %v4145, 7
      %v4147 = vsub.s32 0, %v4146
      %v4148 = vrot.slane %v4143, %v4147
      %v4230 = vunpack.c.l.b16 %v4063
      %v4231 = vunpack.c.l.b16 %v4064
      %v4232 = vunpack.c.l.b16 %v4065
      %v4233 = vunpack.c.l.b16 %v4066
      %v4234 = vunpack.c.l.b16 %v4067
      %v4235 = vunpack.c.l.b16 %v4068
      %v4236 = vunpack.c.l.b16 %v4069
      %v4237 = vunpack.c.l.b16 %v4070
      %v4238 = vunpack.c.l.b16 %v4071
      %v4239 = vunpack.c.l.b16 %v4072
      %v4240 = vunpack.c.l.b16 %v4073
      %v4241 = vunpack.c.l.b16 %v4074
      %v4242 = vunpack.c.l.b16 %v4075
      %v4243 = vunpack.c.l.b16 %v4076
      %v4244 = vunpack.c.l.b16 %v4077
      %v4245 = vunpack.c.l.b16 %v4078
      %v4246 = vunpack.c.l.b16 %v4079
      %v4247 = vunpack.c.l.b16 %v4080
      %v4248 = vunpack.c.l.b16 %v4081
      %v4249 = vunpack.c.l.b16 %v4082
      %v4250 = vunpack.c.l.b16 %v4083
      %v4251 = vunpack.c.l.b16 %v4084
      %v4252 = vunpack.c.l.b16 %v4085
      %v4253 = vunpack.c.l.b16 %v4086
      %v4254 = vunpack.c.l.b16 %v4087
      %v4255 = vunpack.c.l.b16 %v4088
      %v4256 = vunpack.c.l.b16 %v4089
      %v4257 = vunpack.c.l.b16 %v4090
      %v4258 = vunpack.c.l.b16 %v4091
      %v4259 = vunpack.c.l.b16 %v4092
      %v4260 = vunpack.c.l.b16 %v4093
      %v4261 = vunpack.c.l.b16 %v4094
      %v4262 = vunpack.c.l.b16 %v4095
      %v4263 = vunpack.c.l.b16 %v4096
      %v4264 = vunpack.c.l.b16 %v4097
      %v4265 = vunpack.c.l.b16 %v4098
      %v4266 = vunpack.c.l.b16 %v4099
      %v4267 = vunpack.c.l.b16 %v4100
      %v4268 = vunpack.c.l.b16 %v4101
      %v4269 = vunpack.c.l.b16 %v4102
      %v4270 = vunpack.c.l.b16 %v4103
      %v4271 = vunpack.c.l.b16 %v4104
      %v4272 = vunpack.c.l.b16 %v4105
      %v4273 = vunpack.c.l.b16 %v4106
      %v4274 = vunpack.c.l.b16 %v4107
      %v4275 = vunpack.c.l.b16 %v4108
      %v4276 = vunpack.c.l.b16 %v4109
      %v4277 = vunpack.c.l.b16 %v4110
      %v4278 = vunpack.c.l.b16 %v4111
      %v4279 = vunpack.c.l.b16 %v4112
      %v4280 = vunpack.c.l.b16 %v4113
      %v4281 = vunpack.c.l.b16 %v4114
      %v4282 = vunpack.c.l.b16 %v4115
      %v4283 = vunpack.c.l.b16 %v4116
      %v4284 = vunpack.c.l.b16 %v4117
      %v4285 = vunpack.c.l.b16 %v4118
      %v4286 = vunpack.c.l.b16 %v4119
      %v4287 = vunpack.c.l.b16 %v4120
      %v4288 = vunpack.c.l.b16 %v4121
      %v4289 = vunpack.c.l.b16 %v4122
      %v4290 = vunpack.c.l.b16 %v4123
      %v4291 = vunpack.c.l.b16 %v4124
      %v4292 = vunpack.c.l.b16 %v4125
      %v4293 = vunpack.c.l.b16 %v4126
      %v4294 = vunpack.c.l.b16 %v4127
      %v4295 = vunpack.c.l.b16 %v4128
      %v4296 = vunpack.c.l.b16 %v4129
      %v4297 = vunpack.c.l.b16 %v4130
      %v4298 = vunpack.c.l.b16 %v4131
      %v4299 = vunpack.c.l.b16 %v4132
      %v4300 = vunpack.c.l.b16 %v4133
      %v4301 = vunpack.c.l.b16 %v4134
      %v4302 = vunpack.c.l.b16 %v4135
      %v4303 = vunpack.c.l.b16 %v4136
      %v4304 = vunpack.c.l.b16 %v4137
      %v4305 = vunpack.c.l.b16 %v4138
      %v4306 = vunpack.c.l.b16 %v4139
      %v4307 = vunpack.c.l.b16 %v4140
      %v4308 = vunpack.c.l.b16 %v4141
      %v4309 = vunpack.c.l.b16 %v4142
      %v4310 = vpack.c.b16 %v4231, %v4230
      %v4311 = vpack.c.b16 %v4233, %v4232
      %v4312 = vpack.c.b16 %v4235, %v4234
      %v4313 = vpack.c.b16 %v4237, %v4236
      %v4314 = vpack.c.b16 %v4239, %v4238
      %v4315 = vpack.c.b16 %v4241, %v4240
      %v4316 = vpack.c.b16 %v4243, %v4242
      %v4317 = vpack.c.b16 %v4245, %v4244
      %v4318 = vpack.c.b16 %v4247, %v4246
      %v4319 = vpack.c.b16 %v4249, %v4248
      %v4320 = vpack.c.b16 %v4251, %v4250
      %v4321 = vpack.c.b16 %v4253, %v4252
      %v4322 = vpack.c.b16 %v4255, %v4254
      %v4323 = vpack.c.b16 %v4257, %v4256
      %v4324 = vpack.c.b16 %v4259, %v4258
      %v4325 = vpack.c.b16 %v4261, %v4260
      %v4326 = vpack.c.b16 %v4263, %v4262
      %v4327 = vpack.c.b16 %v4265, %v4264
      %v4328 = vpack.c.b16 %v4267, %v4266
      %v4329 = vpack.c.b16 %v4269, %v4268
      %v4330 = vpack.c.b16 %v4271, %v4270
      %v4331 = vpack.c.b16 %v4273, %v4272
      %v4332 = vpack.c.b16 %v4275, %v4274
      %v4333 = vpack.c.b16 %v4277, %v4276
      %v4334 = vpack.c.b16 %v4279, %v4278
      %v4335 = vpack.c.b16 %v4281, %v4280
      %v4336 = vpack.c.b16 %v4283, %v4282
      %v4337 = vpack.c.b16 %v4285, %v4284
      %v4338 = vpack.c.b16 %v4287, %v4286
      %v4339 = vpack.c.b16 %v4289, %v4288
      %v4340 = vpack.c.b16 %v4291, %v4290
      %v4341 = vpack.c.b16 %v4293, %v4292
      %v4342 = vpack.c.b16 %v4295, %v4294
      %v4343 = vpack.c.b16 %v4297, %v4296
      %v4344 = vpack.c.b16 %v4299, %v4298
      %v4345 = vpack.c.b16 %v4301, %v4300
      %v4346 = vpack.c.b16 %v4303, %v4302
      %v4347 = vpack.c.b16 %v4305, %v4304
      %v4348 = vpack.c.b16 %v4307, %v4306
      %v4349 = vpack.c.b16 %v4309, %v4308
      %4390 = vmatprep.subr.bf16.mxu0 0
      %4391 = vmatpush1.bf16.msra.mxu0 %v4317
      %4392 = vmatprep.subr.bf16.mxu0 0
      %4393 = vmatpush1.bf16.msra.mxu0 %v4316
      %4394 = vmatprep.subr.bf16.mxu0 0
      %4395 = vmatpush1.bf16.msra.mxu0 %v4315
      %4396 = vmatprep.subr.bf16.mxu0 0
      %4397 = vmatpush1.bf16.msra.mxu0 %v4314
      %4398 = vmatprep.subr.bf16.mxu0 0
      %4399 = vmatpush1.bf16.msra.mxu0 %v4313
      %4400 = vmatprep.subr.bf16.mxu0 0
      %4401 = vmatpush1.bf16.msra.mxu0 %v4312
      %4402 = vmatprep.subr.bf16.mxu0 0
      %4403 = vmatpush1.bf16.msra.mxu0 %v4311
      %4404 = vmatprep.subr.bf16.mxu0 0
      %4405 = vmatpush1.bf16.msra.mxu0 %v4310
      %4406 = vmatprep.subr.bf16.mxu0 0
      %4407 = vmatpush2.bf16.msra.mxu0 %v4325
      %4408 = vmatprep.subr.bf16.mxu0 0
      %4409 = vmatpush2.bf16.msra.mxu0 %v4324
      %4410 = vmatprep.subr.bf16.mxu0 0
      %4411 = vmatpush2.bf16.msra.mxu0 %v4323
      %4412 = vmatprep.subr.bf16.mxu0 0
      %4413 = vmatpush2.bf16.msra.mxu0 %v4322
      %4414 = vmatprep.subr.bf16.mxu0 0
      %4415 = vmatpush2.bf16.msra.mxu0 %v4321
      %4416 = vmatprep.subr.bf16.mxu0 0
      %4417 = vmatpush2.bf16.msra.mxu0 %v4320
      %4418 = vmatprep.subr.bf16.mxu0 0
      %4419 = vmatpush2.bf16.msra.mxu0 %v4319
      %4420 = vmatprep.subr.bf16.mxu0 0
      %4421 = vmatpush2.bf16.msra.mxu0 %v4318
      %4422 = vmatprep.mubr.bf16.mxu0 %v3665
      %4423 = vmatmul.mubr.bf16.gmra.mxu0 %v3553
      %v4424 = vpop.f32.mrf.mxu0
      %v4425 = vadd.f32 %v4148, %v4424
      %v4426 = vpop.f32.mrf.mxu0
      %v4427 = vpop.f32.mrf.mxu0
      %v4428 = vadd.f32 %v4148, %v4427
      %v4429 = vpop.f32.mrf.mxu0
      %4430 = vmatprep.mubr.bf16.mxu0 %v3669
      %4431 = vmatmul.mubr.bf16.gmra.mxu0 %v3557
      %v4432 = vpop.f32.mrf.mxu0
      %v4433 = vadd.f32 %v4148, %v4432
      %v4434 = vpop.f32.mrf.mxu0
      %v4435 = vpop.f32.mrf.mxu0
      %v4436 = vadd.f32 %v4148, %v4435
      %v4437 = vpop.f32.mrf.mxu0
      %4438 = vmatprep.mubr.bf16.mxu0 %v3673
      %4439 = vmatmul.mubr.bf16.gmra.mxu0 %v3561
      %v4440 = vpop.f32.mrf.mxu0
      %v4441 = vadd.f32 %v4148, %v4440
      %v4442 = vpop.f32.mrf.mxu0
      %v4443 = vpop.f32.mrf.mxu0
      %v4444 = vadd.f32 %v4148, %v4443
      %v4445 = vpop.f32.mrf.mxu0
      %4446 = vmatprep.mubr.bf16.mxu0 %v3677
      %4447 = vmatmul.mubr.bf16.gmra.mxu0 %v3565
      %v4448 = vpop.f32.mrf.mxu0
      %v4449 = vadd.f32 %v4148, %v4448
      %v4450 = vpop.f32.mrf.mxu0
      %v4451 = vpop.f32.mrf.mxu0
      %v4452 = vadd.f32 %v4148, %v4451
      %v4453 = vpop.f32.mrf.mxu0
      %4454 = vmatprep.mubr.bf16.mxu0 %v3681
      %4455 = vmatmul.mubr.bf16.gmra.mxu0 %v3569
      %v4456 = vpop.f32.mrf.mxu0
      %v4457 = vadd.f32 %v4148, %v4456
      %v4458 = vpop.f32.mrf.mxu0
      %v4459 = vpop.f32.mrf.mxu0
      %v4460 = vadd.f32 %v4148, %v4459
      %v4461 = vpop.f32.mrf.mxu0
      %4462 = vmatprep.mubr.bf16.mxu0 %v3685
      %4463 = vmatmul.mubr.bf16.gmra.mxu0 %v3573
      %v4464 = vpop.f32.mrf.mxu0
      %v4465 = vadd.f32 %v4148, %v4464
      %v4466 = vpop.f32.mrf.mxu0
      %v4467 = vpop.f32.mrf.mxu0
      %v4468 = vadd.f32 %v4148, %v4467
      %v4469 = vpop.f32.mrf.mxu0
      %4470 = vmatprep.mubr.bf16.mxu0 %v3689
      %4471 = vmatmul.mubr.bf16.gmra.mxu0 %v3577
      %v4472 = vpop.f32.mrf.mxu0
      %v4473 = vadd.f32 %v4148, %v4472
      %v4474 = vpop.f32.mrf.mxu0
      %v4475 = vpop.f32.mrf.mxu0
      %v4476 = vadd.f32 %v4148, %v4475
      %v4477 = vpop.f32.mrf.mxu0
      %4478 = vmatprep.mubr.bf16.mxu0 %v3693
      %4479 = vmatmul.mubr.bf16.gmra.mxu0 %v3581
      %v4480 = vpop.f32.mrf.mxu0
      %v4481 = vadd.f32 %v4148, %v4480
      %v4482 = vpop.f32.mrf.mxu0
      %v4483 = vpop.f32.mrf.mxu0
      %v4484 = vadd.f32 %v4148, %v4483
      %v4485 = vpop.f32.mrf.mxu0
      %4486 = vmatprep.mubr.bf16.mxu0 %v3697
      %4487 = vmatmul.mubr.bf16.gmra.mxu0 %v3585
      %v4488 = vpop.f32.mrf.mxu0
      %v4489 = vadd.f32 %v4148, %v4488
      %v4490 = vpop.f32.mrf.mxu0
      %v4491 = vpop.f32.mrf.mxu0
      %v4492 = vadd.f32 %v4148, %v4491
      %v4493 = vpop.f32.mrf.mxu0
      %4494 = vmatprep.mubr.bf16.mxu0 %v3701
      %4495 = vmatmul.mubr.bf16.gmra.mxu0 %v3589
      %v4496 = vpop.f32.mrf.mxu0
      %v4497 = vadd.f32 %v4148, %v4496
      %v4498 = vpop.f32.mrf.mxu0
      %v4499 = vpop.f32.mrf.mxu0
      %v4500 = vadd.f32 %v4148, %v4499
      %v4501 = vpop.f32.mrf.mxu0
      %4502 = vmatprep.mubr.bf16.mxu0 %v3705
      %4503 = vmatmul.mubr.bf16.gmra.mxu0 %v3593
      %v4504 = vpop.f32.mrf.mxu0
      %v4505 = vadd.f32 %v4148, %v4504
      %v4506 = vpop.f32.mrf.mxu0
      %v4507 = vpop.f32.mrf.mxu0
      %v4508 = vadd.f32 %v4148, %v4507
      %v4509 = vpop.f32.mrf.mxu0
      %4510 = vmatprep.mubr.bf16.mxu0 %v3709
      %4511 = vmatmul.mubr.bf16.gmra.mxu0 %v3597
      %v4512 = vpop.f32.mrf.mxu0
      %v4513 = vadd.f32 %v4148, %v4512
      %v4514 = vpop.f32.mrf.mxu0
      %v4515 = vpop.f32.mrf.mxu0
      %v4516 = vadd.f32 %v4148, %v4515
      %v4517 = vpop.f32.mrf.mxu0
      %4518 = vmatprep.mubr.bf16.mxu0 %v3713
      %4519 = vmatmul.mubr.bf16.gmra.mxu0 %v3601
      %v4520 = vpop.f32.mrf.mxu0
      %v4521 = vadd.f32 %v4148, %v4520
      %v4522 = vpop.f32.mrf.mxu0
      %v4523 = vpop.f32.mrf.mxu0
      %v4524 = vadd.f32 %v4148, %v4523
      %v4525 = vpop.f32.mrf.mxu0
      %4526 = vmatprep.mubr.bf16.mxu0 %v3717
      %4527 = vmatmul.mubr.bf16.gmra.mxu0 %v3605
      %v4528 = vpop.f32.mrf.mxu0
      %v4529 = vadd.f32 %v4148, %v4528
      %v4530 = vpop.f32.mrf.mxu0
      %v4531 = vpop.f32.mrf.mxu0
      %v4532 = vadd.f32 %v4148, %v4531
      %v4533 = vpop.f32.mrf.mxu0
      %4534 = vmatprep.mubr.bf16.mxu0 %v3721
      %4535 = vmatmul.mubr.bf16.gmra.mxu0 %v3609
      %v4536 = vpop.f32.mrf.mxu0
      %v4537 = vadd.f32 %v4148, %v4536
      %v4538 = vpop.f32.mrf.mxu0
      %v4539 = vpop.f32.mrf.mxu0
      %v4540 = vadd.f32 %v4148, %v4539
      %v4541 = vpop.f32.mrf.mxu0
      %4542 = vmatprep.mubr.bf16.mxu0 %v3725
      %4543 = vmatmul.mubr.bf16.gmra.mxu0 %v3613
      %v4544 = vpop.f32.mrf.mxu0
      %v4545 = vadd.f32 %v4148, %v4544
      %v4546 = vpop.f32.mrf.mxu0
      %v4547 = vpop.f32.mrf.mxu0
      %v4548 = vadd.f32 %v4148, %v4547
      %v4549 = vpop.f32.mrf.mxu0
      %4550 = vdwg.mxu0
      %4551 = vmatprep.subr.bf16.mxu0 0
      %4552 = vmatpush1.bf16.msra.mxu0 %v4333
      %4553 = vmatprep.subr.bf16.mxu0 0
      %4554 = vmatpush1.bf16.msra.mxu0 %v4332
      %4555 = vmatprep.subr.bf16.mxu0 0
      %4556 = vmatpush1.bf16.msra.mxu0 %v4331
      %4557 = vmatprep.subr.bf16.mxu0 0
      %4558 = vmatpush1.bf16.msra.mxu0 %v4330
      %4559 = vmatprep.subr.bf16.mxu0 0
      %4560 = vmatpush1.bf16.msra.mxu0 %v4329
      %4561 = vmatprep.subr.bf16.mxu0 0
      %4562 = vmatpush1.bf16.msra.mxu0 %v4328
      %4563 = vmatprep.subr.bf16.mxu0 0
      %4564 = vmatpush1.bf16.msra.mxu0 %v4327
      %4565 = vmatprep.subr.bf16.mxu0 0
      %4566 = vmatpush1.bf16.msra.mxu0 %v4326
      %4567 = vmatprep.subr.bf16.mxu0 0
      %4568 = vmatpush2.bf16.msra.mxu0 %v4341
      %4569 = vmatprep.subr.bf16.mxu0 0
      %4570 = vmatpush2.bf16.msra.mxu0 %v4340
      %4571 = vmatprep.subr.bf16.mxu0 0
      %4572 = vmatpush2.bf16.msra.mxu0 %v4339
      %4573 = vmatprep.subr.bf16.mxu0 0
      %4574 = vmatpush2.bf16.msra.mxu0 %v4338
      %4575 = vmatprep.subr.bf16.mxu0 0
      %4576 = vmatpush2.bf16.msra.mxu0 %v4337
      %4577 = vmatprep.subr.bf16.mxu0 0
      %4578 = vmatpush2.bf16.msra.mxu0 %v4336
      %4579 = vmatprep.subr.bf16.mxu0 0
      %4580 = vmatpush2.bf16.msra.mxu0 %v4335
      %4581 = vmatprep.subr.bf16.mxu0 0
      %4582 = vmatpush2.bf16.msra.mxu0 %v4334
      %4583 = vmatprep.mubr.bf16.mxu0 %v3889
      %4584 = vmatmul.mubr.bf16.gmra.mxu0 %v3777
      %v4585 = vpop.f32.mrf.mxu0
      %v4586 = vadd.f32 %v4425, %v4585
      %v4587 = vpop.f32.mrf.mxu0
      %v4588 = vpop.f32.mrf.mxu0
      %v4589 = vadd.f32 %v4428, %v4588
      %v4590 = vpop.f32.mrf.mxu0
      %4591 = vmatprep.mubr.bf16.mxu0 %v3893
      %4592 = vmatmul.mubr.bf16.gmra.mxu0 %v3781
      %v4593 = vpop.f32.mrf.mxu0
      %v4594 = vadd.f32 %v4433, %v4593
      %v4595 = vpop.f32.mrf.mxu0
      %v4596 = vpop.f32.mrf.mxu0
      %v4597 = vadd.f32 %v4436, %v4596
      %v4598 = vpop.f32.mrf.mxu0
      %4599 = vmatprep.mubr.bf16.mxu0 %v3897
      %4600 = vmatmul.mubr.bf16.gmra.mxu0 %v3785
      %v4601 = vpop.f32.mrf.mxu0
      %v4602 = vadd.f32 %v4441, %v4601
      %v4603 = vpop.f32.mrf.mxu0
      %v4604 = vpop.f32.mrf.mxu0
      %v4605 = vadd.f32 %v4444, %v4604
      %v4606 = vpop.f32.mrf.mxu0
      %4607 = vmatprep.mubr.bf16.mxu0 %v3901
      %4608 = vmatmul.mubr.bf16.gmra.mxu0 %v3789
      %v4609 = vpop.f32.mrf.mxu0
      %v4610 = vadd.f32 %v4449, %v4609
      %v4611 = vpop.f32.mrf.mxu0
      %v4612 = vpop.f32.mrf.mxu0
      %v4613 = vadd.f32 %v4452, %v4612
      %v4614 = vpop.f32.mrf.mxu0
      %4615 = vmatprep.mubr.bf16.mxu0 %v3905
      %4616 = vmatmul.mubr.bf16.gmra.mxu0 %v3793
      %v4617 = vpop.f32.mrf.mxu0
      %v4618 = vadd.f32 %v4457, %v4617
      %v4619 = vpop.f32.mrf.mxu0
      %v4620 = vpop.f32.mrf.mxu0
      %v4621 = vadd.f32 %v4460, %v4620
      %v4622 = vpop.f32.mrf.mxu0
      %4623 = vmatprep.mubr.bf16.mxu0 %v3909
      %4624 = vmatmul.mubr.bf16.gmra.mxu0 %v3797
      %v4625 = vpop.f32.mrf.mxu0
      %v4626 = vadd.f32 %v4465, %v4625
      %v4627 = vpop.f32.mrf.mxu0
      %v4628 = vpop.f32.mrf.mxu0
      %v4629 = vadd.f32 %v4468, %v4628
      %v4630 = vpop.f32.mrf.mxu0
      %4631 = vmatprep.mubr.bf16.mxu0 %v3913
      %4632 = vmatmul.mubr.bf16.gmra.mxu0 %v3801
      %v4633 = vpop.f32.mrf.mxu0
      %v4634 = vadd.f32 %v4473, %v4633
      %v4635 = vpop.f32.mrf.mxu0
      %v4636 = vpop.f32.mrf.mxu0
      %v4637 = vadd.f32 %v4476, %v4636
      %v4638 = vpop.f32.mrf.mxu0
      %4639 = vmatprep.mubr.bf16.mxu0 %v3917
      %4640 = vmatmul.mubr.bf16.gmra.mxu0 %v3805
      %v4641 = vpop.f32.mrf.mxu0
      %v4642 = vadd.f32 %v4481, %v4641
      %v4643 = vpop.f32.mrf.mxu0
      %v4644 = vpop.f32.mrf.mxu0
      %v4645 = vadd.f32 %v4484, %v4644
      %v4646 = vpop.f32.mrf.mxu0
      %4647 = vmatprep.mubr.bf16.mxu0 %v3921
      %4648 = vmatmul.mubr.bf16.gmra.mxu0 %v3809
      %v4649 = vpop.f32.mrf.mxu0
      %v4650 = vadd.f32 %v4489, %v4649
      %v4651 = vpop.f32.mrf.mxu0
      %v4652 = vpop.f32.mrf.mxu0
      %v4653 = vadd.f32 %v4492, %v4652
      %v4654 = vpop.f32.mrf.mxu0
      %4655 = vmatprep.mubr.bf16.mxu0 %v3925
      %4656 = vmatmul.mubr.bf16.gmra.mxu0 %v3813
      %v4657 = vpop.f32.mrf.mxu0
      %v4658 = vadd.f32 %v4497, %v4657
      %v4659 = vpop.f32.mrf.mxu0
      %v4660 = vpop.f32.mrf.mxu0
      %v4661 = vadd.f32 %v4500, %v4660
      %v4662 = vpop.f32.mrf.mxu0
      %4663 = vmatprep.mubr.bf16.mxu0 %v3929
      %4664 = vmatmul.mubr.bf16.gmra.mxu0 %v3817
      %v4665 = vpop.f32.mrf.mxu0
      %v4666 = vadd.f32 %v4505, %v4665
      %v4667 = vpop.f32.mrf.mxu0
      %v4668 = vpop.f32.mrf.mxu0
      %v4669 = vadd.f32 %v4508, %v4668
      %v4670 = vpop.f32.mrf.mxu0
      %4671 = vmatprep.mubr.bf16.mxu0 %v3933
      %4672 = vmatmul.mubr.bf16.gmra.mxu0 %v3821
      %v4673 = vpop.f32.mrf.mxu0
      %v4674 = vadd.f32 %v4513, %v4673
      %v4675 = vpop.f32.mrf.mxu0
      %v4676 = vpop.f32.mrf.mxu0
      %v4677 = vadd.f32 %v4516, %v4676
      %v4678 = vpop.f32.mrf.mxu0
      %4679 = vmatprep.mubr.bf16.mxu0 %v3937
      %4680 = vmatmul.mubr.bf16.gmra.mxu0 %v3825
      %v4681 = vpop.f32.mrf.mxu0
      %v4682 = vadd.f32 %v4521, %v4681
      %v4683 = vpop.f32.mrf.mxu0
      %v4684 = vpop.f32.mrf.mxu0
      %v4685 = vadd.f32 %v4524, %v4684
      %v4686 = vpop.f32.mrf.mxu0
      %4687 = vmatprep.mubr.bf16.mxu0 %v3941
      %4688 = vmatmul.mubr.bf16.gmra.mxu0 %v3829
      %v4689 = vpop.f32.mrf.mxu0
      %v4690 = vadd.f32 %v4529, %v4689
      %v4691 = vpop.f32.mrf.mxu0
      %v4692 = vpop.f32.mrf.mxu0
      %v4693 = vadd.f32 %v4532, %v4692
      %v4694 = vpop.f32.mrf.mxu0
      %4695 = vmatprep.mubr.bf16.mxu0 %v3945
      %4696 = vmatmul.mubr.bf16.gmra.mxu0 %v3833
      %v4697 = vpop.f32.mrf.mxu0
      %v4698 = vadd.f32 %v4537, %v4697
      %v4699 = vpop.f32.mrf.mxu0
      %v4700 = vpop.f32.mrf.mxu0
      %v4701 = vadd.f32 %v4540, %v4700
      %v4702 = vpop.f32.mrf.mxu0
      %4703 = vmatprep.mubr.bf16.mxu0 %v3949
      %4704 = vmatmul.mubr.bf16.gmra.mxu0 %v3837
      %v4705 = vpop.f32.mrf.mxu0
      %v4706 = vadd.f32 %v4545, %v4705
      %v4707 = vpop.f32.mrf.mxu0
      %v4708 = vpop.f32.mrf.mxu0
      %v4709 = vadd.f32 %v4548, %v4708
      %v4710 = vpop.f32.mrf.mxu0
      %4711 = vdwg.mxu0
      %4712 = vmatprep.subr.bf16.mxu0 0
      %4713 = vmatpush1.bf16.msra.mxu0 %v4349
      %4714 = vmatprep.subr.bf16.mxu0 0
      %4715 = vmatpush1.bf16.msra.mxu0 %v4348
      %4716 = vmatprep.subr.bf16.mxu0 0
      %4717 = vmatpush1.bf16.msra.mxu0 %v4347
      %4718 = vmatprep.subr.bf16.mxu0 0
      %4719 = vmatpush1.bf16.msra.mxu0 %v4346
      %4720 = vmatprep.subr.bf16.mxu0 0
      %4721 = vmatpush1.bf16.msra.mxu0 %v4345
      %4722 = vmatprep.subr.bf16.mxu0 0
      %4723 = vmatpush1.bf16.msra.mxu0 %v4344
      %4724 = vmatprep.subr.bf16.mxu0 0
      %4725 = vmatpush1.bf16.msra.mxu0 %v4343
      %4726 = vmatprep.subr.bf16.mxu0 0
      %4727 = vmatpush1.bf16.msra.mxu0 %v4342
      %4728 = vmatprep.subr.bf16.mxu0 0
      %4729 = vmatpush2.bf16.msra.mxu0 0
      %4730 = vmatprep.subr.bf16.mxu0 0
      %4731 = vmatpush2.bf16.msra.mxu0 0
      %4732 = vmatprep.subr.bf16.mxu0 0
      %4733 = vmatpush2.bf16.msra.mxu0 0
      %4734 = vmatprep.subr.bf16.mxu0 0
      %4735 = vmatpush2.bf16.msra.mxu0 0
      %4736 = vmatprep.subr.bf16.mxu0 0
      %4737 = vmatpush2.bf16.msra.mxu0 0
      %4738 = vmatprep.subr.bf16.mxu0 0
      %4739 = vmatpush2.bf16.msra.mxu0 0
      %4740 = vmatprep.subr.bf16.mxu0 0
      %4741 = vmatpush2.bf16.msra.mxu0 0
      %4742 = vmatprep.subr.bf16.mxu0 0
      %4743 = vmatpush2.bf16.msra.mxu0 0
      %4744 = vmatprep.mubr.bf16.mxu0 0
      %4745 = vmatmul.mubr.bf16.gmra.mxu0 %v4001
      %v4746 = vpop.f32.mrf.mxu0
      %v4747 = vadd.f32 %v4586, %v4746
      %v4748 = vpop.f32.mrf.mxu0
      %v4749 = vpop.f32.mrf.mxu0
      %v4750 = vadd.f32 %v4589, %v4749
      %v4751 = vpop.f32.mrf.mxu0
      %4752 = vmatprep.mubr.bf16.mxu0 0
      %4753 = vmatmul.mubr.bf16.gmra.mxu0 %v4005
      %v4754 = vpop.f32.mrf.mxu0
      %v4755 = vadd.f32 %v4594, %v4754
      %v4756 = vpop.f32.mrf.mxu0
      %v4757 = vpop.f32.mrf.mxu0
      %v4758 = vadd.f32 %v4597, %v4757
      %v4759 = vpop.f32.mrf.mxu0
      %4760 = vmatprep.mubr.bf16.mxu0 0
      %4761 = vmatmul.mubr.bf16.gmra.mxu0 %v4009
      %v4762 = vpop.f32.mrf.mxu0
      %v4763 = vadd.f32 %v4602, %v4762
      %v4764 = vpop.f32.mrf.mxu0
      %v4765 = vpop.f32.mrf.mxu0
      %v4766 = vadd.f32 %v4605, %v4765
      %v4767 = vpop.f32.mrf.mxu0
      %4768 = vmatprep.mubr.bf16.mxu0 0
      %4769 = vmatmul.mubr.bf16.gmra.mxu0 %v4013
      %v4770 = vpop.f32.mrf.mxu0
      %v4771 = vadd.f32 %v4610, %v4770
      %v4772 = vpop.f32.mrf.mxu0
      %v4773 = vpop.f32.mrf.mxu0
      %v4774 = vadd.f32 %v4613, %v4773
      %v4775 = vpop.f32.mrf.mxu0
      %4776 = vmatprep.mubr.bf16.mxu0 0
      %4777 = vmatmul.mubr.bf16.gmra.mxu0 %v4017
      %v4778 = vpop.f32.mrf.mxu0
      %v4779 = vadd.f32 %v4618, %v4778
      %v4780 = vpop.f32.mrf.mxu0
      %v4781 = vpop.f32.mrf.mxu0
      %v4782 = vadd.f32 %v4621, %v4781
      %v4783 = vpop.f32.mrf.mxu0
      %4784 = vmatprep.mubr.bf16.mxu0 0
      %4785 = vmatmul.mubr.bf16.gmra.mxu0 %v4021
      %v4786 = vpop.f32.mrf.mxu0
      %v4787 = vadd.f32 %v4626, %v4786
      %v4788 = vpop.f32.mrf.mxu0
      %v4789 = vpop.f32.mrf.mxu0
      %v4790 = vadd.f32 %v4629, %v4789
      %v4791 = vpop.f32.mrf.mxu0
      %4792 = vmatprep.mubr.bf16.mxu0 0
      %4793 = vmatmul.mubr.bf16.gmra.mxu0 %v4025
      %v4794 = vpop.f32.mrf.mxu0
      %v4795 = vadd.f32 %v4634, %v4794
      %v4796 = vpop.f32.mrf.mxu0
      %v4797 = vpop.f32.mrf.mxu0
      %v4798 = vadd.f32 %v4637, %v4797
      %v4799 = vpop.f32.mrf.mxu0
      %4800 = vmatprep.mubr.bf16.mxu0 0
      %4801 = vmatmul.mubr.bf16.gmra.mxu0 %v4029
      %v4802 = vpop.f32.mrf.mxu0
      %v4803 = vadd.f32 %v4642, %v4802
      %v4804 = vpop.f32.mrf.mxu0
      %v4805 = vpop.f32.mrf.mxu0
      %v4806 = vadd.f32 %v4645, %v4805
      %v4807 = vpop.f32.mrf.mxu0
      %4808 = vmatprep.mubr.bf16.mxu0 0
      %4809 = vmatmul.mubr.bf16.gmra.mxu0 %v4033
      %v4810 = vpop.f32.mrf.mxu0
      %v4811 = vadd.f32 %v4650, %v4810
      %v4812 = vpop.f32.mrf.mxu0
      %v4813 = vpop.f32.mrf.mxu0
      %v4814 = vadd.f32 %v4653, %v4813
      %v4815 = vpop.f32.mrf.mxu0
      %4816 = vmatprep.mubr.bf16.mxu0 0
      %4817 = vmatmul.mubr.bf16.gmra.mxu0 %v4037
      %v4818 = vpop.f32.mrf.mxu0
      %v4819 = vadd.f32 %v4658, %v4818
      %v4820 = vpop.f32.mrf.mxu0
      %v4821 = vpop.f32.mrf.mxu0
      %v4822 = vadd.f32 %v4661, %v4821
      %v4823 = vpop.f32.mrf.mxu0
      %4824 = vmatprep.mubr.bf16.mxu0 0
      %4825 = vmatmul.mubr.bf16.gmra.mxu0 %v4041
      %v4826 = vpop.f32.mrf.mxu0
      %v4827 = vadd.f32 %v4666, %v4826
      %v4828 = vpop.f32.mrf.mxu0
      %v4829 = vpop.f32.mrf.mxu0
      %v4830 = vadd.f32 %v4669, %v4829
      %v4831 = vpop.f32.mrf.mxu0
      %4832 = vmatprep.mubr.bf16.mxu0 0
      %4833 = vmatmul.mubr.bf16.gmra.mxu0 %v4045
      %v4834 = vpop.f32.mrf.mxu0
      %v4835 = vadd.f32 %v4674, %v4834
      %v4836 = vpop.f32.mrf.mxu0
      %v4837 = vpop.f32.mrf.mxu0
      %v4838 = vadd.f32 %v4677, %v4837
      %v4839 = vpop.f32.mrf.mxu0
      %4840 = vmatprep.mubr.bf16.mxu0 0
      %4841 = vmatmul.mubr.bf16.gmra.mxu0 %v4049
      %v4842 = vpop.f32.mrf.mxu0
      %v4843 = vadd.f32 %v4682, %v4842
      %v4844 = vpop.f32.mrf.mxu0
      %v4845 = vpop.f32.mrf.mxu0
      %v4846 = vadd.f32 %v4685, %v4845
      %v4847 = vpop.f32.mrf.mxu0
      %4848 = vmatprep.mubr.bf16.mxu0 0
      %4849 = vmatmul.mubr.bf16.gmra.mxu0 %v4053
      %v4850 = vpop.f32.mrf.mxu0
      %v4851 = vadd.f32 %v4690, %v4850
      %v4852 = vpop.f32.mrf.mxu0
      %v4853 = vpop.f32.mrf.mxu0
      %v4854 = vadd.f32 %v4693, %v4853
      %v4855 = vpop.f32.mrf.mxu0
      %4856 = vmatprep.mubr.bf16.mxu0 0
      %4857 = vmatmul.mubr.bf16.gmra.mxu0 %v4057
      %v4858 = vpop.f32.mrf.mxu0
      %v4859 = vadd.f32 %v4698, %v4858
      %v4860 = vpop.f32.mrf.mxu0
      %v4861 = vpop.f32.mrf.mxu0
      %v4862 = vadd.f32 %v4701, %v4861
      %v4863 = vpop.f32.mrf.mxu0
      %4864 = vmatprep.mubr.bf16.mxu0 0
      %4865 = vmatmul.mubr.bf16.gmra.mxu0 %v4061
      %v4866 = vpop.f32.mrf.mxu0
      %v4867 = vadd.f32 %v4706, %v4866
      %v4868 = vpop.f32.mrf.mxu0
      %v4869 = vpop.f32.mrf.mxu0
      %v4870 = vadd.f32 %v4709, %v4869
      %v4871 = vpop.f32.mrf.mxu0
      %4872 = vdwg.mxu0
      %v4873 = vrot.slane %v4747, 1
      %v4874 = vrot.slane %v4750, 1
      %v4875 = vrot.slane %v4755, 1
      %v4876 = vrot.slane %v4758, 1
      %v4877 = vrot.slane %v4763, 1
      %v4878 = vrot.slane %v4766, 1
      %v4879 = vrot.slane %v4771, 1
      %v4880 = vrot.slane %v4774, 1
      %v4881 = vrot.slane %v4779, 1
      %v4882 = vrot.slane %v4782, 1
      %v4883 = vrot.slane %v4787, 1
      %v4884 = vrot.slane %v4790, 1
      %v4885 = vrot.slane %v4795, 1
      %v4886 = vrot.slane %v4798, 1
      %v4887 = vrot.slane %v4803, 1
      %v4888 = vrot.slane %v4806, 1
      %v4889 = vrot.slane %v4811, 1
      %v4890 = vrot.slane %v4814, 1
      %v4891 = vrot.slane %v4819, 1
      %v4892 = vrot.slane %v4822, 1
      %v4893 = vrot.slane %v4827, 1
      %v4894 = vrot.slane %v4830, 1
      %v4895 = vrot.slane %v4835, 1
      %v4896 = vrot.slane %v4838, 1
      %v4897 = vrot.slane %v4843, 1
      %v4898 = vrot.slane %v4846, 1
      %v4899 = vrot.slane %v4851, 1
      %v4900 = vrot.slane %v4854, 1
      %v4901 = vrot.slane %v4859, 1
      %v4902 = vrot.slane %v4862, 1
      %v4903 = vrot.slane %v4867, 1
      %v4904 = vrot.slane %v4870, 1
      %v4905 = vsel %vm427, %v4903, %v4904
      %v4906 = vsel %vm427, %v4902, %v4903
      %v4907 = vsel %vm427, %v4901, %v4902
      %v4908 = vsel %vm427, %v4900, %v4901
      %v4909 = vsel %vm427, %v4899, %v4900
      %v4910 = vsel %vm427, %v4898, %v4899
      %v4911 = vsel %vm427, %v4897, %v4898
      %v4912 = vsel %vm427, %v4896, %v4897
      %v4913 = vsel %vm427, %v4895, %v4896
      %v4914 = vsel %vm427, %v4894, %v4895
      %v4915 = vsel %vm427, %v4893, %v4894
      %v4916 = vsel %vm427, %v4892, %v4893
      %v4917 = vsel %vm427, %v4891, %v4892
      %v4918 = vsel %vm427, %v4890, %v4891
      %v4919 = vsel %vm427, %v4889, %v4890
      %v4920 = vsel %vm427, %v4888, %v4889
      %v4921 = vsel %vm427, %v4887, %v4888
      %v4922 = vsel %vm427, %v4886, %v4887
      %v4923 = vsel %vm427, %v4885, %v4886
      %v4924 = vsel %vm427, %v4884, %v4885
      %v4925 = vsel %vm427, %v4883, %v4884
      %v4926 = vsel %vm427, %v4882, %v4883
      %v4927 = vsel %vm427, %v4881, %v4882
      %v4928 = vsel %vm427, %v4880, %v4881
      %v4929 = vsel %vm427, %v4879, %v4880
      %v4930 = vsel %vm427, %v4878, %v4879
      %v4931 = vsel %vm427, %v4877, %v4878
      %v4932 = vsel %vm427, %v4876, %v4877
      %v4933 = vsel %vm427, %v4875, %v4876
      %v4934 = vsel %vm427, %v4874, %v4875
      %v4935 = vsel %vm427, %v4873, %v4874
      %v4936 = vsel %vm427, %v4904, %v4873
      %v4937 = vrot.slane %v4747, 7
      %v4938 = vrot.slane %v4750, 7
      %v4939 = vrot.slane %v4755, 7
      %v4940 = vrot.slane %v4758, 7
      %v4941 = vrot.slane %v4763, 7
      %v4942 = vrot.slane %v4766, 7
      %v4943 = vrot.slane %v4771, 7
      %v4944 = vrot.slane %v4774, 7
      %v4945 = vrot.slane %v4779, 7
      %v4946 = vrot.slane %v4782, 7
      %v4947 = vrot.slane %v4787, 7
      %v4948 = vrot.slane %v4790, 7
      %v4949 = vrot.slane %v4795, 7
      %v4950 = vrot.slane %v4798, 7
      %v4951 = vrot.slane %v4803, 7
      %v4952 = vrot.slane %v4806, 7
      %v4953 = vrot.slane %v4811, 7
      %v4954 = vrot.slane %v4814, 7
      %v4955 = vrot.slane %v4819, 7
      %v4956 = vrot.slane %v4822, 7
      %v4957 = vrot.slane %v4827, 7
      %v4958 = vrot.slane %v4830, 7
      %v4959 = vrot.slane %v4835, 7
      %v4960 = vrot.slane %v4838, 7
      %v4961 = vrot.slane %v4843, 7
      %v4962 = vrot.slane %v4846, 7
      %v4963 = vrot.slane %v4851, 7
      %v4964 = vrot.slane %v4854, 7
      %v4965 = vrot.slane %v4859, 7
      %v4966 = vrot.slane %v4862, 7
      %v4967 = vrot.slane %v4867, 7
      %v4968 = vrot.slane %v4870, 7
      %v4969 = vsel %vm492, %v4967, %v4968
      %v4970 = vsel %vm492, %v4966, %v4967
      %v4971 = vsel %vm492, %v4965, %v4966
      %v4972 = vsel %vm492, %v4964, %v4965
      %v4973 = vsel %vm492, %v4963, %v4964
      %v4974 = vsel %vm492, %v4962, %v4963
      %v4975 = vsel %vm492, %v4961, %v4962
      %v4976 = vsel %vm492, %v4960, %v4961
      %v4977 = vsel %vm492, %v4959, %v4960
      %v4978 = vsel %vm492, %v4958, %v4959
      %v4979 = vsel %vm492, %v4957, %v4958
      %v4980 = vsel %vm492, %v4956, %v4957
      %v4981 = vsel %vm492, %v4955, %v4956
      %v4982 = vsel %vm492, %v4954, %v4955
      %v4983 = vsel %vm492, %v4953, %v4954
      %v4984 = vsel %vm492, %v4952, %v4953
      %v4985 = vsel %vm492, %v4951, %v4952
      %v4986 = vsel %vm492, %v4950, %v4951
      %v4987 = vsel %vm492, %v4949, %v4950
      %v4988 = vsel %vm492, %v4948, %v4949
      %v4989 = vsel %vm492, %v4947, %v4948
      %v4990 = vsel %vm492, %v4946, %v4947
      %v4991 = vsel %vm492, %v4945, %v4946
      %v4992 = vsel %vm492, %v4944, %v4945
      %v4993 = vsel %vm492, %v4943, %v4944
      %v4994 = vsel %vm492, %v4942, %v4943
      %v4995 = vsel %vm492, %v4941, %v4942
      %v4996 = vsel %vm492, %v4940, %v4941
      %v4997 = vsel %vm492, %v4939, %v4940
      %v4998 = vsel %vm492, %v4938, %v4939
      %v4999 = vsel %vm492, %v4937, %v4938
      %v5000 = vsel %vm492, %v4968, %v4937
      %v5001 = vpack.c.bf16 %v4969, %v4970
      %v5002 = vpack.c.bf16 %v4999, %v5000
      %v5003 = vpack.c.bf16 %v4997, %v4998
      %v5004 = vpack.c.bf16 %v4995, %v4996
      %v5005 = vpack.c.bf16 %v4993, %v4994
      %v5006 = vpack.c.bf16 %v4991, %v4992
      %v5007 = vpack.c.bf16 %v4989, %v4990
      %v5008 = vpack.c.bf16 %v4987, %v4988
      %v5009 = vpack.c.bf16 %v4985, %v4986
      %v5010 = vpack.c.bf16 %v4983, %v4984
      %v5011 = vpack.c.bf16 %v4981, %v4982
      %v5012 = vpack.c.bf16 %v4979, %v4980
      %v5013 = vpack.c.bf16 %v4977, %v4978
      %v5014 = vpack.c.bf16 %v4975, %v4976
      %v5015 = vpack.c.bf16 %v4973, %v4974
      %v5016 = vpack.c.bf16 %v4971, %v4972
      %v5017 = vmul.bf16 %v5001, %v637
      %v5018 = vmul.bf16 %v5002, %v638
      %v5019 = vmul.bf16 %v5003, %v639
      %v5020 = vmul.bf16 %v5004, %v640
      %v5021 = vmul.bf16 %v5005, %v641
      %v5022 = vmul.bf16 %v5006, %v642
      %v5023 = vmul.bf16 %v5007, %v643
      %v5024 = vmul.bf16 %v5008, %v644
      %v5025 = vmul.bf16 %v5009, %v645
      %v5026 = vmul.bf16 %v5010, %v646
      %v5027 = vmul.bf16 %v5011, %v647
      %v5028 = vmul.bf16 %v5012, %v648
      %v5029 = vmul.bf16 %v5013, %v649
      %v5030 = vmul.bf16 %v5014, %v650
      %v5031 = vmul.bf16 %v5015, %v651
      %v5032 = vmul.bf16 %v5016, %v652
      %v5033 = vpack.c.bf16 %v4870, %v4867
      %v5034 = vpack.c.bf16 %v4750, %v4747
      %v5035 = vpack.c.bf16 %v4758, %v4755
      %v5036 = vpack.c.bf16 %v4766, %v4763
      %v5037 = vpack.c.bf16 %v4774, %v4771
      %v5038 = vpack.c.bf16 %v4782, %v4779
      %v5039 = vpack.c.bf16 %v4790, %v4787
      %v5040 = vpack.c.bf16 %v4798, %v4795
      %v5041 = vpack.c.bf16 %v4806, %v4803
      %v5042 = vpack.c.bf16 %v4814, %v4811
      %v5043 = vpack.c.bf16 %v4822, %v4819
      %v5044 = vpack.c.bf16 %v4830, %v4827
      %v5045 = vpack.c.bf16 %v4838, %v4835
      %v5046 = vpack.c.bf16 %v4846, %v4843
      %v5047 = vpack.c.bf16 %v4854, %v4851
      %v5048 = vpack.c.bf16 %v4862, %v4859
      %v5049 = vmul.bf16 %v5033, %v798
      %v5050 = vmul.bf16 %v5034, %v799
      %v5051 = vmul.bf16 %v5035, %v800
      %v5052 = vmul.bf16 %v5036, %v801
      %v5053 = vmul.bf16 %v5037, %v802
      %v5054 = vmul.bf16 %v5038, %v803
      %v5055 = vmul.bf16 %v5039, %v804
      %v5056 = vmul.bf16 %v5040, %v805
      %v5057 = vmul.bf16 %v5041, %v806
      %v5058 = vmul.bf16 %v5042, %v807
      %v5059 = vmul.bf16 %v5043, %v808
      %v5060 = vmul.bf16 %v5044, %v809
      %v5061 = vmul.bf16 %v5045, %v810
      %v5062 = vmul.bf16 %v5046, %v811
      %v5063 = vmul.bf16 %v5047, %v812
      %v5064 = vmul.bf16 %v5048, %v813
      %v5065 = vpack.c.bf16 %v4936, %v4905
      %v5066 = vpack.c.bf16 %v4934, %v4935
      %v5067 = vpack.c.bf16 %v4932, %v4933
      %v5068 = vpack.c.bf16 %v4930, %v4931
      %v5069 = vpack.c.bf16 %v4928, %v4929
      %v5070 = vpack.c.bf16 %v4926, %v4927
      %v5071 = vpack.c.bf16 %v4924, %v4925
      %v5072 = vpack.c.bf16 %v4922, %v4923
      %v5073 = vpack.c.bf16 %v4920, %v4921
      %v5074 = vpack.c.bf16 %v4918, %v4919
      %v5075 = vpack.c.bf16 %v4916, %v4917
      %v5076 = vpack.c.bf16 %v4914, %v4915
      %v5077 = vpack.c.bf16 %v4912, %v4913
      %v5078 = vpack.c.bf16 %v4910, %v4911
      %v5079 = vpack.c.bf16 %v4908, %v4909
      %v5080 = vpack.c.bf16 %v4906, %v4907
      %v5081 = vmul.bf16 %v5065, %v959
      %v5082 = vmul.bf16 %v5066, %v960
      %v5083 = vmul.bf16 %v5067, %v961
      %v5084 = vmul.bf16 %v5068, %v962
      %v5085 = vmul.bf16 %v5069, %v963
      %v5086 = vmul.bf16 %v5070, %v964
      %v5087 = vmul.bf16 %v5071, %v965
      %v5088 = vmul.bf16 %v5072, %v966
      %v5089 = vmul.bf16 %v5073, %v967
      %v5090 = vmul.bf16 %v5074, %v968
      %v5091 = vmul.bf16 %v5075, %v969
      %v5092 = vmul.bf16 %v5076, %v970
      %v5093 = vmul.bf16 %v5077, %v971
      %v5094 = vmul.bf16 %v5078, %v972
      %v5095 = vmul.bf16 %v5079, %v973
      %v5096 = vmul.bf16 %v5080, %v974
      %v5097 = vmul.bf16 %v5002, %v1104
      %v5098 = vmul.bf16 %v5003, %v1105
      %v5099 = vmul.bf16 %v5004, %v1106
      %v5100 = vmul.bf16 %v5005, %v1107
      %v5101 = vmul.bf16 %v5006, %v1108
      %v5102 = vmul.bf16 %v5007, %v1109
      %v5103 = vmul.bf16 %v5008, %v1110
      %v5104 = vmul.bf16 %v5009, %v1111
      %v5105 = vmul.bf16 %v5010, %v1112
      %v5106 = vmul.bf16 %v5011, %v1113
      %v5107 = vmul.bf16 %v5012, %v1114
      %v5108 = vmul.bf16 %v5013, %v1115
      %v5109 = vmul.bf16 %v5014, %v1116
      %v5110 = vmul.bf16 %v5015, %v1117
      %v5111 = vmul.bf16 %v5016, %v1118
      %v5112 = vmul.bf16 %v5001, %v1119
      %v5113 = vmul.bf16 %v5066, %v1249
      %v5114 = vmul.bf16 %v5067, %v1250
      %v5115 = vmul.bf16 %v5068, %v1251
      %v5116 = vmul.bf16 %v5069, %v1252
      %v5117 = vmul.bf16 %v5070, %v1253
      %v5118 = vmul.bf16 %v5071, %v1254
      %v5119 = vmul.bf16 %v5072, %v1255
      %v5120 = vmul.bf16 %v5073, %v1256
      %v5121 = vmul.bf16 %v5074, %v1257
      %v5122 = vmul.bf16 %v5075, %v1258
      %v5123 = vmul.bf16 %v5076, %v1259
      %v5124 = vmul.bf16 %v5077, %v1260
      %v5125 = vmul.bf16 %v5078, %v1261
      %v5126 = vmul.bf16 %v5079, %v1262
      %v5127 = vmul.bf16 %v5080, %v1263
      %v5128 = vmul.bf16 %v5065, %v1264
      %v5129 = vmul.bf16 %v5003, %v1394
      %v5130 = vmul.bf16 %v5004, %v1395
      %v5131 = vmul.bf16 %v5005, %v1396
      %v5132 = vmul.bf16 %v5006, %v1397
      %v5133 = vmul.bf16 %v5007, %v1398
      %v5134 = vmul.bf16 %v5008, %v1399
      %v5135 = vmul.bf16 %v5009, %v1400
      %v5136 = vmul.bf16 %v5010, %v1401
      %v5137 = vmul.bf16 %v5011, %v1402
      %v5138 = vmul.bf16 %v5012, %v1403
      %v5139 = vmul.bf16 %v5013, %v1404
      %v5140 = vmul.bf16 %v5014, %v1405
      %v5141 = vmul.bf16 %v5015, %v1406
      %v5142 = vmul.bf16 %v5016, %v1407
      %v5143 = vmul.bf16 %v5001, %v1408
      %v5144 = vmul.bf16 %v5002, %v1409
      %v5145 = vmul.bf16 %v5035, %v1539
      %v5146 = vmul.bf16 %v5036, %v1540
      %v5147 = vmul.bf16 %v5037, %v1541
      %v5148 = vmul.bf16 %v5038, %v1542
      %v5149 = vmul.bf16 %v5039, %v1543
      %v5150 = vmul.bf16 %v5040, %v1544
      %v5151 = vmul.bf16 %v5041, %v1545
      %v5152 = vmul.bf16 %v5042, %v1546
      %v5153 = vmul.bf16 %v5043, %v1547
      %v5154 = vmul.bf16 %v5044, %v1548
      %v5155 = vmul.bf16 %v5045, %v1549
      %v5156 = vmul.bf16 %v5046, %v1550
      %v5157 = vmul.bf16 %v5047, %v1551
      %v5158 = vmul.bf16 %v5048, %v1552
      %v5159 = vmul.bf16 %v5033, %v1553
      %v5160 = vmul.bf16 %v5034, %v1554
      %v5161 = vmul.bf16 %v5067, %v1684
      %v5162 = vmul.bf16 %v5068, %v1685
      %v5163 = vmul.bf16 %v5069, %v1686
      %v5164 = vmul.bf16 %v5070, %v1687
      %v5165 = vmul.bf16 %v5071, %v1688
      %v5166 = vmul.bf16 %v5072, %v1689
      %v5167 = vmul.bf16 %v5073, %v1690
      %v5168 = vmul.bf16 %v5074, %v1691
      %v5169 = vmul.bf16 %v5075, %v1692
      %v5170 = vmul.bf16 %v5076, %v1693
      %v5171 = vmul.bf16 %v5077, %v1694
      %v5172 = vmul.bf16 %v5078, %v1695
      %v5173 = vmul.bf16 %v5079, %v1696
      %v5174 = vmul.bf16 %v5080, %v1697
      %v5175 = vmul.bf16 %v5065, %v1698
      %v5176 = vmul.bf16 %v5066, %v1699
      %5193 = vrot.lane.b32.xlu0 %v5049, 64
      %v5194 = vpop.permute.xlu0 %5193
      %5195 = vrot.lane.b32.xlu0 %v5050, 64
      %v5196 = vpop.permute.xlu0 %5195
      %5197 = vrot.lane.b32.xlu0 %v5051, 64
      %v5198 = vpop.permute.xlu0 %5197
      %5199 = vrot.lane.b32.xlu0 %v5052, 64
      %v5200 = vpop.permute.xlu0 %5199
      %5201 = vrot.lane.b32.xlu0 %v5053, 64
      %v5202 = vpop.permute.xlu0 %5201
      %5203 = vrot.lane.b32.xlu0 %v5054, 64
      %v5204 = vpop.permute.xlu0 %5203
      %5205 = vrot.lane.b32.xlu0 %v5055, 64
      %v5206 = vpop.permute.xlu0 %5205
      %5207 = vrot.lane.b32.xlu0 %v5056, 64
      %v5208 = vpop.permute.xlu0 %5207
      %5209 = vrot.lane.b32.xlu0 %v5057, 64
      %v5210 = vpop.permute.xlu0 %5209
      %5211 = vrot.lane.b32.xlu0 %v5058, 64
      %v5212 = vpop.permute.xlu0 %5211
      %5213 = vrot.lane.b32.xlu0 %v5059, 64
      %v5214 = vpop.permute.xlu0 %5213
      %5215 = vrot.lane.b32.xlu0 %v5060, 64
      %v5216 = vpop.permute.xlu0 %5215
      %5217 = vrot.lane.b32.xlu0 %v5061, 64
      %v5218 = vpop.permute.xlu0 %5217
      %5219 = vrot.lane.b32.xlu0 %v5062, 64
      %v5220 = vpop.permute.xlu0 %5219
      %5221 = vrot.lane.b32.xlu0 %v5063, 64
      %v5222 = vpop.permute.xlu0 %5221
      %5223 = vrot.lane.b32.xlu0 %v5064, 64
      %v5224 = vpop.permute.xlu0 %5223
      %v5227 = vsel %vm1780, %v5017, %v5194
      %v5231 = vsel %vm1780, %v5018, %v5196
      %v5235 = vsel %vm1780, %v5019, %v5198
      %v5239 = vsel %vm1780, %v5020, %v5200
      %v5243 = vsel %vm1780, %v5021, %v5202
      %v5247 = vsel %vm1780, %v5022, %v5204
      %v5251 = vsel %vm1780, %v5023, %v5206
      %v5255 = vsel %vm1780, %v5024, %v5208
      %v5259 = vsel %vm1780, %v5025, %v5210
      %v5263 = vsel %vm1780, %v5026, %v5212
      %v5267 = vsel %vm1780, %v5027, %v5214
      %v5271 = vsel %vm1780, %v5028, %v5216
      %v5275 = vsel %vm1780, %v5029, %v5218
      %v5279 = vsel %vm1780, %v5030, %v5220
      %v5283 = vsel %vm1780, %v5031, %v5222
      %v5287 = vsel %vm1780, %v5032, %v5224
      %5305 = vrot.lane.b32.xlu0 %v5097, 64
      %v5306 = vpop.permute.xlu0 %5305
      %5307 = vrot.lane.b32.xlu0 %v5098, 64
      %v5308 = vpop.permute.xlu0 %5307
      %5309 = vrot.lane.b32.xlu0 %v5099, 64
      %v5310 = vpop.permute.xlu0 %5309
      %5311 = vrot.lane.b32.xlu0 %v5100, 64
      %v5312 = vpop.permute.xlu0 %5311
      %5313 = vrot.lane.b32.xlu0 %v5101, 64
      %v5314 = vpop.permute.xlu0 %5313
      %5315 = vrot.lane.b32.xlu0 %v5102, 64
      %v5316 = vpop.permute.xlu0 %5315
      %5317 = vrot.lane.b32.xlu0 %v5103, 64
      %v5318 = vpop.permute.xlu0 %5317
      %5319 = vrot.lane.b32.xlu0 %v5104, 64
      %v5320 = vpop.permute.xlu0 %5319
      %5321 = vrot.lane.b32.xlu0 %v5105, 64
      %v5322 = vpop.permute.xlu0 %5321
      %5323 = vrot.lane.b32.xlu0 %v5106, 64
      %v5324 = vpop.permute.xlu0 %5323
      %5325 = vrot.lane.b32.xlu0 %v5107, 64
      %v5326 = vpop.permute.xlu0 %5325
      %5327 = vrot.lane.b32.xlu0 %v5108, 64
      %v5328 = vpop.permute.xlu0 %5327
      %5329 = vrot.lane.b32.xlu0 %v5109, 64
      %v5330 = vpop.permute.xlu0 %5329
      %5331 = vrot.lane.b32.xlu0 %v5110, 64
      %v5332 = vpop.permute.xlu0 %5331
      %5333 = vrot.lane.b32.xlu0 %v5111, 64
      %v5334 = vpop.permute.xlu0 %5333
      %5335 = vrot.lane.b32.xlu0 %v5112, 64
      %v5336 = vpop.permute.xlu0 %5335
      %v5339 = vsel %vm1780, %v5081, %v5306
      %v5343 = vsel %vm1780, %v5082, %v5308
      %v5347 = vsel %vm1780, %v5083, %v5310
      %v5351 = vsel %vm1780, %v5084, %v5312
      %v5355 = vsel %vm1780, %v5085, %v5314
      %v5359 = vsel %vm1780, %v5086, %v5316
      %v5363 = vsel %vm1780, %v5087, %v5318
      %v5367 = vsel %vm1780, %v5088, %v5320
      %v5371 = vsel %vm1780, %v5089, %v5322
      %v5375 = vsel %vm1780, %v5090, %v5324
      %v5379 = vsel %vm1780, %v5091, %v5326
      %v5383 = vsel %vm1780, %v5092, %v5328
      %v5387 = vsel %vm1780, %v5093, %v5330
      %v5391 = vsel %vm1780, %v5094, %v5332
      %v5395 = vsel %vm1780, %v5095, %v5334
      %v5399 = vsel %vm1780, %v5096, %v5336
      %5417 = vrot.lane.b32.xlu0 %v5113, 64
      %v5418 = vpop.permute.xlu0 %5417
      %5419 = vrot.lane.b32.xlu0 %v5114, 64
      %v5420 = vpop.permute.xlu0 %5419
      %5421 = vrot.lane.b32.xlu0 %v5115, 64
      %v5422 = vpop.permute.xlu0 %5421
      %5423 = vrot.lane.b32.xlu0 %v5116, 64
      %v5424 = vpop.permute.xlu0 %5423
      %5425 = vrot.lane.b32.xlu0 %v5117, 64
      %v5426 = vpop.permute.xlu0 %5425
      %5427 = vrot.lane.b32.xlu0 %v5118, 64
      %v5428 = vpop.permute.xlu0 %5427
      %5429 = vrot.lane.b32.xlu0 %v5119, 64
      %v5430 = vpop.permute.xlu0 %5429
      %5431 = vrot.lane.b32.xlu0 %v5120, 64
      %v5432 = vpop.permute.xlu0 %5431
      %5433 = vrot.lane.b32.xlu0 %v5121, 64
      %v5434 = vpop.permute.xlu0 %5433
      %5435 = vrot.lane.b32.xlu0 %v5122, 64
      %v5436 = vpop.permute.xlu0 %5435
      %5437 = vrot.lane.b32.xlu0 %v5123, 64
      %v5438 = vpop.permute.xlu0 %5437
      %5439 = vrot.lane.b32.xlu0 %v5124, 64
      %v5440 = vpop.permute.xlu0 %5439
      %5441 = vrot.lane.b32.xlu0 %v5125, 64
      %v5442 = vpop.permute.xlu0 %5441
      %5443 = vrot.lane.b32.xlu0 %v5126, 64
      %v5444 = vpop.permute.xlu0 %5443
      %5445 = vrot.lane.b32.xlu0 %v5127, 64
      %v5446 = vpop.permute.xlu0 %5445
      %5447 = vrot.lane.b32.xlu0 %v5128, 64
      %v5448 = vpop.permute.xlu0 %5447
      %v5451 = vsel %vm1780, %v5034, %v5418
      %v5455 = vsel %vm1780, %v5035, %v5420
      %v5459 = vsel %vm1780, %v5036, %v5422
      %v5463 = vsel %vm1780, %v5037, %v5424
      %v5467 = vsel %vm1780, %v5038, %v5426
      %v5471 = vsel %vm1780, %v5039, %v5428
      %v5475 = vsel %vm1780, %v5040, %v5430
      %v5479 = vsel %vm1780, %v5041, %v5432
      %v5483 = vsel %vm1780, %v5042, %v5434
      %v5487 = vsel %vm1780, %v5043, %v5436
      %v5491 = vsel %vm1780, %v5044, %v5438
      %v5495 = vsel %vm1780, %v5045, %v5440
      %v5499 = vsel %vm1780, %v5046, %v5442
      %v5503 = vsel %vm1780, %v5047, %v5444
      %v5507 = vsel %vm1780, %v5048, %v5446
      %v5511 = vsel %vm1780, %v5033, %v5448
      %5529 = vrot.lane.b32.xlu0 %v5145, 64
      %v5530 = vpop.permute.xlu0 %5529
      %5531 = vrot.lane.b32.xlu0 %v5146, 64
      %v5532 = vpop.permute.xlu0 %5531
      %5533 = vrot.lane.b32.xlu0 %v5147, 64
      %v5534 = vpop.permute.xlu0 %5533
      %5535 = vrot.lane.b32.xlu0 %v5148, 64
      %v5536 = vpop.permute.xlu0 %5535
      %5537 = vrot.lane.b32.xlu0 %v5149, 64
      %v5538 = vpop.permute.xlu0 %5537
      %5539 = vrot.lane.b32.xlu0 %v5150, 64
      %v5540 = vpop.permute.xlu0 %5539
      %5541 = vrot.lane.b32.xlu0 %v5151, 64
      %v5542 = vpop.permute.xlu0 %5541
      %5543 = vrot.lane.b32.xlu0 %v5152, 64
      %v5544 = vpop.permute.xlu0 %5543
      %5545 = vrot.lane.b32.xlu0 %v5153, 64
      %v5546 = vpop.permute.xlu0 %5545
      %5547 = vrot.lane.b32.xlu0 %v5154, 64
      %v5548 = vpop.permute.xlu0 %5547
      %5549 = vrot.lane.b32.xlu0 %v5155, 64
      %v5550 = vpop.permute.xlu0 %5549
      %5551 = vrot.lane.b32.xlu0 %v5156, 64
      %v5552 = vpop.permute.xlu0 %5551
      %5553 = vrot.lane.b32.xlu0 %v5157, 64
      %v5554 = vpop.permute.xlu0 %5553
      %5555 = vrot.lane.b32.xlu0 %v5158, 64
      %v5556 = vpop.permute.xlu0 %5555
      %5557 = vrot.lane.b32.xlu0 %v5159, 64
      %v5558 = vpop.permute.xlu0 %5557
      %5559 = vrot.lane.b32.xlu0 %v5160, 64
      %v5560 = vpop.permute.xlu0 %5559
      %v5563 = vsel %vm1780, %v5129, %v5530
      %v5567 = vsel %vm1780, %v5130, %v5532
      %v5571 = vsel %vm1780, %v5131, %v5534
      %v5575 = vsel %vm1780, %v5132, %v5536
      %v5579 = vsel %vm1780, %v5133, %v5538
      %v5583 = vsel %vm1780, %v5134, %v5540
      %v5587 = vsel %vm1780, %v5135, %v5542
      %v5591 = vsel %vm1780, %v5136, %v5544
      %v5595 = vsel %vm1780, %v5137, %v5546
      %v5599 = vsel %vm1780, %v5138, %v5548
      %v5603 = vsel %vm1780, %v5139, %v5550
      %v5607 = vsel %vm1780, %v5140, %v5552
      %v5611 = vsel %vm1780, %v5141, %v5554
      %v5615 = vsel %vm1780, %v5142, %v5556
      %v5619 = vsel %vm1780, %v5143, %v5558
      %v5623 = vsel %vm1780, %v5144, %v5560
      %5641 = vrot.lane.b32.xlu0 %v5034, 64
      %v5642 = vpop.permute.xlu0 %5641
      %5643 = vrot.lane.b32.xlu0 %v5035, 64
      %v5644 = vpop.permute.xlu0 %5643
      %5645 = vrot.lane.b32.xlu0 %v5036, 64
      %v5646 = vpop.permute.xlu0 %5645
      %5647 = vrot.lane.b32.xlu0 %v5037, 64
      %v5648 = vpop.permute.xlu0 %5647
      %5649 = vrot.lane.b32.xlu0 %v5038, 64
      %v5650 = vpop.permute.xlu0 %5649
      %5651 = vrot.lane.b32.xlu0 %v5039, 64
      %v5652 = vpop.permute.xlu0 %5651
      %5653 = vrot.lane.b32.xlu0 %v5040, 64
      %v5654 = vpop.permute.xlu0 %5653
      %5655 = vrot.lane.b32.xlu0 %v5041, 64
      %v5656 = vpop.permute.xlu0 %5655
      %5657 = vrot.lane.b32.xlu0 %v5042, 64
      %v5658 = vpop.permute.xlu0 %5657
      %5659 = vrot.lane.b32.xlu0 %v5043, 64
      %v5660 = vpop.permute.xlu0 %5659
      %5661 = vrot.lane.b32.xlu0 %v5044, 64
      %v5662 = vpop.permute.xlu0 %5661
      %5663 = vrot.lane.b32.xlu0 %v5045, 64
      %v5664 = vpop.permute.xlu0 %5663
      %5665 = vrot.lane.b32.xlu0 %v5046, 64
      %v5666 = vpop.permute.xlu0 %5665
      %5667 = vrot.lane.b32.xlu0 %v5047, 64
      %v5668 = vpop.permute.xlu0 %5667
      %5669 = vrot.lane.b32.xlu0 %v5048, 64
      %v5670 = vpop.permute.xlu0 %5669
      %5671 = vrot.lane.b32.xlu0 %v5033, 64
      %v5672 = vpop.permute.xlu0 %5671
      %v5675 = vsel %vm1780, %v5161, %v5642
      %v5679 = vsel %vm1780, %v5162, %v5644
      %v5683 = vsel %vm1780, %v5163, %v5646
      %v5687 = vsel %vm1780, %v5164, %v5648
      %v5691 = vsel %vm1780, %v5165, %v5650
      %v5695 = vsel %vm1780, %v5166, %v5652
      %v5699 = vsel %vm1780, %v5167, %v5654
      %v5703 = vsel %vm1780, %v5168, %v5656
      %v5707 = vsel %vm1780, %v5169, %v5658
      %v5711 = vsel %vm1780, %v5170, %v5660
      %v5715 = vsel %vm1780, %v5171, %v5662
      %v5719 = vsel %vm1780, %v5172, %v5664
      %v5723 = vsel %vm1780, %v5173, %v5666
      %v5727 = vsel %vm1780, %v5174, %v5668
      %v5731 = vsel %vm1780, %v5175, %v5670
      %v5735 = vsel %vm1780, %v5176, %v5672
      %v5737 = vld [vmem:[%s6] sm:$0xf]
      %v5738 = vld [vmem:[%s6 + $0x4] sm:$0xf]
      %v5739 = vld [vmem:[%s6 + $0x8] sm:$0xf]
      %v5740 = vld [vmem:[%s6 + $0xc] sm:$0xf]
      %v5741 = vld [vmem:[%s6 + $0x10] sm:$0xf]
      %v5742 = vld [vmem:[%s6 + $0x14] sm:$0xf]
      %v5743 = vld [vmem:[%s6 + $0x18] sm:$0xf]
      %v5744 = vld [vmem:[%s6 + $0x1c] sm:$0xf]
      %v5745 = vld [vmem:[%s6 + $0x20] sm:$0xf]
      %v5746 = vld [vmem:[%s6 + $0x24] sm:$0xf]
      %v5747 = vld [vmem:[%s6 + $0x28] sm:$0xf]
      %v5748 = vld [vmem:[%s6 + $0x2c] sm:$0xf]
      %v5749 = vld [vmem:[%s6 + $0x30] sm:$0xf]
      %v5750 = vld [vmem:[%s6 + $0x34] sm:$0xf]
      %v5751 = vld [vmem:[%s6 + $0x38] sm:$0xf]
      %v5752 = vld [vmem:[%s6 + $0x3c] sm:$0xf]
      %v5753 = vld [vmem:[%s6 + $0x40] sm:$0xf]
      %v5754 = vld [vmem:[%s6 + $0x44] sm:$0xf]
      %v5755 = vld [vmem:[%s6 + $0x48] sm:$0xf]
      %v5756 = vld [vmem:[%s6 + $0x4c] sm:$0xf]
      %v5757 = vld [vmem:[%s6 + $0x50] sm:$0xf]
      %v5758 = vld [vmem:[%s6 + $0x54] sm:$0xf]
      %v5759 = vld [vmem:[%s6 + $0x58] sm:$0xf]
      %v5760 = vld [vmem:[%s6 + $0x5c] sm:$0xf]
      %v5761 = vld [vmem:[%s6 + $0x60] sm:$0xf]
      %v5762 = vld [vmem:[%s6 + $0x64] sm:$0xf]
      %v5763 = vld [vmem:[%s6 + $0x68] sm:$0xf]
      %v5764 = vld [vmem:[%s6 + $0x6c] sm:$0xf]
      %v5765 = vld [vmem:[%s6 + $0x70] sm:$0xf]
      %v5766 = vld [vmem:[%s6 + $0x74] sm:$0xf]
      %v5767 = vld [vmem:[%s6 + $0x78] sm:$0xf]
      %v5768 = vld [vmem:[%s6 + $0x7c] sm:$0xf]
      %v5769 = vld [vmem:[%s6 + $0x80] sm:$0xf]
      %v5770 = vld [vmem:[%s6 + $0x84] sm:$0xf]
      %v5771 = vld [vmem:[%s6 + $0x88] sm:$0xf]
      %v5772 = vld [vmem:[%s6 + $0x8c] sm:$0xf]
      %v5773 = vld [vmem:[%s6 + $0x90] sm:$0xf]
      %v5774 = vld [vmem:[%s6 + $0x94] sm:$0xf]
      %v5775 = vld [vmem:[%s6 + $0x98] sm:$0xf]
      %v5776 = vld [vmem:[%s6 + $0x9c] sm:$0xf]
      %v5777 = vld [vmem:[%s6 + $0xa0] sm:$0xf]
      %v5778 = vld [vmem:[%s6 + $0xa4] sm:$0xf]
      %v5779 = vld [vmem:[%s6 + $0xa8] sm:$0xf]
      %v5780 = vld [vmem:[%s6 + $0xac] sm:$0xf]
      %v5781 = vld [vmem:[%s6 + $0xb0] sm:$0xf]
      %v5782 = vld [vmem:[%s6 + $0xb4] sm:$0xf]
      %v5783 = vld [vmem:[%s6 + $0xb8] sm:$0xf]
      %v5784 = vld [vmem:[%s6 + $0xbc] sm:$0xf]
      %v5785 = vld [vmem:[%s6 + $0xc0] sm:$0xf]
      %v5786 = vld [vmem:[%s6 + $0xc4] sm:$0xf]
      %v5787 = vld [vmem:[%s6 + $0xc8] sm:$0xf]
      %v5788 = vld [vmem:[%s6 + $0xcc] sm:$0xf]
      %v5789 = vld [vmem:[%s6 + $0xd0] sm:$0xf]
      %v5790 = vld [vmem:[%s6 + $0xd4] sm:$0xf]
      %v5791 = vld [vmem:[%s6 + $0xd8] sm:$0xf]
      %v5792 = vld [vmem:[%s6 + $0xdc] sm:$0xf]
      %v5793 = vld [vmem:[%s6 + $0xe0] sm:$0xf]
      %v5794 = vld [vmem:[%s6 + $0xe4] sm:$0xf]
      %v5795 = vld [vmem:[%s6 + $0xe8] sm:$0xf]
      %v5796 = vld [vmem:[%s6 + $0xec] sm:$0xf]
      %v5797 = vld [vmem:[%s6 + $0xf0] sm:$0xf]
      %v5798 = vld [vmem:[%s6 + $0xf4] sm:$0xf]
      %v5799 = vld [vmem:[%s6 + $0xf8] sm:$0xf]
      %v5800 = vld [vmem:[%s6 + $0xfc] sm:$0xf]
      %v5801 = vld [vmem:[%s6 + $0x100] sm:$0xf]
      %v5802 = vld [vmem:[%s6 + $0x104] sm:$0xf]
      %v5803 = vld [vmem:[%s6 + $0x108] sm:$0xf]
      %v5804 = vld [vmem:[%s6 + $0x10c] sm:$0xf]
      %v5805 = vld [vmem:[%s6 + $0x110] sm:$0xf]
      %v5806 = vld [vmem:[%s6 + $0x114] sm:$0xf]
      %v5807 = vld [vmem:[%s6 + $0x118] sm:$0xf]
      %v5808 = vld [vmem:[%s6 + $0x11c] sm:$0xf]
      %v5809 = vld [vmem:[%s6 + $0x120] sm:$0xf]
      %v5810 = vld [vmem:[%s6 + $0x124] sm:$0xf]
      %v5811 = vld [vmem:[%s6 + $0x128] sm:$0xf]
      %v5812 = vld [vmem:[%s6 + $0x12c] sm:$0xf]
      %v5813 = vld [vmem:[%s6 + $0x130] sm:$0xf]
      %v5814 = vld [vmem:[%s6 + $0x134] sm:$0xf]
      %v5815 = vld [vmem:[%s6 + $0x138] sm:$0xf]
      %v5816 = vld [vmem:[%s6 + $0x13c] sm:$0xf]
      %v5817 = vld [vmem:[%s7] sm:$0x1]
      %v5819 = vlaneseq
      %v5820 = vshrl.u32 %v5819, 7
      %v5821 = vsub.s32 0, %v5820
      %v5822 = vrot.slane %v5817, %v5821
      %v5904 = vunpack.c.l.b16 %v5737
      %v5905 = vunpack.c.l.b16 %v5738
      %v5906 = vunpack.c.l.b16 %v5739
      %v5907 = vunpack.c.l.b16 %v5740
      %v5908 = vunpack.c.l.b16 %v5741
      %v5909 = vunpack.c.l.b16 %v5742
      %v5910 = vunpack.c.l.b16 %v5743
      %v5911 = vunpack.c.l.b16 %v5744
      %v5912 = vunpack.c.l.b16 %v5745
      %v5913 = vunpack.c.l.b16 %v5746
      %v5914 = vunpack.c.l.b16 %v5747
      %v5915 = vunpack.c.l.b16 %v5748
      %v5916 = vunpack.c.l.b16 %v5749
      %v5917 = vunpack.c.l.b16 %v5750
      %v5918 = vunpack.c.l.b16 %v5751
      %v5919 = vunpack.c.l.b16 %v5752
      %v5920 = vunpack.c.l.b16 %v5753
      %v5921 = vunpack.c.l.b16 %v5754
      %v5922 = vunpack.c.l.b16 %v5755
      %v5923 = vunpack.c.l.b16 %v5756
      %v5924 = vunpack.c.l.b16 %v5757
      %v5925 = vunpack.c.l.b16 %v5758
      %v5926 = vunpack.c.l.b16 %v5759
      %v5927 = vunpack.c.l.b16 %v5760
      %v5928 = vunpack.c.l.b16 %v5761
      %v5929 = vunpack.c.l.b16 %v5762
      %v5930 = vunpack.c.l.b16 %v5763
      %v5931 = vunpack.c.l.b16 %v5764
      %v5932 = vunpack.c.l.b16 %v5765
      %v5933 = vunpack.c.l.b16 %v5766
      %v5934 = vunpack.c.l.b16 %v5767
      %v5935 = vunpack.c.l.b16 %v5768
      %v5936 = vunpack.c.l.b16 %v5769
      %v5937 = vunpack.c.l.b16 %v5770
      %v5938 = vunpack.c.l.b16 %v5771
      %v5939 = vunpack.c.l.b16 %v5772
      %v5940 = vunpack.c.l.b16 %v5773
      %v5941 = vunpack.c.l.b16 %v5774
      %v5942 = vunpack.c.l.b16 %v5775
      %v5943 = vunpack.c.l.b16 %v5776
      %v5944 = vunpack.c.l.b16 %v5777
      %v5945 = vunpack.c.l.b16 %v5778
      %v5946 = vunpack.c.l.b16 %v5779
      %v5947 = vunpack.c.l.b16 %v5780
      %v5948 = vunpack.c.l.b16 %v5781
      %v5949 = vunpack.c.l.b16 %v5782
      %v5950 = vunpack.c.l.b16 %v5783
      %v5951 = vunpack.c.l.b16 %v5784
      %v5952 = vunpack.c.l.b16 %v5785
      %v5953 = vunpack.c.l.b16 %v5786
      %v5954 = vunpack.c.l.b16 %v5787
      %v5955 = vunpack.c.l.b16 %v5788
      %v5956 = vunpack.c.l.b16 %v5789
      %v5957 = vunpack.c.l.b16 %v5790
      %v5958 = vunpack.c.l.b16 %v5791
      %v5959 = vunpack.c.l.b16 %v5792
      %v5960 = vunpack.c.l.b16 %v5793
      %v5961 = vunpack.c.l.b16 %v5794
      %v5962 = vunpack.c.l.b16 %v5795
      %v5963 = vunpack.c.l.b16 %v5796
      %v5964 = vunpack.c.l.b16 %v5797
      %v5965 = vunpack.c.l.b16 %v5798
      %v5966 = vunpack.c.l.b16 %v5799
      %v5967 = vunpack.c.l.b16 %v5800
      %v5968 = vunpack.c.l.b16 %v5801
      %v5969 = vunpack.c.l.b16 %v5802
      %v5970 = vunpack.c.l.b16 %v5803
      %v5971 = vunpack.c.l.b16 %v5804
      %v5972 = vunpack.c.l.b16 %v5805
      %v5973 = vunpack.c.l.b16 %v5806
      %v5974 = vunpack.c.l.b16 %v5807
      %v5975 = vunpack.c.l.b16 %v5808
      %v5976 = vunpack.c.l.b16 %v5809
      %v5977 = vunpack.c.l.b16 %v5810
      %v5978 = vunpack.c.l.b16 %v5811
      %v5979 = vunpack.c.l.b16 %v5812
      %v5980 = vunpack.c.l.b16 %v5813
      %v5981 = vunpack.c.l.b16 %v5814
      %v5982 = vunpack.c.l.b16 %v5815
      %v5983 = vunpack.c.l.b16 %v5816
      %v5984 = vpack.c.b16 %v5905, %v5904
      %v5985 = vpack.c.b16 %v5907, %v5906
      %v5986 = vpack.c.b16 %v5909, %v5908
      %v5987 = vpack.c.b16 %v5911, %v5910
      %v5988 = vpack.c.b16 %v5913, %v5912
      %v5989 = vpack.c.b16 %v5915, %v5914
      %v5990 = vpack.c.b16 %v5917, %v5916
      %v5991 = vpack.c.b16 %v5919, %v5918
      %v5992 = vpack.c.b16 %v5921, %v5920
      %v5993 = vpack.c.b16 %v5923, %v5922
      %v5994 = vpack.c.b16 %v5925, %v5924
      %v5995 = vpack.c.b16 %v5927, %v5926
      %v5996 = vpack.c.b16 %v5929, %v5928
      %v5997 = vpack.c.b16 %v5931, %v5930
      %v5998 = vpack.c.b16 %v5933, %v5932
      %v5999 = vpack.c.b16 %v5935, %v5934
      %v6000 = vpack.c.b16 %v5937, %v5936
      %v6001 = vpack.c.b16 %v5939, %v5938
      %v6002 = vpack.c.b16 %v5941, %v5940
      %v6003 = vpack.c.b16 %v5943, %v5942
      %v6004 = vpack.c.b16 %v5945, %v5944
      %v6005 = vpack.c.b16 %v5947, %v5946
      %v6006 = vpack.c.b16 %v5949, %v5948
      %v6007 = vpack.c.b16 %v5951, %v5950
      %v6008 = vpack.c.b16 %v5953, %v5952
      %v6009 = vpack.c.b16 %v5955, %v5954
      %v6010 = vpack.c.b16 %v5957, %v5956
      %v6011 = vpack.c.b16 %v5959, %v5958
      %v6012 = vpack.c.b16 %v5961, %v5960
      %v6013 = vpack.c.b16 %v5963, %v5962
      %v6014 = vpack.c.b16 %v5965, %v5964
      %v6015 = vpack.c.b16 %v5967, %v5966
      %v6016 = vpack.c.b16 %v5969, %v5968
      %v6017 = vpack.c.b16 %v5971, %v5970
      %v6018 = vpack.c.b16 %v5973, %v5972
      %v6019 = vpack.c.b16 %v5975, %v5974
      %v6020 = vpack.c.b16 %v5977, %v5976
      %v6021 = vpack.c.b16 %v5979, %v5978
      %v6022 = vpack.c.b16 %v5981, %v5980
      %v6023 = vpack.c.b16 %v5983, %v5982
      %6064 = vmatprep.subr.bf16.mxu0 0
      %6065 = vmatpush1.bf16.msra.mxu0 %v5991
      %6066 = vmatprep.subr.bf16.mxu0 0
      %6067 = vmatpush1.bf16.msra.mxu0 %v5990
      %6068 = vmatprep.subr.bf16.mxu0 0
      %6069 = vmatpush1.bf16.msra.mxu0 %v5989
      %6070 = vmatprep.subr.bf16.mxu0 0
      %6071 = vmatpush1.bf16.msra.mxu0 %v5988
      %6072 = vmatprep.subr.bf16.mxu0 0
      %6073 = vmatpush1.bf16.msra.mxu0 %v5987
      %6074 = vmatprep.subr.bf16.mxu0 0
      %6075 = vmatpush1.bf16.msra.mxu0 %v5986
      %6076 = vmatprep.subr.bf16.mxu0 0
      %6077 = vmatpush1.bf16.msra.mxu0 %v5985
      %6078 = vmatprep.subr.bf16.mxu0 0
      %6079 = vmatpush1.bf16.msra.mxu0 %v5984
      %6080 = vmatprep.subr.bf16.mxu0 0
      %6081 = vmatpush2.bf16.msra.mxu0 %v5999
      %6082 = vmatprep.subr.bf16.mxu0 0
      %6083 = vmatpush2.bf16.msra.mxu0 %v5998
      %6084 = vmatprep.subr.bf16.mxu0 0
      %6085 = vmatpush2.bf16.msra.mxu0 %v5997
      %6086 = vmatprep.subr.bf16.mxu0 0
      %6087 = vmatpush2.bf16.msra.mxu0 %v5996
      %6088 = vmatprep.subr.bf16.mxu0 0
      %6089 = vmatpush2.bf16.msra.mxu0 %v5995
      %6090 = vmatprep.subr.bf16.mxu0 0
      %6091 = vmatpush2.bf16.msra.mxu0 %v5994
      %6092 = vmatprep.subr.bf16.mxu0 0
      %6093 = vmatpush2.bf16.msra.mxu0 %v5993
      %6094 = vmatprep.subr.bf16.mxu0 0
      %6095 = vmatpush2.bf16.msra.mxu0 %v5992
      %6096 = vmatprep.mubr.bf16.mxu0 %v5339
      %6097 = vmatmul.mubr.bf16.gmra.mxu0 %v5227
      %v6098 = vpop.f32.mrf.mxu0
      %v6099 = vadd.f32 %v5822, %v6098
      %v6100 = vpop.f32.mrf.mxu0
      %v6101 = vpop.f32.mrf.mxu0
      %v6102 = vadd.f32 %v5822, %v6101
      %v6103 = vpop.f32.mrf.mxu0
      %6104 = vmatprep.mubr.bf16.mxu0 %v5343
      %6105 = vmatmul.mubr.bf16.gmra.mxu0 %v5231
      %v6106 = vpop.f32.mrf.mxu0
      %v6107 = vadd.f32 %v5822, %v6106
      %v6108 = vpop.f32.mrf.mxu0
      %v6109 = vpop.f32.mrf.mxu0
      %v6110 = vadd.f32 %v5822, %v6109
      %v6111 = vpop.f32.mrf.mxu0
      %6112 = vmatprep.mubr.bf16.mxu0 %v5347
      %6113 = vmatmul.mubr.bf16.gmra.mxu0 %v5235
      %v6114 = vpop.f32.mrf.mxu0
      %v6115 = vadd.f32 %v5822, %v6114
      %v6116 = vpop.f32.mrf.mxu0
      %v6117 = vpop.f32.mrf.mxu0
      %v6118 = vadd.f32 %v5822, %v6117
      %v6119 = vpop.f32.mrf.mxu0
      %6120 = vmatprep.mubr.bf16.mxu0 %v5351
      %6121 = vmatmul.mubr.bf16.gmra.mxu0 %v5239
      %v6122 = vpop.f32.mrf.mxu0
      %v6123 = vadd.f32 %v5822, %v6122
      %v6124 = vpop.f32.mrf.mxu0
      %v6125 = vpop.f32.mrf.mxu0
      %v6126 = vadd.f32 %v5822, %v6125
      %v6127 = vpop.f32.mrf.mxu0
      %6128 = vmatprep.mubr.bf16.mxu0 %v5355
      %6129 = vmatmul.mubr.bf16.gmra.mxu0 %v5243
      %v6130 = vpop.f32.mrf.mxu0
      %v6131 = vadd.f32 %v5822, %v6130
      %v6132 = vpop.f32.mrf.mxu0
      %v6133 = vpop.f32.mrf.mxu0
      %v6134 = vadd.f32 %v5822, %v6133
      %v6135 = vpop.f32.mrf.mxu0
      %6136 = vmatprep.mubr.bf16.mxu0 %v5359
      %6137 = vmatmul.mubr.bf16.gmra.mxu0 %v5247
      %v6138 = vpop.f32.mrf.mxu0
      %v6139 = vadd.f32 %v5822, %v6138
      %v6140 = vpop.f32.mrf.mxu0
      %v6141 = vpop.f32.mrf.mxu0
      %v6142 = vadd.f32 %v5822, %v6141
      %v6143 = vpop.f32.mrf.mxu0
      %6144 = vmatprep.mubr.bf16.mxu0 %v5363
      %6145 = vmatmul.mubr.bf16.gmra.mxu0 %v5251
      %v6146 = vpop.f32.mrf.mxu0
      %v6147 = vadd.f32 %v5822, %v6146
      %v6148 = vpop.f32.mrf.mxu0
      %v6149 = vpop.f32.mrf.mxu0
      %v6150 = vadd.f32 %v5822, %v6149
      %v6151 = vpop.f32.mrf.mxu0
      %6152 = vmatprep.mubr.bf16.mxu0 %v5367
      %6153 = vmatmul.mubr.bf16.gmra.mxu0 %v5255
      %v6154 = vpop.f32.mrf.mxu0
      %v6155 = vadd.f32 %v5822, %v6154
      %v6156 = vpop.f32.mrf.mxu0
      %v6157 = vpop.f32.mrf.mxu0
      %v6158 = vadd.f32 %v5822, %v6157
      %v6159 = vpop.f32.mrf.mxu0
      %6160 = vmatprep.mubr.bf16.mxu0 %v5371
      %6161 = vmatmul.mubr.bf16.gmra.mxu0 %v5259
      %v6162 = vpop.f32.mrf.mxu0
      %v6163 = vadd.f32 %v5822, %v6162
      %v6164 = vpop.f32.mrf.mxu0
      %v6165 = vpop.f32.mrf.mxu0
      %v6166 = vadd.f32 %v5822, %v6165
      %v6167 = vpop.f32.mrf.mxu0
      %6168 = vmatprep.mubr.bf16.mxu0 %v5375
      %6169 = vmatmul.mubr.bf16.gmra.mxu0 %v5263
      %v6170 = vpop.f32.mrf.mxu0
      %v6171 = vadd.f32 %v5822, %v6170
      %v6172 = vpop.f32.mrf.mxu0
      %v6173 = vpop.f32.mrf.mxu0
      %v6174 = vadd.f32 %v5822, %v6173
      %v6175 = vpop.f32.mrf.mxu0
      %6176 = vmatprep.mubr.bf16.mxu0 %v5379
      %6177 = vmatmul.mubr.bf16.gmra.mxu0 %v5267
      %v6178 = vpop.f32.mrf.mxu0
      %v6179 = vadd.f32 %v5822, %v6178
      %v6180 = vpop.f32.mrf.mxu0
      %v6181 = vpop.f32.mrf.mxu0
      %v6182 = vadd.f32 %v5822, %v6181
      %v6183 = vpop.f32.mrf.mxu0
      %6184 = vmatprep.mubr.bf16.mxu0 %v5383
      %6185 = vmatmul.mubr.bf16.gmra.mxu0 %v5271
      %v6186 = vpop.f32.mrf.mxu0
      %v6187 = vadd.f32 %v5822, %v6186
      %v6188 = vpop.f32.mrf.mxu0
      %v6189 = vpop.f32.mrf.mxu0
      %v6190 = vadd.f32 %v5822, %v6189
      %v6191 = vpop.f32.mrf.mxu0
      %6192 = vmatprep.mubr.bf16.mxu0 %v5387
      %6193 = vmatmul.mubr.bf16.gmra.mxu0 %v5275
      %v6194 = vpop.f32.mrf.mxu0
      %v6195 = vadd.f32 %v5822, %v6194
      %v6196 = vpop.f32.mrf.mxu0
      %v6197 = vpop.f32.mrf.mxu0
      %v6198 = vadd.f32 %v5822, %v6197
      %v6199 = vpop.f32.mrf.mxu0
      %6200 = vmatprep.mubr.bf16.mxu0 %v5391
      %6201 = vmatmul.mubr.bf16.gmra.mxu0 %v5279
      %v6202 = vpop.f32.mrf.mxu0
      %v6203 = vadd.f32 %v5822, %v6202
      %v6204 = vpop.f32.mrf.mxu0
      %v6205 = vpop.f32.mrf.mxu0
      %v6206 = vadd.f32 %v5822, %v6205
      %v6207 = vpop.f32.mrf.mxu0
      %6208 = vmatprep.mubr.bf16.mxu0 %v5395
      %6209 = vmatmul.mubr.bf16.gmra.mxu0 %v5283
      %v6210 = vpop.f32.mrf.mxu0
      %v6211 = vadd.f32 %v5822, %v6210
      %v6212 = vpop.f32.mrf.mxu0
      %v6213 = vpop.f32.mrf.mxu0
      %v6214 = vadd.f32 %v5822, %v6213
      %v6215 = vpop.f32.mrf.mxu0
      %6216 = vmatprep.mubr.bf16.mxu0 %v5399
      %6217 = vmatmul.mubr.bf16.gmra.mxu0 %v5287
      %v6218 = vpop.f32.mrf.mxu0
      %v6219 = vadd.f32 %v5822, %v6218
      %v6220 = vpop.f32.mrf.mxu0
      %v6221 = vpop.f32.mrf.mxu0
      %v6222 = vadd.f32 %v5822, %v6221
      %v6223 = vpop.f32.mrf.mxu0
      %6224 = vdwg.mxu0
      %6225 = vmatprep.subr.bf16.mxu0 0
      %6226 = vmatpush1.bf16.msra.mxu0 %v6007
      %6227 = vmatprep.subr.bf16.mxu0 0
      %6228 = vmatpush1.bf16.msra.mxu0 %v6006
      %6229 = vmatprep.subr.bf16.mxu0 0
      %6230 = vmatpush1.bf16.msra.mxu0 %v6005
      %6231 = vmatprep.subr.bf16.mxu0 0
      %6232 = vmatpush1.bf16.msra.mxu0 %v6004
      %6233 = vmatprep.subr.bf16.mxu0 0
      %6234 = vmatpush1.bf16.msra.mxu0 %v6003
      %6235 = vmatprep.subr.bf16.mxu0 0
      %6236 = vmatpush1.bf16.msra.mxu0 %v6002
      %6237 = vmatprep.subr.bf16.mxu0 0
      %6238 = vmatpush1.bf16.msra.mxu0 %v6001
      %6239 = vmatprep.subr.bf16.mxu0 0
      %6240 = vmatpush1.bf16.msra.mxu0 %v6000
      %6241 = vmatprep.subr.bf16.mxu0 0
      %6242 = vmatpush2.bf16.msra.mxu0 %v6015
      %6243 = vmatprep.subr.bf16.mxu0 0
      %6244 = vmatpush2.bf16.msra.mxu0 %v6014
      %6245 = vmatprep.subr.bf16.mxu0 0
      %6246 = vmatpush2.bf16.msra.mxu0 %v6013
      %6247 = vmatprep.subr.bf16.mxu0 0
      %6248 = vmatpush2.bf16.msra.mxu0 %v6012
      %6249 = vmatprep.subr.bf16.mxu0 0
      %6250 = vmatpush2.bf16.msra.mxu0 %v6011
      %6251 = vmatprep.subr.bf16.mxu0 0
      %6252 = vmatpush2.bf16.msra.mxu0 %v6010
      %6253 = vmatprep.subr.bf16.mxu0 0
      %6254 = vmatpush2.bf16.msra.mxu0 %v6009
      %6255 = vmatprep.subr.bf16.mxu0 0
      %6256 = vmatpush2.bf16.msra.mxu0 %v6008
      %6257 = vmatprep.mubr.bf16.mxu0 %v5563
      %6258 = vmatmul.mubr.bf16.gmra.mxu0 %v5451
      %v6259 = vpop.f32.mrf.mxu0
      %v6260 = vadd.f32 %v6099, %v6259
      %v6261 = vpop.f32.mrf.mxu0
      %v6262 = vpop.f32.mrf.mxu0
      %v6263 = vadd.f32 %v6102, %v6262
      %v6264 = vpop.f32.mrf.mxu0
      %6265 = vmatprep.mubr.bf16.mxu0 %v5567
      %6266 = vmatmul.mubr.bf16.gmra.mxu0 %v5455
      %v6267 = vpop.f32.mrf.mxu0
      %v6268 = vadd.f32 %v6107, %v6267
      %v6269 = vpop.f32.mrf.mxu0
      %v6270 = vpop.f32.mrf.mxu0
      %v6271 = vadd.f32 %v6110, %v6270
      %v6272 = vpop.f32.mrf.mxu0
      %6273 = vmatprep.mubr.bf16.mxu0 %v5571
      %6274 = vmatmul.mubr.bf16.gmra.mxu0 %v5459
      %v6275 = vpop.f32.mrf.mxu0
      %v6276 = vadd.f32 %v6115, %v6275
      %v6277 = vpop.f32.mrf.mxu0
      %v6278 = vpop.f32.mrf.mxu0
      %v6279 = vadd.f32 %v6118, %v6278
      %v6280 = vpop.f32.mrf.mxu0
      %6281 = vmatprep.mubr.bf16.mxu0 %v5575
      %6282 = vmatmul.mubr.bf16.gmra.mxu0 %v5463
      %v6283 = vpop.f32.mrf.mxu0
      %v6284 = vadd.f32 %v6123, %v6283
      %v6285 = vpop.f32.mrf.mxu0
      %v6286 = vpop.f32.mrf.mxu0
      %v6287 = vadd.f32 %v6126, %v6286
      %v6288 = vpop.f32.mrf.mxu0
      %6289 = vmatprep.mubr.bf16.mxu0 %v5579
      %6290 = vmatmul.mubr.bf16.gmra.mxu0 %v5467
      %v6291 = vpop.f32.mrf.mxu0
      %v6292 = vadd.f32 %v6131, %v6291
      %v6293 = vpop.f32.mrf.mxu0
      %v6294 = vpop.f32.mrf.mxu0
      %v6295 = vadd.f32 %v6134, %v6294
      %v6296 = vpop.f32.mrf.mxu0
      %6297 = vmatprep.mubr.bf16.mxu0 %v5583
      %6298 = vmatmul.mubr.bf16.gmra.mxu0 %v5471
      %v6299 = vpop.f32.mrf.mxu0
      %v6300 = vadd.f32 %v6139, %v6299
      %v6301 = vpop.f32.mrf.mxu0
      %v6302 = vpop.f32.mrf.mxu0
      %v6303 = vadd.f32 %v6142, %v6302
      %v6304 = vpop.f32.mrf.mxu0
      %6305 = vmatprep.mubr.bf16.mxu0 %v5587
      %6306 = vmatmul.mubr.bf16.gmra.mxu0 %v5475
      %v6307 = vpop.f32.mrf.mxu0
      %v6308 = vadd.f32 %v6147, %v6307
      %v6309 = vpop.f32.mrf.mxu0
      %v6310 = vpop.f32.mrf.mxu0
      %v6311 = vadd.f32 %v6150, %v6310
      %v6312 = vpop.f32.mrf.mxu0
      %6313 = vmatprep.mubr.bf16.mxu0 %v5591
      %6314 = vmatmul.mubr.bf16.gmra.mxu0 %v5479
      %v6315 = vpop.f32.mrf.mxu0
      %v6316 = vadd.f32 %v6155, %v6315
      %v6317 = vpop.f32.mrf.mxu0
      %v6318 = vpop.f32.mrf.mxu0
      %v6319 = vadd.f32 %v6158, %v6318
      %v6320 = vpop.f32.mrf.mxu0
      %6321 = vmatprep.mubr.bf16.mxu0 %v5595
      %6322 = vmatmul.mubr.bf16.gmra.mxu0 %v5483
      %v6323 = vpop.f32.mrf.mxu0
      %v6324 = vadd.f32 %v6163, %v6323
      %v6325 = vpop.f32.mrf.mxu0
      %v6326 = vpop.f32.mrf.mxu0
      %v6327 = vadd.f32 %v6166, %v6326
      %v6328 = vpop.f32.mrf.mxu0
      %6329 = vmatprep.mubr.bf16.mxu0 %v5599
      %6330 = vmatmul.mubr.bf16.gmra.mxu0 %v5487
      %v6331 = vpop.f32.mrf.mxu0
      %v6332 = vadd.f32 %v6171, %v6331
      %v6333 = vpop.f32.mrf.mxu0
      %v6334 = vpop.f32.mrf.mxu0
      %v6335 = vadd.f32 %v6174, %v6334
      %v6336 = vpop.f32.mrf.mxu0
      %6337 = vmatprep.mubr.bf16.mxu0 %v5603
      %6338 = vmatmul.mubr.bf16.gmra.mxu0 %v5491
      %v6339 = vpop.f32.mrf.mxu0
      %v6340 = vadd.f32 %v6179, %v6339
      %v6341 = vpop.f32.mrf.mxu0
      %v6342 = vpop.f32.mrf.mxu0
      %v6343 = vadd.f32 %v6182, %v6342
      %v6344 = vpop.f32.mrf.mxu0
      %6345 = vmatprep.mubr.bf16.mxu0 %v5607
      %6346 = vmatmul.mubr.bf16.gmra.mxu0 %v5495
      %v6347 = vpop.f32.mrf.mxu0
      %v6348 = vadd.f32 %v6187, %v6347
      %v6349 = vpop.f32.mrf.mxu0
      %v6350 = vpop.f32.mrf.mxu0
      %v6351 = vadd.f32 %v6190, %v6350
      %v6352 = vpop.f32.mrf.mxu0
      %6353 = vmatprep.mubr.bf16.mxu0 %v5611
      %6354 = vmatmul.mubr.bf16.gmra.mxu0 %v5499
      %v6355 = vpop.f32.mrf.mxu0
      %v6356 = vadd.f32 %v6195, %v6355
      %v6357 = vpop.f32.mrf.mxu0
      %v6358 = vpop.f32.mrf.mxu0
      %v6359 = vadd.f32 %v6198, %v6358
      %v6360 = vpop.f32.mrf.mxu0
      %6361 = vmatprep.mubr.bf16.mxu0 %v5615
      %6362 = vmatmul.mubr.bf16.gmra.mxu0 %v5503
      %v6363 = vpop.f32.mrf.mxu0
      %v6364 = vadd.f32 %v6203, %v6363
      %v6365 = vpop.f32.mrf.mxu0
      %v6366 = vpop.f32.mrf.mxu0
      %v6367 = vadd.f32 %v6206, %v6366
      %v6368 = vpop.f32.mrf.mxu0
      %6369 = vmatprep.mubr.bf16.mxu0 %v5619
      %6370 = vmatmul.mubr.bf16.gmra.mxu0 %v5507
      %v6371 = vpop.f32.mrf.mxu0
      %v6372 = vadd.f32 %v6211, %v6371
      %v6373 = vpop.f32.mrf.mxu0
      %v6374 = vpop.f32.mrf.mxu0
      %v6375 = vadd.f32 %v6214, %v6374
      %v6376 = vpop.f32.mrf.mxu0
      %6377 = vmatprep.mubr.bf16.mxu0 %v5623
      %6378 = vmatmul.mubr.bf16.gmra.mxu0 %v5511
      %v6379 = vpop.f32.mrf.mxu0
      %v6380 = vadd.f32 %v6219, %v6379
      %v6381 = vpop.f32.mrf.mxu0
      %v6382 = vpop.f32.mrf.mxu0
      %v6383 = vadd.f32 %v6222, %v6382
      %v6384 = vpop.f32.mrf.mxu0
      %6385 = vdwg.mxu0
      %6386 = vmatprep.subr.bf16.mxu0 0
      %6387 = vmatpush1.bf16.msra.mxu0 %v6023
      %6388 = vmatprep.subr.bf16.mxu0 0
      %6389 = vmatpush1.bf16.msra.mxu0 %v6022
      %6390 = vmatprep.subr.bf16.mxu0 0
      %6391 = vmatpush1.bf16.msra.mxu0 %v6021
      %6392 = vmatprep.subr.bf16.mxu0 0
      %6393 = vmatpush1.bf16.msra.mxu0 %v6020
      %6394 = vmatprep.subr.bf16.mxu0 0
      %6395 = vmatpush1.bf16.msra.mxu0 %v6019
      %6396 = vmatprep.subr.bf16.mxu0 0
      %6397 = vmatpush1.bf16.msra.mxu0 %v6018
      %6398 = vmatprep.subr.bf16.mxu0 0
      %6399 = vmatpush1.bf16.msra.mxu0 %v6017
      %6400 = vmatprep.subr.bf16.mxu0 0
      %6401 = vmatpush1.bf16.msra.mxu0 %v6016
      %6402 = vmatprep.subr.bf16.mxu0 0
      %6403 = vmatpush2.bf16.msra.mxu0 0
      %6404 = vmatprep.subr.bf16.mxu0 0
      %6405 = vmatpush2.bf16.msra.mxu0 0
      %6406 = vmatprep.subr.bf16.mxu0 0
      %6407 = vmatpush2.bf16.msra.mxu0 0
      %6408 = vmatprep.subr.bf16.mxu0 0
      %6409 = vmatpush2.bf16.msra.mxu0 0
      %6410 = vmatprep.subr.bf16.mxu0 0
      %6411 = vmatpush2.bf16.msra.mxu0 0
      %6412 = vmatprep.subr.bf16.mxu0 0
      %6413 = vmatpush2.bf16.msra.mxu0 0
      %6414 = vmatprep.subr.bf16.mxu0 0
      %6415 = vmatpush2.bf16.msra.mxu0 0
      %6416 = vmatprep.subr.bf16.mxu0 0
      %6417 = vmatpush2.bf16.msra.mxu0 0
      %6418 = vmatprep.mubr.bf16.mxu0 0
      %6419 = vmatmul.mubr.bf16.gmra.mxu0 %v5675
      %v6420 = vpop.f32.mrf.mxu0
      %v6421 = vadd.f32 %v6260, %v6420
      %v6422 = vpop.f32.mrf.mxu0
      %v6423 = vpop.f32.mrf.mxu0
      %v6424 = vadd.f32 %v6263, %v6423
      %v6425 = vpop.f32.mrf.mxu0
      %6426 = vmatprep.mubr.bf16.mxu0 0
      %6427 = vmatmul.mubr.bf16.gmra.mxu0 %v5679
      %v6428 = vpop.f32.mrf.mxu0
      %v6429 = vadd.f32 %v6268, %v6428
      %v6430 = vpop.f32.mrf.mxu0
      %v6431 = vpop.f32.mrf.mxu0
      %v6432 = vadd.f32 %v6271, %v6431
      %v6433 = vpop.f32.mrf.mxu0
      %6434 = vmatprep.mubr.bf16.mxu0 0
      %6435 = vmatmul.mubr.bf16.gmra.mxu0 %v5683
      %v6436 = vpop.f32.mrf.mxu0
      %v6437 = vadd.f32 %v6276, %v6436
      %v6438 = vpop.f32.mrf.mxu0
      %v6439 = vpop.f32.mrf.mxu0
      %v6440 = vadd.f32 %v6279, %v6439
      %v6441 = vpop.f32.mrf.mxu0
      %6442 = vmatprep.mubr.bf16.mxu0 0
      %6443 = vmatmul.mubr.bf16.gmra.mxu0 %v5687
      %v6444 = vpop.f32.mrf.mxu0
      %v6445 = vadd.f32 %v6284, %v6444
      %v6446 = vpop.f32.mrf.mxu0
      %v6447 = vpop.f32.mrf.mxu0
      %v6448 = vadd.f32 %v6287, %v6447
      %v6449 = vpop.f32.mrf.mxu0
      %6450 = vmatprep.mubr.bf16.mxu0 0
      %6451 = vmatmul.mubr.bf16.gmra.mxu0 %v5691
      %v6452 = vpop.f32.mrf.mxu0
      %v6453 = vadd.f32 %v6292, %v6452
      %v6454 = vpop.f32.mrf.mxu0
      %v6455 = vpop.f32.mrf.mxu0
      %v6456 = vadd.f32 %v6295, %v6455
      %v6457 = vpop.f32.mrf.mxu0
      %6458 = vmatprep.mubr.bf16.mxu0 0
      %6459 = vmatmul.mubr.bf16.gmra.mxu0 %v5695
      %v6460 = vpop.f32.mrf.mxu0
      %v6461 = vadd.f32 %v6300, %v6460
      %v6462 = vpop.f32.mrf.mxu0
      %v6463 = vpop.f32.mrf.mxu0
      %v6464 = vadd.f32 %v6303, %v6463
      %v6465 = vpop.f32.mrf.mxu0
      %6466 = vmatprep.mubr.bf16.mxu0 0
      %6467 = vmatmul.mubr.bf16.gmra.mxu0 %v5699
      %v6468 = vpop.f32.mrf.mxu0
      %v6469 = vadd.f32 %v6308, %v6468
      %v6470 = vpop.f32.mrf.mxu0
      %v6471 = vpop.f32.mrf.mxu0
      %v6472 = vadd.f32 %v6311, %v6471
      %v6473 = vpop.f32.mrf.mxu0
      %6474 = vmatprep.mubr.bf16.mxu0 0
      %6475 = vmatmul.mubr.bf16.gmra.mxu0 %v5703
      %v6476 = vpop.f32.mrf.mxu0
      %v6477 = vadd.f32 %v6316, %v6476
      %v6478 = vpop.f32.mrf.mxu0
      %v6479 = vpop.f32.mrf.mxu0
      %v6480 = vadd.f32 %v6319, %v6479
      %v6481 = vpop.f32.mrf.mxu0
      %6482 = vmatprep.mubr.bf16.mxu0 0
      %6483 = vmatmul.mubr.bf16.gmra.mxu0 %v5707
      %v6484 = vpop.f32.mrf.mxu0
      %v6485 = vadd.f32 %v6324, %v6484
      %v6486 = vpop.f32.mrf.mxu0
      %v6487 = vpop.f32.mrf.mxu0
      %v6488 = vadd.f32 %v6327, %v6487
      %v6489 = vpop.f32.mrf.mxu0
      %6490 = vmatprep.mubr.bf16.mxu0 0
      %6491 = vmatmul.mubr.bf16.gmra.mxu0 %v5711
      %v6492 = vpop.f32.mrf.mxu0
      %v6493 = vadd.f32 %v6332, %v6492
      %v6494 = vpop.f32.mrf.mxu0
      %v6495 = vpop.f32.mrf.mxu0
      %v6496 = vadd.f32 %v6335, %v6495
      %v6497 = vpop.f32.mrf.mxu0
      %6498 = vmatprep.mubr.bf16.mxu0 0
      %6499 = vmatmul.mubr.bf16.gmra.mxu0 %v5715
      %v6500 = vpop.f32.mrf.mxu0
      %v6501 = vadd.f32 %v6340, %v6500
      %v6502 = vpop.f32.mrf.mxu0
      %v6503 = vpop.f32.mrf.mxu0
      %v6504 = vadd.f32 %v6343, %v6503
      %v6505 = vpop.f32.mrf.mxu0
      %6506 = vmatprep.mubr.bf16.mxu0 0
      %6507 = vmatmul.mubr.bf16.gmra.mxu0 %v5719
      %v6508 = vpop.f32.mrf.mxu0
      %v6509 = vadd.f32 %v6348, %v6508
      %v6510 = vpop.f32.mrf.mxu0
      %v6511 = vpop.f32.mrf.mxu0
      %v6512 = vadd.f32 %v6351, %v6511
      %v6513 = vpop.f32.mrf.mxu0
      %6514 = vmatprep.mubr.bf16.mxu0 0
      %6515 = vmatmul.mubr.bf16.gmra.mxu0 %v5723
      %v6516 = vpop.f32.mrf.mxu0
      %v6517 = vadd.f32 %v6356, %v6516
      %v6518 = vpop.f32.mrf.mxu0
      %v6519 = vpop.f32.mrf.mxu0
      %v6520 = vadd.f32 %v6359, %v6519
      %v6521 = vpop.f32.mrf.mxu0
      %6522 = vmatprep.mubr.bf16.mxu0 0
      %6523 = vmatmul.mubr.bf16.gmra.mxu0 %v5727
      %v6524 = vpop.f32.mrf.mxu0
      %v6525 = vadd.f32 %v6364, %v6524
      %v6526 = vpop.f32.mrf.mxu0
      %v6527 = vpop.f32.mrf.mxu0
      %v6528 = vadd.f32 %v6367, %v6527
      %v6529 = vpop.f32.mrf.mxu0
      %6530 = vmatprep.mubr.bf16.mxu0 0
      %6531 = vmatmul.mubr.bf16.gmra.mxu0 %v5731
      %v6532 = vpop.f32.mrf.mxu0
      %v6533 = vadd.f32 %v6372, %v6532
      %v6534 = vpop.f32.mrf.mxu0
      %v6535 = vpop.f32.mrf.mxu0
      %v6536 = vadd.f32 %v6375, %v6535
      %v6537 = vpop.f32.mrf.mxu0
      %6538 = vmatprep.mubr.bf16.mxu0 0
      %6539 = vmatmul.mubr.bf16.gmra.mxu0 %v5735
      %v6540 = vpop.f32.mrf.mxu0
      %v6541 = vadd.f32 %v6380, %v6540
      %v6542 = vpop.f32.mrf.mxu0
      %v6543 = vpop.f32.mrf.mxu0
      %v6544 = vadd.f32 %v6383, %v6543
      %v6545 = vpop.f32.mrf.mxu0
      %6546 = vdwg.mxu0
      %vm6547 = vcmp.gt.f32.partialorder %v6421, 0.0
      %vm6548 = vcmp.gt.f32.partialorder %v6424, 0.0
      %vm6549 = vcmp.gt.f32.partialorder %v6429, 0.0
      %vm6550 = vcmp.gt.f32.partialorder %v6432, 0.0
      %vm6551 = vcmp.gt.f32.partialorder %v6437, 0.0
      %vm6552 = vcmp.gt.f32.partialorder %v6440, 0.0
      %vm6553 = vcmp.gt.f32.partialorder %v6445, 0.0
      %vm6554 = vcmp.gt.f32.partialorder %v6448, 0.0
      %vm6555 = vcmp.gt.f32.partialorder %v6453, 0.0
      %vm6556 = vcmp.gt.f32.partialorder %v6456, 0.0
      %vm6557 = vcmp.gt.f32.partialorder %v6461, 0.0
      %vm6558 = vcmp.gt.f32.partialorder %v6464, 0.0
      %vm6559 = vcmp.gt.f32.partialorder %v6469, 0.0
      %vm6560 = vcmp.gt.f32.partialorder %v6472, 0.0
      %vm6561 = vcmp.gt.f32.partialorder %v6477, 0.0
      %vm6562 = vcmp.gt.f32.partialorder %v6480, 0.0
      %vm6563 = vcmp.gt.f32.partialorder %v6485, 0.0
      %vm6564 = vcmp.gt.f32.partialorder %v6488, 0.0
      %vm6565 = vcmp.gt.f32.partialorder %v6493, 0.0
      %vm6566 = vcmp.gt.f32.partialorder %v6496, 0.0
      %vm6567 = vcmp.gt.f32.partialorder %v6501, 0.0
      %vm6568 = vcmp.gt.f32.partialorder %v6504, 0.0
      %vm6569 = vcmp.gt.f32.partialorder %v6509, 0.0
      %vm6570 = vcmp.gt.f32.partialorder %v6512, 0.0
      %vm6571 = vcmp.gt.f32.partialorder %v6517, 0.0
      %vm6572 = vcmp.gt.f32.partialorder %v6520, 0.0
      %vm6573 = vcmp.gt.f32.partialorder %v6525, 0.0
      %vm6574 = vcmp.gt.f32.partialorder %v6528, 0.0
      %vm6575 = vcmp.gt.f32.partialorder %v6533, 0.0
      %vm6576 = vcmp.gt.f32.partialorder %v6536, 0.0
      %vm6577 = vcmp.gt.f32.partialorder %v6541, 0.0
      %vm6578 = vcmp.gt.f32.partialorder %v6544, 0.0
      %v6579 = vmul.f32 %v6421, 0.2
      %v6580 = vmul.f32 %v6424, 0.2
      %v6581 = vmul.f32 %v6429, 0.2
      %v6582 = vmul.f32 %v6432, 0.2
      %v6583 = vmul.f32 %v6437, 0.2
      %v6584 = vmul.f32 %v6440, 0.2
      %v6585 = vmul.f32 %v6445, 0.2
      %v6586 = vmul.f32 %v6448, 0.2
      %v6587 = vmul.f32 %v6453, 0.2
      %v6588 = vmul.f32 %v6456, 0.2
      %v6589 = vmul.f32 %v6461, 0.2
      %v6590 = vmul.f32 %v6464, 0.2
      %v6591 = vmul.f32 %v6469, 0.2
      %v6592 = vmul.f32 %v6472, 0.2
      %v6593 = vmul.f32 %v6477, 0.2
      %v6594 = vmul.f32 %v6480, 0.2
      %v6595 = vmul.f32 %v6485, 0.2
      %v6596 = vmul.f32 %v6488, 0.2
      %v6597 = vmul.f32 %v6493, 0.2
      %v6598 = vmul.f32 %v6496, 0.2
      %v6599 = vmul.f32 %v6501, 0.2
      %v6600 = vmul.f32 %v6504, 0.2
      %v6601 = vmul.f32 %v6509, 0.2
      %v6602 = vmul.f32 %v6512, 0.2
      %v6603 = vmul.f32 %v6517, 0.2
      %v6604 = vmul.f32 %v6520, 0.2
      %v6605 = vmul.f32 %v6525, 0.2
      %v6606 = vmul.f32 %v6528, 0.2
      %v6607 = vmul.f32 %v6533, 0.2
      %v6608 = vmul.f32 %v6536, 0.2
      %v6609 = vmul.f32 %v6541, 0.2
      %v6610 = vmul.f32 %v6544, 0.2
      %v6611 = vsel %vm6547, %v6421, %v6579
      %v6612 = vsel %vm6548, %v6424, %v6580
      %v6613 = vsel %vm6549, %v6429, %v6581
      %v6614 = vsel %vm6550, %v6432, %v6582
      %v6615 = vsel %vm6551, %v6437, %v6583
      %v6616 = vsel %vm6552, %v6440, %v6584
      %v6617 = vsel %vm6553, %v6445, %v6585
      %v6618 = vsel %vm6554, %v6448, %v6586
      %v6619 = vsel %vm6555, %v6453, %v6587
      %v6620 = vsel %vm6556, %v6456, %v6588
      %v6621 = vsel %vm6557, %v6461, %v6589
      %v6622 = vsel %vm6558, %v6464, %v6590
      %v6623 = vsel %vm6559, %v6469, %v6591
      %v6624 = vsel %vm6560, %v6472, %v6592
      %v6625 = vsel %vm6561, %v6477, %v6593
      %v6626 = vsel %vm6562, %v6480, %v6594
      %v6627 = vsel %vm6563, %v6485, %v6595
      %v6628 = vsel %vm6564, %v6488, %v6596
      %v6629 = vsel %vm6565, %v6493, %v6597
      %v6630 = vsel %vm6566, %v6496, %v6598
      %v6631 = vsel %vm6567, %v6501, %v6599
      %v6632 = vsel %vm6568, %v6504, %v6600
      %v6633 = vsel %vm6569, %v6509, %v6601
      %v6634 = vsel %vm6570, %v6512, %v6602
      %v6635 = vsel %vm6571, %v6517, %v6603
      %v6636 = vsel %vm6572, %v6520, %v6604
      %v6637 = vsel %vm6573, %v6525, %v6605
      %v6638 = vsel %vm6574, %v6528, %v6606
      %v6639 = vsel %vm6575, %v6533, %v6607
      %v6640 = vsel %vm6576, %v6536, %v6608
      %v6641 = vsel %vm6577, %v6541, %v6609
      %v6642 = vsel %vm6578, %v6544, %v6610
      %v6643 = vrot.slane %v6611, 1
      %v6644 = vrot.slane %v6612, 1
      %v6645 = vrot.slane %v6613, 1
      %v6646 = vrot.slane %v6614, 1
      %v6647 = vrot.slane %v6615, 1
      %v6648 = vrot.slane %v6616, 1
      %v6649 = vrot.slane %v6617, 1
      %v6650 = vrot.slane %v6618, 1
      %v6651 = vrot.slane %v6619, 1
      %v6652 = vrot.slane %v6620, 1
      %v6653 = vrot.slane %v6621, 1
      %v6654 = vrot.slane %v6622, 1
      %v6655 = vrot.slane %v6623, 1
      %v6656 = vrot.slane %v6624, 1
      %v6657 = vrot.slane %v6625, 1
      %v6658 = vrot.slane %v6626, 1
      %v6659 = vrot.slane %v6627, 1
      %v6660 = vrot.slane %v6628, 1
      %v6661 = vrot.slane %v6629, 1
      %v6662 = vrot.slane %v6630, 1
      %v6663 = vrot.slane %v6631, 1
      %v6664 = vrot.slane %v6632, 1
      %v6665 = vrot.slane %v6633, 1
      %v6666 = vrot.slane %v6634, 1
      %v6667 = vrot.slane %v6635, 1
      %v6668 = vrot.slane %v6636, 1
      %v6669 = vrot.slane %v6637, 1
      %v6670 = vrot.slane %v6638, 1
      %v6671 = vrot.slane %v6639, 1
      %v6672 = vrot.slane %v6640, 1
      %v6673 = vrot.slane %v6641, 1
      %v6674 = vrot.slane %v6642, 1
      %v6675 = vsel %vm427, %v6673, %v6674
      %v6676 = vsel %vm427, %v6672, %v6673
      %v6677 = vsel %vm427, %v6671, %v6672
      %v6678 = vsel %vm427, %v6670, %v6671
      %v6679 = vsel %vm427, %v6669, %v6670
      %v6680 = vsel %vm427, %v6668, %v6669
      %v6681 = vsel %vm427, %v6667, %v6668
      %v6682 = vsel %vm427, %v6666, %v6667
      %v6683 = vsel %vm427, %v6665, %v6666
      %v6684 = vsel %vm427, %v6664, %v6665
      %v6685 = vsel %vm427, %v6663, %v6664
      %v6686 = vsel %vm427, %v6662, %v6663
      %v6687 = vsel %vm427, %v6661, %v6662
      %v6688 = vsel %vm427, %v6660, %v6661
      %v6689 = vsel %vm427, %v6659, %v6660
      %v6690 = vsel %vm427, %v6658, %v6659
      %v6691 = vsel %vm427, %v6657, %v6658
      %v6692 = vsel %vm427, %v6656, %v6657
      %v6693 = vsel %vm427, %v6655, %v6656
      %v6694 = vsel %vm427, %v6654, %v6655
      %v6695 = vsel %vm427, %v6653, %v6654
      %v6696 = vsel %vm427, %v6652, %v6653
      %v6697 = vsel %vm427, %v6651, %v6652
      %v6698 = vsel %vm427, %v6650, %v6651
      %v6699 = vsel %vm427, %v6649, %v6650
      %v6700 = vsel %vm427, %v6648, %v6649
      %v6701 = vsel %vm427, %v6647, %v6648
      %v6702 = vsel %vm427, %v6646, %v6647
      %v6703 = vsel %vm427, %v6645, %v6646
      %v6704 = vsel %vm427, %v6644, %v6645
      %v6705 = vsel %vm427, %v6643, %v6644
      %v6706 = vsel %vm427, %v6674, %v6643
      %v6707 = vrot.slane %v6611, 7
      %v6708 = vrot.slane %v6612, 7
      %v6709 = vrot.slane %v6613, 7
      %v6710 = vrot.slane %v6614, 7
      %v6711 = vrot.slane %v6615, 7
      %v6712 = vrot.slane %v6616, 7
      %v6713 = vrot.slane %v6617, 7
      %v6714 = vrot.slane %v6618, 7
      %v6715 = vrot.slane %v6619, 7
      %v6716 = vrot.slane %v6620, 7
      %v6717 = vrot.slane %v6621, 7
      %v6718 = vrot.slane %v6622, 7
      %v6719 = vrot.slane %v6623, 7
      %v6720 = vrot.slane %v6624, 7
      %v6721 = vrot.slane %v6625, 7
      %v6722 = vrot.slane %v6626, 7
      %v6723 = vrot.slane %v6627, 7
      %v6724 = vrot.slane %v6628, 7
      %v6725 = vrot.slane %v6629, 7
      %v6726 = vrot.slane %v6630, 7
      %v6727 = vrot.slane %v6631, 7
      %v6728 = vrot.slane %v6632, 7
      %v6729 = vrot.slane %v6633, 7
      %v6730 = vrot.slane %v6634, 7
      %v6731 = vrot.slane %v6635, 7
      %v6732 = vrot.slane %v6636, 7
      %v6733 = vrot.slane %v6637, 7
      %v6734 = vrot.slane %v6638, 7
      %v6735 = vrot.slane %v6639, 7
      %v6736 = vrot.slane %v6640, 7
      %v6737 = vrot.slane %v6641, 7
      %v6738 = vrot.slane %v6642, 7
      %v6739 = vsel %vm492, %v6737, %v6738
      %v6740 = vsel %vm492, %v6736, %v6737
      %v6741 = vsel %vm492, %v6735, %v6736
      %v6742 = vsel %vm492, %v6734, %v6735
      %v6743 = vsel %vm492, %v6733, %v6734
      %v6744 = vsel %vm492, %v6732, %v6733
      %v6745 = vsel %vm492, %v6731, %v6732
      %v6746 = vsel %vm492, %v6730, %v6731
      %v6747 = vsel %vm492, %v6729, %v6730
      %v6748 = vsel %vm492, %v6728, %v6729
      %v6749 = vsel %vm492, %v6727, %v6728
      %v6750 = vsel %vm492, %v6726, %v6727
      %v6751 = vsel %vm492, %v6725, %v6726
      %v6752 = vsel %vm492, %v6724, %v6725
      %v6753 = vsel %vm492, %v6723, %v6724
      %v6754 = vsel %vm492, %v6722, %v6723
      %v6755 = vsel %vm492, %v6721, %v6722
      %v6756 = vsel %vm492, %v6720, %v6721
      %v6757 = vsel %vm492, %v6719, %v6720
      %v6758 = vsel %vm492, %v6718, %v6719
      %v6759 = vsel %vm492, %v6717, %v6718
      %v6760 = vsel %vm492, %v6716, %v6717
      %v6761 = vsel %vm492, %v6715, %v6716
      %v6762 = vsel %vm492, %v6714, %v6715
      %v6763 = vsel %vm492, %v6713, %v6714
      %v6764 = vsel %vm492, %v6712, %v6713
      %v6765 = vsel %vm492, %v6711, %v6712
      %v6766 = vsel %vm492, %v6710, %v6711
      %v6767 = vsel %vm492, %v6709, %v6710
      %v6768 = vsel %vm492, %v6708, %v6709
      %v6769 = vsel %vm492, %v6707, %v6708
      %v6770 = vsel %vm492, %v6738, %v6707
      %v6771 = vpack.c.bf16 %v6739, %v6740
      %v6772 = vpack.c.bf16 %v6769, %v6770
      %v6773 = vpack.c.bf16 %v6767, %v6768
      %v6774 = vpack.c.bf16 %v6765, %v6766
      %v6775 = vpack.c.bf16 %v6763, %v6764
      %v6776 = vpack.c.bf16 %v6761, %v6762
      %v6777 = vpack.c.bf16 %v6759, %v6760
      %v6778 = vpack.c.bf16 %v6757, %v6758
      %v6779 = vpack.c.bf16 %v6755, %v6756
      %v6780 = vpack.c.bf16 %v6753, %v6754
      %v6781 = vpack.c.bf16 %v6751, %v6752
      %v6782 = vpack.c.bf16 %v6749, %v6750
      %v6783 = vpack.c.bf16 %v6747, %v6748
      %v6784 = vpack.c.bf16 %v6745, %v6746
      %v6785 = vpack.c.bf16 %v6743, %v6744
      %v6786 = vpack.c.bf16 %v6741, %v6742
      %v6787 = vmul.bf16 %v6771, %v637
      %v6788 = vmul.bf16 %v6772, %v638
      %v6789 = vmul.bf16 %v6773, %v639
      %v6790 = vmul.bf16 %v6774, %v640
      %v6791 = vmul.bf16 %v6775, %v641
      %v6792 = vmul.bf16 %v6776, %v642
      %v6793 = vmul.bf16 %v6777, %v643
      %v6794 = vmul.bf16 %v6778, %v644
      %v6795 = vmul.bf16 %v6779, %v645
      %v6796 = vmul.bf16 %v6780, %v646
      %v6797 = vmul.bf16 %v6781, %v647
      %v6798 = vmul.bf16 %v6782, %v648
      %v6799 = vmul.bf16 %v6783, %v649
      %v6800 = vmul.bf16 %v6784, %v650
      %v6801 = vmul.bf16 %v6785, %v651
      %v6802 = vmul.bf16 %v6786, %v652
      %v6803 = vpack.c.bf16 %v6642, %v6641
      %v6804 = vpack.c.bf16 %v6612, %v6611
      %v6805 = vpack.c.bf16 %v6614, %v6613
      %v6806 = vpack.c.bf16 %v6616, %v6615
      %v6807 = vpack.c.bf16 %v6618, %v6617
      %v6808 = vpack.c.bf16 %v6620, %v6619
      %v6809 = vpack.c.bf16 %v6622, %v6621
      %v6810 = vpack.c.bf16 %v6624, %v6623
      %v6811 = vpack.c.bf16 %v6626, %v6625
      %v6812 = vpack.c.bf16 %v6628, %v6627
      %v6813 = vpack.c.bf16 %v6630, %v6629
      %v6814 = vpack.c.bf16 %v6632, %v6631
      %v6815 = vpack.c.bf16 %v6634, %v6633
      %v6816 = vpack.c.bf16 %v6636, %v6635
      %v6817 = vpack.c.bf16 %v6638, %v6637
      %v6818 = vpack.c.bf16 %v6640, %v6639
      %v6819 = vmul.bf16 %v6803, %v798
      %v6820 = vmul.bf16 %v6804, %v799
      %v6821 = vmul.bf16 %v6805, %v800
      %v6822 = vmul.bf16 %v6806, %v801
      %v6823 = vmul.bf16 %v6807, %v802
      %v6824 = vmul.bf16 %v6808, %v803
      %v6825 = vmul.bf16 %v6809, %v804
      %v6826 = vmul.bf16 %v6810, %v805
      %v6827 = vmul.bf16 %v6811, %v806
      %v6828 = vmul.bf16 %v6812, %v807
      %v6829 = vmul.bf16 %v6813, %v808
      %v6830 = vmul.bf16 %v6814, %v809
      %v6831 = vmul.bf16 %v6815, %v810
      %v6832 = vmul.bf16 %v6816, %v811
      %v6833 = vmul.bf16 %v6817, %v812
      %v6834 = vmul.bf16 %v6818, %v813
      %v6835 = vpack.c.bf16 %v6706, %v6675
      %v6836 = vpack.c.bf16 %v6704, %v6705
      %v6837 = vpack.c.bf16 %v6702, %v6703
      %v6838 = vpack.c.bf16 %v6700, %v6701
      %v6839 = vpack.c.bf16 %v6698, %v6699
      %v6840 = vpack.c.bf16 %v6696, %v6697
      %v6841 = vpack.c.bf16 %v6694, %v6695
      %v6842 = vpack.c.bf16 %v6692, %v6693
      %v6843 = vpack.c.bf16 %v6690, %v6691
      %v6844 = vpack.c.bf16 %v6688, %v6689
      %v6845 = vpack.c.bf16 %v6686, %v6687
      %v6846 = vpack.c.bf16 %v6684, %v6685
      %v6847 = vpack.c.bf16 %v6682, %v6683
      %v6848 = vpack.c.bf16 %v6680, %v6681
      %v6849 = vpack.c.bf16 %v6678, %v6679
      %v6850 = vpack.c.bf16 %v6676, %v6677
      %v6851 = vmul.bf16 %v6835, %v959
      %v6852 = vmul.bf16 %v6836, %v960
      %v6853 = vmul.bf16 %v6837, %v961
      %v6854 = vmul.bf16 %v6838, %v962
      %v6855 = vmul.bf16 %v6839, %v963
      %v6856 = vmul.bf16 %v6840, %v964
      %v6857 = vmul.bf16 %v6841, %v965
      %v6858 = vmul.bf16 %v6842, %v966
      %v6859 = vmul.bf16 %v6843, %v967
      %v6860 = vmul.bf16 %v6844, %v968
      %v6861 = vmul.bf16 %v6845, %v969
      %v6862 = vmul.bf16 %v6846, %v970
      %v6863 = vmul.bf16 %v6847, %v971
      %v6864 = vmul.bf16 %v6848, %v972
      %v6865 = vmul.bf16 %v6849, %v973
      %v6866 = vmul.bf16 %v6850, %v974
      %v6867 = vmul.bf16 %v6772, %v1104
      %v6868 = vmul.bf16 %v6773, %v1105
      %v6869 = vmul.bf16 %v6774, %v1106
      %v6870 = vmul.bf16 %v6775, %v1107
      %v6871 = vmul.bf16 %v6776, %v1108
      %v6872 = vmul.bf16 %v6777, %v1109
      %v6873 = vmul.bf16 %v6778, %v1110
      %v6874 = vmul.bf16 %v6779, %v1111
      %v6875 = vmul.bf16 %v6780, %v1112
      %v6876 = vmul.bf16 %v6781, %v1113
      %v6877 = vmul.bf16 %v6782, %v1114
      %v6878 = vmul.bf16 %v6783, %v1115
      %v6879 = vmul.bf16 %v6784, %v1116
      %v6880 = vmul.bf16 %v6785, %v1117
      %v6881 = vmul.bf16 %v6786, %v1118
      %v6882 = vmul.bf16 %v6771, %v1119
      %v6883 = vmul.bf16 %v6836, %v1249
      %v6884 = vmul.bf16 %v6837, %v1250
      %v6885 = vmul.bf16 %v6838, %v1251
      %v6886 = vmul.bf16 %v6839, %v1252
      %v6887 = vmul.bf16 %v6840, %v1253
      %v6888 = vmul.bf16 %v6841, %v1254
      %v6889 = vmul.bf16 %v6842, %v1255
      %v6890 = vmul.bf16 %v6843, %v1256
      %v6891 = vmul.bf16 %v6844, %v1257
      %v6892 = vmul.bf16 %v6845, %v1258
      %v6893 = vmul.bf16 %v6846, %v1259
      %v6894 = vmul.bf16 %v6847, %v1260
      %v6895 = vmul.bf16 %v6848, %v1261
      %v6896 = vmul.bf16 %v6849, %v1262
      %v6897 = vmul.bf16 %v6850, %v1263
      %v6898 = vmul.bf16 %v6835, %v1264
      %v6899 = vmul.bf16 %v6773, %v1394
      %v6900 = vmul.bf16 %v6774, %v1395
      %v6901 = vmul.bf16 %v6775, %v1396
      %v6902 = vmul.bf16 %v6776, %v1397
      %v6903 = vmul.bf16 %v6777, %v1398
      %v6904 = vmul.bf16 %v6778, %v1399
      %v6905 = vmul.bf16 %v6779, %v1400
      %v6906 = vmul.bf16 %v6780, %v1401
      %v6907 = vmul.bf16 %v6781, %v1402
      %v6908 = vmul.bf16 %v6782, %v1403
      %v6909 = vmul.bf16 %v6783, %v1404
      %v6910 = vmul.bf16 %v6784, %v1405
      %v6911 = vmul.bf16 %v6785, %v1406
      %v6912 = vmul.bf16 %v6786, %v1407
      %v6913 = vmul.bf16 %v6771, %v1408
      %v6914 = vmul.bf16 %v6772, %v1409
      %v6915 = vmul.bf16 %v6805, %v1539
      %v6916 = vmul.bf16 %v6806, %v1540
      %v6917 = vmul.bf16 %v6807, %v1541
      %v6918 = vmul.bf16 %v6808, %v1542
      %v6919 = vmul.bf16 %v6809, %v1543
      %v6920 = vmul.bf16 %v6810, %v1544
      %v6921 = vmul.bf16 %v6811, %v1545
      %v6922 = vmul.bf16 %v6812, %v1546
      %v6923 = vmul.bf16 %v6813, %v1547
      %v6924 = vmul.bf16 %v6814, %v1548
      %v6925 = vmul.bf16 %v6815, %v1549
      %v6926 = vmul.bf16 %v6816, %v1550
      %v6927 = vmul.bf16 %v6817, %v1551
      %v6928 = vmul.bf16 %v6818, %v1552
      %v6929 = vmul.bf16 %v6803, %v1553
      %v6930 = vmul.bf16 %v6804, %v1554
      %v6931 = vmul.bf16 %v6837, %v1684
      %v6932 = vmul.bf16 %v6838, %v1685
      %v6933 = vmul.bf16 %v6839, %v1686
      %v6934 = vmul.bf16 %v6840, %v1687
      %v6935 = vmul.bf16 %v6841, %v1688
      %v6936 = vmul.bf16 %v6842, %v1689
      %v6937 = vmul.bf16 %v6843, %v1690
      %v6938 = vmul.bf16 %v6844, %v1691
      %v6939 = vmul.bf16 %v6845, %v1692
      %v6940 = vmul.bf16 %v6846, %v1693
      %v6941 = vmul.bf16 %v6847, %v1694
      %v6942 = vmul.bf16 %v6848, %v1695
      %v6943 = vmul.bf16 %v6849, %v1696
      %v6944 = vmul.bf16 %v6850, %v1697
      %v6945 = vmul.bf16 %v6835, %v1698
      %v6946 = vmul.bf16 %v6836, %v1699
      %6963 = vrot.lane.b32.xlu0 %v6819, 64
      %v6964 = vpop.permute.xlu0 %6963
      %6965 = vrot.lane.b32.xlu0 %v6820, 64
      %v6966 = vpop.permute.xlu0 %6965
      %6967 = vrot.lane.b32.xlu0 %v6821, 64
      %v6968 = vpop.permute.xlu0 %6967
      %6969 = vrot.lane.b32.xlu0 %v6822, 64
      %v6970 = vpop.permute.xlu0 %6969
      %6971 = vrot.lane.b32.xlu0 %v6823, 64
      %v6972 = vpop.permute.xlu0 %6971
      %6973 = vrot.lane.b32.xlu0 %v6824, 64
      %v6974 = vpop.permute.xlu0 %6973
      %6975 = vrot.lane.b32.xlu0 %v6825, 64
      %v6976 = vpop.permute.xlu0 %6975
      %6977 = vrot.lane.b32.xlu0 %v6826, 64
      %v6978 = vpop.permute.xlu0 %6977
      %6979 = vrot.lane.b32.xlu0 %v6827, 64
      %v6980 = vpop.permute.xlu0 %6979
      %6981 = vrot.lane.b32.xlu0 %v6828, 64
      %v6982 = vpop.permute.xlu0 %6981
      %6983 = vrot.lane.b32.xlu0 %v6829, 64
      %v6984 = vpop.permute.xlu0 %6983
      %6985 = vrot.lane.b32.xlu0 %v6830, 64
      %v6986 = vpop.permute.xlu0 %6985
      %6987 = vrot.lane.b32.xlu0 %v6831, 64
      %v6988 = vpop.permute.xlu0 %6987
      %6989 = vrot.lane.b32.xlu0 %v6832, 64
      %v6990 = vpop.permute.xlu0 %6989
      %6991 = vrot.lane.b32.xlu0 %v6833, 64
      %v6992 = vpop.permute.xlu0 %6991
      %6993 = vrot.lane.b32.xlu0 %v6834, 64
      %v6994 = vpop.permute.xlu0 %6993
      %v6997 = vsel %vm1780, %v6787, %v6964
      %v7001 = vsel %vm1780, %v6788, %v6966
      %v7005 = vsel %vm1780, %v6789, %v6968
      %v7009 = vsel %vm1780, %v6790, %v6970
      %v7013 = vsel %vm1780, %v6791, %v6972
      %v7017 = vsel %vm1780, %v6792, %v6974
      %v7021 = vsel %vm1780, %v6793, %v6976
      %v7025 = vsel %vm1780, %v6794, %v6978
      %v7029 = vsel %vm1780, %v6795, %v6980
      %v7033 = vsel %vm1780, %v6796, %v6982
      %v7037 = vsel %vm1780, %v6797, %v6984
      %v7041 = vsel %vm1780, %v6798, %v6986
      %v7045 = vsel %vm1780, %v6799, %v6988
      %v7049 = vsel %vm1780, %v6800, %v6990
      %v7053 = vsel %vm1780, %v6801, %v6992
      %v7057 = vsel %vm1780, %v6802, %v6994
      %7075 = vrot.lane.b32.xlu0 %v6867, 64
      %v7076 = vpop.permute.xlu0 %7075
      %7077 = vrot.lane.b32.xlu0 %v6868, 64
      %v7078 = vpop.permute.xlu0 %7077
      %7079 = vrot.lane.b32.xlu0 %v6869, 64
      %v7080 = vpop.permute.xlu0 %7079
      %7081 = vrot.lane.b32.xlu0 %v6870, 64
      %v7082 = vpop.permute.xlu0 %7081
      %7083 = vrot.lane.b32.xlu0 %v6871, 64
      %v7084 = vpop.permute.xlu0 %7083
      %7085 = vrot.lane.b32.xlu0 %v6872, 64
      %v7086 = vpop.permute.xlu0 %7085
      %7087 = vrot.lane.b32.xlu0 %v6873, 64
      %v7088 = vpop.permute.xlu0 %7087
      %7089 = vrot.lane.b32.xlu0 %v6874, 64
      %v7090 = vpop.permute.xlu0 %7089
      %7091 = vrot.lane.b32.xlu0 %v6875, 64
      %v7092 = vpop.permute.xlu0 %7091
      %7093 = vrot.lane.b32.xlu0 %v6876, 64
      %v7094 = vpop.permute.xlu0 %7093
      %7095 = vrot.lane.b32.xlu0 %v6877, 64
      %v7096 = vpop.permute.xlu0 %7095
      %7097 = vrot.lane.b32.xlu0 %v6878, 64
      %v7098 = vpop.permute.xlu0 %7097
      %7099 = vrot.lane.b32.xlu0 %v6879, 64
      %v7100 = vpop.permute.xlu0 %7099
      %7101 = vrot.lane.b32.xlu0 %v6880, 64
      %v7102 = vpop.permute.xlu0 %7101
      %7103 = vrot.lane.b32.xlu0 %v6881, 64
      %v7104 = vpop.permute.xlu0 %7103
      %7105 = vrot.lane.b32.xlu0 %v6882, 64
      %v7106 = vpop.permute.xlu0 %7105
      %v7109 = vsel %vm1780, %v6851, %v7076
      %v7113 = vsel %vm1780, %v6852, %v7078
      %v7117 = vsel %vm1780, %v6853, %v7080
      %v7121 = vsel %vm1780, %v6854, %v7082
      %v7125 = vsel %vm1780, %v6855, %v7084
      %v7129 = vsel %vm1780, %v6856, %v7086
      %v7133 = vsel %vm1780, %v6857, %v7088
      %v7137 = vsel %vm1780, %v6858, %v7090
      %v7141 = vsel %vm1780, %v6859, %v7092
      %v7145 = vsel %vm1780, %v6860, %v7094
      %v7149 = vsel %vm1780, %v6861, %v7096
      %v7153 = vsel %vm1780, %v6862, %v7098
      %v7157 = vsel %vm1780, %v6863, %v7100
      %v7161 = vsel %vm1780, %v6864, %v7102
      %v7165 = vsel %vm1780, %v6865, %v7104
      %v7169 = vsel %vm1780, %v6866, %v7106
      %7187 = vrot.lane.b32.xlu0 %v6883, 64
      %v7188 = vpop.permute.xlu0 %7187
      %7189 = vrot.lane.b32.xlu0 %v6884, 64
      %v7190 = vpop.permute.xlu0 %7189
      %7191 = vrot.lane.b32.xlu0 %v6885, 64
      %v7192 = vpop.permute.xlu0 %7191
      %7193 = vrot.lane.b32.xlu0 %v6886, 64
      %v7194 = vpop.permute.xlu0 %7193
      %7195 = vrot.lane.b32.xlu0 %v6887, 64
      %v7196 = vpop.permute.xlu0 %7195
      %7197 = vrot.lane.b32.xlu0 %v6888, 64
      %v7198 = vpop.permute.xlu0 %7197
      %7199 = vrot.lane.b32.xlu0 %v6889, 64
      %v7200 = vpop.permute.xlu0 %7199
      %7201 = vrot.lane.b32.xlu0 %v6890, 64
      %v7202 = vpop.permute.xlu0 %7201
      %7203 = vrot.lane.b32.xlu0 %v6891, 64
      %v7204 = vpop.permute.xlu0 %7203
      %7205 = vrot.lane.b32.xlu0 %v6892, 64
      %v7206 = vpop.permute.xlu0 %7205
      %7207 = vrot.lane.b32.xlu0 %v6893, 64
      %v7208 = vpop.permute.xlu0 %7207
      %7209 = vrot.lane.b32.xlu0 %v6894, 64
      %v7210 = vpop.permute.xlu0 %7209
      %7211 = vrot.lane.b32.xlu0 %v6895, 64
      %v7212 = vpop.permute.xlu0 %7211
      %7213 = vrot.lane.b32.xlu0 %v6896, 64
      %v7214 = vpop.permute.xlu0 %7213
      %7215 = vrot.lane.b32.xlu0 %v6897, 64
      %v7216 = vpop.permute.xlu0 %7215
      %7217 = vrot.lane.b32.xlu0 %v6898, 64
      %v7218 = vpop.permute.xlu0 %7217
      %v7221 = vsel %vm1780, %v6804, %v7188
      %v7225 = vsel %vm1780, %v6805, %v7190
      %v7229 = vsel %vm1780, %v6806, %v7192
      %v7233 = vsel %vm1780, %v6807, %v7194
      %v7237 = vsel %vm1780, %v6808, %v7196
      %v7241 = vsel %vm1780, %v6809, %v7198
      %v7245 = vsel %vm1780, %v6810, %v7200
      %v7249 = vsel %vm1780, %v6811, %v7202
      %v7253 = vsel %vm1780, %v6812, %v7204
      %v7257 = vsel %vm1780, %v6813, %v7206
      %v7261 = vsel %vm1780, %v6814, %v7208
      %v7265 = vsel %vm1780, %v6815, %v7210
      %v7269 = vsel %vm1780, %v6816, %v7212
      %v7273 = vsel %vm1780, %v6817, %v7214
      %v7277 = vsel %vm1780, %v6818, %v7216
      %v7281 = vsel %vm1780, %v6803, %v7218
      %7299 = vrot.lane.b32.xlu0 %v6915, 64
      %v7300 = vpop.permute.xlu0 %7299
      %7301 = vrot.lane.b32.xlu0 %v6916, 64
      %v7302 = vpop.permute.xlu0 %7301
      %7303 = vrot.lane.b32.xlu0 %v6917, 64
      %v7304 = vpop.permute.xlu0 %7303
      %7305 = vrot.lane.b32.xlu0 %v6918, 64
      %v7306 = vpop.permute.xlu0 %7305
      %7307 = vrot.lane.b32.xlu0 %v6919, 64
      %v7308 = vpop.permute.xlu0 %7307
      %7309 = vrot.lane.b32.xlu0 %v6920, 64
      %v7310 = vpop.permute.xlu0 %7309
      %7311 = vrot.lane.b32.xlu0 %v6921, 64
      %v7312 = vpop.permute.xlu0 %7311
      %7313 = vrot.lane.b32.xlu0 %v6922, 64
      %v7314 = vpop.permute.xlu0 %7313
      %7315 = vrot.lane.b32.xlu0 %v6923, 64
      %v7316 = vpop.permute.xlu0 %7315
      %7317 = vrot.lane.b32.xlu0 %v6924, 64
      %v7318 = vpop.permute.xlu0 %7317
      %7319 = vrot.lane.b32.xlu0 %v6925, 64
      %v7320 = vpop.permute.xlu0 %7319
      %7321 = vrot.lane.b32.xlu0 %v6926, 64
      %v7322 = vpop.permute.xlu0 %7321
      %7323 = vrot.lane.b32.xlu0 %v6927, 64
      %v7324 = vpop.permute.xlu0 %7323
      %7325 = vrot.lane.b32.xlu0 %v6928, 64
      %v7326 = vpop.permute.xlu0 %7325
      %7327 = vrot.lane.b32.xlu0 %v6929, 64
      %v7328 = vpop.permute.xlu0 %7327
      %7329 = vrot.lane.b32.xlu0 %v6930, 64
      %v7330 = vpop.permute.xlu0 %7329
      %v7333 = vsel %vm1780, %v6899, %v7300
      %v7337 = vsel %vm1780, %v6900, %v7302
      %v7341 = vsel %vm1780, %v6901, %v7304
      %v7345 = vsel %vm1780, %v6902, %v7306
      %v7349 = vsel %vm1780, %v6903, %v7308
      %v7353 = vsel %vm1780, %v6904, %v7310
      %v7357 = vsel %vm1780, %v6905, %v7312
      %v7361 = vsel %vm1780, %v6906, %v7314
      %v7365 = vsel %vm1780, %v6907, %v7316
      %v7369 = vsel %vm1780, %v6908, %v7318
      %v7373 = vsel %vm1780, %v6909, %v7320
      %v7377 = vsel %vm1780, %v6910, %v7322
      %v7381 = vsel %vm1780, %v6911, %v7324
      %v7385 = vsel %vm1780, %v6912, %v7326
      %v7389 = vsel %vm1780, %v6913, %v7328
      %v7393 = vsel %vm1780, %v6914, %v7330
      %7411 = vrot.lane.b32.xlu0 %v6804, 64
      %v7412 = vpop.permute.xlu0 %7411
      %7413 = vrot.lane.b32.xlu0 %v6805, 64
      %v7414 = vpop.permute.xlu0 %7413
      %7415 = vrot.lane.b32.xlu0 %v6806, 64
      %v7416 = vpop.permute.xlu0 %7415
      %7417 = vrot.lane.b32.xlu0 %v6807, 64
      %v7418 = vpop.permute.xlu0 %7417
      %7419 = vrot.lane.b32.xlu0 %v6808, 64
      %v7420 = vpop.permute.xlu0 %7419
      %7421 = vrot.lane.b32.xlu0 %v6809, 64
      %v7422 = vpop.permute.xlu0 %7421
      %7423 = vrot.lane.b32.xlu0 %v6810, 64
      %v7424 = vpop.permute.xlu0 %7423
      %7425 = vrot.lane.b32.xlu0 %v6811, 64
      %v7426 = vpop.permute.xlu0 %7425
      %7427 = vrot.lane.b32.xlu0 %v6812, 64
      %v7428 = vpop.permute.xlu0 %7427
      %7429 = vrot.lane.b32.xlu0 %v6813, 64
      %v7430 = vpop.permute.xlu0 %7429
      %7431 = vrot.lane.b32.xlu0 %v6814, 64
      %v7432 = vpop.permute.xlu0 %7431
      %7433 = vrot.lane.b32.xlu0 %v6815, 64
      %v7434 = vpop.permute.xlu0 %7433
      %7435 = vrot.lane.b32.xlu0 %v6816, 64
      %v7436 = vpop.permute.xlu0 %7435
      %7437 = vrot.lane.b32.xlu0 %v6817, 64
      %v7438 = vpop.permute.xlu0 %7437
      %7439 = vrot.lane.b32.xlu0 %v6818, 64
      %v7440 = vpop.permute.xlu0 %7439
      %7441 = vrot.lane.b32.xlu0 %v6803, 64
      %v7442 = vpop.permute.xlu0 %7441
      %v7445 = vsel %vm1780, %v6931, %v7412
      %v7449 = vsel %vm1780, %v6932, %v7414
      %v7453 = vsel %vm1780, %v6933, %v7416
      %v7457 = vsel %vm1780, %v6934, %v7418
      %v7461 = vsel %vm1780, %v6935, %v7420
      %v7465 = vsel %vm1780, %v6936, %v7422
      %v7469 = vsel %vm1780, %v6937, %v7424
      %v7473 = vsel %vm1780, %v6938, %v7426
      %v7477 = vsel %vm1780, %v6939, %v7428
      %v7481 = vsel %vm1780, %v6940, %v7430
      %v7485 = vsel %vm1780, %v6941, %v7432
      %v7489 = vsel %vm1780, %v6942, %v7434
      %v7493 = vsel %vm1780, %v6943, %v7436
      %v7497 = vsel %vm1780, %v6944, %v7438
      %v7501 = vsel %vm1780, %v6945, %v7440
      %v7505 = vsel %vm1780, %v6946, %v7442
      %v7507 = vld [vmem:[%s8] sm:$0xf]
      %v7508 = vld [vmem:[%s8 + $0x4] sm:$0xf]
      %v7509 = vld [vmem:[%s8 + $0x8] sm:$0xf]
      %v7510 = vld [vmem:[%s8 + $0xc] sm:$0xf]
      %v7511 = vld [vmem:[%s8 + $0x10] sm:$0xf]
      %v7512 = vld [vmem:[%s8 + $0x14] sm:$0xf]
      %v7513 = vld [vmem:[%s8 + $0x18] sm:$0xf]
      %v7514 = vld [vmem:[%s8 + $0x1c] sm:$0xf]
      %v7515 = vld [vmem:[%s8 + $0x20] sm:$0xf]
      %v7516 = vld [vmem:[%s8 + $0x24] sm:$0xf]
      %v7517 = vld [vmem:[%s8 + $0x28] sm:$0xf]
      %v7518 = vld [vmem:[%s8 + $0x2c] sm:$0xf]
      %v7519 = vld [vmem:[%s8 + $0x30] sm:$0xf]
      %v7520 = vld [vmem:[%s8 + $0x34] sm:$0xf]
      %v7521 = vld [vmem:[%s8 + $0x38] sm:$0xf]
      %v7522 = vld [vmem:[%s8 + $0x3c] sm:$0xf]
      %v7523 = vld [vmem:[%s8 + $0x40] sm:$0xf]
      %v7524 = vld [vmem:[%s8 + $0x44] sm:$0xf]
      %v7525 = vld [vmem:[%s8 + $0x48] sm:$0xf]
      %v7526 = vld [vmem:[%s8 + $0x4c] sm:$0xf]
      %v7527 = vld [vmem:[%s8 + $0x50] sm:$0xf]
      %v7528 = vld [vmem:[%s8 + $0x54] sm:$0xf]
      %v7529 = vld [vmem:[%s8 + $0x58] sm:$0xf]
      %v7530 = vld [vmem:[%s8 + $0x5c] sm:$0xf]
      %v7531 = vld [vmem:[%s8 + $0x60] sm:$0xf]
      %v7532 = vld [vmem:[%s8 + $0x64] sm:$0xf]
      %v7533 = vld [vmem:[%s8 + $0x68] sm:$0xf]
      %v7534 = vld [vmem:[%s8 + $0x6c] sm:$0xf]
      %v7535 = vld [vmem:[%s8 + $0x70] sm:$0xf]
      %v7536 = vld [vmem:[%s8 + $0x74] sm:$0xf]
      %v7537 = vld [vmem:[%s8 + $0x78] sm:$0xf]
      %v7538 = vld [vmem:[%s8 + $0x7c] sm:$0xf]
      %v7539 = vld [vmem:[%s8 + $0x80] sm:$0xf]
      %v7540 = vld [vmem:[%s8 + $0x84] sm:$0xf]
      %v7541 = vld [vmem:[%s8 + $0x88] sm:$0xf]
      %v7542 = vld [vmem:[%s8 + $0x8c] sm:$0xf]
      %v7543 = vld [vmem:[%s8 + $0x90] sm:$0xf]
      %v7544 = vld [vmem:[%s8 + $0x94] sm:$0xf]
      %v7545 = vld [vmem:[%s8 + $0x98] sm:$0xf]
      %v7546 = vld [vmem:[%s8 + $0x9c] sm:$0xf]
      %v7547 = vld [vmem:[%s8 + $0xa0] sm:$0xf]
      %v7548 = vld [vmem:[%s8 + $0xa4] sm:$0xf]
      %v7549 = vld [vmem:[%s8 + $0xa8] sm:$0xf]
      %v7550 = vld [vmem:[%s8 + $0xac] sm:$0xf]
      %v7551 = vld [vmem:[%s8 + $0xb0] sm:$0xf]
      %v7552 = vld [vmem:[%s8 + $0xb4] sm:$0xf]
      %v7553 = vld [vmem:[%s8 + $0xb8] sm:$0xf]
      %v7554 = vld [vmem:[%s8 + $0xbc] sm:$0xf]
      %v7555 = vld [vmem:[%s8 + $0xc0] sm:$0xf]
      %v7556 = vld [vmem:[%s8 + $0xc4] sm:$0xf]
      %v7557 = vld [vmem:[%s8 + $0xc8] sm:$0xf]
      %v7558 = vld [vmem:[%s8 + $0xcc] sm:$0xf]
      %v7559 = vld [vmem:[%s8 + $0xd0] sm:$0xf]
      %v7560 = vld [vmem:[%s8 + $0xd4] sm:$0xf]
      %v7561 = vld [vmem:[%s8 + $0xd8] sm:$0xf]
      %v7562 = vld [vmem:[%s8 + $0xdc] sm:$0xf]
      %v7563 = vld [vmem:[%s8 + $0xe0] sm:$0xf]
      %v7564 = vld [vmem:[%s8 + $0xe4] sm:$0xf]
      %v7565 = vld [vmem:[%s8 + $0xe8] sm:$0xf]
      %v7566 = vld [vmem:[%s8 + $0xec] sm:$0xf]
      %v7567 = vld [vmem:[%s8 + $0xf0] sm:$0xf]
      %v7568 = vld [vmem:[%s8 + $0xf4] sm:$0xf]
      %v7569 = vld [vmem:[%s8 + $0xf8] sm:$0xf]
      %v7570 = vld [vmem:[%s8 + $0xfc] sm:$0xf]
      %v7571 = vld [vmem:[%s8 + $0x100] sm:$0xf]
      %v7572 = vld [vmem:[%s8 + $0x104] sm:$0xf]
      %v7573 = vld [vmem:[%s8 + $0x108] sm:$0xf]
      %v7574 = vld [vmem:[%s8 + $0x10c] sm:$0xf]
      %v7575 = vld [vmem:[%s8 + $0x110] sm:$0xf]
      %v7576 = vld [vmem:[%s8 + $0x114] sm:$0xf]
      %v7577 = vld [vmem:[%s8 + $0x118] sm:$0xf]
      %v7578 = vld [vmem:[%s8 + $0x11c] sm:$0xf]
      %v7579 = vld [vmem:[%s8 + $0x120] sm:$0xf]
      %v7580 = vld [vmem:[%s8 + $0x124] sm:$0xf]
      %v7581 = vld [vmem:[%s8 + $0x128] sm:$0xf]
      %v7582 = vld [vmem:[%s8 + $0x12c] sm:$0xf]
      %v7583 = vld [vmem:[%s8 + $0x130] sm:$0xf]
      %v7584 = vld [vmem:[%s8 + $0x134] sm:$0xf]
      %v7585 = vld [vmem:[%s8 + $0x138] sm:$0xf]
      %v7586 = vld [vmem:[%s8 + $0x13c] sm:$0xf]
      %v7587 = vld [vmem:[%s9] sm:$0x1]
      %v7589 = vlaneseq
      %v7590 = vshrl.u32 %v7589, 7
      %v7591 = vsub.s32 0, %v7590
      %v7592 = vrot.slane %v7587, %v7591
      %v7674 = vunpack.c.l.b16 %v7507
      %v7675 = vunpack.c.l.b16 %v7508
      %v7676 = vunpack.c.l.b16 %v7509
      %v7677 = vunpack.c.l.b16 %v7510
      %v7678 = vunpack.c.l.b16 %v7511
      %v7679 = vunpack.c.l.b16 %v7512
      %v7680 = vunpack.c.l.b16 %v7513
      %v7681 = vunpack.c.l.b16 %v7514
      %v7682 = vunpack.c.l.b16 %v7515
      %v7683 = vunpack.c.l.b16 %v7516
      %v7684 = vunpack.c.l.b16 %v7517
      %v7685 = vunpack.c.l.b16 %v7518
      %v7686 = vunpack.c.l.b16 %v7519
      %v7687 = vunpack.c.l.b16 %v7520
      %v7688 = vunpack.c.l.b16 %v7521
      %v7689 = vunpack.c.l.b16 %v7522
      %v7690 = vunpack.c.l.b16 %v7523
      %v7691 = vunpack.c.l.b16 %v7524
      %v7692 = vunpack.c.l.b16 %v7525
      %v7693 = vunpack.c.l.b16 %v7526
      %v7694 = vunpack.c.l.b16 %v7527
      %v7695 = vunpack.c.l.b16 %v7528
      %v7696 = vunpack.c.l.b16 %v7529
      %v7697 = vunpack.c.l.b16 %v7530
      %v7698 = vunpack.c.l.b16 %v7531
      %v7699 = vunpack.c.l.b16 %v7532
      %v7700 = vunpack.c.l.b16 %v7533
      %v7701 = vunpack.c.l.b16 %v7534
      %v7702 = vunpack.c.l.b16 %v7535
      %v7703 = vunpack.c.l.b16 %v7536
      %v7704 = vunpack.c.l.b16 %v7537
      %v7705 = vunpack.c.l.b16 %v7538
      %v7706 = vunpack.c.l.b16 %v7539
      %v7707 = vunpack.c.l.b16 %v7540
      %v7708 = vunpack.c.l.b16 %v7541
      %v7709 = vunpack.c.l.b16 %v7542
      %v7710 = vunpack.c.l.b16 %v7543
      %v7711 = vunpack.c.l.b16 %v7544
      %v7712 = vunpack.c.l.b16 %v7545
      %v7713 = vunpack.c.l.b16 %v7546
      %v7714 = vunpack.c.l.b16 %v7547
      %v7715 = vunpack.c.l.b16 %v7548
      %v7716 = vunpack.c.l.b16 %v7549
      %v7717 = vunpack.c.l.b16 %v7550
      %v7718 = vunpack.c.l.b16 %v7551
      %v7719 = vunpack.c.l.b16 %v7552
      %v7720 = vunpack.c.l.b16 %v7553
      %v7721 = vunpack.c.l.b16 %v7554
      %v7722 = vunpack.c.l.b16 %v7555
      %v7723 = vunpack.c.l.b16 %v7556
      %v7724 = vunpack.c.l.b16 %v7557
      %v7725 = vunpack.c.l.b16 %v7558
      %v7726 = vunpack.c.l.b16 %v7559
      %v7727 = vunpack.c.l.b16 %v7560
      %v7728 = vunpack.c.l.b16 %v7561
      %v7729 = vunpack.c.l.b16 %v7562
      %v7730 = vunpack.c.l.b16 %v7563
      %v7731 = vunpack.c.l.b16 %v7564
      %v7732 = vunpack.c.l.b16 %v7565
      %v7733 = vunpack.c.l.b16 %v7566
      %v7734 = vunpack.c.l.b16 %v7567
      %v7735 = vunpack.c.l.b16 %v7568
      %v7736 = vunpack.c.l.b16 %v7569
      %v7737 = vunpack.c.l.b16 %v7570
      %v7738 = vunpack.c.l.b16 %v7571
      %v7739 = vunpack.c.l.b16 %v7572
      %v7740 = vunpack.c.l.b16 %v7573
      %v7741 = vunpack.c.l.b16 %v7574
      %v7742 = vunpack.c.l.b16 %v7575
      %v7743 = vunpack.c.l.b16 %v7576
      %v7744 = vunpack.c.l.b16 %v7577
      %v7745 = vunpack.c.l.b16 %v7578
      %v7746 = vunpack.c.l.b16 %v7579
      %v7747 = vunpack.c.l.b16 %v7580
      %v7748 = vunpack.c.l.b16 %v7581
      %v7749 = vunpack.c.l.b16 %v7582
      %v7750 = vunpack.c.l.b16 %v7583
      %v7751 = vunpack.c.l.b16 %v7584
      %v7752 = vunpack.c.l.b16 %v7585
      %v7753 = vunpack.c.l.b16 %v7586
      %v7754 = vpack.c.b16 %v7675, %v7674
      %v7755 = vpack.c.b16 %v7677, %v7676
      %v7756 = vpack.c.b16 %v7679, %v7678
      %v7757 = vpack.c.b16 %v7681, %v7680
      %v7758 = vpack.c.b16 %v7683, %v7682
      %v7759 = vpack.c.b16 %v7685, %v7684
      %v7760 = vpack.c.b16 %v7687, %v7686
      %v7761 = vpack.c.b16 %v7689, %v7688
      %v7762 = vpack.c.b16 %v7691, %v7690
      %v7763 = vpack.c.b16 %v7693, %v7692
      %v7764 = vpack.c.b16 %v7695, %v7694
      %v7765 = vpack.c.b16 %v7697, %v7696
      %v7766 = vpack.c.b16 %v7699, %v7698
      %v7767 = vpack.c.b16 %v7701, %v7700
      %v7768 = vpack.c.b16 %v7703, %v7702
      %v7769 = vpack.c.b16 %v7705, %v7704
      %v7770 = vpack.c.b16 %v7707, %v7706
      %v7771 = vpack.c.b16 %v7709, %v7708
      %v7772 = vpack.c.b16 %v7711, %v7710
      %v7773 = vpack.c.b16 %v7713, %v7712
      %v7774 = vpack.c.b16 %v7715, %v7714
      %v7775 = vpack.c.b16 %v7717, %v7716
      %v7776 = vpack.c.b16 %v7719, %v7718
      %v7777 = vpack.c.b16 %v7721, %v7720
      %v7778 = vpack.c.b16 %v7723, %v7722
      %v7779 = vpack.c.b16 %v7725, %v7724
      %v7780 = vpack.c.b16 %v7727, %v7726
      %v7781 = vpack.c.b16 %v7729, %v7728
      %v7782 = vpack.c.b16 %v7731, %v7730
      %v7783 = vpack.c.b16 %v7733, %v7732
      %v7784 = vpack.c.b16 %v7735, %v7734
      %v7785 = vpack.c.b16 %v7737, %v7736
      %v7786 = vpack.c.b16 %v7739, %v7738
      %v7787 = vpack.c.b16 %v7741, %v7740
      %v7788 = vpack.c.b16 %v7743, %v7742
      %v7789 = vpack.c.b16 %v7745, %v7744
      %v7790 = vpack.c.b16 %v7747, %v7746
      %v7791 = vpack.c.b16 %v7749, %v7748
      %v7792 = vpack.c.b16 %v7751, %v7750
      %v7793 = vpack.c.b16 %v7753, %v7752
      %7834 = vmatprep.subr.bf16.mxu0 0
      %7835 = vmatpush1.bf16.msra.mxu0 %v7761
      %7836 = vmatprep.subr.bf16.mxu0 0
      %7837 = vmatpush1.bf16.msra.mxu0 %v7760
      %7838 = vmatprep.subr.bf16.mxu0 0
      %7839 = vmatpush1.bf16.msra.mxu0 %v7759
      %7840 = vmatprep.subr.bf16.mxu0 0
      %7841 = vmatpush1.bf16.msra.mxu0 %v7758
      %7842 = vmatprep.subr.bf16.mxu0 0
      %7843 = vmatpush1.bf16.msra.mxu0 %v7757
      %7844 = vmatprep.subr.bf16.mxu0 0
      %7845 = vmatpush1.bf16.msra.mxu0 %v7756
      %7846 = vmatprep.subr.bf16.mxu0 0
      %7847 = vmatpush1.bf16.msra.mxu0 %v7755
      %7848 = vmatprep.subr.bf16.mxu0 0
      %7849 = vmatpush1.bf16.msra.mxu0 %v7754
      %7850 = vmatprep.subr.bf16.mxu0 0
      %7851 = vmatpush2.bf16.msra.mxu0 %v7769
      %7852 = vmatprep.subr.bf16.mxu0 0
      %7853 = vmatpush2.bf16.msra.mxu0 %v7768
      %7854 = vmatprep.subr.bf16.mxu0 0
      %7855 = vmatpush2.bf16.msra.mxu0 %v7767
      %7856 = vmatprep.subr.bf16.mxu0 0
      %7857 = vmatpush2.bf16.msra.mxu0 %v7766
      %7858 = vmatprep.subr.bf16.mxu0 0
      %7859 = vmatpush2.bf16.msra.mxu0 %v7765
      %7860 = vmatprep.subr.bf16.mxu0 0
      %7861 = vmatpush2.bf16.msra.mxu0 %v7764
      %7862 = vmatprep.subr.bf16.mxu0 0
      %7863 = vmatpush2.bf16.msra.mxu0 %v7763
      %7864 = vmatprep.subr.bf16.mxu0 0
      %7865 = vmatpush2.bf16.msra.mxu0 %v7762
      %7866 = vmatprep.mubr.bf16.mxu0 %v7109
      %7867 = vmatmul.mubr.bf16.gmra.mxu0 %v6997
      %v7868 = vpop.f32.mrf.mxu0
      %v7869 = vadd.f32 %v7592, %v7868
      %v7870 = vpop.f32.mrf.mxu0
      %v7871 = vpop.f32.mrf.mxu0
      %v7872 = vadd.f32 %v7592, %v7871
      %v7873 = vpop.f32.mrf.mxu0
      %7874 = vmatprep.mubr.bf16.mxu0 %v7113
      %7875 = vmatmul.mubr.bf16.gmra.mxu0 %v7001
      %v7876 = vpop.f32.mrf.mxu0
      %v7877 = vadd.f32 %v7592, %v7876
      %v7878 = vpop.f32.mrf.mxu0
      %v7879 = vpop.f32.mrf.mxu0
      %v7880 = vadd.f32 %v7592, %v7879
      %v7881 = vpop.f32.mrf.mxu0
      %7882 = vmatprep.mubr.bf16.mxu0 %v7117
      %7883 = vmatmul.mubr.bf16.gmra.mxu0 %v7005
      %v7884 = vpop.f32.mrf.mxu0
      %v7885 = vadd.f32 %v7592, %v7884
      %v7886 = vpop.f32.mrf.mxu0
      %v7887 = vpop.f32.mrf.mxu0
      %v7888 = vadd.f32 %v7592, %v7887
      %v7889 = vpop.f32.mrf.mxu0
      %7890 = vmatprep.mubr.bf16.mxu0 %v7121
      %7891 = vmatmul.mubr.bf16.gmra.mxu0 %v7009
      %v7892 = vpop.f32.mrf.mxu0
      %v7893 = vadd.f32 %v7592, %v7892
      %v7894 = vpop.f32.mrf.mxu0
      %v7895 = vpop.f32.mrf.mxu0
      %v7896 = vadd.f32 %v7592, %v7895
      %v7897 = vpop.f32.mrf.mxu0
      %7898 = vmatprep.mubr.bf16.mxu0 %v7125
      %7899 = vmatmul.mubr.bf16.gmra.mxu0 %v7013
      %v7900 = vpop.f32.mrf.mxu0
      %v7901 = vadd.f32 %v7592, %v7900
      %v7902 = vpop.f32.mrf.mxu0
      %v7903 = vpop.f32.mrf.mxu0
      %v7904 = vadd.f32 %v7592, %v7903
      %v7905 = vpop.f32.mrf.mxu0
      %7906 = vmatprep.mubr.bf16.mxu0 %v7129
      %7907 = vmatmul.mubr.bf16.gmra.mxu0 %v7017
      %v7908 = vpop.f32.mrf.mxu0
      %v7909 = vadd.f32 %v7592, %v7908
      %v7910 = vpop.f32.mrf.mxu0
      %v7911 = vpop.f32.mrf.mxu0
      %v7912 = vadd.f32 %v7592, %v7911
      %v7913 = vpop.f32.mrf.mxu0
      %7914 = vmatprep.mubr.bf16.mxu0 %v7133
      %7915 = vmatmul.mubr.bf16.gmra.mxu0 %v7021
      %v7916 = vpop.f32.mrf.mxu0
      %v7917 = vadd.f32 %v7592, %v7916
      %v7918 = vpop.f32.mrf.mxu0
      %v7919 = vpop.f32.mrf.mxu0
      %v7920 = vadd.f32 %v7592, %v7919
      %v7921 = vpop.f32.mrf.mxu0
      %7922 = vmatprep.mubr.bf16.mxu0 %v7137
      %7923 = vmatmul.mubr.bf16.gmra.mxu0 %v7025
      %v7924 = vpop.f32.mrf.mxu0
      %v7925 = vadd.f32 %v7592, %v7924
      %v7926 = vpop.f32.mrf.mxu0
      %v7927 = vpop.f32.mrf.mxu0
      %v7928 = vadd.f32 %v7592, %v7927
      %v7929 = vpop.f32.mrf.mxu0
      %7930 = vmatprep.mubr.bf16.mxu0 %v7141
      %7931 = vmatmul.mubr.bf16.gmra.mxu0 %v7029
      %v7932 = vpop.f32.mrf.mxu0
      %v7933 = vadd.f32 %v7592, %v7932
      %v7934 = vpop.f32.mrf.mxu0
      %v7935 = vpop.f32.mrf.mxu0
      %v7936 = vadd.f32 %v7592, %v7935
      %v7937 = vpop.f32.mrf.mxu0
      %7938 = vmatprep.mubr.bf16.mxu0 %v7145
      %7939 = vmatmul.mubr.bf16.gmra.mxu0 %v7033
      %v7940 = vpop.f32.mrf.mxu0
      %v7941 = vadd.f32 %v7592, %v7940
      %v7942 = vpop.f32.mrf.mxu0
      %v7943 = vpop.f32.mrf.mxu0
      %v7944 = vadd.f32 %v7592, %v7943
      %v7945 = vpop.f32.mrf.mxu0
      %7946 = vmatprep.mubr.bf16.mxu0 %v7149
      %7947 = vmatmul.mubr.bf16.gmra.mxu0 %v7037
      %v7948 = vpop.f32.mrf.mxu0
      %v7949 = vadd.f32 %v7592, %v7948
      %v7950 = vpop.f32.mrf.mxu0
      %v7951 = vpop.f32.mrf.mxu0
      %v7952 = vadd.f32 %v7592, %v7951
      %v7953 = vpop.f32.mrf.mxu0
      %7954 = vmatprep.mubr.bf16.mxu0 %v7153
      %7955 = vmatmul.mubr.bf16.gmra.mxu0 %v7041
      %v7956 = vpop.f32.mrf.mxu0
      %v7957 = vadd.f32 %v7592, %v7956
      %v7958 = vpop.f32.mrf.mxu0
      %v7959 = vpop.f32.mrf.mxu0
      %v7960 = vadd.f32 %v7592, %v7959
      %v7961 = vpop.f32.mrf.mxu0
      %7962 = vmatprep.mubr.bf16.mxu0 %v7157
      %7963 = vmatmul.mubr.bf16.gmra.mxu0 %v7045
      %v7964 = vpop.f32.mrf.mxu0
      %v7965 = vadd.f32 %v7592, %v7964
      %v7966 = vpop.f32.mrf.mxu0
      %v7967 = vpop.f32.mrf.mxu0
      %v7968 = vadd.f32 %v7592, %v7967
      %v7969 = vpop.f32.mrf.mxu0
      %7970 = vmatprep.mubr.bf16.mxu0 %v7161
      %7971 = vmatmul.mubr.bf16.gmra.mxu0 %v7049
      %v7972 = vpop.f32.mrf.mxu0
      %v7973 = vadd.f32 %v7592, %v7972
      %v7974 = vpop.f32.mrf.mxu0
      %v7975 = vpop.f32.mrf.mxu0
      %v7976 = vadd.f32 %v7592, %v7975
      %v7977 = vpop.f32.mrf.mxu0
      %7978 = vmatprep.mubr.bf16.mxu0 %v7165
      %7979 = vmatmul.mubr.bf16.gmra.mxu0 %v7053
      %v7980 = vpop.f32.mrf.mxu0
      %v7981 = vadd.f32 %v7592, %v7980
      %v7982 = vpop.f32.mrf.mxu0
      %v7983 = vpop.f32.mrf.mxu0
      %v7984 = vadd.f32 %v7592, %v7983
      %v7985 = vpop.f32.mrf.mxu0
      %7986 = vmatprep.mubr.bf16.mxu0 %v7169
      %7987 = vmatmul.mubr.bf16.gmra.mxu0 %v7057
      %v7988 = vpop.f32.mrf.mxu0
      %v7989 = vadd.f32 %v7592, %v7988
      %v7990 = vpop.f32.mrf.mxu0
      %v7991 = vpop.f32.mrf.mxu0
      %v7992 = vadd.f32 %v7592, %v7991
      %v7993 = vpop.f32.mrf.mxu0
      %7994 = vdwg.mxu0
      %7995 = vmatprep.subr.bf16.mxu0 0
      %7996 = vmatpush1.bf16.msra.mxu0 %v7777
      %7997 = vmatprep.subr.bf16.mxu0 0
      %7998 = vmatpush1.bf16.msra.mxu0 %v7776
      %7999 = vmatprep.subr.bf16.mxu0 0
      %8000 = vmatpush1.bf16.msra.mxu0 %v7775
      %8001 = vmatprep.subr.bf16.mxu0 0
      %8002 = vmatpush1.bf16.msra.mxu0 %v7774
      %8003 = vmatprep.subr.bf16.mxu0 0
      %8004 = vmatpush1.bf16.msra.mxu0 %v7773
      %8005 = vmatprep.subr.bf16.mxu0 0
      %8006 = vmatpush1.bf16.msra.mxu0 %v7772
      %8007 = vmatprep.subr.bf16.mxu0 0
      %8008 = vmatpush1.bf16.msra.mxu0 %v7771
      %8009 = vmatprep.subr.bf16.mxu0 0
      %8010 = vmatpush1.bf16.msra.mxu0 %v7770
      %8011 = vmatprep.subr.bf16.mxu0 0
      %8012 = vmatpush2.bf16.msra.mxu0 %v7785
      %8013 = vmatprep.subr.bf16.mxu0 0
      %8014 = vmatpush2.bf16.msra.mxu0 %v7784
      %8015 = vmatprep.subr.bf16.mxu0 0
      %8016 = vmatpush2.bf16.msra.mxu0 %v7783
      %8017 = vmatprep.subr.bf16.mxu0 0
      %8018 = vmatpush2.bf16.msra.mxu0 %v7782
      %8019 = vmatprep.subr.bf16.mxu0 0
      %8020 = vmatpush2.bf16.msra.mxu0 %v7781
      %8021 = vmatprep.subr.bf16.mxu0 0
      %8022 = vmatpush2.bf16.msra.mxu0 %v7780
      %8023 = vmatprep.subr.bf16.mxu0 0
      %8024 = vmatpush2.bf16.msra.mxu0 %v7779
      %8025 = vmatprep.subr.bf16.mxu0 0
      %8026 = vmatpush2.bf16.msra.mxu0 %v7778
      %8027 = vmatprep.mubr.bf16.mxu0 %v7333
      %8028 = vmatmul.mubr.bf16.gmra.mxu0 %v7221
      %v8029 = vpop.f32.mrf.mxu0
      %v8030 = vadd.f32 %v7869, %v8029
      %v8031 = vpop.f32.mrf.mxu0
      %v8032 = vpop.f32.mrf.mxu0
      %v8033 = vadd.f32 %v7872, %v8032
      %v8034 = vpop.f32.mrf.mxu0
      %8035 = vmatprep.mubr.bf16.mxu0 %v7337
      %8036 = vmatmul.mubr.bf16.gmra.mxu0 %v7225
      %v8037 = vpop.f32.mrf.mxu0
      %v8038 = vadd.f32 %v7877, %v8037
      %v8039 = vpop.f32.mrf.mxu0
      %v8040 = vpop.f32.mrf.mxu0
      %v8041 = vadd.f32 %v7880, %v8040
      %v8042 = vpop.f32.mrf.mxu0
      %8043 = vmatprep.mubr.bf16.mxu0 %v7341
      %8044 = vmatmul.mubr.bf16.gmra.mxu0 %v7229
      %v8045 = vpop.f32.mrf.mxu0
      %v8046 = vadd.f32 %v7885, %v8045
      %v8047 = vpop.f32.mrf.mxu0
      %v8048 = vpop.f32.mrf.mxu0
      %v8049 = vadd.f32 %v7888, %v8048
      %v8050 = vpop.f32.mrf.mxu0
      %8051 = vmatprep.mubr.bf16.mxu0 %v7345
      %8052 = vmatmul.mubr.bf16.gmra.mxu0 %v7233
      %v8053 = vpop.f32.mrf.mxu0
      %v8054 = vadd.f32 %v7893, %v8053
      %v8055 = vpop.f32.mrf.mxu0
      %v8056 = vpop.f32.mrf.mxu0
      %v8057 = vadd.f32 %v7896, %v8056
      %v8058 = vpop.f32.mrf.mxu0
      %8059 = vmatprep.mubr.bf16.mxu0 %v7349
      %8060 = vmatmul.mubr.bf16.gmra.mxu0 %v7237
      %v8061 = vpop.f32.mrf.mxu0
      %v8062 = vadd.f32 %v7901, %v8061
      %v8063 = vpop.f32.mrf.mxu0
      %v8064 = vpop.f32.mrf.mxu0
      %v8065 = vadd.f32 %v7904, %v8064
      %v8066 = vpop.f32.mrf.mxu0
      %8067 = vmatprep.mubr.bf16.mxu0 %v7353
      %8068 = vmatmul.mubr.bf16.gmra.mxu0 %v7241
      %v8069 = vpop.f32.mrf.mxu0
      %v8070 = vadd.f32 %v7909, %v8069
      %v8071 = vpop.f32.mrf.mxu0
      %v8072 = vpop.f32.mrf.mxu0
      %v8073 = vadd.f32 %v7912, %v8072
      %v8074 = vpop.f32.mrf.mxu0
      %8075 = vmatprep.mubr.bf16.mxu0 %v7357
      %8076 = vmatmul.mubr.bf16.gmra.mxu0 %v7245
      %v8077 = vpop.f32.mrf.mxu0
      %v8078 = vadd.f32 %v7917, %v8077
      %v8079 = vpop.f32.mrf.mxu0
      %v8080 = vpop.f32.mrf.mxu0
      %v8081 = vadd.f32 %v7920, %v8080
      %v8082 = vpop.f32.mrf.mxu0
      %8083 = vmatprep.mubr.bf16.mxu0 %v7361
      %8084 = vmatmul.mubr.bf16.gmra.mxu0 %v7249
      %v8085 = vpop.f32.mrf.mxu0
      %v8086 = vadd.f32 %v7925, %v8085
      %v8087 = vpop.f32.mrf.mxu0
      %v8088 = vpop.f32.mrf.mxu0
      %v8089 = vadd.f32 %v7928, %v8088
      %v8090 = vpop.f32.mrf.mxu0
      %8091 = vmatprep.mubr.bf16.mxu0 %v7365
      %8092 = vmatmul.mubr.bf16.gmra.mxu0 %v7253
      %v8093 = vpop.f32.mrf.mxu0
      %v8094 = vadd.f32 %v7933, %v8093
      %v8095 = vpop.f32.mrf.mxu0
      %v8096 = vpop.f32.mrf.mxu0
      %v8097 = vadd.f32 %v7936, %v8096
      %v8098 = vpop.f32.mrf.mxu0
      %8099 = vmatprep.mubr.bf16.mxu0 %v7369
      %8100 = vmatmul.mubr.bf16.gmra.mxu0 %v7257
      %v8101 = vpop.f32.mrf.mxu0
      %v8102 = vadd.f32 %v7941, %v8101
      %v8103 = vpop.f32.mrf.mxu0
      %v8104 = vpop.f32.mrf.mxu0
      %v8105 = vadd.f32 %v7944, %v8104
      %v8106 = vpop.f32.mrf.mxu0
      %8107 = vmatprep.mubr.bf16.mxu0 %v7373
      %8108 = vmatmul.mubr.bf16.gmra.mxu0 %v7261
      %v8109 = vpop.f32.mrf.mxu0
      %v8110 = vadd.f32 %v7949, %v8109
      %v8111 = vpop.f32.mrf.mxu0
      %v8112 = vpop.f32.mrf.mxu0
      %v8113 = vadd.f32 %v7952, %v8112
      %v8114 = vpop.f32.mrf.mxu0
      %8115 = vmatprep.mubr.bf16.mxu0 %v7377
      %8116 = vmatmul.mubr.bf16.gmra.mxu0 %v7265
      %v8117 = vpop.f32.mrf.mxu0
      %v8118 = vadd.f32 %v7957, %v8117
      %v8119 = vpop.f32.mrf.mxu0
      %v8120 = vpop.f32.mrf.mxu0
      %v8121 = vadd.f32 %v7960, %v8120
      %v8122 = vpop.f32.mrf.mxu0
      %8123 = vmatprep.mubr.bf16.mxu0 %v7381
      %8124 = vmatmul.mubr.bf16.gmra.mxu0 %v7269
      %v8125 = vpop.f32.mrf.mxu0
      %v8126 = vadd.f32 %v7965, %v8125
      %v8127 = vpop.f32.mrf.mxu0
      %v8128 = vpop.f32.mrf.mxu0
      %v8129 = vadd.f32 %v7968, %v8128
      %v8130 = vpop.f32.mrf.mxu0
      %8131 = vmatprep.mubr.bf16.mxu0 %v7385
      %8132 = vmatmul.mubr.bf16.gmra.mxu0 %v7273
      %v8133 = vpop.f32.mrf.mxu0
      %v8134 = vadd.f32 %v7973, %v8133
      %v8135 = vpop.f32.mrf.mxu0
      %v8136 = vpop.f32.mrf.mxu0
      %v8137 = vadd.f32 %v7976, %v8136
      %v8138 = vpop.f32.mrf.mxu0
      %8139 = vmatprep.mubr.bf16.mxu0 %v7389
      %8140 = vmatmul.mubr.bf16.gmra.mxu0 %v7277
      %v8141 = vpop.f32.mrf.mxu0
      %v8142 = vadd.f32 %v7981, %v8141
      %v8143 = vpop.f32.mrf.mxu0
      %v8144 = vpop.f32.mrf.mxu0
      %v8145 = vadd.f32 %v7984, %v8144
      %v8146 = vpop.f32.mrf.mxu0
      %8147 = vmatprep.mubr.bf16.mxu0 %v7393
      %8148 = vmatmul.mubr.bf16.gmra.mxu0 %v7281
      %v8149 = vpop.f32.mrf.mxu0
      %v8150 = vadd.f32 %v7989, %v8149
      %v8151 = vpop.f32.mrf.mxu0
      %v8152 = vpop.f32.mrf.mxu0
      %v8153 = vadd.f32 %v7992, %v8152
      %v8154 = vpop.f32.mrf.mxu0
      %8155 = vdwg.mxu0
      %8156 = vmatprep.subr.bf16.mxu0 0
      %8157 = vmatpush1.bf16.msra.mxu0 %v7793
      %8158 = vmatprep.subr.bf16.mxu0 0
      %8159 = vmatpush1.bf16.msra.mxu0 %v7792
      %8160 = vmatprep.subr.bf16.mxu0 0
      %8161 = vmatpush1.bf16.msra.mxu0 %v7791
      %8162 = vmatprep.subr.bf16.mxu0 0
      %8163 = vmatpush1.bf16.msra.mxu0 %v7790
      %8164 = vmatprep.subr.bf16.mxu0 0
      %8165 = vmatpush1.bf16.msra.mxu0 %v7789
      %8166 = vmatprep.subr.bf16.mxu0 0
      %8167 = vmatpush1.bf16.msra.mxu0 %v7788
      %8168 = vmatprep.subr.bf16.mxu0 0
      %8169 = vmatpush1.bf16.msra.mxu0 %v7787
      %8170 = vmatprep.subr.bf16.mxu0 0
      %8171 = vmatpush1.bf16.msra.mxu0 %v7786
      %8172 = vmatprep.subr.bf16.mxu0 0
      %8173 = vmatpush2.bf16.msra.mxu0 0
      %8174 = vmatprep.subr.bf16.mxu0 0
      %8175 = vmatpush2.bf16.msra.mxu0 0
      %8176 = vmatprep.subr.bf16.mxu0 0
      %8177 = vmatpush2.bf16.msra.mxu0 0
      %8178 = vmatprep.subr.bf16.mxu0 0
      %8179 = vmatpush2.bf16.msra.mxu0 0
      %8180 = vmatprep.subr.bf16.mxu0 0
      %8181 = vmatpush2.bf16.msra.mxu0 0
      %8182 = vmatprep.subr.bf16.mxu0 0
      %8183 = vmatpush2.bf16.msra.mxu0 0
      %8184 = vmatprep.subr.bf16.mxu0 0
      %8185 = vmatpush2.bf16.msra.mxu0 0
      %8186 = vmatprep.subr.bf16.mxu0 0
      %8187 = vmatpush2.bf16.msra.mxu0 0
      %8188 = vmatprep.mubr.bf16.mxu0 0
      %8189 = vmatmul.mubr.bf16.gmra.mxu0 %v7445
      %v8190 = vpop.f32.mrf.mxu0
      %v8191 = vadd.f32 %v8030, %v8190
      %v8192 = vpop.f32.mrf.mxu0
      %v8193 = vpop.f32.mrf.mxu0
      %v8194 = vadd.f32 %v8033, %v8193
      %v8195 = vpop.f32.mrf.mxu0
      %8196 = vmatprep.mubr.bf16.mxu0 0
      %8197 = vmatmul.mubr.bf16.gmra.mxu0 %v7449
      %v8198 = vpop.f32.mrf.mxu0
      %v8199 = vadd.f32 %v8038, %v8198
      %v8200 = vpop.f32.mrf.mxu0
      %v8201 = vpop.f32.mrf.mxu0
      %v8202 = vadd.f32 %v8041, %v8201
      %v8203 = vpop.f32.mrf.mxu0
      %8204 = vmatprep.mubr.bf16.mxu0 0
      %8205 = vmatmul.mubr.bf16.gmra.mxu0 %v7453
      %v8206 = vpop.f32.mrf.mxu0
      %v8207 = vadd.f32 %v8046, %v8206
      %v8208 = vpop.f32.mrf.mxu0
      %v8209 = vpop.f32.mrf.mxu0
      %v8210 = vadd.f32 %v8049, %v8209
      %v8211 = vpop.f32.mrf.mxu0
      %8212 = vmatprep.mubr.bf16.mxu0 0
      %8213 = vmatmul.mubr.bf16.gmra.mxu0 %v7457
      %v8214 = vpop.f32.mrf.mxu0
      %v8215 = vadd.f32 %v8054, %v8214
      %v8216 = vpop.f32.mrf.mxu0
      %v8217 = vpop.f32.mrf.mxu0
      %v8218 = vadd.f32 %v8057, %v8217
      %v8219 = vpop.f32.mrf.mxu0
      %8220 = vmatprep.mubr.bf16.mxu0 0
      %8221 = vmatmul.mubr.bf16.gmra.mxu0 %v7461
      %v8222 = vpop.f32.mrf.mxu0
      %v8223 = vadd.f32 %v8062, %v8222
      %v8224 = vpop.f32.mrf.mxu0
      %v8225 = vpop.f32.mrf.mxu0
      %v8226 = vadd.f32 %v8065, %v8225
      %v8227 = vpop.f32.mrf.mxu0
      %8228 = vmatprep.mubr.bf16.mxu0 0
      %8229 = vmatmul.mubr.bf16.gmra.mxu0 %v7465
      %v8230 = vpop.f32.mrf.mxu0
      %v8231 = vadd.f32 %v8070, %v8230
      %v8232 = vpop.f32.mrf.mxu0
      %v8233 = vpop.f32.mrf.mxu0
      %v8234 = vadd.f32 %v8073, %v8233
      %v8235 = vpop.f32.mrf.mxu0
      %8236 = vmatprep.mubr.bf16.mxu0 0
      %8237 = vmatmul.mubr.bf16.gmra.mxu0 %v7469
      %v8238 = vpop.f32.mrf.mxu0
      %v8239 = vadd.f32 %v8078, %v8238
      %v8240 = vpop.f32.mrf.mxu0
      %v8241 = vpop.f32.mrf.mxu0
      %v8242 = vadd.f32 %v8081, %v8241
      %v8243 = vpop.f32.mrf.mxu0
      %8244 = vmatprep.mubr.bf16.mxu0 0
      %8245 = vmatmul.mubr.bf16.gmra.mxu0 %v7473
      %v8246 = vpop.f32.mrf.mxu0
      %v8247 = vadd.f32 %v8086, %v8246
      %v8248 = vpop.f32.mrf.mxu0
      %v8249 = vpop.f32.mrf.mxu0
      %v8250 = vadd.f32 %v8089, %v8249
      %v8251 = vpop.f32.mrf.mxu0
      %8252 = vmatprep.mubr.bf16.mxu0 0
      %8253 = vmatmul.mubr.bf16.gmra.mxu0 %v7477
      %v8254 = vpop.f32.mrf.mxu0
      %v8255 = vadd.f32 %v8094, %v8254
      %v8256 = vpop.f32.mrf.mxu0
      %v8257 = vpop.f32.mrf.mxu0
      %v8258 = vadd.f32 %v8097, %v8257
      %v8259 = vpop.f32.mrf.mxu0
      %8260 = vmatprep.mubr.bf16.mxu0 0
      %8261 = vmatmul.mubr.bf16.gmra.mxu0 %v7481
      %v8262 = vpop.f32.mrf.mxu0
      %v8263 = vadd.f32 %v8102, %v8262
      %v8264 = vpop.f32.mrf.mxu0
      %v8265 = vpop.f32.mrf.mxu0
      %v8266 = vadd.f32 %v8105, %v8265
      %v8267 = vpop.f32.mrf.mxu0
      %8268 = vmatprep.mubr.bf16.mxu0 0
      %8269 = vmatmul.mubr.bf16.gmra.mxu0 %v7485
      %v8270 = vpop.f32.mrf.mxu0
      %v8271 = vadd.f32 %v8110, %v8270
      %v8272 = vpop.f32.mrf.mxu0
      %v8273 = vpop.f32.mrf.mxu0
      %v8274 = vadd.f32 %v8113, %v8273
      %v8275 = vpop.f32.mrf.mxu0
      %8276 = vmatprep.mubr.bf16.mxu0 0
      %8277 = vmatmul.mubr.bf16.gmra.mxu0 %v7489
      %v8278 = vpop.f32.mrf.mxu0
      %v8279 = vadd.f32 %v8118, %v8278
      %v8280 = vpop.f32.mrf.mxu0
      %v8281 = vpop.f32.mrf.mxu0
      %v8282 = vadd.f32 %v8121, %v8281
      %v8283 = vpop.f32.mrf.mxu0
      %8284 = vmatprep.mubr.bf16.mxu0 0
      %8285 = vmatmul.mubr.bf16.gmra.mxu0 %v7493
      %v8286 = vpop.f32.mrf.mxu0
      %v8287 = vadd.f32 %v8126, %v8286
      %v8288 = vpop.f32.mrf.mxu0
      %v8289 = vpop.f32.mrf.mxu0
      %v8290 = vadd.f32 %v8129, %v8289
      %v8291 = vpop.f32.mrf.mxu0
      %8292 = vmatprep.mubr.bf16.mxu0 0
      %8293 = vmatmul.mubr.bf16.gmra.mxu0 %v7497
      %v8294 = vpop.f32.mrf.mxu0
      %v8295 = vadd.f32 %v8134, %v8294
      %v8296 = vpop.f32.mrf.mxu0
      %v8297 = vpop.f32.mrf.mxu0
      %v8298 = vadd.f32 %v8137, %v8297
      %v8299 = vpop.f32.mrf.mxu0
      %8300 = vmatprep.mubr.bf16.mxu0 0
      %8301 = vmatmul.mubr.bf16.gmra.mxu0 %v7501
      %v8302 = vpop.f32.mrf.mxu0
      %v8303 = vadd.f32 %v8142, %v8302
      %v8304 = vpop.f32.mrf.mxu0
      %v8305 = vpop.f32.mrf.mxu0
      %v8306 = vadd.f32 %v8145, %v8305
      %v8307 = vpop.f32.mrf.mxu0
      %8308 = vmatprep.mubr.bf16.mxu0 0
      %8309 = vmatmul.mubr.bf16.gmra.mxu0 %v7505
      %v8310 = vpop.f32.mrf.mxu0
      %v8311 = vadd.f32 %v8150, %v8310
      %v8312 = vpop.f32.mrf.mxu0
      %v8313 = vpop.f32.mrf.mxu0
      %v8314 = vadd.f32 %v8153, %v8313
      %v8315 = vpop.f32.mrf.mxu0
      %8316 = vdwg.mxu0
      %v8317 = vadd.f32 %v361, %v8191
      %v8318 = vadd.f32 %v362, %v8194
      %v8319 = vadd.f32 %v363, %v8199
      %v8320 = vadd.f32 %v364, %v8202
      %v8321 = vadd.f32 %v365, %v8207
      %v8322 = vadd.f32 %v366, %v8210
      %v8323 = vadd.f32 %v367, %v8215
      %v8324 = vadd.f32 %v368, %v8218
      %v8325 = vadd.f32 %v369, %v8223
      %v8326 = vadd.f32 %v370, %v8226
      %v8327 = vadd.f32 %v371, %v8231
      %v8328 = vadd.f32 %v372, %v8234
      %v8329 = vadd.f32 %v373, %v8239
      %v8330 = vadd.f32 %v374, %v8242
      %v8331 = vadd.f32 %v375, %v8247
      %v8332 = vadd.f32 %v376, %v8250
      %v8333 = vadd.f32 %v377, %v8255
      %v8334 = vadd.f32 %v378, %v8258
      %v8335 = vadd.f32 %v379, %v8263
      %v8336 = vadd.f32 %v380, %v8266
      %v8337 = vadd.f32 %v381, %v8271
      %v8338 = vadd.f32 %v382, %v8274
      %v8339 = vadd.f32 %v383, %v8279
      %v8340 = vadd.f32 %v384, %v8282
      %v8341 = vadd.f32 %v385, %v8287
      %v8342 = vadd.f32 %v386, %v8290
      %v8343 = vadd.f32 %v387, %v8295
      %v8344 = vadd.f32 %v388, %v8298
      %v8345 = vadd.f32 %v389, %v8303
      %v8346 = vadd.f32 %v390, %v8306
      %v8347 = vadd.f32 %v391, %v8311
      %v8348 = vadd.f32 %v392, %v8314
      %8349 = vst.msk [vmem:[%s359] sm:$0xff] %vm1780, %v8317
      %8350 = vst.msk [vmem:[%s359 + $0x8] sm:$0xff] %vm1780, %v8318
      %8351 = vst.msk [vmem:[%s359 + $0x10] sm:$0xff] %vm1780, %v8319
      %8352 = vst.msk [vmem:[%s359 + $0x18] sm:$0xff] %vm1780, %v8320
      %8353 = vst.msk [vmem:[%s359 + $0x20] sm:$0xff] %vm1780, %v8321
      %8354 = vst.msk [vmem:[%s359 + $0x28] sm:$0xff] %vm1780, %v8322
      %8355 = vst.msk [vmem:[%s359 + $0x30] sm:$0xff] %vm1780, %v8323
      %8356 = vst.msk [vmem:[%s359 + $0x38] sm:$0xff] %vm1780, %v8324
      %8357 = vst.msk [vmem:[%s359 + $0x40] sm:$0xff] %vm1780, %v8325
      %8358 = vst.msk [vmem:[%s359 + $0x48] sm:$0xff] %vm1780, %v8326
      %8359 = vst.msk [vmem:[%s359 + $0x50] sm:$0xff] %vm1780, %v8327
      %8360 = vst.msk [vmem:[%s359 + $0x58] sm:$0xff] %vm1780, %v8328
      %8361 = vst.msk [vmem:[%s359 + $0x60] sm:$0xff] %vm1780, %v8329
      %8362 = vst.msk [vmem:[%s359 + $0x68] sm:$0xff] %vm1780, %v8330
      %8363 = vst.msk [vmem:[%s359 + $0x70] sm:$0xff] %vm1780, %v8331
      %8364 = vst.msk [vmem:[%s359 + $0x78] sm:$0xff] %vm1780, %v8332
      %8365 = vst.msk [vmem:[%s359 + $0x80] sm:$0xff] %vm1780, %v8333
      %8366 = vst.msk [vmem:[%s359 + $0x88] sm:$0xff] %vm1780, %v8334
      %8367 = vst.msk [vmem:[%s359 + $0x90] sm:$0xff] %vm1780, %v8335
      %8368 = vst.msk [vmem:[%s359 + $0x98] sm:$0xff] %vm1780, %v8336
      %8369 = vst.msk [vmem:[%s359 + $0xa0] sm:$0xff] %vm1780, %v8337
      %8370 = vst.msk [vmem:[%s359 + $0xa8] sm:$0xff] %vm1780, %v8338
      %8371 = vst.msk [vmem:[%s359 + $0xb0] sm:$0xff] %vm1780, %v8339
      %8372 = vst.msk [vmem:[%s359 + $0xb8] sm:$0xff] %vm1780, %v8340
      %8373 = vst.msk [vmem:[%s359 + $0xc0] sm:$0xff] %vm1780, %v8341
      %8374 = vst.msk [vmem:[%s359 + $0xc8] sm:$0xff] %vm1780, %v8342
      %8375 = vst.msk [vmem:[%s359 + $0xd0] sm:$0xff] %vm1780, %v8343
      %8376 = vst.msk [vmem:[%s359 + $0xd8] sm:$0xff] %vm1780, %v8344
      %8377 = vst.msk [vmem:[%s359 + $0xe0] sm:$0xff] %vm1780, %v8345
      %8378 = vst.msk [vmem:[%s359 + $0xe8] sm:$0xff] %vm1780, %v8346
      %8379 = vst.msk [vmem:[%s359 + $0xf0] sm:$0xff] %vm1780, %v8347
      %8380 = vst.msk [vmem:[%s359 + $0xf8] sm:$0xff] %vm1780, %v8348
      %p8381 = scmp.lt.s32.totalorder %s21, 1
      %s8382 = scalar_select %p8381, %s21, 1
      %s8383 = smul.addr %s8382, 32
      %s8384 = smul.addr %s8383, 8
      %s8385 = scalar_lea.vmem %s10, %s8384
      // Predicated region
      $region61: #{tpu_custom_call.1} parent=59 // pred_check
        %p8386 = pneg %p254
      $region62: #{tpu_custom_call.1} parent=59 // pred_check_branch
        %8388 = sbr.rel (%p8386) target = $region64
      $region63: #{tpu_custom_call.1} parent=59 // pred_region
        _
      $region64: #{tpu_custom_call.1} parent=59 // pred_fallthru
        _
    $region60: #{tpu_custom_call.1} parent=5 // pred_fallthru
      _
    %p8389 = scmp.le.s32.totalorder 2, %s16
    // Predicated region
    $region65: #{tpu_custom_call.1} parent=5 // pred_check
      %p8390 = pneg %p8389
    $region66: #{tpu_custom_call.1} parent=5 // pred_check_branch
      %8392 = sbr.rel (%p8390) target = $region68
    $region67: #{tpu_custom_call.1} parent=5 // pred_region
      %s8393 = ssub.s32 %s16, 2
      // Predicated region
      $region69: #{tpu_custom_call.1} parent=67 // pred_check
        %p8394 = pneg %p260
      $region70: #{tpu_custom_call.1} parent=67 // pred_check_branch
        %8396 = sbr.rel (%p8394) target = $region72
      $region71: #{tpu_custom_call.1} parent=67 // pred_region
        %p8397 = scmp.lt.s32.totalorder %s22, 1
        %s8398 = scalar_select %p8397, %s22, 1
        %s8399 = smul.addr %s8398, 32
        %s8400 = smul.addr %s8399, 8
        %s8401 = scalar_lea.vmem %s10, %s8400
      $region72: #{tpu_custom_call.1} parent=67 // pred_fallthru
        _
    $region68: #{tpu_custom_call.1} parent=5 // pred_fallthru
      _
  $region6: #{tpu_custom_call.1} parent=0 // loop_footer
    %s20 = sadd.s32 1, %s16
  $region7: #{tpu_custom_call.1} parent=0 // loop_footer_branch
    %15 = sbr.rel target = $region3
  $region8: #{tpu_custom_call.1} parent=0 // loop_exit
    _

</llo_original>
